<compile_context>
chip_gen: v5e
topology: v5e:2x2
jax: 0.10.0
libtpu: 0.0.40
codegen_flags: <defaults>
</compile_context>

<pallas_src>
import jax
import jax.numpy as jnp
from jax.experimental import pallas as pl
from jax.experimental.pallas import tpu as pltpu

_EPS = 1e-5
_CP = 128          # lane-padded channel width


def _round_up(x, m):
    return ((x + m - 1) // m) * m


def _vmem_limit(block_bytes, scratch_bytes):
    # double-buffered pipelined blocks + scratch + headroom (computed, not a blanket 48 MiB).
    return int(2 * sum(block_bytes) + sum(scratch_bytes) + (8 << 20))


def residual_block_forward(x_nchw, params):
    """x_nchw: (N, Cin, H, W) float32.  Returns (N, Cout, H, W) float32 (train-mode BN)."""
    w1, w2, wsc, g1, b1, g2, b2, gs, bs = params
    N, Cin, H, W = x_nchw.shape
    Cout = w1.shape[0]
    CP = _CP
    assert Cin <= CP and Cout <= CP

    Hp, Wp = H + 2, W + 2
    Mimg = Hp * Wp                         # rows per image tile (incl. zero border)
    G = _round_up(Wp + 1, 16)              # per-image guard rows, bf16 sublane-pack aligned
    assert G >= Wp + 1                     # flat-shift im2col invariant: all taps stay in-tile
    Rimg = Mimg + 2 * G
    cnt = float(N * H * W)                 # BN population: valid positions only
    starts = [G + (ky - 1) * Wp + (kx - 1) for ky in range(3) for kx in range(3)]
    fp32, bf16 = jnp.float32, jnp.bfloat16
    fWp, fH, fW = float(Wp), float(H), float(W)

    # ---------------- glue: layout conversion & weight packing (plain JAX) ----------------
    x_nhwc = jnp.transpose(x_nchw, (0, 2, 3, 1)).astype(fp32)
    xp = jnp.pad(x_nhwc, ((0, 0), (1, 1), (1, 1), (0, CP - Cin)))           # (N,Hp,Wp,CP)
    xf = jnp.pad(xp.reshape(N, Mimg, CP), ((0, 0), (G, G), (0, 0))).astype(bf16)  # (N,Rimg,CP)

    def stack3x3(w, cin, cout):            # (cout,cin,3,3) -> (9*CP, CP), row = tap*CP + cin
        wk = jnp.transpose(w, (2, 3, 1, 0)).reshape(9, cin, cout)
        wk = jnp.pad(wk, ((0, 0), (0, CP - cin), (0, CP - cout)))
        return wk.reshape(9 * CP, CP)

    w1s = stack3x3(w1, Cin, Cout)
    w2s = stack3x3(w2, Cout, Cout).astype(bf16)
    wsc2 = jnp.transpose(wsc[:, :, 0, 0], (1, 0))                           # (Cin, Cout)
    wsc_col = jnp.zeros((9 * CP, CP), fp32).at[4 * CP:4 * CP + Cin, :Cout].set(wsc2)
    wbig1 = jnp.concatenate([w1s, wsc_col], axis=1).astype(bf16)            # (9CP, 2CP)

    # ---------------- in-kernel helpers ----------------
    def row_mask(width):
        # 1.0 at valid (non-border) flat positions of the per-image Hp*Wp row index.
        m = jax.lax.broadcasted_iota(jnp.int32, (Mimg, width), 0).astype(fp32)
        hp = jnp.floor((m + 0.5) * (1.0 / fWp))      # div-free row/col decode (VPU only)
        wp = m - hp * fWp
        ok = (hp >= 1.0) & (hp <= fH) & (wp >= 1.0) & (wp <= fW)
        return ok.astype(fp32)

    def masked_stats(y, mask, width):
        ym = y * mask
        s = jnp.sum(ym, axis=0, keepdims=True)
        ss = jnp.sum(ym * y, axis=0, keepdims=True)
        return jnp.concatenate([s, ss, jnp.zeros((6, width), fp32)], axis=0)   # (8, width)

    # ---------------- kernels ----------------
    def conv1_kernel(xf_ref, w1_ref, y1ys_ref, st_ref, p_ref):
        # im2col: 9 row-shifted bf16 tap slices read straight from the ref (no casts).
        for t, s0 in enumerate(starts):
            p_ref[:, t * CP:(t + 1) * CP] = xf_ref[0, s0:s0 + Mimg, :]
        # one fat K=9*CP bf16 matmul, f32 acc: lanes [:CP]=conv1, [CP:]=1x1 shortcut.
        y1ys = jnp.dot(p_ref[...], w1_ref[...], preferred_element_type=fp32)
        y1ys_ref[0] = y1ys
        st_ref[0] = masked_stats(y1ys, row_mask(2 * CP), 2 * CP)

    def conv2_kernel(y1ys_ref, w2_ref, c1_ref, yb_ref, st_ref, p_ref, ypad_ref):
        maskf = row_mask(CP)
        # BN1 (global folded scale/shift) + ReLU; border rows zeroed = conv2's zero padding.
        y1 = y1ys_ref[0, :, 0:CP] * c1_ref[0:1, :] + c1_ref[1:2, :]
        y1 = jnp.maximum(y1, 0.0) * maskf
        # conv2 input buffer (bf16): zero only the guard rows, write the interior once.
        ypad_ref[0:G, :] = jnp.zeros((G, CP), bf16)
        ypad_ref[G + Mimg:Rimg, :] = jnp.zeros((Rimg - G - Mimg, CP), bf16)
        ypad_ref[G:G + Mimg, :] = y1.astype(bf16)
        for t, s0 in enumerate(starts):
            p_ref[:, t * CP:(t + 1) * CP] = ypad_ref[s0:s0 + Mimg, :]
        y2 = jnp.dot(p_ref[...], w2_ref[...], preferred_element_type=fp32)   # (Mimg, CP)
        st_ref[0] = masked_stats(y2, maskf, CP)
        # lanes [:CP] = raw conv2 output (BN2 stats not global yet), [CP:] = BN'ed shortcut.
        yb_ref[0, :, 0:CP] = y2
        yb_ref[0, :, CP:2 * CP] = (y1ys_ref[0, :, CP:2 * CP] * c1_ref[2:3, :]
                                   + c1_ref[3:4, :])

    def fuse_kernel(yb_ref, c2_ref, o_ref):
        y2 = yb_ref[0, :, 0:CP]
        ysc = yb_ref[0, :, CP:2 * CP]
        o_ref[0] = jnp.maximum(y2 * c2_ref[0:1, :] + c2_ref[1:2, :] + ysc, 0.0)

    # ---------------- pass A ----------------
    limA = _vmem_limit([Rimg * CP * 2, 9 * CP * 2 * CP * 2,
                        Mimg * 2 * CP * 4, 8 * 2 * CP * 4],
                       [Mimg * 9 * CP * 2])
    y1ys, stats1 = pl.pallas_call(
        conv1_kernel,
        out_shape=(jax.ShapeDtypeStruct((N, Mimg, 2 * CP), fp32),
                   jax.ShapeDtypeStruct((N, 8, 2 * CP), fp32)),
        grid=(N,),
        in_specs=[pl.BlockSpec((1, Rimg, CP), lambda n: (n, 0, 0)),
                  pl.BlockSpec((9 * CP, 2 * CP), lambda n: (0, 0))],
        out_specs=(pl.BlockSpec((1, Mimg, 2 * CP), lambda n: (n, 0, 0)),
                   pl.BlockSpec((1, 8, 2 * CP), lambda n: (n, 0, 0))),
        scratch_shapes=[pltpu.VMEM((Mimg, 9 * CP), bf16)],
        compiler_params=pltpu.CompilerParams(
            dimension_semantics=("parallel",), vmem_limit_bytes=limA),
    )(xf, wbig1)

    # ---- tiny cross-tile BN reductions + folded scale/shift (plain JAX, 256-vector math) ----
    def pad_vec(v, fill):
        return jnp.full((CP,), fill, fp32).at[:Cout].set(v.astype(fp32))

    def bn_scale_shift(s, ss, gamma_p, beta_p):
        mean = s / cnt
        var = jnp.maximum(ss / cnt - mean * mean, 0.0)     # clamp one-pass variance >= 0
        scale = gamma_p * jax.lax.rsqrt(var + _EPS)
        return scale, beta_p - mean * scale

    s1 = jnp.sum(stats1[:, 0, :], axis=0)
    q1 = jnp.sum(stats1[:, 1, :], axis=0)
    sc1, sh1 = bn_scale_shift(s1[:CP], q1[:CP], pad_vec(g1, 1.0), pad_vec(b1, 0.0))
    scs, shs = bn_scale_shift(s1[CP:], q1[CP:], pad_vec(gs, 1.0), pad_vec(bs, 0.0))
    c1 = (jnp.zeros((8, CP), fp32)
          .at[0].set(sc1).at[1].set(sh1).at[2].set(scs).at[3].set(shs))

    # ---------------- pass B ----------------
    limB = _vmem_limit([Mimg * 2 * CP * 4, 9 * CP * CP * 2, 8 * CP * 4,
                        Mimg * 2 * CP * 4, 8 * CP * 4],
                       [Mimg * 9 * CP * 2, Rimg * CP * 2])
    y2ysc, stats2 = pl.pallas_call(
        conv2_kernel,
        out_shape=(jax.ShapeDtypeStruct((N, Mimg, 2 * CP), fp32),
                   jax.ShapeDtypeStruct((N, 8, CP), fp32)),
        grid=(N,),
        in_specs=[pl.BlockSpec((1, Mimg, 2 * CP), lambda n: (n, 0, 0)),
                  pl.BlockSpec((9 * CP, CP), lambda n: (0, 0)),
                  pl.BlockSpec((8, CP), lambda n: (0, 0))],
        out_specs=(pl.BlockSpec((1, Mimg, 2 * CP), lambda n: (n, 0, 0)),
                   pl.BlockSpec((1, 8, CP), lambda n: (n, 0, 0))),
        scratch_shapes=[pltpu.VMEM((Mimg, 9 * CP), bf16),
                        pltpu.VMEM((Rimg, CP), bf16)],
        compiler_params=pltpu.CompilerParams(
            dimension_semantics=("parallel",), vmem_limit_bytes=limB),
    )(y1ys, w2s, c1)

    s2 = jnp.sum(stats2[:, 0, :], axis=0)
    q2 = jnp.sum(stats2[:, 1, :], axis=0)
    sc2, sh2 = bn_scale_shift(s2, q2, pad_vec(g2, 1.0), pad_vec(b2, 0.0))
    c2 = jnp.zeros((8, CP), fp32).at[0].set(sc2).at[1].set(sh2)

    # ---------------- pass C ----------------
    limC = _vmem_limit([Mimg * 2 * CP * 4, 8 * CP * 4, Mimg * CP * 4], [])
    out_flat = pl.pallas_call(
        fuse_kernel,
        out_shape=jax.ShapeDtypeStruct((N, Mimg, CP), fp32),
        grid=(N,),
        in_specs=[pl.BlockSpec((1, Mimg, 2 * CP), lambda n: (n, 0, 0)),
                  pl.BlockSpec((8, CP), lambda n: (0, 0))],
        out_specs=pl.BlockSpec((1, Mimg, CP), lambda n: (n, 0, 0)),
        compiler_params=pltpu.CompilerParams(
            dimension_semantics=("parallel",), vmem_limit_bytes=limC),
    )(y2ysc, c2)

    # crop the zero border / padded lanes and return NCHW.
    out = out_flat.reshape(N, Hp, Wp, CP)[:, 1:H + 1, 1:W + 1, :Cout]
    return jnp.transpose(out, (0, 3, 1, 2))


def _reference_forward(x, params):
    """Pure-JAX f32 reference matching the PyTorch forward (train-mode BN)."""
    w1, w2, wsc, g1, b1, g2, b2, gs, bs = params

    def conv(y, w, pad):
        return jax.lax.conv_general_dilated(
            y, w, (1, 1), [(pad, pad), (pad, pad)],
            dimension_numbers=("NCHW", "OIHW", "NCHW"))

    def bn(y, g, b):
        mean = jnp.mean(y, axis=(0, 2, 3), keepdims=True)
        var = jnp.mean((y - mean) ** 2, axis=(0, 2, 3), keepdims=True)
        return ((y - mean) * jax.lax.rsqrt(var + _EPS)
                * g.reshape(1, -1, 1, 1) + b.reshape(1, -1, 1, 1))

    out = jax.nn.relu(bn(conv(x, w1, 1), g1, b1))
    out = bn(conv(out, w2, 1), g2, b2)
    sc = bn(conv(x, wsc, 0), gs, bs)
    return jax.nn.relu(out + sc)


if __name__ == "__main__":
    N, Cin, Cout, H, W = 2, 4, 8, 16, 16   # stride=1, Cin != Cout -> conv shortcut path

    key = jax.random.PRNGKey(0)
    k0, k1, k2, k3 = jax.random.split(key, 4)
    x = jax.random.normal(k0, (N, Cin, H, W), jnp.float32)
    w1 = jax.random.normal(k1, (Cout, Cin, 3, 3), jnp.float32) * 0.1
    w2 = jax.random.normal(k2, (Cout, Cout, 3, 3), jnp.float32) * 0.1
    wsc = jax.random.normal(k3, (Cout, Cin, 1, 1), jnp.float32) * 0.1
    # BatchNorm affine params at PyTorch default init (weight=1, bias=0).
    g1 = jnp.ones((Cout,), jnp.float32); b1 = jnp.zeros((Cout,), jnp.float32)
    g2 = jnp.ones((Cout,), jnp.float32); b2 = jnp.zeros((Cout,), jnp.float32)
    gs = jnp.ones((Cout,), jnp.float32); bs = jnp.zeros((Cout,), jnp.float32)
    params = (w1, w2, wsc, g1, b1, g2, b2, gs, bs)

    out = residual_block_forward(x, params)
    out = jax.block_until_ready(out)

    ref = _reference_forward(x, params)
    assert out.shape == (N, Cout, H, W), out.shape
    err = float(jnp.max(jnp.abs(out - ref)))
    # bf16 input / bf16 MXU operands vs. f32 reference -> loosened tolerance (intended).
    assert jnp.allclose(out, ref, atol=5e-2, rtol=5e-2), f"max abs err {err}"
    print("KERNEL_OK")
</pallas_src>

<mosaic_0001>
module attributes {stable_mosaic.version = 11 : i64} {
  func.func @conv1_kernel(%arg0: i32, %arg1: memref<1x388x128xbf16, #tpu.memory_space<vmem>>, %arg2: memref<1152x256xbf16, #tpu.memory_space<vmem>>, %arg3: memref<1x324x256xf32, #tpu.memory_space<vmem>>, %arg4: memref<1x8x256xf32, #tpu.memory_space<vmem>>, %arg5: memref<324x1152xbf16, #tpu.memory_space<vmem>>) attributes {dimension_semantics = [#tpu.dimension_semantics<parallel>], iteration_bounds = array<i64: 2>, scalar_prefetch = 0 : i64, scratch_operands = 1 : i64, tpu.core_type = #tpu.core_type<tc>, window_params = [{transform_indices = @transform_0, window_bounds = array<i64: 1, 388, 128>}, {pipeline_mode = #tpu.pipeline_mode<synchronous>, transform_indices = @transform_1, window_bounds = array<i64: 1152, 256>}, {transform_indices = @transform_2, window_bounds = array<i64: 1, 324, 256>}, {transform_indices = @transform_3, window_bounds = array<i64: 1, 8, 256>}]} {
    %c0 = arith.constant 0 : index
    %c13 = arith.constant 13 : index
    %c0_0 = arith.constant 0 : index
    %0 = vector.load %arg1[%c0, %c13, %c0_0] : memref<1x388x128xbf16, #tpu.memory_space<vmem>>, vector<1x324x128xbf16>
    %1 = vector.shape_cast %0 : vector<1x324x128xbf16> to vector<324x128xbf16>
    %c0_1 = arith.constant 0 : index
    %c0_2 = arith.constant 0 : index
    %2 = vector.load %arg5[%c0_1, %c0_2] : memref<324x1152xbf16, #tpu.memory_space<vmem>>, vector<324x128xbf16>
    tpu.vector_store %arg5[%c0_1, %c0_2], %1 {strides = array<i32>} : memref<324x1152xbf16, #tpu.memory_space<vmem>>, vector<324x128xbf16>,
    %c0_3 = arith.constant 0 : index
    %c14 = arith.constant 14 : index
    %c0_4 = arith.constant 0 : index
    %3 = vector.load %arg1[%c0_3, %c14, %c0_4] : memref<1x388x128xbf16, #tpu.memory_space<vmem>>, vector<1x324x128xbf16>
    %4 = vector.shape_cast %3 : vector<1x324x128xbf16> to vector<324x128xbf16>
    %c0_5 = arith.constant 0 : index
    %c128 = arith.constant 128 : index
    %5 = vector.load %arg5[%c0_5, %c128] : memref<324x1152xbf16, #tpu.memory_space<vmem>>, vector<324x128xbf16>
    tpu.vector_store %arg5[%c0_5, %c128], %4 {strides = array<i32>} : memref<324x1152xbf16, #tpu.memory_space<vmem>>, vector<324x128xbf16>,
    %c0_6 = arith.constant 0 : index
    %c15 = arith.constant 15 : index
    %c0_7 = arith.constant 0 : index
    %6 = vector.load %arg1[%c0_6, %c15, %c0_7] : memref<1x388x128xbf16, #tpu.memory_space<vmem>>, vector<1x324x128xbf16>
    %7 = vector.shape_cast %6 : vector<1x324x128xbf16> to vector<324x128xbf16>
    %c0_8 = arith.constant 0 : index
    %c256 = arith.constant 256 : index
    %8 = vector.load %arg5[%c0_8, %c256] : memref<324x1152xbf16, #tpu.memory_space<vmem>>, vector<324x128xbf16>
    tpu.vector_store %arg5[%c0_8, %c256], %7 {strides = array<i32>} : memref<324x1152xbf16, #tpu.memory_space<vmem>>, vector<324x128xbf16>,
    %c0_9 = arith.constant 0 : index
    %c31 = arith.constant 31 : index
    %c0_10 = arith.constant 0 : index
    %9 = vector.load %arg1[%c0_9, %c31, %c0_10] : memref<1x388x128xbf16, #tpu.memory_space<vmem>>, vector<1x324x128xbf16>
    %10 = vector.shape_cast %9 : vector<1x324x128xbf16> to vector<324x128xbf16>
    %c0_11 = arith.constant 0 : index
    %c384 = arith.constant 384 : index
    %11 = vector.load %arg5[%c0_11, %c384] : memref<324x1152xbf16, #tpu.memory_space<vmem>>, vector<324x128xbf16>
    tpu.vector_store %arg5[%c0_11, %c384], %10 {strides = array<i32>} : memref<324x1152xbf16, #tpu.memory_space<vmem>>, vector<324x128xbf16>,
    %c0_12 = arith.constant 0 : index
    %c32 = arith.constant 32 : index
    %c0_13 = arith.constant 0 : index
    %12 = vector.load %arg1[%c0_12, %c32, %c0_13] : memref<1x388x128xbf16, #tpu.memory_space<vmem>>, vector<1x324x128xbf16>
    %13 = vector.shape_cast %12 : vector<1x324x128xbf16> to vector<324x128xbf16>
    %c0_14 = arith.constant 0 : index
    %c512 = arith.constant 512 : index
    %14 = vector.load %arg5[%c0_14, %c512] : memref<324x1152xbf16, #tpu.memory_space<vmem>>, vector<324x128xbf16>
    tpu.vector_store %arg5[%c0_14, %c512], %13 {strides = array<i32>} : memref<324x1152xbf16, #tpu.memory_space<vmem>>, vector<324x128xbf16>,
    %c0_15 = arith.constant 0 : index
    %c33 = arith.constant 33 : index
    %c0_16 = arith.constant 0 : index
    %15 = vector.load %arg1[%c0_15, %c33, %c0_16] : memref<1x388x128xbf16, #tpu.memory_space<vmem>>, vector<1x324x128xbf16>
    %16 = vector.shape_cast %15 : vector<1x324x128xbf16> to vector<324x128xbf16>
    %c0_17 = arith.constant 0 : index
    %c640 = arith.constant 640 : index
    %17 = vector.load %arg5[%c0_17, %c640] : memref<324x1152xbf16, #tpu.memory_space<vmem>>, vector<324x128xbf16>
    tpu.vector_store %arg5[%c0_17, %c640], %16 {strides = array<i32>} : memref<324x1152xbf16, #tpu.memory_space<vmem>>, vector<324x128xbf16>,
    %c0_18 = arith.constant 0 : index
    %c49 = arith.constant 49 : index
    %c0_19 = arith.constant 0 : index
    %18 = vector.load %arg1[%c0_18, %c49, %c0_19] : memref<1x388x128xbf16, #tpu.memory_space<vmem>>, vector<1x324x128xbf16>
    %19 = vector.shape_cast %18 : vector<1x324x128xbf16> to vector<324x128xbf16>
    %c0_20 = arith.constant 0 : index
    %c768 = arith.constant 768 : index
    %20 = vector.load %arg5[%c0_20, %c768] : memref<324x1152xbf16, #tpu.memory_space<vmem>>, vector<324x128xbf16>
    tpu.vector_store %arg5[%c0_20, %c768], %19 {strides = array<i32>} : memref<324x1152xbf16, #tpu.memory_space<vmem>>, vector<324x128xbf16>,
    %c0_21 = arith.constant 0 : index
    %c50 = arith.constant 50 : index
    %c0_22 = arith.constant 0 : index
    %21 = vector.load %arg1[%c0_21, %c50, %c0_22] : memref<1x388x128xbf16, #tpu.memory_space<vmem>>, vector<1x324x128xbf16>
    %22 = vector.shape_cast %21 : vector<1x324x128xbf16> to vector<324x128xbf16>
    %c0_23 = arith.constant 0 : index
    %c896 = arith.constant 896 : index
    %23 = vector.load %arg5[%c0_23, %c896] : memref<324x1152xbf16, #tpu.memory_space<vmem>>, vector<324x128xbf16>
    tpu.vector_store %arg5[%c0_23, %c896], %22 {strides = array<i32>} : memref<324x1152xbf16, #tpu.memory_space<vmem>>, vector<324x128xbf16>,
    %c0_24 = arith.constant 0 : index
    %c51 = arith.constant 51 : index
    %c0_25 = arith.constant 0 : index
    %24 = vector.load %arg1[%c0_24, %c51, %c0_25] : memref<1x388x128xbf16, #tpu.memory_space<vmem>>, vector<1x324x128xbf16>
    %25 = vector.shape_cast %24 : vector<1x324x128xbf16> to vector<324x128xbf16>
    %c0_26 = arith.constant 0 : index
    %c1024 = arith.constant 1024 : index
    %26 = vector.load %arg5[%c0_26, %c1024] : memref<324x1152xbf16, #tpu.memory_space<vmem>>, vector<324x128xbf16>
    tpu.vector_store %arg5[%c0_26, %c1024], %25 {strides = array<i32>} : memref<324x1152xbf16, #tpu.memory_space<vmem>>, vector<324x128xbf16>,
    %c0_27 = arith.constant 0 : index
    %c0_28 = arith.constant 0 : index
    %27 = vector.load %arg5[%c0_27, %c0_28] : memref<324x1152xbf16, #tpu.memory_space<vmem>>, vector<324x1152xbf16>
    %c0_29 = arith.constant 0 : index
    %c0_30 = arith.constant 0 : index
    %28 = vector.load %arg2[%c0_29, %c0_30] : memref<1152x256xbf16, #tpu.memory_space<vmem>>, vector<1152x256xbf16>
    %cst = arith.constant dense<0.000000e+00> : vector<324x256xf32>
    %29 = tpu.matmul %27, %28, %cst {dimension_numbers = #tpu.dot_dimension_numbers<[1], [0], [0], [1], [0, 0, 1, 1], [], []>} : vector<324x1152xbf16>, vector<1152x256xbf16>, vector<324x256xf32> -> vector<324x256xf32>
    %c0_31 = arith.constant 0 : index
    %c0_32 = arith.constant 0 : index
    %c0_33 = arith.constant 0 : index
    %30 = vector.load %arg3[%c0_31, %c0_32, %c0_33] : memref<1x324x256xf32, #tpu.memory_space<vmem>>, vector<1x324x256xf32>
    %31 = vector.shape_cast %30 : vector<1x324x256xf32> to vector<324x256xf32>
    %32 = vector.shape_cast %29 : vector<324x256xf32> to vector<1x324x256xf32>
    tpu.vector_store %arg3[%c0_31, %c0_32, %c0_33], %32 {strides = array<i32>} : memref<1x324x256xf32, #tpu.memory_space<vmem>>, vector<1x324x256xf32>,
    %33 = tpu.iota {dimensions = array<i32: 0>} : vector<324x256xi32>
    %34 = arith.sitofp %33 : vector<324x256xi32> to vector<324x256xf32>
    %cst_34 = arith.constant 5.000000e-01 : f32
    %35 = vector.broadcast %cst_34 : f32 to vector<324x256xf32>
    %36 = arith.addf %34, %35 : vector<324x256xf32>
    %cst_35 = arith.constant 0.055555556 : f32
    %37 = vector.broadcast %cst_35 : f32 to vector<324x256xf32>
    %38 = arith.mulf %36, %37 : vector<324x256xf32>
    %39 = math.floor %38 : vector<324x256xf32>
    %cst_36 = arith.constant 1.800000e+01 : f32
    %40 = vector.broadcast %cst_36 : f32 to vector<324x256xf32>
    %41 = arith.mulf %39, %40 : vector<324x256xf32>
    %42 = arith.subf %34, %41 : vector<324x256xf32>
    %cst_37 = arith.constant 1.000000e+00 : f32
    %43 = vector.broadcast %cst_37 : f32 to vector<324x256xf32>
    %44 = arith.cmpf oge, %39, %43 : vector<324x256xf32>
    %cst_38 = arith.constant 1.600000e+01 : f32
    %45 = vector.broadcast %cst_38 : f32 to vector<324x256xf32>
    %46 = arith.cmpf ole, %39, %45 : vector<324x256xf32>
    %47 = arith.andi %44, %46 : vector<324x256xi1>
    %cst_39 = arith.constant 1.000000e+00 : f32
    %48 = vector.broadcast %cst_39 : f32 to vector<324x256xf32>
    %49 = arith.cmpf oge, %42, %48 : vector<324x256xf32>
    %50 = arith.andi %47, %49 : vector<324x256xi1>
    %cst_40 = arith.constant 1.600000e+01 : f32
    %51 = vector.broadcast %cst_40 : f32 to vector<324x256xf32>
    %52 = arith.cmpf ole, %42, %51 : vector<324x256xf32>
    %53 = arith.andi %50, %52 : vector<324x256xi1>
    %54 = arith.extui %53 : vector<324x256xi1> to vector<324x256xi32>
    %55 = arith.sitofp %54 : vector<324x256xi32> to vector<324x256xf32>
    %56 = arith.mulf %29, %55 : vector<324x256xf32>
    %cst_41 = arith.constant dense<0.000000e+00> : vector<256xf32>
    %57 = vector.multi_reduction <add>, %56, %cst_41 [0] : vector<324x256xf32> to vector<256xf32>
    %58 = vector.shape_cast %57 : vector<256xf32> to vector<1x256xf32>
    %59 = arith.mulf %56, %29 : vector<324x256xf32>
    %cst_42 = arith.constant dense<0.000000e+00> : vector<256xf32>
    %60 = vector.multi_reduction <add>, %59, %cst_42 [0] : vector<324x256xf32> to vector<256xf32>
    %61 = vector.shape_cast %60 : vector<256xf32> to vector<1x256xf32>
    %cst_43 = arith.constant 0.000000e+00 : f32
    %62 = vector.broadcast %cst_43 : f32 to vector<6x256xf32>
    %63 = tpu.concatenate %58, %61, %62 in 0 : vector<1x256xf32>, vector<1x256xf32>, vector<6x256xf32> -> vector<8x256xf32>
    %c0_44 = arith.constant 0 : index
    %c0_45 = arith.constant 0 : index
    %c0_46 = arith.constant 0 : index
    %64 = vector.load %arg4[%c0_44, %c0_45, %c0_46] : memref<1x8x256xf32, #tpu.memory_space<vmem>>, vector<1x8x256xf32>
    %65 = vector.shape_cast %64 : vector<1x8x256xf32> to vector<8x256xf32>
    %66 = vector.shape_cast %63 : vector<8x256xf32> to vector<1x8x256xf32>
    tpu.vector_store %arg4[%c0_44, %c0_45, %c0_46], %66 {strides = array<i32>} : memref<1x8x256xf32, #tpu.memory_space<vmem>>, vector<1x8x256xf32>,
    return
  }
  func.func @transform_0(%arg0: i32) -> (i32, i32, i32) {
    %c0_i32 = arith.constant 0 : i32
    %c0_i32_0 = arith.constant 0 : i32
    %c0_i32_1 = arith.constant 0 : i32
    return %arg0, %c0_i32, %c0_i32_0 : i32, i32, i32
  }
  func.func @transform_1(%arg0: i32) -> (i32, i32) {
    %c0_i32 = arith.constant 0 : i32
    %c0_i32_0 = arith.constant 0 : i32
    %c0_i32_1 = arith.constant 0 : i32
    return %c0_i32, %c0_i32_0 : i32, i32
  }
  func.func @transform_2(%arg0: i32) -> (i32, i32, i32) {
    %c0_i32 = arith.constant 0 : i32
    %c0_i32_0 = arith.constant 0 : i32
    %c0_i32_1 = arith.constant 0 : i32
    return %arg0, %c0_i32, %c0_i32_0 : i32, i32, i32
  }
  func.func @transform_3(%arg0: i32) -> (i32, i32, i32) {
    %c0_i32 = arith.constant 0 : i32
    %c0_i32_0 = arith.constant 0 : i32
    %c0_i32_1 = arith.constant 0 : i32
    return %arg0, %c0_i32, %c0_i32_0 : i32, i32, i32
  }
}

</mosaic_0001>

<llo_original>
// kernel: tpu_custom_call.1
$region0: #{tpu_custom_call.1}
  #allocation0 [shape = 'u32[]', space=smem, size = 0x4, offset = 0x4, fixed_abs, tag = 'smem constant byte address 0x4 - core index']
  #allocation1 [shape = 'u32[72,128]{1,0:T(1,128)}', space=vmem, size = 0x9000, scoped, tag = 'internal scratch']
  #allocation2 [shape = 'bf16[324,1152]{1,0:T(8,128)(2,1)}', space=vmem, size = 0xb8800, scoped, tag = 'scratch operand']
  %s0 = inlined_call_operand.vmem [shape: bf16[2,388,128], index: 0, kind: input, shape index: {}]
  %s1 = inlined_call_operand.hbm [shape: bf16[1152,256], index: 1, kind: input, shape index: {}]
  %s2 = inlined_call_operand.vmem [shape: f32[2,324,256], index: 2, kind: output, shape index: {0}]
  %s3 = inlined_call_operand.hbm [shape: f32[2,8,256], index: 3, kind: output, shape index: {1}]
  %4 = xla_tuple %s2, %s3
  %s5 = sld [smem:[#allocation0]]
  $region53: #{tpu_custom_call.1} parent=0
    _
  %s7 = ssub.s32 1, %s5
  %s8 = scalar_select 0, %s7, %s5
  $region1: #{tpu_custom_call.1} parent=0
    #allocation3 [shape = 'u8[589824]{0}', space=vmem, size = 0x90000, scoped, tag = 'input window, operand 1, single buffered']
    #allocation4 [shape = 's32[2]{0}', space=sflag, size = 0x8, scoped, tag = 'scoped memory for tpu_custom_call.1']
    #allocation5 [shape = 's32[2]{0}', space=sflag, size = 0x8, scoped, tag = 'scoped memory for tpu_custom_call.1']
    #allocation6 [shape = 'u8[16384]{0}', space=vmem, size = 0x4000, scoped, tag = 'output window, operand 1']
    %9 = vsyncpa [#allocation4], 0
    %10 = vsyncpa [#allocation5], 0
    %s11 = scalar_lea.sflag [#allocation5], 1
    %12 = vsyncpa %s11, 0
    loop: start=0, step=1, limit=4
    $region2: #{tpu_custom_call.1} parent=1 // loop_pre_header
      _
    $region3: #{tpu_custom_call.1} parent=1 // loop_header
      %s14 = sphi 0, %s18
      %p15 = scmp.ge.s32.totalorder %s14, 4
      %s24 = sphi 0, %s26
      %s27 = sphi 0, %s24
      %s28 = sphi 0, %s27
      %s44 = sphi 0, %s28
      %s48 = sphi 0, %s48
      %s50 = sphi 0, %s48
      %s51 = sphi 0, %s50
      %s65 = sphi 0, %s51
      %s71 = sphi 0, %s73
      %s74 = sphi 0, %s71
      %s75 = sphi 0, %s74
      %s91 = sphi 0, %s75
      %s97 = sphi 0, %s99
      %s100 = sphi 0, %s97
      %s101 = sphi 0, %s100
      %s117 = sphi 0, %s101
    $region4: #{tpu_custom_call.1} parent=1 // loop_header_branch
      %17 = sbr.rel (%p15) target = $region8
    $region5: #{tpu_custom_call.1} parent=1 // loop_body
      %s19 = ssub.s32 %s14, 1
      %s20 = ssub.s32 %s14, 2
      %s21 = sadd.s32 %s14, 1
      %s22 = ssub.s32 %s14, %s21
      %p23 = scmp.eq.s32.totalorder %s22, 0
      %s25 = sadd.s32 %s24, 1
      %s26 = scalar_select %p23, %s24, %s25
      %p29 = pneg %p23
      %p30 = scmp.eq.s32.totalorder %s14, 1
      %p31 = por %p29, %p30
      %p32 = scmp.ne.s32.totalorder %s24, %s27
      %p33 = scmp.eq.s32.totalorder %s14, 0
      %p34 = por %p32, %p33
      %p35 = scmp.ne.s32.totalorder %s24, %s27
      %p36 = scmp.eq.s32.totalorder %s19, 1
      %p37 = por %p35, %p36
      %p38 = scmp.ne.s32.totalorder %s27, %s28
      %p39 = scmp.eq.s32.totalorder %s19, 0
      %p40 = por %p38, %p39
      %p41 = scmp.ne.s32.totalorder %s27, %s28
      %p42 = scmp.eq.s32.totalorder %s20, 1
      %p43 = por %p41, %p42
      %p45 = scmp.ne.s32.totalorder %s28, %s44
      %p46 = scmp.eq.s32.totalorder %s20, 0
      %p47 = por %p45, %p46
      %s49 = sadd.s32 %s48, 1
      %p52 = scmp.eq.s32.totalorder %s14, 1
      %p53 = scmp.ne.s32.totalorder %s48, %s50
      %p54 = scmp.eq.s32.totalorder %s14, 0
      %p55 = por %p53, %p54
      %p56 = scmp.ne.s32.totalorder %s48, %s50
      %p57 = scmp.eq.s32.totalorder %s19, 1
      %p58 = por %p56, %p57
      %p59 = scmp.ne.s32.totalorder %s50, %s51
      %p60 = scmp.eq.s32.totalorder %s19, 0
      %p61 = por %p59, %p60
      %p62 = scmp.ne.s32.totalorder %s50, %s51
      %p63 = scmp.eq.s32.totalorder %s20, 1
      %p64 = por %p62, %p63
      %p66 = scmp.ne.s32.totalorder %s51, %s65
      %p67 = scmp.eq.s32.totalorder %s20, 0
      %p68 = por %p66, %p67
      %s69 = ssub.s32 %s14, %s21
      %p70 = scmp.eq.s32.totalorder %s69, 0
      %s72 = sadd.s32 %s71, 1
      %s73 = scalar_select %p70, %s71, %s72
      %p76 = pneg %p70
      %p77 = scmp.eq.s32.totalorder %s14, 1
      %p78 = por %p76, %p77
      %p79 = scmp.ne.s32.totalorder %s71, %s74
      %p80 = scmp.eq.s32.totalorder %s14, 0
      %p81 = por %p79, %p80
      %p82 = scmp.ne.s32.totalorder %s71, %s74
      %p83 = scmp.eq.s32.totalorder %s19, 1
      %p84 = por %p82, %p83
      %p85 = scmp.ne.s32.totalorder %s74, %s75
      %p86 = scmp.eq.s32.totalorder %s19, 0
      %p87 = por %p85, %p86
      %p88 = scmp.ne.s32.totalorder %s74, %s75
      %p89 = scmp.eq.s32.totalorder %s20, 1
      %p90 = por %p88, %p89
      %p92 = scmp.ne.s32.totalorder %s75, %s91
      %p93 = scmp.eq.s32.totalorder %s20, 0
      %p94 = por %p92, %p93
      %s95 = ssub.s32 %s14, %s21
      %p96 = scmp.eq.s32.totalorder %s95, 0
      %s98 = sadd.s32 %s97, 1
      %s99 = scalar_select %p96, %s97, %s98
      %p102 = pneg %p96
      %p103 = scmp.eq.s32.totalorder %s14, 1
      %p104 = por %p102, %p103
      %p105 = scmp.ne.s32.totalorder %s97, %s100
      %p106 = scmp.eq.s32.totalorder %s14, 0
      %p107 = por %p105, %p106
      %p108 = scmp.ne.s32.totalorder %s97, %s100
      %p109 = scmp.eq.s32.totalorder %s19, 1
      %p110 = por %p108, %p109
      %p111 = scmp.ne.s32.totalorder %s100, %s101
      %p112 = scmp.eq.s32.totalorder %s19, 0
      %p113 = por %p111, %p112
      %p114 = scmp.ne.s32.totalorder %s100, %s101
      %p115 = scmp.eq.s32.totalorder %s20, 1
      %p116 = por %p114, %p115
      %p118 = scmp.ne.s32.totalorder %s101, %s117
      %p119 = scmp.eq.s32.totalorder %s20, 0
      %p120 = por %p118, %p119
      %p121 = scmp.le.s32.totalorder 1, %s14
      %p122 = scmp.lt.s32.totalorder %s14, 3
      %p123 = pnand %p121, %p122
      %p124 = pneg %p123
      // Predicated region
      $region9: #{tpu_custom_call.1} parent=5 // pred_check
        _
      $region10: #{tpu_custom_call.1} parent=5 // pred_check_branch
        %126 = sbr.rel (%p123) target = $region12
      $region11: #{tpu_custom_call.1} parent=5 // pred_region
        %s127 = ssub.s32 %s14, 1
        // Predicated region
        $region13: #{tpu_custom_call.1} parent=11 // pred_check
          %p128 = pneg %p61
        $region14: #{tpu_custom_call.1} parent=11 // pred_check_branch
          %130 = sbr.rel (%p128) target = $region16
        $region15: #{tpu_custom_call.1} parent=11 // pred_region
          %132 = vsyncadd [#allocation4], 0
          %s133 = sshll.u32 %s1, 4
          %s134 = int_to_ptr.hbm [resolvable:$true] %s133
          %s135 = sshll.u32 [#allocation3], 4
          %s136 = int_to_ptr.vmem [resolvable:$true] %s135
          %141 = dma.hbm_to_vmem [thread:$0]  %s134, 18432, %s136, [#allocation4], 128, 128, 8
        $region16: #{tpu_custom_call.1} parent=11 // pred_fallthru
          _
      $region12: #{tpu_custom_call.1} parent=5 // pred_fallthru
        _
      %p142 = scmp.lt.s32.totalorder %s14, 2
      // Predicated region
      $region17: #{tpu_custom_call.1} parent=5 // pred_check
        %p143 = pneg %p142
      $region18: #{tpu_custom_call.1} parent=5 // pred_check_branch
        %145 = sbr.rel (%p143) target = $region20
      $region19: #{tpu_custom_call.1} parent=5 // pred_region
        // Predicated region
        $region21: #{tpu_custom_call.1} parent=19 // pred_check
          %p146 = pneg %p34
        $region22: #{tpu_custom_call.1} parent=19 // pred_check_branch
          %148 = sbr.rel (%p146) target = $region24
        $region23: #{tpu_custom_call.1} parent=19 // pred_region
          %p149 = scmp.lt.s32.totalorder %s14, 1
          %s150 = scalar_select %p149, %s14, 1
          %s151 = smul.addr %s150, 49
          %s152 = smul.addr %s151, 4
          %s153 = scalar_lea.vmem %s0, %s152
        $region24: #{tpu_custom_call.1} parent=19 // pred_fallthru
          _
      $region20: #{tpu_custom_call.1} parent=5 // pred_fallthru
        _
      %p154 = scmp.le.s32.totalorder 1, %s14
      %p155 = scmp.lt.s32.totalorder %s14, 3
      %p156 = pnand %p154, %p155
      %p157 = pneg %p156
      // Predicated region
      $region25: #{tpu_custom_call.1} parent=5 // pred_check
        _
      $region26: #{tpu_custom_call.1} parent=5 // pred_check_branch
        %159 = sbr.rel (%p156) target = $region28
      $region27: #{tpu_custom_call.1} parent=5 // pred_region
        %s160 = ssub.s32 %s14, 1
        // Predicated region
        $region29: #{tpu_custom_call.1} parent=27 // pred_check
          %p161 = pneg %p61
        $region30: #{tpu_custom_call.1} parent=27 // pred_check_branch
          %163 = sbr.rel (%p161) target = $region32
        $region31: #{tpu_custom_call.1} parent=27 // pred_region
          %165 = dma.done [#allocation4], 18432
        $region32: #{tpu_custom_call.1} parent=27 // pred_fallthru
          _
        %p166 = scmp.lt.s32.totalorder %s19, 1
        %s167 = scalar_select %p166, %s19, 1
        %s168 = smul.addr %s167, 49
        %s169 = smul.addr %s168, 4
        %s170 = scalar_lea.vmem %s0, %s169
        %p171 = pneg %p40
        %p172 = pneg %p37
        %p173 = pneg %p61
        %p174 = pneg %p58
        %p175 = pneg %p87
        %p176 = pneg %p84
        %p177 = scmp.lt.s32.totalorder %s19, 1
        %s178 = scalar_select %p177, %s19, 1
        %s179 = smul.addr %s178, 82
        %s180 = smul.addr %s179, 8
        %s181 = scalar_lea.vmem %s2, %s180
        %p182 = pneg %p113
        %p183 = pneg %p110
        %s184 = sand.u32 %s100, 1
        %s185 = scalar_lea.sflag [#allocation5], %s184
        %s186 = sand.u32 %s100, 1
        %s187 = smul.addr %s186, 16
        %s188 = scalar_lea.vmem [#allocation6], %s187
        %p189 = scmp.lt.s32.totalorder %s19, 1
        %s190 = scalar_select %p189, %s19, 1
        %s191 = smul.addr %s190, 49
        %s192 = smul.addr %s191, 4
        %s193 = scalar_lea.vmem %s0, %s192
        %p194 = scmp.lt.s32.totalorder %s19, 1
        %s195 = scalar_select %p194, %s19, 1
        %s196 = smul.addr %s195, 82
        %s197 = smul.addr %s196, 8
        %s198 = scalar_lea.vmem %s2, %s197
        %v199 = vld [vmem:[%s193 + $0x4] sm:$0xc]
        %v200 = vld [vmem:[%s193 + $0x8] sm:$0xf]
        %v201 = vld [vmem:[%s193 + $0xc] sm:$0xf]
        %v202 = vld [vmem:[%s193 + $0x10] sm:$0xf]
        %v203 = vld [vmem:[%s193 + $0x14] sm:$0xf]
        %v204 = vld [vmem:[%s193 + $0x18] sm:$0xf]
        %v205 = vld [vmem:[%s193 + $0x1c] sm:$0xf]
        %v206 = vld [vmem:[%s193 + $0x20] sm:$0xf]
        %v207 = vld [vmem:[%s193 + $0x24] sm:$0xf]
        %v208 = vld [vmem:[%s193 + $0x28] sm:$0xf]
        %v209 = vld [vmem:[%s193 + $0x2c] sm:$0xf]
        %v210 = vld [vmem:[%s193 + $0x30] sm:$0xf]
        %v211 = vld [vmem:[%s193 + $0x34] sm:$0xf]
        %v212 = vld [vmem:[%s193 + $0x38] sm:$0xf]
        %v213 = vld [vmem:[%s193 + $0x3c] sm:$0xf]
        %v214 = vld [vmem:[%s193 + $0x40] sm:$0xf]
        %v215 = vld [vmem:[%s193 + $0x44] sm:$0xf]
        %v216 = vld [vmem:[%s193 + $0x48] sm:$0xf]
        %v217 = vld [vmem:[%s193 + $0x4c] sm:$0xf]
        %v218 = vld [vmem:[%s193 + $0x50] sm:$0xf]
        %v219 = vld [vmem:[%s193 + $0x54] sm:$0xf]
        %v220 = vld [vmem:[%s193 + $0x58] sm:$0xf]
        %v221 = vld [vmem:[%s193 + $0x5c] sm:$0xf]
        %v222 = vld [vmem:[%s193 + $0x60] sm:$0xf]
        %v223 = vld [vmem:[%s193 + $0x64] sm:$0xf]
        %v224 = vld [vmem:[%s193 + $0x68] sm:$0xf]
        %v225 = vld [vmem:[%s193 + $0x6c] sm:$0xf]
        %v226 = vld [vmem:[%s193 + $0x70] sm:$0xf]
        %v227 = vld [vmem:[%s193 + $0x74] sm:$0xf]
        %v228 = vld [vmem:[%s193 + $0x78] sm:$0xf]
        %v229 = vld [vmem:[%s193 + $0x7c] sm:$0xf]
        %v230 = vld [vmem:[%s193 + $0x80] sm:$0xf]
        %v231 = vld [vmem:[%s193 + $0x84] sm:$0xf]
        %v232 = vld [vmem:[%s193 + $0x88] sm:$0xf]
        %v233 = vld [vmem:[%s193 + $0x8c] sm:$0xf]
        %v234 = vld [vmem:[%s193 + $0x90] sm:$0xf]
        %v235 = vld [vmem:[%s193 + $0x94] sm:$0xf]
        %v236 = vld [vmem:[%s193 + $0x98] sm:$0xf]
        %v237 = vld [vmem:[%s193 + $0x9c] sm:$0xf]
        %v238 = vld [vmem:[%s193 + $0xa0] sm:$0xf]
        %v239 = vld [vmem:[%s193 + $0xa4] sm:$0xf]
        %v240 = vld [vmem:[%s193 + $0xa8] sm:$0x1]
        %vm241 = vsmask.f32 1280
        %vm242 = vsmask.f32 5392
        %vm243 = vmor %vm241, %vm242
        %v245 = vshrl.u32 %v199, 16
        %v247 = vrot.slane %v245, 6
        %v248 = vshll.u32 %v199, 16
        %v250 = vrot.slane %v248, 7
        %v251 = vor.u32 %v247, %v250
        %v252 = vrot.slane %v251, 4
        %v254 = vshrl.u32 %v200, 16
        %v256 = vrot.slane %v254, 6
        %v257 = vshll.u32 %v200, 16
        %v259 = vrot.slane %v257, 7
        %v260 = vor.u32 %v256, %v259
        %v261 = vsel %vm243, %v252, %v260
        %v262 = vrot.slane %v260, 4
        %v264 = vshrl.u32 %v201, 16
        %v266 = vrot.slane %v264, 6
        %v267 = vshll.u32 %v201, 16
        %v269 = vrot.slane %v267, 7
        %v270 = vor.u32 %v266, %v269
        %v271 = vsel %vm243, %v262, %v270
        %v272 = vrot.slane %v270, 4
        %v274 = vshrl.u32 %v202, 16
        %v276 = vrot.slane %v274, 6
        %v277 = vshll.u32 %v202, 16
        %v279 = vrot.slane %v277, 7
        %v280 = vor.u32 %v276, %v279
        %v281 = vsel %vm243, %v272, %v280
        %v282 = vrot.slane %v280, 4
        %v284 = vshrl.u32 %v203, 16
        %v286 = vrot.slane %v284, 6
        %v287 = vshll.u32 %v203, 16
        %v289 = vrot.slane %v287, 7
        %v290 = vor.u32 %v286, %v289
        %v291 = vsel %vm243, %v282, %v290
        %v292 = vrot.slane %v290, 4
        %v294 = vshrl.u32 %v204, 16
        %v296 = vrot.slane %v294, 6
        %v297 = vshll.u32 %v204, 16
        %v299 = vrot.slane %v297, 7
        %v300 = vor.u32 %v296, %v299
        %v301 = vsel %vm243, %v292, %v300
        %v302 = vrot.slane %v300, 4
        %v304 = vshrl.u32 %v205, 16
        %v306 = vrot.slane %v304, 6
        %v307 = vshll.u32 %v205, 16
        %v309 = vrot.slane %v307, 7
        %v310 = vor.u32 %v306, %v309
        %v311 = vsel %vm243, %v302, %v310
        %v312 = vrot.slane %v310, 4
        %v314 = vshrl.u32 %v206, 16
        %v316 = vrot.slane %v314, 6
        %v317 = vshll.u32 %v206, 16
        %v319 = vrot.slane %v317, 7
        %v320 = vor.u32 %v316, %v319
        %v321 = vsel %vm243, %v312, %v320
        %v322 = vrot.slane %v320, 4
        %v324 = vshrl.u32 %v207, 16
        %v326 = vrot.slane %v324, 6
        %v327 = vshll.u32 %v207, 16
        %v329 = vrot.slane %v327, 7
        %v330 = vor.u32 %v326, %v329
        %v331 = vsel %vm243, %v322, %v330
        %v332 = vrot.slane %v330, 4
        %v334 = vshrl.u32 %v208, 16
        %v336 = vrot.slane %v334, 6
        %v337 = vshll.u32 %v208, 16
        %v339 = vrot.slane %v337, 7
        %v340 = vor.u32 %v336, %v339
        %v341 = vsel %vm243, %v332, %v340
        %v342 = vrot.slane %v340, 4
        %v344 = vshrl.u32 %v209, 16
        %v346 = vrot.slane %v344, 6
        %v347 = vshll.u32 %v209, 16
        %v349 = vrot.slane %v347, 7
        %v350 = vor.u32 %v346, %v349
        %v351 = vsel %vm243, %v342, %v350
        %v352 = vrot.slane %v350, 4
        %v354 = vshrl.u32 %v210, 16
        %v356 = vrot.slane %v354, 6
        %v357 = vshll.u32 %v210, 16
        %v359 = vrot.slane %v357, 7
        %v360 = vor.u32 %v356, %v359
        %v361 = vsel %vm243, %v352, %v360
        %v362 = vrot.slane %v360, 4
        %v364 = vshrl.u32 %v211, 16
        %v366 = vrot.slane %v364, 6
        %v367 = vshll.u32 %v211, 16
        %v369 = vrot.slane %v367, 7
        %v370 = vor.u32 %v366, %v369
        %v371 = vsel %vm243, %v362, %v370
        %v372 = vrot.slane %v370, 4
        %v374 = vshrl.u32 %v212, 16
        %v376 = vrot.slane %v374, 6
        %v377 = vshll.u32 %v212, 16
        %v379 = vrot.slane %v377, 7
        %v380 = vor.u32 %v376, %v379
        %v381 = vsel %vm243, %v372, %v380
        %v382 = vrot.slane %v380, 4
        %v384 = vshrl.u32 %v213, 16
        %v386 = vrot.slane %v384, 6
        %v387 = vshll.u32 %v213, 16
        %v389 = vrot.slane %v387, 7
        %v390 = vor.u32 %v386, %v389
        %v391 = vsel %vm243, %v382, %v390
        %v392 = vrot.slane %v390, 4
        %v394 = vshrl.u32 %v214, 16
        %v396 = vrot.slane %v394, 6
        %v397 = vshll.u32 %v214, 16
        %v399 = vrot.slane %v397, 7
        %v400 = vor.u32 %v396, %v399
        %v401 = vsel %vm243, %v392, %v400
        %v402 = vrot.slane %v400, 4
        %v404 = vshrl.u32 %v215, 16
        %v406 = vrot.slane %v404, 6
        %v407 = vshll.u32 %v215, 16
        %v409 = vrot.slane %v407, 7
        %v410 = vor.u32 %v406, %v409
        %v411 = vsel %vm243, %v402, %v410
        %v412 = vrot.slane %v410, 4
        %v414 = vshrl.u32 %v216, 16
        %v416 = vrot.slane %v414, 6
        %v417 = vshll.u32 %v216, 16
        %v419 = vrot.slane %v417, 7
        %v420 = vor.u32 %v416, %v419
        %v421 = vsel %vm243, %v412, %v420
        %v422 = vrot.slane %v420, 4
        %v424 = vshrl.u32 %v217, 16
        %v426 = vrot.slane %v424, 6
        %v427 = vshll.u32 %v217, 16
        %v429 = vrot.slane %v427, 7
        %v430 = vor.u32 %v426, %v429
        %v431 = vsel %vm243, %v422, %v430
        %v432 = vrot.slane %v430, 4
        %v434 = vshrl.u32 %v218, 16
        %v436 = vrot.slane %v434, 6
        %v437 = vshll.u32 %v218, 16
        %v439 = vrot.slane %v437, 7
        %v440 = vor.u32 %v436, %v439
        %v441 = vsel %vm243, %v432, %v440
        %v442 = vrot.slane %v440, 4
        %v444 = vshrl.u32 %v219, 16
        %v446 = vrot.slane %v444, 6
        %v447 = vshll.u32 %v219, 16
        %v449 = vrot.slane %v447, 7
        %v450 = vor.u32 %v446, %v449
        %v451 = vsel %vm243, %v442, %v450
        %v452 = vrot.slane %v450, 4
        %v454 = vshrl.u32 %v220, 16
        %v456 = vrot.slane %v454, 6
        %v457 = vshll.u32 %v220, 16
        %v459 = vrot.slane %v457, 7
        %v460 = vor.u32 %v456, %v459
        %v461 = vsel %vm243, %v452, %v460
        %v462 = vrot.slane %v460, 4
        %v464 = vshrl.u32 %v221, 16
        %v466 = vrot.slane %v464, 6
        %v467 = vshll.u32 %v221, 16
        %v469 = vrot.slane %v467, 7
        %v470 = vor.u32 %v466, %v469
        %v471 = vsel %vm243, %v462, %v470
        %v472 = vrot.slane %v470, 4
        %v474 = vshrl.u32 %v222, 16
        %v476 = vrot.slane %v474, 6
        %v477 = vshll.u32 %v222, 16
        %v479 = vrot.slane %v477, 7
        %v480 = vor.u32 %v476, %v479
        %v481 = vsel %vm243, %v472, %v480
        %v482 = vrot.slane %v480, 4
        %v484 = vshrl.u32 %v223, 16
        %v486 = vrot.slane %v484, 6
        %v487 = vshll.u32 %v223, 16
        %v489 = vrot.slane %v487, 7
        %v490 = vor.u32 %v486, %v489
        %v491 = vsel %vm243, %v482, %v490
        %v492 = vrot.slane %v490, 4
        %v494 = vshrl.u32 %v224, 16
        %v496 = vrot.slane %v494, 6
        %v497 = vshll.u32 %v224, 16
        %v499 = vrot.slane %v497, 7
        %v500 = vor.u32 %v496, %v499
        %v501 = vsel %vm243, %v492, %v500
        %v502 = vrot.slane %v500, 4
        %v504 = vshrl.u32 %v225, 16
        %v506 = vrot.slane %v504, 6
        %v507 = vshll.u32 %v225, 16
        %v509 = vrot.slane %v507, 7
        %v510 = vor.u32 %v506, %v509
        %v511 = vsel %vm243, %v502, %v510
        %v512 = vrot.slane %v510, 4
        %v514 = vshrl.u32 %v226, 16
        %v516 = vrot.slane %v514, 6
        %v517 = vshll.u32 %v226, 16
        %v519 = vrot.slane %v517, 7
        %v520 = vor.u32 %v516, %v519
        %v521 = vsel %vm243, %v512, %v520
        %v522 = vrot.slane %v520, 4
        %v524 = vshrl.u32 %v227, 16
        %v526 = vrot.slane %v524, 6
        %v527 = vshll.u32 %v227, 16
        %v529 = vrot.slane %v527, 7
        %v530 = vor.u32 %v526, %v529
        %v531 = vsel %vm243, %v522, %v530
        %v532 = vrot.slane %v530, 4
        %v534 = vshrl.u32 %v228, 16
        %v536 = vrot.slane %v534, 6
        %v537 = vshll.u32 %v228, 16
        %v539 = vrot.slane %v537, 7
        %v540 = vor.u32 %v536, %v539
        %v541 = vsel %vm243, %v532, %v540
        %v542 = vrot.slane %v540, 4
        %v544 = vshrl.u32 %v229, 16
        %v546 = vrot.slane %v544, 6
        %v547 = vshll.u32 %v229, 16
        %v549 = vrot.slane %v547, 7
        %v550 = vor.u32 %v546, %v549
        %v551 = vsel %vm243, %v542, %v550
        %v552 = vrot.slane %v550, 4
        %v554 = vshrl.u32 %v230, 16
        %v556 = vrot.slane %v554, 6
        %v557 = vshll.u32 %v230, 16
        %v559 = vrot.slane %v557, 7
        %v560 = vor.u32 %v556, %v559
        %v561 = vsel %vm243, %v552, %v560
        %v562 = vrot.slane %v560, 4
        %v564 = vshrl.u32 %v231, 16
        %v566 = vrot.slane %v564, 6
        %v567 = vshll.u32 %v231, 16
        %v569 = vrot.slane %v567, 7
        %v570 = vor.u32 %v566, %v569
        %v571 = vsel %vm243, %v562, %v570
        %v572 = vrot.slane %v570, 4
        %v574 = vshrl.u32 %v232, 16
        %v576 = vrot.slane %v574, 6
        %v577 = vshll.u32 %v232, 16
        %v579 = vrot.slane %v577, 7
        %v580 = vor.u32 %v576, %v579
        %v581 = vsel %vm243, %v572, %v580
        %v582 = vrot.slane %v580, 4
        %v584 = vshrl.u32 %v233, 16
        %v586 = vrot.slane %v584, 6
        %v587 = vshll.u32 %v233, 16
        %v589 = vrot.slane %v587, 7
        %v590 = vor.u32 %v586, %v589
        %v591 = vsel %vm243, %v582, %v590
        %v592 = vrot.slane %v590, 4
        %v594 = vshrl.u32 %v234, 16
        %v596 = vrot.slane %v594, 6
        %v597 = vshll.u32 %v234, 16
        %v599 = vrot.slane %v597, 7
        %v600 = vor.u32 %v596, %v599
        %v601 = vsel %vm243, %v592, %v600
        %v602 = vrot.slane %v600, 4
        %v604 = vshrl.u32 %v235, 16
        %v606 = vrot.slane %v604, 6
        %v607 = vshll.u32 %v235, 16
        %v609 = vrot.slane %v607, 7
        %v610 = vor.u32 %v606, %v609
        %v611 = vsel %vm243, %v602, %v610
        %v612 = vrot.slane %v610, 4
        %v614 = vshrl.u32 %v236, 16
        %v616 = vrot.slane %v614, 6
        %v617 = vshll.u32 %v236, 16
        %v619 = vrot.slane %v617, 7
        %v620 = vor.u32 %v616, %v619
        %v621 = vsel %vm243, %v612, %v620
        %v622 = vrot.slane %v620, 4
        %v624 = vshrl.u32 %v237, 16
        %v626 = vrot.slane %v624, 6
        %v627 = vshll.u32 %v237, 16
        %v629 = vrot.slane %v627, 7
        %v630 = vor.u32 %v626, %v629
        %v631 = vsel %vm243, %v622, %v630
        %v632 = vrot.slane %v630, 4
        %v634 = vshrl.u32 %v238, 16
        %v636 = vrot.slane %v634, 6
        %v637 = vshll.u32 %v238, 16
        %v639 = vrot.slane %v637, 7
        %v640 = vor.u32 %v636, %v639
        %v641 = vsel %vm243, %v632, %v640
        %v642 = vrot.slane %v640, 4
        %v644 = vshrl.u32 %v239, 16
        %v646 = vrot.slane %v644, 6
        %v647 = vshll.u32 %v239, 16
        %v649 = vrot.slane %v647, 7
        %v650 = vor.u32 %v646, %v649
        %v651 = vsel %vm243, %v642, %v650
        %v652 = vrot.slane %v650, 4
        %v654 = vshll.u32 %v240, 16
        %v656 = vrot.slane %v654, 7
        %v657 = vsel %vm243, %v652, %v656
        %699 = vst [vmem:[#allocation2] sm:$0xf] %v261
        %700 = vst [vmem:[#allocation2 + $0x24] sm:$0xf] %v271
        %701 = vst [vmem:[#allocation2 + $0x48] sm:$0xf] %v281
        %702 = vst [vmem:[#allocation2 + $0x6c] sm:$0xf] %v291
        %703 = vst [vmem:[#allocation2 + $0x90] sm:$0xf] %v301
        %704 = vst [vmem:[#allocation2 + $0xb4] sm:$0xf] %v311
        %705 = vst [vmem:[#allocation2 + $0xd8] sm:$0xf] %v321
        %706 = vst [vmem:[#allocation2 + $0xfc] sm:$0xf] %v331
        %707 = vst [vmem:[#allocation2 + $0x120] sm:$0xf] %v341
        %708 = vst [vmem:[#allocation2 + $0x144] sm:$0xf] %v351
        %709 = vst [vmem:[#allocation2 + $0x168] sm:$0xf] %v361
        %710 = vst [vmem:[#allocation2 + $0x18c] sm:$0xf] %v371
        %711 = vst [vmem:[#allocation2 + $0x1b0] sm:$0xf] %v381
        %712 = vst [vmem:[#allocation2 + $0x1d4] sm:$0xf] %v391
        %713 = vst [vmem:[#allocation2 + $0x1f8] sm:$0xf] %v401
        %714 = vst [vmem:[#allocation2 + $0x21c] sm:$0xf] %v411
        %715 = vst [vmem:[#allocation2 + $0x240] sm:$0xf] %v421
        %716 = vst [vmem:[#allocation2 + $0x264] sm:$0xf] %v431
        %717 = vst [vmem:[#allocation2 + $0x288] sm:$0xf] %v441
        %718 = vst [vmem:[#allocation2 + $0x2ac] sm:$0xf] %v451
        %719 = vst [vmem:[#allocation2 + $0x2d0] sm:$0xf] %v461
        %720 = vst [vmem:[#allocation2 + $0x2f4] sm:$0xf] %v471
        %721 = vst [vmem:[#allocation2 + $0x318] sm:$0xf] %v481
        %722 = vst [vmem:[#allocation2 + $0x33c] sm:$0xf] %v491
        %723 = vst [vmem:[#allocation2 + $0x360] sm:$0xf] %v501
        %724 = vst [vmem:[#allocation2 + $0x384] sm:$0xf] %v511
        %725 = vst [vmem:[#allocation2 + $0x3a8] sm:$0xf] %v521
        %726 = vst [vmem:[#allocation2 + $0x3cc] sm:$0xf] %v531
        %727 = vst [vmem:[#allocation2 + $0x3f0] sm:$0xf] %v541
        %728 = vst [vmem:[#allocation2 + $0x414] sm:$0xf] %v551
        %729 = vst [vmem:[#allocation2 + $0x438] sm:$0xf] %v561
        %730 = vst [vmem:[#allocation2 + $0x45c] sm:$0xf] %v571
        %731 = vst [vmem:[#allocation2 + $0x480] sm:$0xf] %v581
        %732 = vst [vmem:[#allocation2 + $0x4a4] sm:$0xf] %v591
        %733 = vst [vmem:[#allocation2 + $0x4c8] sm:$0xf] %v601
        %734 = vst [vmem:[#allocation2 + $0x4ec] sm:$0xf] %v611
        %735 = vst [vmem:[#allocation2 + $0x510] sm:$0xf] %v621
        %736 = vst [vmem:[#allocation2 + $0x534] sm:$0xf] %v631
        %737 = vst [vmem:[#allocation2 + $0x558] sm:$0xf] %v641
        %738 = vst [vmem:[#allocation2 + $0x57c] sm:$0xf] %v651
        %739 = vst [vmem:[#allocation2 + $0x5a0] sm:$0x3] %v657
        %v740 = vld [vmem:[%s193 + $0x4] sm:$0x8]
        %v741 = vld [vmem:[%s193 + $0x8] sm:$0xf]
        %v742 = vld [vmem:[%s193 + $0xc] sm:$0xf]
        %v743 = vld [vmem:[%s193 + $0x10] sm:$0xf]
        %v744 = vld [vmem:[%s193 + $0x14] sm:$0xf]
        %v745 = vld [vmem:[%s193 + $0x18] sm:$0xf]
        %v746 = vld [vmem:[%s193 + $0x1c] sm:$0xf]
        %v747 = vld [vmem:[%s193 + $0x20] sm:$0xf]
        %v748 = vld [vmem:[%s193 + $0x24] sm:$0xf]
        %v749 = vld [vmem:[%s193 + $0x28] sm:$0xf]
        %v750 = vld [vmem:[%s193 + $0x2c] sm:$0xf]
        %v751 = vld [vmem:[%s193 + $0x30] sm:$0xf]
        %v752 = vld [vmem:[%s193 + $0x34] sm:$0xf]
        %v753 = vld [vmem:[%s193 + $0x38] sm:$0xf]
        %v754 = vld [vmem:[%s193 + $0x3c] sm:$0xf]
        %v755 = vld [vmem:[%s193 + $0x40] sm:$0xf]
        %v756 = vld [vmem:[%s193 + $0x44] sm:$0xf]
        %v757 = vld [vmem:[%s193 + $0x48] sm:$0xf]
        %v758 = vld [vmem:[%s193 + $0x4c] sm:$0xf]
        %v759 = vld [vmem:[%s193 + $0x50] sm:$0xf]
        %v760 = vld [vmem:[%s193 + $0x54] sm:$0xf]
        %v761 = vld [vmem:[%s193 + $0x58] sm:$0xf]
        %v762 = vld [vmem:[%s193 + $0x5c] sm:$0xf]
        %v763 = vld [vmem:[%s193 + $0x60] sm:$0xf]
        %v764 = vld [vmem:[%s193 + $0x64] sm:$0xf]
        %v765 = vld [vmem:[%s193 + $0x68] sm:$0xf]
        %v766 = vld [vmem:[%s193 + $0x6c] sm:$0xf]
        %v767 = vld [vmem:[%s193 + $0x70] sm:$0xf]
        %v768 = vld [vmem:[%s193 + $0x74] sm:$0xf]
        %v769 = vld [vmem:[%s193 + $0x78] sm:$0xf]
        %v770 = vld [vmem:[%s193 + $0x7c] sm:$0xf]
        %v771 = vld [vmem:[%s193 + $0x80] sm:$0xf]
        %v772 = vld [vmem:[%s193 + $0x84] sm:$0xf]
        %v773 = vld [vmem:[%s193 + $0x88] sm:$0xf]
        %v774 = vld [vmem:[%s193 + $0x8c] sm:$0xf]
        %v775 = vld [vmem:[%s193 + $0x90] sm:$0xf]
        %v776 = vld [vmem:[%s193 + $0x94] sm:$0xf]
        %v777 = vld [vmem:[%s193 + $0x98] sm:$0xf]
        %v778 = vld [vmem:[%s193 + $0x9c] sm:$0xf]
        %v779 = vld [vmem:[%s193 + $0xa0] sm:$0xf]
        %v780 = vld [vmem:[%s193 + $0xa4] sm:$0xf]
        %v781 = vld [vmem:[%s193 + $0xa8] sm:$0x1]
        %vm824 = vcmask 1040384
        %vm825 = vcmask 1044484
        %vm826 = vmor %vm824, %vm825
        %v827 = vrot.slane %v740, 7
        %v828 = vrot.slane %v827, 4
        %v829 = vrot.slane %v741, 7
        %v830 = vsel %vm826, %v828, %v829
        %v831 = vrot.slane %v829, 4
        %v832 = vrot.slane %v742, 7
        %v833 = vsel %vm826, %v831, %v832
        %v834 = vrot.slane %v832, 4
        %v835 = vrot.slane %v743, 7
        %v836 = vsel %vm826, %v834, %v835
        %v837 = vrot.slane %v835, 4
        %v838 = vrot.slane %v744, 7
        %v839 = vsel %vm826, %v837, %v838
        %v840 = vrot.slane %v838, 4
        %v841 = vrot.slane %v745, 7
        %v842 = vsel %vm826, %v840, %v841
        %v843 = vrot.slane %v841, 4
        %v844 = vrot.slane %v746, 7
        %v845 = vsel %vm826, %v843, %v844
        %v846 = vrot.slane %v844, 4
        %v847 = vrot.slane %v747, 7
        %v848 = vsel %vm826, %v846, %v847
        %v849 = vrot.slane %v847, 4
        %v850 = vrot.slane %v748, 7
        %v851 = vsel %vm826, %v849, %v850
        %v852 = vrot.slane %v850, 4
        %v853 = vrot.slane %v749, 7
        %v854 = vsel %vm826, %v852, %v853
        %v855 = vrot.slane %v853, 4
        %v856 = vrot.slane %v750, 7
        %v857 = vsel %vm826, %v855, %v856
        %v858 = vrot.slane %v856, 4
        %v859 = vrot.slane %v751, 7
        %v860 = vsel %vm826, %v858, %v859
        %v861 = vrot.slane %v859, 4
        %v862 = vrot.slane %v752, 7
        %v863 = vsel %vm826, %v861, %v862
        %v864 = vrot.slane %v862, 4
        %v865 = vrot.slane %v753, 7
        %v866 = vsel %vm826, %v864, %v865
        %v867 = vrot.slane %v865, 4
        %v868 = vrot.slane %v754, 7
        %v869 = vsel %vm826, %v867, %v868
        %v870 = vrot.slane %v868, 4
        %v871 = vrot.slane %v755, 7
        %v872 = vsel %vm826, %v870, %v871
        %v873 = vrot.slane %v871, 4
        %v874 = vrot.slane %v756, 7
        %v875 = vsel %vm826, %v873, %v874
        %v876 = vrot.slane %v874, 4
        %v877 = vrot.slane %v757, 7
        %v878 = vsel %vm826, %v876, %v877
        %v879 = vrot.slane %v877, 4
        %v880 = vrot.slane %v758, 7
        %v881 = vsel %vm826, %v879, %v880
        %v882 = vrot.slane %v880, 4
        %v883 = vrot.slane %v759, 7
        %v884 = vsel %vm826, %v882, %v883
        %v885 = vrot.slane %v883, 4
        %v886 = vrot.slane %v760, 7
        %v887 = vsel %vm826, %v885, %v886
        %v888 = vrot.slane %v886, 4
        %v889 = vrot.slane %v761, 7
        %v890 = vsel %vm826, %v888, %v889
        %v891 = vrot.slane %v889, 4
        %v892 = vrot.slane %v762, 7
        %v893 = vsel %vm826, %v891, %v892
        %v894 = vrot.slane %v892, 4
        %v895 = vrot.slane %v763, 7
        %v896 = vsel %vm826, %v894, %v895
        %v897 = vrot.slane %v895, 4
        %v898 = vrot.slane %v764, 7
        %v899 = vsel %vm826, %v897, %v898
        %v900 = vrot.slane %v898, 4
        %v901 = vrot.slane %v765, 7
        %v902 = vsel %vm826, %v900, %v901
        %v903 = vrot.slane %v901, 4
        %v904 = vrot.slane %v766, 7
        %v905 = vsel %vm826, %v903, %v904
        %v906 = vrot.slane %v904, 4
        %v907 = vrot.slane %v767, 7
        %v908 = vsel %vm826, %v906, %v907
        %v909 = vrot.slane %v907, 4
        %v910 = vrot.slane %v768, 7
        %v911 = vsel %vm826, %v909, %v910
        %v912 = vrot.slane %v910, 4
        %v913 = vrot.slane %v769, 7
        %v914 = vsel %vm826, %v912, %v913
        %v915 = vrot.slane %v913, 4
        %v916 = vrot.slane %v770, 7
        %v917 = vsel %vm826, %v915, %v916
        %v918 = vrot.slane %v916, 4
        %v919 = vrot.slane %v771, 7
        %v920 = vsel %vm826, %v918, %v919
        %v921 = vrot.slane %v919, 4
        %v922 = vrot.slane %v772, 7
        %v923 = vsel %vm826, %v921, %v922
        %v924 = vrot.slane %v922, 4
        %v925 = vrot.slane %v773, 7
        %v926 = vsel %vm826, %v924, %v925
        %v927 = vrot.slane %v925, 4
        %v928 = vrot.slane %v774, 7
        %v929 = vsel %vm826, %v927, %v928
        %v930 = vrot.slane %v928, 4
        %v931 = vrot.slane %v775, 7
        %v932 = vsel %vm826, %v930, %v931
        %v933 = vrot.slane %v931, 4
        %v934 = vrot.slane %v776, 7
        %v935 = vsel %vm826, %v933, %v934
        %v936 = vrot.slane %v934, 4
        %v937 = vrot.slane %v777, 7
        %v938 = vsel %vm826, %v936, %v937
        %v939 = vrot.slane %v937, 4
        %v940 = vrot.slane %v778, 7
        %v941 = vsel %vm826, %v939, %v940
        %v942 = vrot.slane %v940, 4
        %v943 = vrot.slane %v779, 7
        %v944 = vsel %vm826, %v942, %v943
        %v945 = vrot.slane %v943, 4
        %v946 = vrot.slane %v780, 7
        %v947 = vsel %vm826, %v945, %v946
        %v948 = vrot.slane %v946, 4
        %v949 = vrot.slane %v781, 7
        %v950 = vsel %vm826, %v948, %v949
        %992 = vst [vmem:[#allocation2 + $0x4] sm:$0xf] %v830
        %993 = vst [vmem:[#allocation2 + $0x28] sm:$0xf] %v833
        %994 = vst [vmem:[#allocation2 + $0x4c] sm:$0xf] %v836
        %995 = vst [vmem:[#allocation2 + $0x70] sm:$0xf] %v839
        %996 = vst [vmem:[#allocation2 + $0x94] sm:$0xf] %v842
        %997 = vst [vmem:[#allocation2 + $0xb8] sm:$0xf] %v845
        %998 = vst [vmem:[#allocation2 + $0xdc] sm:$0xf] %v848
        %999 = vst [vmem:[#allocation2 + $0x100] sm:$0xf] %v851
        %1000 = vst [vmem:[#allocation2 + $0x124] sm:$0xf] %v854
        %1001 = vst [vmem:[#allocation2 + $0x148] sm:$0xf] %v857
        %1002 = vst [vmem:[#allocation2 + $0x16c] sm:$0xf] %v860
        %1003 = vst [vmem:[#allocation2 + $0x190] sm:$0xf] %v863
        %1004 = vst [vmem:[#allocation2 + $0x1b4] sm:$0xf] %v866
        %1005 = vst [vmem:[#allocation2 + $0x1d8] sm:$0xf] %v869
        %1006 = vst [vmem:[#allocation2 + $0x1fc] sm:$0xf] %v872
        %1007 = vst [vmem:[#allocation2 + $0x220] sm:$0xf] %v875
        %1008 = vst [vmem:[#allocation2 + $0x244] sm:$0xf] %v878
        %1009 = vst [vmem:[#allocation2 + $0x268] sm:$0xf] %v881
        %1010 = vst [vmem:[#allocation2 + $0x28c] sm:$0xf] %v884
        %1011 = vst [vmem:[#allocation2 + $0x2b0] sm:$0xf] %v887
        %1012 = vst [vmem:[#allocation2 + $0x2d4] sm:$0xf] %v890
        %1013 = vst [vmem:[#allocation2 + $0x2f8] sm:$0xf] %v893
        %1014 = vst [vmem:[#allocation2 + $0x31c] sm:$0xf] %v896
        %1015 = vst [vmem:[#allocation2 + $0x340] sm:$0xf] %v899
        %1016 = vst [vmem:[#allocation2 + $0x364] sm:$0xf] %v902
        %1017 = vst [vmem:[#allocation2 + $0x388] sm:$0xf] %v905
        %1018 = vst [vmem:[#allocation2 + $0x3ac] sm:$0xf] %v908
        %1019 = vst [vmem:[#allocation2 + $0x3d0] sm:$0xf] %v911
        %1020 = vst [vmem:[#allocation2 + $0x3f4] sm:$0xf] %v914
        %1021 = vst [vmem:[#allocation2 + $0x418] sm:$0xf] %v917
        %1022 = vst [vmem:[#allocation2 + $0x43c] sm:$0xf] %v920
        %1023 = vst [vmem:[#allocation2 + $0x460] sm:$0xf] %v923
        %1024 = vst [vmem:[#allocation2 + $0x484] sm:$0xf] %v926
        %1025 = vst [vmem:[#allocation2 + $0x4a8] sm:$0xf] %v929
        %1026 = vst [vmem:[#allocation2 + $0x4cc] sm:$0xf] %v932
        %1027 = vst [vmem:[#allocation2 + $0x4f0] sm:$0xf] %v935
        %1028 = vst [vmem:[#allocation2 + $0x514] sm:$0xf] %v938
        %1029 = vst [vmem:[#allocation2 + $0x538] sm:$0xf] %v941
        %1030 = vst [vmem:[#allocation2 + $0x55c] sm:$0xf] %v944
        %1031 = vst [vmem:[#allocation2 + $0x580] sm:$0xf] %v947
        %1032 = vst [vmem:[#allocation2 + $0x5a4] sm:$0x3] %v950
        %v1033 = vld [vmem:[%s193 + $0x4] sm:$0x8]
        %v1034 = vld [vmem:[%s193 + $0x8] sm:$0xf]
        %v1035 = vld [vmem:[%s193 + $0xc] sm:$0xf]
        %v1036 = vld [vmem:[%s193 + $0x10] sm:$0xf]
        %v1037 = vld [vmem:[%s193 + $0x14] sm:$0xf]
        %v1038 = vld [vmem:[%s193 + $0x18] sm:$0xf]
        %v1039 = vld [vmem:[%s193 + $0x1c] sm:$0xf]
        %v1040 = vld [vmem:[%s193 + $0x20] sm:$0xf]
        %v1041 = vld [vmem:[%s193 + $0x24] sm:$0xf]
        %v1042 = vld [vmem:[%s193 + $0x28] sm:$0xf]
        %v1043 = vld [vmem:[%s193 + $0x2c] sm:$0xf]
        %v1044 = vld [vmem:[%s193 + $0x30] sm:$0xf]
        %v1045 = vld [vmem:[%s193 + $0x34] sm:$0xf]
        %v1046 = vld [vmem:[%s193 + $0x38] sm:$0xf]
        %v1047 = vld [vmem:[%s193 + $0x3c] sm:$0xf]
        %v1048 = vld [vmem:[%s193 + $0x40] sm:$0xf]
        %v1049 = vld [vmem:[%s193 + $0x44] sm:$0xf]
        %v1050 = vld [vmem:[%s193 + $0x48] sm:$0xf]
        %v1051 = vld [vmem:[%s193 + $0x4c] sm:$0xf]
        %v1052 = vld [vmem:[%s193 + $0x50] sm:$0xf]
        %v1053 = vld [vmem:[%s193 + $0x54] sm:$0xf]
        %v1054 = vld [vmem:[%s193 + $0x58] sm:$0xf]
        %v1055 = vld [vmem:[%s193 + $0x5c] sm:$0xf]
        %v1056 = vld [vmem:[%s193 + $0x60] sm:$0xf]
        %v1057 = vld [vmem:[%s193 + $0x64] sm:$0xf]
        %v1058 = vld [vmem:[%s193 + $0x68] sm:$0xf]
        %v1059 = vld [vmem:[%s193 + $0x6c] sm:$0xf]
        %v1060 = vld [vmem:[%s193 + $0x70] sm:$0xf]
        %v1061 = vld [vmem:[%s193 + $0x74] sm:$0xf]
        %v1062 = vld [vmem:[%s193 + $0x78] sm:$0xf]
        %v1063 = vld [vmem:[%s193 + $0x7c] sm:$0xf]
        %v1064 = vld [vmem:[%s193 + $0x80] sm:$0xf]
        %v1065 = vld [vmem:[%s193 + $0x84] sm:$0xf]
        %v1066 = vld [vmem:[%s193 + $0x88] sm:$0xf]
        %v1067 = vld [vmem:[%s193 + $0x8c] sm:$0xf]
        %v1068 = vld [vmem:[%s193 + $0x90] sm:$0xf]
        %v1069 = vld [vmem:[%s193 + $0x94] sm:$0xf]
        %v1070 = vld [vmem:[%s193 + $0x98] sm:$0xf]
        %v1071 = vld [vmem:[%s193 + $0x9c] sm:$0xf]
        %v1072 = vld [vmem:[%s193 + $0xa0] sm:$0xf]
        %v1073 = vld [vmem:[%s193 + $0xa4] sm:$0xf]
        %v1074 = vld [vmem:[%s193 + $0xa8] sm:$0x3]
        %vm1075 = vsmask.f32 256
        %vm1076 = vsmask.f32 4368
        %vm1077 = vmor %vm1075, %vm1076
        %v1079 = vshrl.u32 %v1033, 16
        %v1081 = vrot.slane %v1079, 7
        %v1082 = vrot.slane %v1081, 4
        %v1084 = vshrl.u32 %v1034, 16
        %v1086 = vrot.slane %v1084, 7
        %v1087 = vshll.u32 %v1034, 16
        %v1089 = vor.u32 %v1086, %v1087
        %v1090 = vsel %vm1077, %v1082, %v1089
        %v1091 = vrot.slane %v1086, 4
        %v1093 = vshrl.u32 %v1035, 16
        %v1095 = vrot.slane %v1093, 7
        %v1096 = vshll.u32 %v1035, 16
        %v1098 = vor.u32 %v1095, %v1096
        %v1099 = vsel %vm1077, %v1091, %v1098
        %v1100 = vrot.slane %v1095, 4
        %v1102 = vshrl.u32 %v1036, 16
        %v1104 = vrot.slane %v1102, 7
        %v1105 = vshll.u32 %v1036, 16
        %v1107 = vor.u32 %v1104, %v1105
        %v1108 = vsel %vm1077, %v1100, %v1107
        %v1109 = vrot.slane %v1104, 4
        %v1111 = vshrl.u32 %v1037, 16
        %v1113 = vrot.slane %v1111, 7
        %v1114 = vshll.u32 %v1037, 16
        %v1116 = vor.u32 %v1113, %v1114
        %v1117 = vsel %vm1077, %v1109, %v1116
        %v1118 = vrot.slane %v1113, 4
        %v1120 = vshrl.u32 %v1038, 16
        %v1122 = vrot.slane %v1120, 7
        %v1123 = vshll.u32 %v1038, 16
        %v1125 = vor.u32 %v1122, %v1123
        %v1126 = vsel %vm1077, %v1118, %v1125
        %v1127 = vrot.slane %v1122, 4
        %v1129 = vshrl.u32 %v1039, 16
        %v1131 = vrot.slane %v1129, 7
        %v1132 = vshll.u32 %v1039, 16
        %v1134 = vor.u32 %v1131, %v1132
        %v1135 = vsel %vm1077, %v1127, %v1134
        %v1136 = vrot.slane %v1131, 4
        %v1138 = vshrl.u32 %v1040, 16
        %v1140 = vrot.slane %v1138, 7
        %v1141 = vshll.u32 %v1040, 16
        %v1143 = vor.u32 %v1140, %v1141
        %v1144 = vsel %vm1077, %v1136, %v1143
        %v1145 = vrot.slane %v1140, 4
        %v1147 = vshrl.u32 %v1041, 16
        %v1149 = vrot.slane %v1147, 7
        %v1150 = vshll.u32 %v1041, 16
        %v1152 = vor.u32 %v1149, %v1150
        %v1153 = vsel %vm1077, %v1145, %v1152
        %v1154 = vrot.slane %v1149, 4
        %v1156 = vshrl.u32 %v1042, 16
        %v1158 = vrot.slane %v1156, 7
        %v1159 = vshll.u32 %v1042, 16
        %v1161 = vor.u32 %v1158, %v1159
        %v1162 = vsel %vm1077, %v1154, %v1161
        %v1163 = vrot.slane %v1158, 4
        %v1165 = vshrl.u32 %v1043, 16
        %v1167 = vrot.slane %v1165, 7
        %v1168 = vshll.u32 %v1043, 16
        %v1170 = vor.u32 %v1167, %v1168
        %v1171 = vsel %vm1077, %v1163, %v1170
        %v1172 = vrot.slane %v1167, 4
        %v1174 = vshrl.u32 %v1044, 16
        %v1176 = vrot.slane %v1174, 7
        %v1177 = vshll.u32 %v1044, 16
        %v1179 = vor.u32 %v1176, %v1177
        %v1180 = vsel %vm1077, %v1172, %v1179
        %v1181 = vrot.slane %v1176, 4
        %v1183 = vshrl.u32 %v1045, 16
        %v1185 = vrot.slane %v1183, 7
        %v1186 = vshll.u32 %v1045, 16
        %v1188 = vor.u32 %v1185, %v1186
        %v1189 = vsel %vm1077, %v1181, %v1188
        %v1190 = vrot.slane %v1185, 4
        %v1192 = vshrl.u32 %v1046, 16
        %v1194 = vrot.slane %v1192, 7
        %v1195 = vshll.u32 %v1046, 16
        %v1197 = vor.u32 %v1194, %v1195
        %v1198 = vsel %vm1077, %v1190, %v1197
        %v1199 = vrot.slane %v1194, 4
        %v1201 = vshrl.u32 %v1047, 16
        %v1203 = vrot.slane %v1201, 7
        %v1204 = vshll.u32 %v1047, 16
        %v1206 = vor.u32 %v1203, %v1204
        %v1207 = vsel %vm1077, %v1199, %v1206
        %v1208 = vrot.slane %v1203, 4
        %v1210 = vshrl.u32 %v1048, 16
        %v1212 = vrot.slane %v1210, 7
        %v1213 = vshll.u32 %v1048, 16
        %v1215 = vor.u32 %v1212, %v1213
        %v1216 = vsel %vm1077, %v1208, %v1215
        %v1217 = vrot.slane %v1212, 4
        %v1219 = vshrl.u32 %v1049, 16
        %v1221 = vrot.slane %v1219, 7
        %v1222 = vshll.u32 %v1049, 16
        %v1224 = vor.u32 %v1221, %v1222
        %v1225 = vsel %vm1077, %v1217, %v1224
        %v1226 = vrot.slane %v1221, 4
        %v1228 = vshrl.u32 %v1050, 16
        %v1230 = vrot.slane %v1228, 7
        %v1231 = vshll.u32 %v1050, 16
        %v1233 = vor.u32 %v1230, %v1231
        %v1234 = vsel %vm1077, %v1226, %v1233
        %v1235 = vrot.slane %v1230, 4
        %v1237 = vshrl.u32 %v1051, 16
        %v1239 = vrot.slane %v1237, 7
        %v1240 = vshll.u32 %v1051, 16
        %v1242 = vor.u32 %v1239, %v1240
        %v1243 = vsel %vm1077, %v1235, %v1242
        %v1244 = vrot.slane %v1239, 4
        %v1246 = vshrl.u32 %v1052, 16
        %v1248 = vrot.slane %v1246, 7
        %v1249 = vshll.u32 %v1052, 16
        %v1251 = vor.u32 %v1248, %v1249
        %v1252 = vsel %vm1077, %v1244, %v1251
        %v1253 = vrot.slane %v1248, 4
        %v1255 = vshrl.u32 %v1053, 16
        %v1257 = vrot.slane %v1255, 7
        %v1258 = vshll.u32 %v1053, 16
        %v1260 = vor.u32 %v1257, %v1258
        %v1261 = vsel %vm1077, %v1253, %v1260
        %v1262 = vrot.slane %v1257, 4
        %v1264 = vshrl.u32 %v1054, 16
        %v1266 = vrot.slane %v1264, 7
        %v1267 = vshll.u32 %v1054, 16
        %v1269 = vor.u32 %v1266, %v1267
        %v1270 = vsel %vm1077, %v1262, %v1269
        %v1271 = vrot.slane %v1266, 4
        %v1273 = vshrl.u32 %v1055, 16
        %v1275 = vrot.slane %v1273, 7
        %v1276 = vshll.u32 %v1055, 16
        %v1278 = vor.u32 %v1275, %v1276
        %v1279 = vsel %vm1077, %v1271, %v1278
        %v1280 = vrot.slane %v1275, 4
        %v1282 = vshrl.u32 %v1056, 16
        %v1284 = vrot.slane %v1282, 7
        %v1285 = vshll.u32 %v1056, 16
        %v1287 = vor.u32 %v1284, %v1285
        %v1288 = vsel %vm1077, %v1280, %v1287
        %v1289 = vrot.slane %v1284, 4
        %v1291 = vshrl.u32 %v1057, 16
        %v1293 = vrot.slane %v1291, 7
        %v1294 = vshll.u32 %v1057, 16
        %v1296 = vor.u32 %v1293, %v1294
        %v1297 = vsel %vm1077, %v1289, %v1296
        %v1298 = vrot.slane %v1293, 4
        %v1300 = vshrl.u32 %v1058, 16
        %v1302 = vrot.slane %v1300, 7
        %v1303 = vshll.u32 %v1058, 16
        %v1305 = vor.u32 %v1302, %v1303
        %v1306 = vsel %vm1077, %v1298, %v1305
        %v1307 = vrot.slane %v1302, 4
        %v1309 = vshrl.u32 %v1059, 16
        %v1311 = vrot.slane %v1309, 7
        %v1312 = vshll.u32 %v1059, 16
        %v1314 = vor.u32 %v1311, %v1312
        %v1315 = vsel %vm1077, %v1307, %v1314
        %v1316 = vrot.slane %v1311, 4
        %v1318 = vshrl.u32 %v1060, 16
        %v1320 = vrot.slane %v1318, 7
        %v1321 = vshll.u32 %v1060, 16
        %v1323 = vor.u32 %v1320, %v1321
        %v1324 = vsel %vm1077, %v1316, %v1323
        %v1325 = vrot.slane %v1320, 4
        %v1327 = vshrl.u32 %v1061, 16
        %v1329 = vrot.slane %v1327, 7
        %v1330 = vshll.u32 %v1061, 16
        %v1332 = vor.u32 %v1329, %v1330
        %v1333 = vsel %vm1077, %v1325, %v1332
        %v1334 = vrot.slane %v1329, 4
        %v1336 = vshrl.u32 %v1062, 16
        %v1338 = vrot.slane %v1336, 7
        %v1339 = vshll.u32 %v1062, 16
        %v1341 = vor.u32 %v1338, %v1339
        %v1342 = vsel %vm1077, %v1334, %v1341
        %v1343 = vrot.slane %v1338, 4
        %v1345 = vshrl.u32 %v1063, 16
        %v1347 = vrot.slane %v1345, 7
        %v1348 = vshll.u32 %v1063, 16
        %v1350 = vor.u32 %v1347, %v1348
        %v1351 = vsel %vm1077, %v1343, %v1350
        %v1352 = vrot.slane %v1347, 4
        %v1354 = vshrl.u32 %v1064, 16
        %v1356 = vrot.slane %v1354, 7
        %v1357 = vshll.u32 %v1064, 16
        %v1359 = vor.u32 %v1356, %v1357
        %v1360 = vsel %vm1077, %v1352, %v1359
        %v1361 = vrot.slane %v1356, 4
        %v1363 = vshrl.u32 %v1065, 16
        %v1365 = vrot.slane %v1363, 7
        %v1366 = vshll.u32 %v1065, 16
        %v1368 = vor.u32 %v1365, %v1366
        %v1369 = vsel %vm1077, %v1361, %v1368
        %v1370 = vrot.slane %v1365, 4
        %v1372 = vshrl.u32 %v1066, 16
        %v1374 = vrot.slane %v1372, 7
        %v1375 = vshll.u32 %v1066, 16
        %v1377 = vor.u32 %v1374, %v1375
        %v1378 = vsel %vm1077, %v1370, %v1377
        %v1379 = vrot.slane %v1374, 4
        %v1381 = vshrl.u32 %v1067, 16
        %v1383 = vrot.slane %v1381, 7
        %v1384 = vshll.u32 %v1067, 16
        %v1386 = vor.u32 %v1383, %v1384
        %v1387 = vsel %vm1077, %v1379, %v1386
        %v1388 = vrot.slane %v1383, 4
        %v1390 = vshrl.u32 %v1068, 16
        %v1392 = vrot.slane %v1390, 7
        %v1393 = vshll.u32 %v1068, 16
        %v1395 = vor.u32 %v1392, %v1393
        %v1396 = vsel %vm1077, %v1388, %v1395
        %v1397 = vrot.slane %v1392, 4
        %v1399 = vshrl.u32 %v1069, 16
        %v1401 = vrot.slane %v1399, 7
        %v1402 = vshll.u32 %v1069, 16
        %v1404 = vor.u32 %v1401, %v1402
        %v1405 = vsel %vm1077, %v1397, %v1404
        %v1406 = vrot.slane %v1401, 4
        %v1408 = vshrl.u32 %v1070, 16
        %v1410 = vrot.slane %v1408, 7
        %v1411 = vshll.u32 %v1070, 16
        %v1413 = vor.u32 %v1410, %v1411
        %v1414 = vsel %vm1077, %v1406, %v1413
        %v1415 = vrot.slane %v1410, 4
        %v1417 = vshrl.u32 %v1071, 16
        %v1419 = vrot.slane %v1417, 7
        %v1420 = vshll.u32 %v1071, 16
        %v1422 = vor.u32 %v1419, %v1420
        %v1423 = vsel %vm1077, %v1415, %v1422
        %v1424 = vrot.slane %v1419, 4
        %v1426 = vshrl.u32 %v1072, 16
        %v1428 = vrot.slane %v1426, 7
        %v1429 = vshll.u32 %v1072, 16
        %v1431 = vor.u32 %v1428, %v1429
        %v1432 = vsel %vm1077, %v1424, %v1431
        %v1433 = vrot.slane %v1428, 4
        %v1435 = vshrl.u32 %v1073, 16
        %v1437 = vrot.slane %v1435, 7
        %v1438 = vshll.u32 %v1073, 16
        %v1440 = vor.u32 %v1437, %v1438
        %v1441 = vsel %vm1077, %v1433, %v1440
        %v1442 = vrot.slane %v1437, 4
        %v1444 = vshrl.u32 %v1074, 16
        %v1446 = vrot.slane %v1444, 7
        %v1447 = vshll.u32 %v1074, 16
        %v1449 = vor.u32 %v1446, %v1447
        %v1450 = vsel %vm1077, %v1442, %v1449
        %1492 = vst [vmem:[#allocation2 + $0x8] sm:$0xf] %v1090
        %1493 = vst [vmem:[#allocation2 + $0x2c] sm:$0xf] %v1099
        %1494 = vst [vmem:[#allocation2 + $0x50] sm:$0xf] %v1108
        %1495 = vst [vmem:[#allocation2 + $0x74] sm:$0xf] %v1117
        %1496 = vst [vmem:[#allocation2 + $0x98] sm:$0xf] %v1126
        %1497 = vst [vmem:[#allocation2 + $0xbc] sm:$0xf] %v1135
        %1498 = vst [vmem:[#allocation2 + $0xe0] sm:$0xf] %v1144
        %1499 = vst [vmem:[#allocation2 + $0x104] sm:$0xf] %v1153
        %1500 = vst [vmem:[#allocation2 + $0x128] sm:$0xf] %v1162
        %1501 = vst [vmem:[#allocation2 + $0x14c] sm:$0xf] %v1171
        %1502 = vst [vmem:[#allocation2 + $0x170] sm:$0xf] %v1180
        %1503 = vst [vmem:[#allocation2 + $0x194] sm:$0xf] %v1189
        %1504 = vst [vmem:[#allocation2 + $0x1b8] sm:$0xf] %v1198
        %1505 = vst [vmem:[#allocation2 + $0x1dc] sm:$0xf] %v1207
        %1506 = vst [vmem:[#allocation2 + $0x200] sm:$0xf] %v1216
        %1507 = vst [vmem:[#allocation2 + $0x224] sm:$0xf] %v1225
        %1508 = vst [vmem:[#allocation2 + $0x248] sm:$0xf] %v1234
        %1509 = vst [vmem:[#allocation2 + $0x26c] sm:$0xf] %v1243
        %1510 = vst [vmem:[#allocation2 + $0x290] sm:$0xf] %v1252
        %1511 = vst [vmem:[#allocation2 + $0x2b4] sm:$0xf] %v1261
        %1512 = vst [vmem:[#allocation2 + $0x2d8] sm:$0xf] %v1270
        %1513 = vst [vmem:[#allocation2 + $0x2fc] sm:$0xf] %v1279
        %1514 = vst [vmem:[#allocation2 + $0x320] sm:$0xf] %v1288
        %1515 = vst [vmem:[#allocation2 + $0x344] sm:$0xf] %v1297
        %1516 = vst [vmem:[#allocation2 + $0x368] sm:$0xf] %v1306
        %1517 = vst [vmem:[#allocation2 + $0x38c] sm:$0xf] %v1315
        %1518 = vst [vmem:[#allocation2 + $0x3b0] sm:$0xf] %v1324
        %1519 = vst [vmem:[#allocation2 + $0x3d4] sm:$0xf] %v1333
        %1520 = vst [vmem:[#allocation2 + $0x3f8] sm:$0xf] %v1342
        %1521 = vst [vmem:[#allocation2 + $0x41c] sm:$0xf] %v1351
        %1522 = vst [vmem:[#allocation2 + $0x440] sm:$0xf] %v1360
        %1523 = vst [vmem:[#allocation2 + $0x464] sm:$0xf] %v1369
        %1524 = vst [vmem:[#allocation2 + $0x488] sm:$0xf] %v1378
        %1525 = vst [vmem:[#allocation2 + $0x4ac] sm:$0xf] %v1387
        %1526 = vst [vmem:[#allocation2 + $0x4d0] sm:$0xf] %v1396
        %1527 = vst [vmem:[#allocation2 + $0x4f4] sm:$0xf] %v1405
        %1528 = vst [vmem:[#allocation2 + $0x518] sm:$0xf] %v1414
        %1529 = vst [vmem:[#allocation2 + $0x53c] sm:$0xf] %v1423
        %1530 = vst [vmem:[#allocation2 + $0x560] sm:$0xf] %v1432
        %1531 = vst [vmem:[#allocation2 + $0x584] sm:$0xf] %v1441
        %1532 = vst [vmem:[#allocation2 + $0x5a8] sm:$0x3] %v1450
        %v1533 = vld [vmem:[%s193 + $0xc] sm:$0x8]
        %v1534 = vld [vmem:[%s193 + $0x10] sm:$0xf]
        %v1535 = vld [vmem:[%s193 + $0x14] sm:$0xf]
        %v1536 = vld [vmem:[%s193 + $0x18] sm:$0xf]
        %v1537 = vld [vmem:[%s193 + $0x1c] sm:$0xf]
        %v1538 = vld [vmem:[%s193 + $0x20] sm:$0xf]
        %v1539 = vld [vmem:[%s193 + $0x24] sm:$0xf]
        %v1540 = vld [vmem:[%s193 + $0x28] sm:$0xf]
        %v1541 = vld [vmem:[%s193 + $0x2c] sm:$0xf]
        %v1542 = vld [vmem:[%s193 + $0x30] sm:$0xf]
        %v1543 = vld [vmem:[%s193 + $0x34] sm:$0xf]
        %v1544 = vld [vmem:[%s193 + $0x38] sm:$0xf]
        %v1545 = vld [vmem:[%s193 + $0x3c] sm:$0xf]
        %v1546 = vld [vmem:[%s193 + $0x40] sm:$0xf]
        %v1547 = vld [vmem:[%s193 + $0x44] sm:$0xf]
        %v1548 = vld [vmem:[%s193 + $0x48] sm:$0xf]
        %v1549 = vld [vmem:[%s193 + $0x4c] sm:$0xf]
        %v1550 = vld [vmem:[%s193 + $0x50] sm:$0xf]
        %v1551 = vld [vmem:[%s193 + $0x54] sm:$0xf]
        %v1552 = vld [vmem:[%s193 + $0x58] sm:$0xf]
        %v1553 = vld [vmem:[%s193 + $0x5c] sm:$0xf]
        %v1554 = vld [vmem:[%s193 + $0x60] sm:$0xf]
        %v1555 = vld [vmem:[%s193 + $0x64] sm:$0xf]
        %v1556 = vld [vmem:[%s193 + $0x68] sm:$0xf]
        %v1557 = vld [vmem:[%s193 + $0x6c] sm:$0xf]
        %v1558 = vld [vmem:[%s193 + $0x70] sm:$0xf]
        %v1559 = vld [vmem:[%s193 + $0x74] sm:$0xf]
        %v1560 = vld [vmem:[%s193 + $0x78] sm:$0xf]
        %v1561 = vld [vmem:[%s193 + $0x7c] sm:$0xf]
        %v1562 = vld [vmem:[%s193 + $0x80] sm:$0xf]
        %v1563 = vld [vmem:[%s193 + $0x84] sm:$0xf]
        %v1564 = vld [vmem:[%s193 + $0x88] sm:$0xf]
        %v1565 = vld [vmem:[%s193 + $0x8c] sm:$0xf]
        %v1566 = vld [vmem:[%s193 + $0x90] sm:$0xf]
        %v1567 = vld [vmem:[%s193 + $0x94] sm:$0xf]
        %v1568 = vld [vmem:[%s193 + $0x98] sm:$0xf]
        %v1569 = vld [vmem:[%s193 + $0x9c] sm:$0xf]
        %v1570 = vld [vmem:[%s193 + $0xa0] sm:$0xf]
        %v1571 = vld [vmem:[%s193 + $0xa4] sm:$0xf]
        %v1572 = vld [vmem:[%s193 + $0xa8] sm:$0xf]
        %v1573 = vld [vmem:[%s193 + $0xac] sm:$0xf]
        %v1574 = vld [vmem:[%s193 + $0xb0] sm:$0x3]
        %v1576 = vshrl.u32 %v1533, 16
        %v1578 = vrot.slane %v1576, 7
        %v1579 = vrot.slane %v1578, 4
        %v1581 = vshrl.u32 %v1534, 16
        %v1583 = vrot.slane %v1581, 7
        %v1584 = vshll.u32 %v1534, 16
        %v1586 = vor.u32 %v1583, %v1584
        %v1587 = vsel %vm1077, %v1579, %v1586
        %v1588 = vrot.slane %v1583, 4
        %v1590 = vshrl.u32 %v1535, 16
        %v1592 = vrot.slane %v1590, 7
        %v1593 = vshll.u32 %v1535, 16
        %v1595 = vor.u32 %v1592, %v1593
        %v1596 = vsel %vm1077, %v1588, %v1595
        %v1597 = vrot.slane %v1592, 4
        %v1599 = vshrl.u32 %v1536, 16
        %v1601 = vrot.slane %v1599, 7
        %v1602 = vshll.u32 %v1536, 16
        %v1604 = vor.u32 %v1601, %v1602
        %v1605 = vsel %vm1077, %v1597, %v1604
        %v1606 = vrot.slane %v1601, 4
        %v1608 = vshrl.u32 %v1537, 16
        %v1610 = vrot.slane %v1608, 7
        %v1611 = vshll.u32 %v1537, 16
        %v1613 = vor.u32 %v1610, %v1611
        %v1614 = vsel %vm1077, %v1606, %v1613
        %v1615 = vrot.slane %v1610, 4
        %v1617 = vshrl.u32 %v1538, 16
        %v1619 = vrot.slane %v1617, 7
        %v1620 = vshll.u32 %v1538, 16
        %v1622 = vor.u32 %v1619, %v1620
        %v1623 = vsel %vm1077, %v1615, %v1622
        %v1624 = vrot.slane %v1619, 4
        %v1626 = vshrl.u32 %v1539, 16
        %v1628 = vrot.slane %v1626, 7
        %v1629 = vshll.u32 %v1539, 16
        %v1631 = vor.u32 %v1628, %v1629
        %v1632 = vsel %vm1077, %v1624, %v1631
        %v1633 = vrot.slane %v1628, 4
        %v1635 = vshrl.u32 %v1540, 16
        %v1637 = vrot.slane %v1635, 7
        %v1638 = vshll.u32 %v1540, 16
        %v1640 = vor.u32 %v1637, %v1638
        %v1641 = vsel %vm1077, %v1633, %v1640
        %v1642 = vrot.slane %v1637, 4
        %v1644 = vshrl.u32 %v1541, 16
        %v1646 = vrot.slane %v1644, 7
        %v1647 = vshll.u32 %v1541, 16
        %v1649 = vor.u32 %v1646, %v1647
        %v1650 = vsel %vm1077, %v1642, %v1649
        %v1651 = vrot.slane %v1646, 4
        %v1653 = vshrl.u32 %v1542, 16
        %v1655 = vrot.slane %v1653, 7
        %v1656 = vshll.u32 %v1542, 16
        %v1658 = vor.u32 %v1655, %v1656
        %v1659 = vsel %vm1077, %v1651, %v1658
        %v1660 = vrot.slane %v1655, 4
        %v1662 = vshrl.u32 %v1543, 16
        %v1664 = vrot.slane %v1662, 7
        %v1665 = vshll.u32 %v1543, 16
        %v1667 = vor.u32 %v1664, %v1665
        %v1668 = vsel %vm1077, %v1660, %v1667
        %v1669 = vrot.slane %v1664, 4
        %v1671 = vshrl.u32 %v1544, 16
        %v1673 = vrot.slane %v1671, 7
        %v1674 = vshll.u32 %v1544, 16
        %v1676 = vor.u32 %v1673, %v1674
        %v1677 = vsel %vm1077, %v1669, %v1676
        %v1678 = vrot.slane %v1673, 4
        %v1680 = vshrl.u32 %v1545, 16
        %v1682 = vrot.slane %v1680, 7
        %v1683 = vshll.u32 %v1545, 16
        %v1685 = vor.u32 %v1682, %v1683
        %v1686 = vsel %vm1077, %v1678, %v1685
        %v1687 = vrot.slane %v1682, 4
        %v1689 = vshrl.u32 %v1546, 16
        %v1691 = vrot.slane %v1689, 7
        %v1692 = vshll.u32 %v1546, 16
        %v1694 = vor.u32 %v1691, %v1692
        %v1695 = vsel %vm1077, %v1687, %v1694
        %v1696 = vrot.slane %v1691, 4
        %v1698 = vshrl.u32 %v1547, 16
        %v1700 = vrot.slane %v1698, 7
        %v1701 = vshll.u32 %v1547, 16
        %v1703 = vor.u32 %v1700, %v1701
        %v1704 = vsel %vm1077, %v1696, %v1703
        %v1705 = vrot.slane %v1700, 4
        %v1707 = vshrl.u32 %v1548, 16
        %v1709 = vrot.slane %v1707, 7
        %v1710 = vshll.u32 %v1548, 16
        %v1712 = vor.u32 %v1709, %v1710
        %v1713 = vsel %vm1077, %v1705, %v1712
        %v1714 = vrot.slane %v1709, 4
        %v1716 = vshrl.u32 %v1549, 16
        %v1718 = vrot.slane %v1716, 7
        %v1719 = vshll.u32 %v1549, 16
        %v1721 = vor.u32 %v1718, %v1719
        %v1722 = vsel %vm1077, %v1714, %v1721
        %v1723 = vrot.slane %v1718, 4
        %v1725 = vshrl.u32 %v1550, 16
        %v1727 = vrot.slane %v1725, 7
        %v1728 = vshll.u32 %v1550, 16
        %v1730 = vor.u32 %v1727, %v1728
        %v1731 = vsel %vm1077, %v1723, %v1730
        %v1732 = vrot.slane %v1727, 4
        %v1734 = vshrl.u32 %v1551, 16
        %v1736 = vrot.slane %v1734, 7
        %v1737 = vshll.u32 %v1551, 16
        %v1739 = vor.u32 %v1736, %v1737
        %v1740 = vsel %vm1077, %v1732, %v1739
        %v1741 = vrot.slane %v1736, 4
        %v1743 = vshrl.u32 %v1552, 16
        %v1745 = vrot.slane %v1743, 7
        %v1746 = vshll.u32 %v1552, 16
        %v1748 = vor.u32 %v1745, %v1746
        %v1749 = vsel %vm1077, %v1741, %v1748
        %v1750 = vrot.slane %v1745, 4
        %v1752 = vshrl.u32 %v1553, 16
        %v1754 = vrot.slane %v1752, 7
        %v1755 = vshll.u32 %v1553, 16
        %v1757 = vor.u32 %v1754, %v1755
        %v1758 = vsel %vm1077, %v1750, %v1757
        %v1759 = vrot.slane %v1754, 4
        %v1761 = vshrl.u32 %v1554, 16
        %v1763 = vrot.slane %v1761, 7
        %v1764 = vshll.u32 %v1554, 16
        %v1766 = vor.u32 %v1763, %v1764
        %v1767 = vsel %vm1077, %v1759, %v1766
        %v1768 = vrot.slane %v1763, 4
        %v1770 = vshrl.u32 %v1555, 16
        %v1772 = vrot.slane %v1770, 7
        %v1773 = vshll.u32 %v1555, 16
        %v1775 = vor.u32 %v1772, %v1773
        %v1776 = vsel %vm1077, %v1768, %v1775
        %v1777 = vrot.slane %v1772, 4
        %v1779 = vshrl.u32 %v1556, 16
        %v1781 = vrot.slane %v1779, 7
        %v1782 = vshll.u32 %v1556, 16
        %v1784 = vor.u32 %v1781, %v1782
        %v1785 = vsel %vm1077, %v1777, %v1784
        %v1786 = vrot.slane %v1781, 4
        %v1788 = vshrl.u32 %v1557, 16
        %v1790 = vrot.slane %v1788, 7
        %v1791 = vshll.u32 %v1557, 16
        %v1793 = vor.u32 %v1790, %v1791
        %v1794 = vsel %vm1077, %v1786, %v1793
        %v1795 = vrot.slane %v1790, 4
        %v1797 = vshrl.u32 %v1558, 16
        %v1799 = vrot.slane %v1797, 7
        %v1800 = vshll.u32 %v1558, 16
        %v1802 = vor.u32 %v1799, %v1800
        %v1803 = vsel %vm1077, %v1795, %v1802
        %v1804 = vrot.slane %v1799, 4
        %v1806 = vshrl.u32 %v1559, 16
        %v1808 = vrot.slane %v1806, 7
        %v1809 = vshll.u32 %v1559, 16
        %v1811 = vor.u32 %v1808, %v1809
        %v1812 = vsel %vm1077, %v1804, %v1811
        %v1813 = vrot.slane %v1808, 4
        %v1815 = vshrl.u32 %v1560, 16
        %v1817 = vrot.slane %v1815, 7
        %v1818 = vshll.u32 %v1560, 16
        %v1820 = vor.u32 %v1817, %v1818
        %v1821 = vsel %vm1077, %v1813, %v1820
        %v1822 = vrot.slane %v1817, 4
        %v1824 = vshrl.u32 %v1561, 16
        %v1826 = vrot.slane %v1824, 7
        %v1827 = vshll.u32 %v1561, 16
        %v1829 = vor.u32 %v1826, %v1827
        %v1830 = vsel %vm1077, %v1822, %v1829
        %v1831 = vrot.slane %v1826, 4
        %v1833 = vshrl.u32 %v1562, 16
        %v1835 = vrot.slane %v1833, 7
        %v1836 = vshll.u32 %v1562, 16
        %v1838 = vor.u32 %v1835, %v1836
        %v1839 = vsel %vm1077, %v1831, %v1838
        %v1840 = vrot.slane %v1835, 4
        %v1842 = vshrl.u32 %v1563, 16
        %v1844 = vrot.slane %v1842, 7
        %v1845 = vshll.u32 %v1563, 16
        %v1847 = vor.u32 %v1844, %v1845
        %v1848 = vsel %vm1077, %v1840, %v1847
        %v1849 = vrot.slane %v1844, 4
        %v1851 = vshrl.u32 %v1564, 16
        %v1853 = vrot.slane %v1851, 7
        %v1854 = vshll.u32 %v1564, 16
        %v1856 = vor.u32 %v1853, %v1854
        %v1857 = vsel %vm1077, %v1849, %v1856
        %v1858 = vrot.slane %v1853, 4
        %v1860 = vshrl.u32 %v1565, 16
        %v1862 = vrot.slane %v1860, 7
        %v1863 = vshll.u32 %v1565, 16
        %v1865 = vor.u32 %v1862, %v1863
        %v1866 = vsel %vm1077, %v1858, %v1865
        %v1867 = vrot.slane %v1862, 4
        %v1869 = vshrl.u32 %v1566, 16
        %v1871 = vrot.slane %v1869, 7
        %v1872 = vshll.u32 %v1566, 16
        %v1874 = vor.u32 %v1871, %v1872
        %v1875 = vsel %vm1077, %v1867, %v1874
        %v1876 = vrot.slane %v1871, 4
        %v1878 = vshrl.u32 %v1567, 16
        %v1880 = vrot.slane %v1878, 7
        %v1881 = vshll.u32 %v1567, 16
        %v1883 = vor.u32 %v1880, %v1881
        %v1884 = vsel %vm1077, %v1876, %v1883
        %v1885 = vrot.slane %v1880, 4
        %v1887 = vshrl.u32 %v1568, 16
        %v1889 = vrot.slane %v1887, 7
        %v1890 = vshll.u32 %v1568, 16
        %v1892 = vor.u32 %v1889, %v1890
        %v1893 = vsel %vm1077, %v1885, %v1892
        %v1894 = vrot.slane %v1889, 4
        %v1896 = vshrl.u32 %v1569, 16
        %v1898 = vrot.slane %v1896, 7
        %v1899 = vshll.u32 %v1569, 16
        %v1901 = vor.u32 %v1898, %v1899
        %v1902 = vsel %vm1077, %v1894, %v1901
        %v1903 = vrot.slane %v1898, 4
        %v1905 = vshrl.u32 %v1570, 16
        %v1907 = vrot.slane %v1905, 7
        %v1908 = vshll.u32 %v1570, 16
        %v1910 = vor.u32 %v1907, %v1908
        %v1911 = vsel %vm1077, %v1903, %v1910
        %v1912 = vrot.slane %v1907, 4
        %v1914 = vshrl.u32 %v1571, 16
        %v1916 = vrot.slane %v1914, 7
        %v1917 = vshll.u32 %v1571, 16
        %v1919 = vor.u32 %v1916, %v1917
        %v1920 = vsel %vm1077, %v1912, %v1919
        %v1921 = vrot.slane %v1916, 4
        %v1923 = vshrl.u32 %v1572, 16
        %v1925 = vrot.slane %v1923, 7
        %v1926 = vshll.u32 %v1572, 16
        %v1928 = vor.u32 %v1925, %v1926
        %v1929 = vsel %vm1077, %v1921, %v1928
        %v1930 = vrot.slane %v1925, 4
        %v1932 = vshrl.u32 %v1573, 16
        %v1934 = vrot.slane %v1932, 7
        %v1935 = vshll.u32 %v1573, 16
        %v1937 = vor.u32 %v1934, %v1935
        %v1938 = vsel %vm1077, %v1930, %v1937
        %v1939 = vrot.slane %v1934, 4
        %v1941 = vshrl.u32 %v1574, 16
        %v1943 = vrot.slane %v1941, 7
        %v1944 = vshll.u32 %v1574, 16
        %v1946 = vor.u32 %v1943, %v1944
        %v1947 = vsel %vm1077, %v1939, %v1946
        %1989 = vst [vmem:[#allocation2 + $0xc] sm:$0xf] %v1587
        %1990 = vst [vmem:[#allocation2 + $0x30] sm:$0xf] %v1596
        %1991 = vst [vmem:[#allocation2 + $0x54] sm:$0xf] %v1605
        %1992 = vst [vmem:[#allocation2 + $0x78] sm:$0xf] %v1614
        %1993 = vst [vmem:[#allocation2 + $0x9c] sm:$0xf] %v1623
        %1994 = vst [vmem:[#allocation2 + $0xc0] sm:$0xf] %v1632
        %1995 = vst [vmem:[#allocation2 + $0xe4] sm:$0xf] %v1641
        %1996 = vst [vmem:[#allocation2 + $0x108] sm:$0xf] %v1650
        %1997 = vst [vmem:[#allocation2 + $0x12c] sm:$0xf] %v1659
        %1998 = vst [vmem:[#allocation2 + $0x150] sm:$0xf] %v1668
        %1999 = vst [vmem:[#allocation2 + $0x174] sm:$0xf] %v1677
        %2000 = vst [vmem:[#allocation2 + $0x198] sm:$0xf] %v1686
        %2001 = vst [vmem:[#allocation2 + $0x1bc] sm:$0xf] %v1695
        %2002 = vst [vmem:[#allocation2 + $0x1e0] sm:$0xf] %v1704
        %2003 = vst [vmem:[#allocation2 + $0x204] sm:$0xf] %v1713
        %2004 = vst [vmem:[#allocation2 + $0x228] sm:$0xf] %v1722
        %2005 = vst [vmem:[#allocation2 + $0x24c] sm:$0xf] %v1731
        %2006 = vst [vmem:[#allocation2 + $0x270] sm:$0xf] %v1740
        %2007 = vst [vmem:[#allocation2 + $0x294] sm:$0xf] %v1749
        %2008 = vst [vmem:[#allocation2 + $0x2b8] sm:$0xf] %v1758
        %2009 = vst [vmem:[#allocation2 + $0x2dc] sm:$0xf] %v1767
        %2010 = vst [vmem:[#allocation2 + $0x300] sm:$0xf] %v1776
        %2011 = vst [vmem:[#allocation2 + $0x324] sm:$0xf] %v1785
        %2012 = vst [vmem:[#allocation2 + $0x348] sm:$0xf] %v1794
        %2013 = vst [vmem:[#allocation2 + $0x36c] sm:$0xf] %v1803
        %2014 = vst [vmem:[#allocation2 + $0x390] sm:$0xf] %v1812
        %2015 = vst [vmem:[#allocation2 + $0x3b4] sm:$0xf] %v1821
        %2016 = vst [vmem:[#allocation2 + $0x3d8] sm:$0xf] %v1830
        %2017 = vst [vmem:[#allocation2 + $0x3fc] sm:$0xf] %v1839
        %2018 = vst [vmem:[#allocation2 + $0x420] sm:$0xf] %v1848
        %2019 = vst [vmem:[#allocation2 + $0x444] sm:$0xf] %v1857
        %2020 = vst [vmem:[#allocation2 + $0x468] sm:$0xf] %v1866
        %2021 = vst [vmem:[#allocation2 + $0x48c] sm:$0xf] %v1875
        %2022 = vst [vmem:[#allocation2 + $0x4b0] sm:$0xf] %v1884
        %2023 = vst [vmem:[#allocation2 + $0x4d4] sm:$0xf] %v1893
        %2024 = vst [vmem:[#allocation2 + $0x4f8] sm:$0xf] %v1902
        %2025 = vst [vmem:[#allocation2 + $0x51c] sm:$0xf] %v1911
        %2026 = vst [vmem:[#allocation2 + $0x540] sm:$0xf] %v1920
        %2027 = vst [vmem:[#allocation2 + $0x564] sm:$0xf] %v1929
        %2028 = vst [vmem:[#allocation2 + $0x588] sm:$0xf] %v1938
        %2029 = vst [vmem:[#allocation2 + $0x5ac] sm:$0x3] %v1947
        %v2030 = vld [vmem:[%s193 + $0x10] sm:$0xf]
        %v2031 = vld [vmem:[%s193 + $0x14] sm:$0xf]
        %v2032 = vld [vmem:[%s193 + $0x18] sm:$0xf]
        %v2033 = vld [vmem:[%s193 + $0x1c] sm:$0xf]
        %v2034 = vld [vmem:[%s193 + $0x20] sm:$0xf]
        %v2035 = vld [vmem:[%s193 + $0x24] sm:$0xf]
        %v2036 = vld [vmem:[%s193 + $0x28] sm:$0xf]
        %v2037 = vld [vmem:[%s193 + $0x2c] sm:$0xf]
        %v2038 = vld [vmem:[%s193 + $0x30] sm:$0xf]
        %v2039 = vld [vmem:[%s193 + $0x34] sm:$0xf]
        %v2040 = vld [vmem:[%s193 + $0x38] sm:$0xf]
        %v2041 = vld [vmem:[%s193 + $0x3c] sm:$0xf]
        %v2042 = vld [vmem:[%s193 + $0x40] sm:$0xf]
        %v2043 = vld [vmem:[%s193 + $0x44] sm:$0xf]
        %v2044 = vld [vmem:[%s193 + $0x48] sm:$0xf]
        %v2045 = vld [vmem:[%s193 + $0x4c] sm:$0xf]
        %v2046 = vld [vmem:[%s193 + $0x50] sm:$0xf]
        %v2047 = vld [vmem:[%s193 + $0x54] sm:$0xf]
        %v2048 = vld [vmem:[%s193 + $0x58] sm:$0xf]
        %v2049 = vld [vmem:[%s193 + $0x5c] sm:$0xf]
        %v2050 = vld [vmem:[%s193 + $0x60] sm:$0xf]
        %v2051 = vld [vmem:[%s193 + $0x64] sm:$0xf]
        %v2052 = vld [vmem:[%s193 + $0x68] sm:$0xf]
        %v2053 = vld [vmem:[%s193 + $0x6c] sm:$0xf]
        %v2054 = vld [vmem:[%s193 + $0x70] sm:$0xf]
        %v2055 = vld [vmem:[%s193 + $0x74] sm:$0xf]
        %v2056 = vld [vmem:[%s193 + $0x78] sm:$0xf]
        %v2057 = vld [vmem:[%s193 + $0x7c] sm:$0xf]
        %v2058 = vld [vmem:[%s193 + $0x80] sm:$0xf]
        %v2059 = vld [vmem:[%s193 + $0x84] sm:$0xf]
        %v2060 = vld [vmem:[%s193 + $0x88] sm:$0xf]
        %v2061 = vld [vmem:[%s193 + $0x8c] sm:$0xf]
        %v2062 = vld [vmem:[%s193 + $0x90] sm:$0xf]
        %v2063 = vld [vmem:[%s193 + $0x94] sm:$0xf]
        %v2064 = vld [vmem:[%s193 + $0x98] sm:$0xf]
        %v2065 = vld [vmem:[%s193 + $0x9c] sm:$0xf]
        %v2066 = vld [vmem:[%s193 + $0xa0] sm:$0xf]
        %v2067 = vld [vmem:[%s193 + $0xa4] sm:$0xf]
        %v2068 = vld [vmem:[%s193 + $0xa8] sm:$0xf]
        %v2069 = vld [vmem:[%s193 + $0xac] sm:$0xf]
        %v2070 = vld [vmem:[%s193 + $0xb0] sm:$0x3]
        %2071 = vst [vmem:[#allocation2 + $0x10] sm:$0xf] %v2030
        %2072 = vst [vmem:[#allocation2 + $0x34] sm:$0xf] %v2031
        %2073 = vst [vmem:[#allocation2 + $0x58] sm:$0xf] %v2032
        %2074 = vst [vmem:[#allocation2 + $0x7c] sm:$0xf] %v2033
        %2075 = vst [vmem:[#allocation2 + $0xa0] sm:$0xf] %v2034
        %2076 = vst [vmem:[#allocation2 + $0xc4] sm:$0xf] %v2035
        %2077 = vst [vmem:[#allocation2 + $0xe8] sm:$0xf] %v2036
        %2078 = vst [vmem:[#allocation2 + $0x10c] sm:$0xf] %v2037
        %2079 = vst [vmem:[#allocation2 + $0x130] sm:$0xf] %v2038
        %2080 = vst [vmem:[#allocation2 + $0x154] sm:$0xf] %v2039
        %2081 = vst [vmem:[#allocation2 + $0x178] sm:$0xf] %v2040
        %2082 = vst [vmem:[#allocation2 + $0x19c] sm:$0xf] %v2041
        %2083 = vst [vmem:[#allocation2 + $0x1c0] sm:$0xf] %v2042
        %2084 = vst [vmem:[#allocation2 + $0x1e4] sm:$0xf] %v2043
        %2085 = vst [vmem:[#allocation2 + $0x208] sm:$0xf] %v2044
        %2086 = vst [vmem:[#allocation2 + $0x22c] sm:$0xf] %v2045
        %2087 = vst [vmem:[#allocation2 + $0x250] sm:$0xf] %v2046
        %2088 = vst [vmem:[#allocation2 + $0x274] sm:$0xf] %v2047
        %2089 = vst [vmem:[#allocation2 + $0x298] sm:$0xf] %v2048
        %2090 = vst [vmem:[#allocation2 + $0x2bc] sm:$0xf] %v2049
        %2091 = vst [vmem:[#allocation2 + $0x2e0] sm:$0xf] %v2050
        %2092 = vst [vmem:[#allocation2 + $0x304] sm:$0xf] %v2051
        %2093 = vst [vmem:[#allocation2 + $0x328] sm:$0xf] %v2052
        %2094 = vst [vmem:[#allocation2 + $0x34c] sm:$0xf] %v2053
        %2095 = vst [vmem:[#allocation2 + $0x370] sm:$0xf] %v2054
        %2096 = vst [vmem:[#allocation2 + $0x394] sm:$0xf] %v2055
        %2097 = vst [vmem:[#allocation2 + $0x3b8] sm:$0xf] %v2056
        %2098 = vst [vmem:[#allocation2 + $0x3dc] sm:$0xf] %v2057
        %2099 = vst [vmem:[#allocation2 + $0x400] sm:$0xf] %v2058
        %2100 = vst [vmem:[#allocation2 + $0x424] sm:$0xf] %v2059
        %2101 = vst [vmem:[#allocation2 + $0x448] sm:$0xf] %v2060
        %2102 = vst [vmem:[#allocation2 + $0x46c] sm:$0xf] %v2061
        %2103 = vst [vmem:[#allocation2 + $0x490] sm:$0xf] %v2062
        %2104 = vst [vmem:[#allocation2 + $0x4b4] sm:$0xf] %v2063
        %2105 = vst [vmem:[#allocation2 + $0x4d8] sm:$0xf] %v2064
        %2106 = vst [vmem:[#allocation2 + $0x4fc] sm:$0xf] %v2065
        %2107 = vst [vmem:[#allocation2 + $0x520] sm:$0xf] %v2066
        %2108 = vst [vmem:[#allocation2 + $0x544] sm:$0xf] %v2067
        %2109 = vst [vmem:[#allocation2 + $0x568] sm:$0xf] %v2068
        %2110 = vst [vmem:[#allocation2 + $0x58c] sm:$0xf] %v2069
        %2111 = vst [vmem:[#allocation2 + $0x5b0] sm:$0x3] %v2070
        %v2112 = vld [vmem:[%s193 + $0x10] sm:$0xf]
        %v2113 = vld [vmem:[%s193 + $0x14] sm:$0xf]
        %v2114 = vld [vmem:[%s193 + $0x18] sm:$0xf]
        %v2115 = vld [vmem:[%s193 + $0x1c] sm:$0xf]
        %v2116 = vld [vmem:[%s193 + $0x20] sm:$0xf]
        %v2117 = vld [vmem:[%s193 + $0x24] sm:$0xf]
        %v2118 = vld [vmem:[%s193 + $0x28] sm:$0xf]
        %v2119 = vld [vmem:[%s193 + $0x2c] sm:$0xf]
        %v2120 = vld [vmem:[%s193 + $0x30] sm:$0xf]
        %v2121 = vld [vmem:[%s193 + $0x34] sm:$0xf]
        %v2122 = vld [vmem:[%s193 + $0x38] sm:$0xf]
        %v2123 = vld [vmem:[%s193 + $0x3c] sm:$0xf]
        %v2124 = vld [vmem:[%s193 + $0x40] sm:$0xf]
        %v2125 = vld [vmem:[%s193 + $0x44] sm:$0xf]
        %v2126 = vld [vmem:[%s193 + $0x48] sm:$0xf]
        %v2127 = vld [vmem:[%s193 + $0x4c] sm:$0xf]
        %v2128 = vld [vmem:[%s193 + $0x50] sm:$0xf]
        %v2129 = vld [vmem:[%s193 + $0x54] sm:$0xf]
        %v2130 = vld [vmem:[%s193 + $0x58] sm:$0xf]
        %v2131 = vld [vmem:[%s193 + $0x5c] sm:$0xf]
        %v2132 = vld [vmem:[%s193 + $0x60] sm:$0xf]
        %v2133 = vld [vmem:[%s193 + $0x64] sm:$0xf]
        %v2134 = vld [vmem:[%s193 + $0x68] sm:$0xf]
        %v2135 = vld [vmem:[%s193 + $0x6c] sm:$0xf]
        %v2136 = vld [vmem:[%s193 + $0x70] sm:$0xf]
        %v2137 = vld [vmem:[%s193 + $0x74] sm:$0xf]
        %v2138 = vld [vmem:[%s193 + $0x78] sm:$0xf]
        %v2139 = vld [vmem:[%s193 + $0x7c] sm:$0xf]
        %v2140 = vld [vmem:[%s193 + $0x80] sm:$0xf]
        %v2141 = vld [vmem:[%s193 + $0x84] sm:$0xf]
        %v2142 = vld [vmem:[%s193 + $0x88] sm:$0xf]
        %v2143 = vld [vmem:[%s193 + $0x8c] sm:$0xf]
        %v2144 = vld [vmem:[%s193 + $0x90] sm:$0xf]
        %v2145 = vld [vmem:[%s193 + $0x94] sm:$0xf]
        %v2146 = vld [vmem:[%s193 + $0x98] sm:$0xf]
        %v2147 = vld [vmem:[%s193 + $0x9c] sm:$0xf]
        %v2148 = vld [vmem:[%s193 + $0xa0] sm:$0xf]
        %v2149 = vld [vmem:[%s193 + $0xa4] sm:$0xf]
        %v2150 = vld [vmem:[%s193 + $0xa8] sm:$0xf]
        %v2151 = vld [vmem:[%s193 + $0xac] sm:$0xf]
        %v2152 = vld [vmem:[%s193 + $0xb0] sm:$0x7]
        %vm2153 = vsmask.f32 3328
        %vm2154 = vsmask.f32 7440
        %vm2155 = vmor %vm2153, %vm2154
        %v2157 = vshrl.u32 %v2112, 16
        %v2159 = vrot.slane %v2157, 4
        %v2160 = vshll.u32 %v2112, 16
        %v2162 = vrot.slane %v2160, 5
        %v2163 = vor.u32 %v2159, %v2162
        %v2164 = vrot.slane %v2163, 4
        %v2166 = vshll.u32 %v2113, 16
        %v2168 = vrot.slane %v2166, 5
        %v2169 = vsel %vm2155, %v2164, %v2168
        %v2170 = vshrl.u32 %v2113, 16
        %v2172 = vrot.slane %v2170, 4
        %v2173 = vor.u32 %v2172, %v2168
        %v2174 = vrot.slane %v2173, 4
        %v2176 = vshll.u32 %v2114, 16
        %v2178 = vrot.slane %v2176, 5
        %v2179 = vsel %vm2155, %v2174, %v2178
        %v2180 = vshrl.u32 %v2114, 16
        %v2182 = vrot.slane %v2180, 4
        %v2183 = vor.u32 %v2182, %v2178
        %v2184 = vrot.slane %v2183, 4
        %v2186 = vshll.u32 %v2115, 16
        %v2188 = vrot.slane %v2186, 5
        %v2189 = vsel %vm2155, %v2184, %v2188
        %v2190 = vshrl.u32 %v2115, 16
        %v2192 = vrot.slane %v2190, 4
        %v2193 = vor.u32 %v2192, %v2188
        %v2194 = vrot.slane %v2193, 4
        %v2196 = vshll.u32 %v2116, 16
        %v2198 = vrot.slane %v2196, 5
        %v2199 = vsel %vm2155, %v2194, %v2198
        %v2200 = vshrl.u32 %v2116, 16
        %v2202 = vrot.slane %v2200, 4
        %v2203 = vor.u32 %v2202, %v2198
        %v2204 = vrot.slane %v2203, 4
        %v2206 = vshll.u32 %v2117, 16
        %v2208 = vrot.slane %v2206, 5
        %v2209 = vsel %vm2155, %v2204, %v2208
        %v2210 = vshrl.u32 %v2117, 16
        %v2212 = vrot.slane %v2210, 4
        %v2213 = vor.u32 %v2212, %v2208
        %v2214 = vrot.slane %v2213, 4
        %v2216 = vshll.u32 %v2118, 16
        %v2218 = vrot.slane %v2216, 5
        %v2219 = vsel %vm2155, %v2214, %v2218
        %v2220 = vshrl.u32 %v2118, 16
        %v2222 = vrot.slane %v2220, 4
        %v2223 = vor.u32 %v2222, %v2218
        %v2224 = vrot.slane %v2223, 4
        %v2226 = vshll.u32 %v2119, 16
        %v2228 = vrot.slane %v2226, 5
        %v2229 = vsel %vm2155, %v2224, %v2228
        %v2230 = vshrl.u32 %v2119, 16
        %v2232 = vrot.slane %v2230, 4
        %v2233 = vor.u32 %v2232, %v2228
        %v2234 = vrot.slane %v2233, 4
        %v2236 = vshll.u32 %v2120, 16
        %v2238 = vrot.slane %v2236, 5
        %v2239 = vsel %vm2155, %v2234, %v2238
        %v2240 = vshrl.u32 %v2120, 16
        %v2242 = vrot.slane %v2240, 4
        %v2243 = vor.u32 %v2242, %v2238
        %v2244 = vrot.slane %v2243, 4
        %v2246 = vshll.u32 %v2121, 16
        %v2248 = vrot.slane %v2246, 5
        %v2249 = vsel %vm2155, %v2244, %v2248
        %v2250 = vshrl.u32 %v2121, 16
        %v2252 = vrot.slane %v2250, 4
        %v2253 = vor.u32 %v2252, %v2248
        %v2254 = vrot.slane %v2253, 4
        %v2256 = vshll.u32 %v2122, 16
        %v2258 = vrot.slane %v2256, 5
        %v2259 = vsel %vm2155, %v2254, %v2258
        %v2260 = vshrl.u32 %v2122, 16
        %v2262 = vrot.slane %v2260, 4
        %v2263 = vor.u32 %v2262, %v2258
        %v2264 = vrot.slane %v2263, 4
        %v2266 = vshll.u32 %v2123, 16
        %v2268 = vrot.slane %v2266, 5
        %v2269 = vsel %vm2155, %v2264, %v2268
        %v2270 = vshrl.u32 %v2123, 16
        %v2272 = vrot.slane %v2270, 4
        %v2273 = vor.u32 %v2272, %v2268
        %v2274 = vrot.slane %v2273, 4
        %v2276 = vshll.u32 %v2124, 16
        %v2278 = vrot.slane %v2276, 5
        %v2279 = vsel %vm2155, %v2274, %v2278
        %v2280 = vshrl.u32 %v2124, 16
        %v2282 = vrot.slane %v2280, 4
        %v2283 = vor.u32 %v2282, %v2278
        %v2284 = vrot.slane %v2283, 4
        %v2286 = vshll.u32 %v2125, 16
        %v2288 = vrot.slane %v2286, 5
        %v2289 = vsel %vm2155, %v2284, %v2288
        %v2290 = vshrl.u32 %v2125, 16
        %v2292 = vrot.slane %v2290, 4
        %v2293 = vor.u32 %v2292, %v2288
        %v2294 = vrot.slane %v2293, 4
        %v2296 = vshll.u32 %v2126, 16
        %v2298 = vrot.slane %v2296, 5
        %v2299 = vsel %vm2155, %v2294, %v2298
        %v2300 = vshrl.u32 %v2126, 16
        %v2302 = vrot.slane %v2300, 4
        %v2303 = vor.u32 %v2302, %v2298
        %v2304 = vrot.slane %v2303, 4
        %v2306 = vshll.u32 %v2127, 16
        %v2308 = vrot.slane %v2306, 5
        %v2309 = vsel %vm2155, %v2304, %v2308
        %v2310 = vshrl.u32 %v2127, 16
        %v2312 = vrot.slane %v2310, 4
        %v2313 = vor.u32 %v2312, %v2308
        %v2314 = vrot.slane %v2313, 4
        %v2316 = vshll.u32 %v2128, 16
        %v2318 = vrot.slane %v2316, 5
        %v2319 = vsel %vm2155, %v2314, %v2318
        %v2320 = vshrl.u32 %v2128, 16
        %v2322 = vrot.slane %v2320, 4
        %v2323 = vor.u32 %v2322, %v2318
        %v2324 = vrot.slane %v2323, 4
        %v2326 = vshll.u32 %v2129, 16
        %v2328 = vrot.slane %v2326, 5
        %v2329 = vsel %vm2155, %v2324, %v2328
        %v2330 = vshrl.u32 %v2129, 16
        %v2332 = vrot.slane %v2330, 4
        %v2333 = vor.u32 %v2332, %v2328
        %v2334 = vrot.slane %v2333, 4
        %v2336 = vshll.u32 %v2130, 16
        %v2338 = vrot.slane %v2336, 5
        %v2339 = vsel %vm2155, %v2334, %v2338
        %v2340 = vshrl.u32 %v2130, 16
        %v2342 = vrot.slane %v2340, 4
        %v2343 = vor.u32 %v2342, %v2338
        %v2344 = vrot.slane %v2343, 4
        %v2346 = vshll.u32 %v2131, 16
        %v2348 = vrot.slane %v2346, 5
        %v2349 = vsel %vm2155, %v2344, %v2348
        %v2350 = vshrl.u32 %v2131, 16
        %v2352 = vrot.slane %v2350, 4
        %v2353 = vor.u32 %v2352, %v2348
        %v2354 = vrot.slane %v2353, 4
        %v2356 = vshll.u32 %v2132, 16
        %v2358 = vrot.slane %v2356, 5
        %v2359 = vsel %vm2155, %v2354, %v2358
        %v2360 = vshrl.u32 %v2132, 16
        %v2362 = vrot.slane %v2360, 4
        %v2363 = vor.u32 %v2362, %v2358
        %v2364 = vrot.slane %v2363, 4
        %v2366 = vshll.u32 %v2133, 16
        %v2368 = vrot.slane %v2366, 5
        %v2369 = vsel %vm2155, %v2364, %v2368
        %v2370 = vshrl.u32 %v2133, 16
        %v2372 = vrot.slane %v2370, 4
        %v2373 = vor.u32 %v2372, %v2368
        %v2374 = vrot.slane %v2373, 4
        %v2376 = vshll.u32 %v2134, 16
        %v2378 = vrot.slane %v2376, 5
        %v2379 = vsel %vm2155, %v2374, %v2378
        %v2380 = vshrl.u32 %v2134, 16
        %v2382 = vrot.slane %v2380, 4
        %v2383 = vor.u32 %v2382, %v2378
        %v2384 = vrot.slane %v2383, 4
        %v2386 = vshll.u32 %v2135, 16
        %v2388 = vrot.slane %v2386, 5
        %v2389 = vsel %vm2155, %v2384, %v2388
        %v2390 = vshrl.u32 %v2135, 16
        %v2392 = vrot.slane %v2390, 4
        %v2393 = vor.u32 %v2392, %v2388
        %v2394 = vrot.slane %v2393, 4
        %v2396 = vshll.u32 %v2136, 16
        %v2398 = vrot.slane %v2396, 5
        %v2399 = vsel %vm2155, %v2394, %v2398
        %v2400 = vshrl.u32 %v2136, 16
        %v2402 = vrot.slane %v2400, 4
        %v2403 = vor.u32 %v2402, %v2398
        %v2404 = vrot.slane %v2403, 4
        %v2406 = vshll.u32 %v2137, 16
        %v2408 = vrot.slane %v2406, 5
        %v2409 = vsel %vm2155, %v2404, %v2408
        %v2410 = vshrl.u32 %v2137, 16
        %v2412 = vrot.slane %v2410, 4
        %v2413 = vor.u32 %v2412, %v2408
        %v2414 = vrot.slane %v2413, 4
        %v2416 = vshll.u32 %v2138, 16
        %v2418 = vrot.slane %v2416, 5
        %v2419 = vsel %vm2155, %v2414, %v2418
        %v2420 = vshrl.u32 %v2138, 16
        %v2422 = vrot.slane %v2420, 4
        %v2423 = vor.u32 %v2422, %v2418
        %v2424 = vrot.slane %v2423, 4
        %v2426 = vshll.u32 %v2139, 16
        %v2428 = vrot.slane %v2426, 5
        %v2429 = vsel %vm2155, %v2424, %v2428
        %v2430 = vshrl.u32 %v2139, 16
        %v2432 = vrot.slane %v2430, 4
        %v2433 = vor.u32 %v2432, %v2428
        %v2434 = vrot.slane %v2433, 4
        %v2436 = vshll.u32 %v2140, 16
        %v2438 = vrot.slane %v2436, 5
        %v2439 = vsel %vm2155, %v2434, %v2438
        %v2440 = vshrl.u32 %v2140, 16
        %v2442 = vrot.slane %v2440, 4
        %v2443 = vor.u32 %v2442, %v2438
        %v2444 = vrot.slane %v2443, 4
        %v2446 = vshll.u32 %v2141, 16
        %v2448 = vrot.slane %v2446, 5
        %v2449 = vsel %vm2155, %v2444, %v2448
        %v2450 = vshrl.u32 %v2141, 16
        %v2452 = vrot.slane %v2450, 4
        %v2453 = vor.u32 %v2452, %v2448
        %v2454 = vrot.slane %v2453, 4
        %v2456 = vshll.u32 %v2142, 16
        %v2458 = vrot.slane %v2456, 5
        %v2459 = vsel %vm2155, %v2454, %v2458
        %v2460 = vshrl.u32 %v2142, 16
        %v2462 = vrot.slane %v2460, 4
        %v2463 = vor.u32 %v2462, %v2458
        %v2464 = vrot.slane %v2463, 4
        %v2466 = vshll.u32 %v2143, 16
        %v2468 = vrot.slane %v2466, 5
        %v2469 = vsel %vm2155, %v2464, %v2468
        %v2470 = vshrl.u32 %v2143, 16
        %v2472 = vrot.slane %v2470, 4
        %v2473 = vor.u32 %v2472, %v2468
        %v2474 = vrot.slane %v2473, 4
        %v2476 = vshll.u32 %v2144, 16
        %v2478 = vrot.slane %v2476, 5
        %v2479 = vsel %vm2155, %v2474, %v2478
        %v2480 = vshrl.u32 %v2144, 16
        %v2482 = vrot.slane %v2480, 4
        %v2483 = vor.u32 %v2482, %v2478
        %v2484 = vrot.slane %v2483, 4
        %v2486 = vshll.u32 %v2145, 16
        %v2488 = vrot.slane %v2486, 5
        %v2489 = vsel %vm2155, %v2484, %v2488
        %v2490 = vshrl.u32 %v2145, 16
        %v2492 = vrot.slane %v2490, 4
        %v2493 = vor.u32 %v2492, %v2488
        %v2494 = vrot.slane %v2493, 4
        %v2496 = vshll.u32 %v2146, 16
        %v2498 = vrot.slane %v2496, 5
        %v2499 = vsel %vm2155, %v2494, %v2498
        %v2500 = vshrl.u32 %v2146, 16
        %v2502 = vrot.slane %v2500, 4
        %v2503 = vor.u32 %v2502, %v2498
        %v2504 = vrot.slane %v2503, 4
        %v2506 = vshll.u32 %v2147, 16
        %v2508 = vrot.slane %v2506, 5
        %v2509 = vsel %vm2155, %v2504, %v2508
        %v2510 = vshrl.u32 %v2147, 16
        %v2512 = vrot.slane %v2510, 4
        %v2513 = vor.u32 %v2512, %v2508
        %v2514 = vrot.slane %v2513, 4
        %v2516 = vshll.u32 %v2148, 16
        %v2518 = vrot.slane %v2516, 5
        %v2519 = vsel %vm2155, %v2514, %v2518
        %v2520 = vshrl.u32 %v2148, 16
        %v2522 = vrot.slane %v2520, 4
        %v2523 = vor.u32 %v2522, %v2518
        %v2524 = vrot.slane %v2523, 4
        %v2526 = vshll.u32 %v2149, 16
        %v2528 = vrot.slane %v2526, 5
        %v2529 = vsel %vm2155, %v2524, %v2528
        %v2530 = vshrl.u32 %v2149, 16
        %v2532 = vrot.slane %v2530, 4
        %v2533 = vor.u32 %v2532, %v2528
        %v2534 = vrot.slane %v2533, 4
        %v2536 = vshll.u32 %v2150, 16
        %v2538 = vrot.slane %v2536, 5
        %v2539 = vsel %vm2155, %v2534, %v2538
        %v2540 = vshrl.u32 %v2150, 16
        %v2542 = vrot.slane %v2540, 4
        %v2543 = vor.u32 %v2542, %v2538
        %v2544 = vrot.slane %v2543, 4
        %v2546 = vshll.u32 %v2151, 16
        %v2548 = vrot.slane %v2546, 5
        %v2549 = vsel %vm2155, %v2544, %v2548
        %v2550 = vshrl.u32 %v2151, 16
        %v2552 = vrot.slane %v2550, 4
        %v2553 = vor.u32 %v2552, %v2548
        %v2554 = vrot.slane %v2553, 4
        %v2556 = vshll.u32 %v2152, 16
        %v2558 = vrot.slane %v2556, 5
        %v2559 = vsel %vm2155, %v2554, %v2558
        %v2560 = vshrl.u32 %v2152, 16
        %v2562 = vrot.slane %v2560, 4
        %v2563 = vor.u32 %v2562, %v2558
        %v2564 = vrot.slane %v2563, 4
        %2606 = vst [vmem:[#allocation2 + $0x14] sm:$0xf] %v2169
        %2607 = vst [vmem:[#allocation2 + $0x38] sm:$0xf] %v2179
        %2608 = vst [vmem:[#allocation2 + $0x5c] sm:$0xf] %v2189
        %2609 = vst [vmem:[#allocation2 + $0x80] sm:$0xf] %v2199
        %2610 = vst [vmem:[#allocation2 + $0xa4] sm:$0xf] %v2209
        %2611 = vst [vmem:[#allocation2 + $0xc8] sm:$0xf] %v2219
        %2612 = vst [vmem:[#allocation2 + $0xec] sm:$0xf] %v2229
        %2613 = vst [vmem:[#allocation2 + $0x110] sm:$0xf] %v2239
        %2614 = vst [vmem:[#allocation2 + $0x134] sm:$0xf] %v2249
        %2615 = vst [vmem:[#allocation2 + $0x158] sm:$0xf] %v2259
        %2616 = vst [vmem:[#allocation2 + $0x17c] sm:$0xf] %v2269
        %2617 = vst [vmem:[#allocation2 + $0x1a0] sm:$0xf] %v2279
        %2618 = vst [vmem:[#allocation2 + $0x1c4] sm:$0xf] %v2289
        %2619 = vst [vmem:[#allocation2 + $0x1e8] sm:$0xf] %v2299
        %2620 = vst [vmem:[#allocation2 + $0x20c] sm:$0xf] %v2309
        %2621 = vst [vmem:[#allocation2 + $0x230] sm:$0xf] %v2319
        %2622 = vst [vmem:[#allocation2 + $0x254] sm:$0xf] %v2329
        %2623 = vst [vmem:[#allocation2 + $0x278] sm:$0xf] %v2339
        %2624 = vst [vmem:[#allocation2 + $0x29c] sm:$0xf] %v2349
        %2625 = vst [vmem:[#allocation2 + $0x2c0] sm:$0xf] %v2359
        %2626 = vst [vmem:[#allocation2 + $0x2e4] sm:$0xf] %v2369
        %2627 = vst [vmem:[#allocation2 + $0x308] sm:$0xf] %v2379
        %2628 = vst [vmem:[#allocation2 + $0x32c] sm:$0xf] %v2389
        %2629 = vst [vmem:[#allocation2 + $0x350] sm:$0xf] %v2399
        %2630 = vst [vmem:[#allocation2 + $0x374] sm:$0xf] %v2409
        %2631 = vst [vmem:[#allocation2 + $0x398] sm:$0xf] %v2419
        %2632 = vst [vmem:[#allocation2 + $0x3bc] sm:$0xf] %v2429
        %2633 = vst [vmem:[#allocation2 + $0x3e0] sm:$0xf] %v2439
        %2634 = vst [vmem:[#allocation2 + $0x404] sm:$0xf] %v2449
        %2635 = vst [vmem:[#allocation2 + $0x428] sm:$0xf] %v2459
        %2636 = vst [vmem:[#allocation2 + $0x44c] sm:$0xf] %v2469
        %2637 = vst [vmem:[#allocation2 + $0x470] sm:$0xf] %v2479
        %2638 = vst [vmem:[#allocation2 + $0x494] sm:$0xf] %v2489
        %2639 = vst [vmem:[#allocation2 + $0x4b8] sm:$0xf] %v2499
        %2640 = vst [vmem:[#allocation2 + $0x4dc] sm:$0xf] %v2509
        %2641 = vst [vmem:[#allocation2 + $0x500] sm:$0xf] %v2519
        %2642 = vst [vmem:[#allocation2 + $0x524] sm:$0xf] %v2529
        %2643 = vst [vmem:[#allocation2 + $0x548] sm:$0xf] %v2539
        %2644 = vst [vmem:[#allocation2 + $0x56c] sm:$0xf] %v2549
        %2645 = vst [vmem:[#allocation2 + $0x590] sm:$0xf] %v2559
        %2646 = vst [vmem:[#allocation2 + $0x5b4] sm:$0x3] %v2564
        %v2647 = vld [vmem:[%s193 + $0x18] sm:$0xf]
        %v2648 = vld [vmem:[%s193 + $0x1c] sm:$0xf]
        %v2649 = vld [vmem:[%s193 + $0x20] sm:$0xf]
        %v2650 = vld [vmem:[%s193 + $0x24] sm:$0xf]
        %v2651 = vld [vmem:[%s193 + $0x28] sm:$0xf]
        %v2652 = vld [vmem:[%s193 + $0x2c] sm:$0xf]
        %v2653 = vld [vmem:[%s193 + $0x30] sm:$0xf]
        %v2654 = vld [vmem:[%s193 + $0x34] sm:$0xf]
        %v2655 = vld [vmem:[%s193 + $0x38] sm:$0xf]
        %v2656 = vld [vmem:[%s193 + $0x3c] sm:$0xf]
        %v2657 = vld [vmem:[%s193 + $0x40] sm:$0xf]
        %v2658 = vld [vmem:[%s193 + $0x44] sm:$0xf]
        %v2659 = vld [vmem:[%s193 + $0x48] sm:$0xf]
        %v2660 = vld [vmem:[%s193 + $0x4c] sm:$0xf]
        %v2661 = vld [vmem:[%s193 + $0x50] sm:$0xf]
        %v2662 = vld [vmem:[%s193 + $0x54] sm:$0xf]
        %v2663 = vld [vmem:[%s193 + $0x58] sm:$0xf]
        %v2664 = vld [vmem:[%s193 + $0x5c] sm:$0xf]
        %v2665 = vld [vmem:[%s193 + $0x60] sm:$0xf]
        %v2666 = vld [vmem:[%s193 + $0x64] sm:$0xf]
        %v2667 = vld [vmem:[%s193 + $0x68] sm:$0xf]
        %v2668 = vld [vmem:[%s193 + $0x6c] sm:$0xf]
        %v2669 = vld [vmem:[%s193 + $0x70] sm:$0xf]
        %v2670 = vld [vmem:[%s193 + $0x74] sm:$0xf]
        %v2671 = vld [vmem:[%s193 + $0x78] sm:$0xf]
        %v2672 = vld [vmem:[%s193 + $0x7c] sm:$0xf]
        %v2673 = vld [vmem:[%s193 + $0x80] sm:$0xf]
        %v2674 = vld [vmem:[%s193 + $0x84] sm:$0xf]
        %v2675 = vld [vmem:[%s193 + $0x88] sm:$0xf]
        %v2676 = vld [vmem:[%s193 + $0x8c] sm:$0xf]
        %v2677 = vld [vmem:[%s193 + $0x90] sm:$0xf]
        %v2678 = vld [vmem:[%s193 + $0x94] sm:$0xf]
        %v2679 = vld [vmem:[%s193 + $0x98] sm:$0xf]
        %v2680 = vld [vmem:[%s193 + $0x9c] sm:$0xf]
        %v2681 = vld [vmem:[%s193 + $0xa0] sm:$0xf]
        %v2682 = vld [vmem:[%s193 + $0xa4] sm:$0xf]
        %v2683 = vld [vmem:[%s193 + $0xa8] sm:$0xf]
        %v2684 = vld [vmem:[%s193 + $0xac] sm:$0xf]
        %v2685 = vld [vmem:[%s193 + $0xb0] sm:$0xf]
        %v2686 = vld [vmem:[%s193 + $0xb4] sm:$0xf]
        %v2687 = vld [vmem:[%s193 + $0xb8] sm:$0x7]
        %v2689 = vshrl.u32 %v2647, 16
        %v2691 = vrot.slane %v2689, 4
        %v2692 = vshll.u32 %v2647, 16
        %v2694 = vrot.slane %v2692, 5
        %v2695 = vor.u32 %v2691, %v2694
        %v2696 = vrot.slane %v2695, 4
        %v2698 = vshll.u32 %v2648, 16
        %v2700 = vrot.slane %v2698, 5
        %v2701 = vsel %vm2155, %v2696, %v2700
        %v2702 = vshrl.u32 %v2648, 16
        %v2704 = vrot.slane %v2702, 4
        %v2705 = vor.u32 %v2704, %v2700
        %v2706 = vrot.slane %v2705, 4
        %v2708 = vshll.u32 %v2649, 16
        %v2710 = vrot.slane %v2708, 5
        %v2711 = vsel %vm2155, %v2706, %v2710
        %v2712 = vshrl.u32 %v2649, 16
        %v2714 = vrot.slane %v2712, 4
        %v2715 = vor.u32 %v2714, %v2710
        %v2716 = vrot.slane %v2715, 4
        %v2718 = vshll.u32 %v2650, 16
        %v2720 = vrot.slane %v2718, 5
        %v2721 = vsel %vm2155, %v2716, %v2720
        %v2722 = vshrl.u32 %v2650, 16
        %v2724 = vrot.slane %v2722, 4
        %v2725 = vor.u32 %v2724, %v2720
        %v2726 = vrot.slane %v2725, 4
        %v2728 = vshll.u32 %v2651, 16
        %v2730 = vrot.slane %v2728, 5
        %v2731 = vsel %vm2155, %v2726, %v2730
        %v2732 = vshrl.u32 %v2651, 16
        %v2734 = vrot.slane %v2732, 4
        %v2735 = vor.u32 %v2734, %v2730
        %v2736 = vrot.slane %v2735, 4
        %v2738 = vshll.u32 %v2652, 16
        %v2740 = vrot.slane %v2738, 5
        %v2741 = vsel %vm2155, %v2736, %v2740
        %v2742 = vshrl.u32 %v2652, 16
        %v2744 = vrot.slane %v2742, 4
        %v2745 = vor.u32 %v2744, %v2740
        %v2746 = vrot.slane %v2745, 4
        %v2748 = vshll.u32 %v2653, 16
        %v2750 = vrot.slane %v2748, 5
        %v2751 = vsel %vm2155, %v2746, %v2750
        %v2752 = vshrl.u32 %v2653, 16
        %v2754 = vrot.slane %v2752, 4
        %v2755 = vor.u32 %v2754, %v2750
        %v2756 = vrot.slane %v2755, 4
        %v2758 = vshll.u32 %v2654, 16
        %v2760 = vrot.slane %v2758, 5
        %v2761 = vsel %vm2155, %v2756, %v2760
        %v2762 = vshrl.u32 %v2654, 16
        %v2764 = vrot.slane %v2762, 4
        %v2765 = vor.u32 %v2764, %v2760
        %v2766 = vrot.slane %v2765, 4
        %v2768 = vshll.u32 %v2655, 16
        %v2770 = vrot.slane %v2768, 5
        %v2771 = vsel %vm2155, %v2766, %v2770
        %v2772 = vshrl.u32 %v2655, 16
        %v2774 = vrot.slane %v2772, 4
        %v2775 = vor.u32 %v2774, %v2770
        %v2776 = vrot.slane %v2775, 4
        %v2778 = vshll.u32 %v2656, 16
        %v2780 = vrot.slane %v2778, 5
        %v2781 = vsel %vm2155, %v2776, %v2780
        %v2782 = vshrl.u32 %v2656, 16
        %v2784 = vrot.slane %v2782, 4
        %v2785 = vor.u32 %v2784, %v2780
        %v2786 = vrot.slane %v2785, 4
        %v2788 = vshll.u32 %v2657, 16
        %v2790 = vrot.slane %v2788, 5
        %v2791 = vsel %vm2155, %v2786, %v2790
        %v2792 = vshrl.u32 %v2657, 16
        %v2794 = vrot.slane %v2792, 4
        %v2795 = vor.u32 %v2794, %v2790
        %v2796 = vrot.slane %v2795, 4
        %v2798 = vshll.u32 %v2658, 16
        %v2800 = vrot.slane %v2798, 5
        %v2801 = vsel %vm2155, %v2796, %v2800
        %v2802 = vshrl.u32 %v2658, 16
        %v2804 = vrot.slane %v2802, 4
        %v2805 = vor.u32 %v2804, %v2800
        %v2806 = vrot.slane %v2805, 4
        %v2808 = vshll.u32 %v2659, 16
        %v2810 = vrot.slane %v2808, 5
        %v2811 = vsel %vm2155, %v2806, %v2810
        %v2812 = vshrl.u32 %v2659, 16
        %v2814 = vrot.slane %v2812, 4
        %v2815 = vor.u32 %v2814, %v2810
        %v2816 = vrot.slane %v2815, 4
        %v2818 = vshll.u32 %v2660, 16
        %v2820 = vrot.slane %v2818, 5
        %v2821 = vsel %vm2155, %v2816, %v2820
        %v2822 = vshrl.u32 %v2660, 16
        %v2824 = vrot.slane %v2822, 4
        %v2825 = vor.u32 %v2824, %v2820
        %v2826 = vrot.slane %v2825, 4
        %v2828 = vshll.u32 %v2661, 16
        %v2830 = vrot.slane %v2828, 5
        %v2831 = vsel %vm2155, %v2826, %v2830
        %v2832 = vshrl.u32 %v2661, 16
        %v2834 = vrot.slane %v2832, 4
        %v2835 = vor.u32 %v2834, %v2830
        %v2836 = vrot.slane %v2835, 4
        %v2838 = vshll.u32 %v2662, 16
        %v2840 = vrot.slane %v2838, 5
        %v2841 = vsel %vm2155, %v2836, %v2840
        %v2842 = vshrl.u32 %v2662, 16
        %v2844 = vrot.slane %v2842, 4
        %v2845 = vor.u32 %v2844, %v2840
        %v2846 = vrot.slane %v2845, 4
        %v2848 = vshll.u32 %v2663, 16
        %v2850 = vrot.slane %v2848, 5
        %v2851 = vsel %vm2155, %v2846, %v2850
        %v2852 = vshrl.u32 %v2663, 16
        %v2854 = vrot.slane %v2852, 4
        %v2855 = vor.u32 %v2854, %v2850
        %v2856 = vrot.slane %v2855, 4
        %v2858 = vshll.u32 %v2664, 16
        %v2860 = vrot.slane %v2858, 5
        %v2861 = vsel %vm2155, %v2856, %v2860
        %v2862 = vshrl.u32 %v2664, 16
        %v2864 = vrot.slane %v2862, 4
        %v2865 = vor.u32 %v2864, %v2860
        %v2866 = vrot.slane %v2865, 4
        %v2868 = vshll.u32 %v2665, 16
        %v2870 = vrot.slane %v2868, 5
        %v2871 = vsel %vm2155, %v2866, %v2870
        %v2872 = vshrl.u32 %v2665, 16
        %v2874 = vrot.slane %v2872, 4
        %v2875 = vor.u32 %v2874, %v2870
        %v2876 = vrot.slane %v2875, 4
        %v2878 = vshll.u32 %v2666, 16
        %v2880 = vrot.slane %v2878, 5
        %v2881 = vsel %vm2155, %v2876, %v2880
        %v2882 = vshrl.u32 %v2666, 16
        %v2884 = vrot.slane %v2882, 4
        %v2885 = vor.u32 %v2884, %v2880
        %v2886 = vrot.slane %v2885, 4
        %v2888 = vshll.u32 %v2667, 16
        %v2890 = vrot.slane %v2888, 5
        %v2891 = vsel %vm2155, %v2886, %v2890
        %v2892 = vshrl.u32 %v2667, 16
        %v2894 = vrot.slane %v2892, 4
        %v2895 = vor.u32 %v2894, %v2890
        %v2896 = vrot.slane %v2895, 4
        %v2898 = vshll.u32 %v2668, 16
        %v2900 = vrot.slane %v2898, 5
        %v2901 = vsel %vm2155, %v2896, %v2900
        %v2902 = vshrl.u32 %v2668, 16
        %v2904 = vrot.slane %v2902, 4
        %v2905 = vor.u32 %v2904, %v2900
        %v2906 = vrot.slane %v2905, 4
        %v2908 = vshll.u32 %v2669, 16
        %v2910 = vrot.slane %v2908, 5
        %v2911 = vsel %vm2155, %v2906, %v2910
        %v2912 = vshrl.u32 %v2669, 16
        %v2914 = vrot.slane %v2912, 4
        %v2915 = vor.u32 %v2914, %v2910
        %v2916 = vrot.slane %v2915, 4
        %v2918 = vshll.u32 %v2670, 16
        %v2920 = vrot.slane %v2918, 5
        %v2921 = vsel %vm2155, %v2916, %v2920
        %v2922 = vshrl.u32 %v2670, 16
        %v2924 = vrot.slane %v2922, 4
        %v2925 = vor.u32 %v2924, %v2920
        %v2926 = vrot.slane %v2925, 4
        %v2928 = vshll.u32 %v2671, 16
        %v2930 = vrot.slane %v2928, 5
        %v2931 = vsel %vm2155, %v2926, %v2930
        %v2932 = vshrl.u32 %v2671, 16
        %v2934 = vrot.slane %v2932, 4
        %v2935 = vor.u32 %v2934, %v2930
        %v2936 = vrot.slane %v2935, 4
        %v2938 = vshll.u32 %v2672, 16
        %v2940 = vrot.slane %v2938, 5
        %v2941 = vsel %vm2155, %v2936, %v2940
        %v2942 = vshrl.u32 %v2672, 16
        %v2944 = vrot.slane %v2942, 4
        %v2945 = vor.u32 %v2944, %v2940
        %v2946 = vrot.slane %v2945, 4
        %v2948 = vshll.u32 %v2673, 16
        %v2950 = vrot.slane %v2948, 5
        %v2951 = vsel %vm2155, %v2946, %v2950
        %v2952 = vshrl.u32 %v2673, 16
        %v2954 = vrot.slane %v2952, 4
        %v2955 = vor.u32 %v2954, %v2950
        %v2956 = vrot.slane %v2955, 4
        %v2958 = vshll.u32 %v2674, 16
        %v2960 = vrot.slane %v2958, 5
        %v2961 = vsel %vm2155, %v2956, %v2960
        %v2962 = vshrl.u32 %v2674, 16
        %v2964 = vrot.slane %v2962, 4
        %v2965 = vor.u32 %v2964, %v2960
        %v2966 = vrot.slane %v2965, 4
        %v2968 = vshll.u32 %v2675, 16
        %v2970 = vrot.slane %v2968, 5
        %v2971 = vsel %vm2155, %v2966, %v2970
        %v2972 = vshrl.u32 %v2675, 16
        %v2974 = vrot.slane %v2972, 4
        %v2975 = vor.u32 %v2974, %v2970
        %v2976 = vrot.slane %v2975, 4
        %v2978 = vshll.u32 %v2676, 16
        %v2980 = vrot.slane %v2978, 5
        %v2981 = vsel %vm2155, %v2976, %v2980
        %v2982 = vshrl.u32 %v2676, 16
        %v2984 = vrot.slane %v2982, 4
        %v2985 = vor.u32 %v2984, %v2980
        %v2986 = vrot.slane %v2985, 4
        %v2988 = vshll.u32 %v2677, 16
        %v2990 = vrot.slane %v2988, 5
        %v2991 = vsel %vm2155, %v2986, %v2990
        %v2992 = vshrl.u32 %v2677, 16
        %v2994 = vrot.slane %v2992, 4
        %v2995 = vor.u32 %v2994, %v2990
        %v2996 = vrot.slane %v2995, 4
        %v2998 = vshll.u32 %v2678, 16
        %v3000 = vrot.slane %v2998, 5
        %v3001 = vsel %vm2155, %v2996, %v3000
        %v3002 = vshrl.u32 %v2678, 16
        %v3004 = vrot.slane %v3002, 4
        %v3005 = vor.u32 %v3004, %v3000
        %v3006 = vrot.slane %v3005, 4
        %v3008 = vshll.u32 %v2679, 16
        %v3010 = vrot.slane %v3008, 5
        %v3011 = vsel %vm2155, %v3006, %v3010
        %v3012 = vshrl.u32 %v2679, 16
        %v3014 = vrot.slane %v3012, 4
        %v3015 = vor.u32 %v3014, %v3010
        %v3016 = vrot.slane %v3015, 4
        %v3018 = vshll.u32 %v2680, 16
        %v3020 = vrot.slane %v3018, 5
        %v3021 = vsel %vm2155, %v3016, %v3020
        %v3022 = vshrl.u32 %v2680, 16
        %v3024 = vrot.slane %v3022, 4
        %v3025 = vor.u32 %v3024, %v3020
        %v3026 = vrot.slane %v3025, 4
        %v3028 = vshll.u32 %v2681, 16
        %v3030 = vrot.slane %v3028, 5
        %v3031 = vsel %vm2155, %v3026, %v3030
        %v3032 = vshrl.u32 %v2681, 16
        %v3034 = vrot.slane %v3032, 4
        %v3035 = vor.u32 %v3034, %v3030
        %v3036 = vrot.slane %v3035, 4
        %v3038 = vshll.u32 %v2682, 16
        %v3040 = vrot.slane %v3038, 5
        %v3041 = vsel %vm2155, %v3036, %v3040
        %v3042 = vshrl.u32 %v2682, 16
        %v3044 = vrot.slane %v3042, 4
        %v3045 = vor.u32 %v3044, %v3040
        %v3046 = vrot.slane %v3045, 4
        %v3048 = vshll.u32 %v2683, 16
        %v3050 = vrot.slane %v3048, 5
        %v3051 = vsel %vm2155, %v3046, %v3050
        %v3052 = vshrl.u32 %v2683, 16
        %v3054 = vrot.slane %v3052, 4
        %v3055 = vor.u32 %v3054, %v3050
        %v3056 = vrot.slane %v3055, 4
        %v3058 = vshll.u32 %v2684, 16
        %v3060 = vrot.slane %v3058, 5
        %v3061 = vsel %vm2155, %v3056, %v3060
        %v3062 = vshrl.u32 %v2684, 16
        %v3064 = vrot.slane %v3062, 4
        %v3065 = vor.u32 %v3064, %v3060
        %v3066 = vrot.slane %v3065, 4
        %v3068 = vshll.u32 %v2685, 16
        %v3070 = vrot.slane %v3068, 5
        %v3071 = vsel %vm2155, %v3066, %v3070
        %v3072 = vshrl.u32 %v2685, 16
        %v3074 = vrot.slane %v3072, 4
        %v3075 = vor.u32 %v3074, %v3070
        %v3076 = vrot.slane %v3075, 4
        %v3078 = vshll.u32 %v2686, 16
        %v3080 = vrot.slane %v3078, 5
        %v3081 = vsel %vm2155, %v3076, %v3080
        %v3082 = vshrl.u32 %v2686, 16
        %v3084 = vrot.slane %v3082, 4
        %v3085 = vor.u32 %v3084, %v3080
        %v3086 = vrot.slane %v3085, 4
        %v3088 = vshll.u32 %v2687, 16
        %v3090 = vrot.slane %v3088, 5
        %v3091 = vsel %vm2155, %v3086, %v3090
        %v3092 = vshrl.u32 %v2687, 16
        %v3094 = vrot.slane %v3092, 4
        %v3095 = vor.u32 %v3094, %v3090
        %v3096 = vrot.slane %v3095, 4
        %3138 = vst [vmem:[#allocation2 + $0x18] sm:$0xf] %v2701
        %3139 = vst [vmem:[#allocation2 + $0x3c] sm:$0xf] %v2711
        %3140 = vst [vmem:[#allocation2 + $0x60] sm:$0xf] %v2721
        %3141 = vst [vmem:[#allocation2 + $0x84] sm:$0xf] %v2731
        %3142 = vst [vmem:[#allocation2 + $0xa8] sm:$0xf] %v2741
        %3143 = vst [vmem:[#allocation2 + $0xcc] sm:$0xf] %v2751
        %3144 = vst [vmem:[#allocation2 + $0xf0] sm:$0xf] %v2761
        %3145 = vst [vmem:[#allocation2 + $0x114] sm:$0xf] %v2771
        %3146 = vst [vmem:[#allocation2 + $0x138] sm:$0xf] %v2781
        %3147 = vst [vmem:[#allocation2 + $0x15c] sm:$0xf] %v2791
        %3148 = vst [vmem:[#allocation2 + $0x180] sm:$0xf] %v2801
        %3149 = vst [vmem:[#allocation2 + $0x1a4] sm:$0xf] %v2811
        %3150 = vst [vmem:[#allocation2 + $0x1c8] sm:$0xf] %v2821
        %3151 = vst [vmem:[#allocation2 + $0x1ec] sm:$0xf] %v2831
        %3152 = vst [vmem:[#allocation2 + $0x210] sm:$0xf] %v2841
        %3153 = vst [vmem:[#allocation2 + $0x234] sm:$0xf] %v2851
        %3154 = vst [vmem:[#allocation2 + $0x258] sm:$0xf] %v2861
        %3155 = vst [vmem:[#allocation2 + $0x27c] sm:$0xf] %v2871
        %3156 = vst [vmem:[#allocation2 + $0x2a0] sm:$0xf] %v2881
        %3157 = vst [vmem:[#allocation2 + $0x2c4] sm:$0xf] %v2891
        %3158 = vst [vmem:[#allocation2 + $0x2e8] sm:$0xf] %v2901
        %3159 = vst [vmem:[#allocation2 + $0x30c] sm:$0xf] %v2911
        %3160 = vst [vmem:[#allocation2 + $0x330] sm:$0xf] %v2921
        %3161 = vst [vmem:[#allocation2 + $0x354] sm:$0xf] %v2931
        %3162 = vst [vmem:[#allocation2 + $0x378] sm:$0xf] %v2941
        %3163 = vst [vmem:[#allocation2 + $0x39c] sm:$0xf] %v2951
        %3164 = vst [vmem:[#allocation2 + $0x3c0] sm:$0xf] %v2961
        %3165 = vst [vmem:[#allocation2 + $0x3e4] sm:$0xf] %v2971
        %3166 = vst [vmem:[#allocation2 + $0x408] sm:$0xf] %v2981
        %3167 = vst [vmem:[#allocation2 + $0x42c] sm:$0xf] %v2991
        %3168 = vst [vmem:[#allocation2 + $0x450] sm:$0xf] %v3001
        %3169 = vst [vmem:[#allocation2 + $0x474] sm:$0xf] %v3011
        %3170 = vst [vmem:[#allocation2 + $0x498] sm:$0xf] %v3021
        %3171 = vst [vmem:[#allocation2 + $0x4bc] sm:$0xf] %v3031
        %3172 = vst [vmem:[#allocation2 + $0x4e0] sm:$0xf] %v3041
        %3173 = vst [vmem:[#allocation2 + $0x504] sm:$0xf] %v3051
        %3174 = vst [vmem:[#allocation2 + $0x528] sm:$0xf] %v3061
        %3175 = vst [vmem:[#allocation2 + $0x54c] sm:$0xf] %v3071
        %3176 = vst [vmem:[#allocation2 + $0x570] sm:$0xf] %v3081
        %3177 = vst [vmem:[#allocation2 + $0x594] sm:$0xf] %v3091
        %3178 = vst [vmem:[#allocation2 + $0x5b8] sm:$0x3] %v3096
        %v3179 = vld [vmem:[%s193 + $0x18] sm:$0xe]
        %v3180 = vld [vmem:[%s193 + $0x1c] sm:$0xf]
        %v3181 = vld [vmem:[%s193 + $0x20] sm:$0xf]
        %v3182 = vld [vmem:[%s193 + $0x24] sm:$0xf]
        %v3183 = vld [vmem:[%s193 + $0x28] sm:$0xf]
        %v3184 = vld [vmem:[%s193 + $0x2c] sm:$0xf]
        %v3185 = vld [vmem:[%s193 + $0x30] sm:$0xf]
        %v3186 = vld [vmem:[%s193 + $0x34] sm:$0xf]
        %v3187 = vld [vmem:[%s193 + $0x38] sm:$0xf]
        %v3188 = vld [vmem:[%s193 + $0x3c] sm:$0xf]
        %v3189 = vld [vmem:[%s193 + $0x40] sm:$0xf]
        %v3190 = vld [vmem:[%s193 + $0x44] sm:$0xf]
        %v3191 = vld [vmem:[%s193 + $0x48] sm:$0xf]
        %v3192 = vld [vmem:[%s193 + $0x4c] sm:$0xf]
        %v3193 = vld [vmem:[%s193 + $0x50] sm:$0xf]
        %v3194 = vld [vmem:[%s193 + $0x54] sm:$0xf]
        %v3195 = vld [vmem:[%s193 + $0x58] sm:$0xf]
        %v3196 = vld [vmem:[%s193 + $0x5c] sm:$0xf]
        %v3197 = vld [vmem:[%s193 + $0x60] sm:$0xf]
        %v3198 = vld [vmem:[%s193 + $0x64] sm:$0xf]
        %v3199 = vld [vmem:[%s193 + $0x68] sm:$0xf]
        %v3200 = vld [vmem:[%s193 + $0x6c] sm:$0xf]
        %v3201 = vld [vmem:[%s193 + $0x70] sm:$0xf]
        %v3202 = vld [vmem:[%s193 + $0x74] sm:$0xf]
        %v3203 = vld [vmem:[%s193 + $0x78] sm:$0xf]
        %v3204 = vld [vmem:[%s193 + $0x7c] sm:$0xf]
        %v3205 = vld [vmem:[%s193 + $0x80] sm:$0xf]
        %v3206 = vld [vmem:[%s193 + $0x84] sm:$0xf]
        %v3207 = vld [vmem:[%s193 + $0x88] sm:$0xf]
        %v3208 = vld [vmem:[%s193 + $0x8c] sm:$0xf]
        %v3209 = vld [vmem:[%s193 + $0x90] sm:$0xf]
        %v3210 = vld [vmem:[%s193 + $0x94] sm:$0xf]
        %v3211 = vld [vmem:[%s193 + $0x98] sm:$0xf]
        %v3212 = vld [vmem:[%s193 + $0x9c] sm:$0xf]
        %v3213 = vld [vmem:[%s193 + $0xa0] sm:$0xf]
        %v3214 = vld [vmem:[%s193 + $0xa4] sm:$0xf]
        %v3215 = vld [vmem:[%s193 + $0xa8] sm:$0xf]
        %v3216 = vld [vmem:[%s193 + $0xac] sm:$0xf]
        %v3217 = vld [vmem:[%s193 + $0xb0] sm:$0xf]
        %v3218 = vld [vmem:[%s193 + $0xb4] sm:$0xf]
        %v3219 = vld [vmem:[%s193 + $0xb8] sm:$0x7]
        %vm3261 = vcmask 1042432
        %vm3262 = vcmask 1046532
        %vm3263 = vmor %vm3261, %vm3262
        %v3264 = vrot.slane %v3179, 5
        %v3265 = vrot.slane %v3264, 4
        %v3266 = vrot.slane %v3180, 5
        %v3267 = vsel %vm3263, %v3265, %v3266
        %v3268 = vrot.slane %v3266, 4
        %v3269 = vrot.slane %v3181, 5
        %v3270 = vsel %vm3263, %v3268, %v3269
        %v3271 = vrot.slane %v3269, 4
        %v3272 = vrot.slane %v3182, 5
        %v3273 = vsel %vm3263, %v3271, %v3272
        %v3274 = vrot.slane %v3272, 4
        %v3275 = vrot.slane %v3183, 5
        %v3276 = vsel %vm3263, %v3274, %v3275
        %v3277 = vrot.slane %v3275, 4
        %v3278 = vrot.slane %v3184, 5
        %v3279 = vsel %vm3263, %v3277, %v3278
        %v3280 = vrot.slane %v3278, 4
        %v3281 = vrot.slane %v3185, 5
        %v3282 = vsel %vm3263, %v3280, %v3281
        %v3283 = vrot.slane %v3281, 4
        %v3284 = vrot.slane %v3186, 5
        %v3285 = vsel %vm3263, %v3283, %v3284
        %v3286 = vrot.slane %v3284, 4
        %v3287 = vrot.slane %v3187, 5
        %v3288 = vsel %vm3263, %v3286, %v3287
        %v3289 = vrot.slane %v3287, 4
        %v3290 = vrot.slane %v3188, 5
        %v3291 = vsel %vm3263, %v3289, %v3290
        %v3292 = vrot.slane %v3290, 4
        %v3293 = vrot.slane %v3189, 5
        %v3294 = vsel %vm3263, %v3292, %v3293
        %v3295 = vrot.slane %v3293, 4
        %v3296 = vrot.slane %v3190, 5
        %v3297 = vsel %vm3263, %v3295, %v3296
        %v3298 = vrot.slane %v3296, 4
        %v3299 = vrot.slane %v3191, 5
        %v3300 = vsel %vm3263, %v3298, %v3299
        %v3301 = vrot.slane %v3299, 4
        %v3302 = vrot.slane %v3192, 5
        %v3303 = vsel %vm3263, %v3301, %v3302
        %v3304 = vrot.slane %v3302, 4
        %v3305 = vrot.slane %v3193, 5
        %v3306 = vsel %vm3263, %v3304, %v3305
        %v3307 = vrot.slane %v3305, 4
        %v3308 = vrot.slane %v3194, 5
        %v3309 = vsel %vm3263, %v3307, %v3308
        %v3310 = vrot.slane %v3308, 4
        %v3311 = vrot.slane %v3195, 5
        %v3312 = vsel %vm3263, %v3310, %v3311
        %v3313 = vrot.slane %v3311, 4
        %v3314 = vrot.slane %v3196, 5
        %v3315 = vsel %vm3263, %v3313, %v3314
        %v3316 = vrot.slane %v3314, 4
        %v3317 = vrot.slane %v3197, 5
        %v3318 = vsel %vm3263, %v3316, %v3317
        %v3319 = vrot.slane %v3317, 4
        %v3320 = vrot.slane %v3198, 5
        %v3321 = vsel %vm3263, %v3319, %v3320
        %v3322 = vrot.slane %v3320, 4
        %v3323 = vrot.slane %v3199, 5
        %v3324 = vsel %vm3263, %v3322, %v3323
        %v3325 = vrot.slane %v3323, 4
        %v3326 = vrot.slane %v3200, 5
        %v3327 = vsel %vm3263, %v3325, %v3326
        %v3328 = vrot.slane %v3326, 4
        %v3329 = vrot.slane %v3201, 5
        %v3330 = vsel %vm3263, %v3328, %v3329
        %v3331 = vrot.slane %v3329, 4
        %v3332 = vrot.slane %v3202, 5
        %v3333 = vsel %vm3263, %v3331, %v3332
        %v3334 = vrot.slane %v3332, 4
        %v3335 = vrot.slane %v3203, 5
        %v3336 = vsel %vm3263, %v3334, %v3335
        %v3337 = vrot.slane %v3335, 4
        %v3338 = vrot.slane %v3204, 5
        %v3339 = vsel %vm3263, %v3337, %v3338
        %v3340 = vrot.slane %v3338, 4
        %v3341 = vrot.slane %v3205, 5
        %v3342 = vsel %vm3263, %v3340, %v3341
        %v3343 = vrot.slane %v3341, 4
        %v3344 = vrot.slane %v3206, 5
        %v3345 = vsel %vm3263, %v3343, %v3344
        %v3346 = vrot.slane %v3344, 4
        %v3347 = vrot.slane %v3207, 5
        %v3348 = vsel %vm3263, %v3346, %v3347
        %v3349 = vrot.slane %v3347, 4
        %v3350 = vrot.slane %v3208, 5
        %v3351 = vsel %vm3263, %v3349, %v3350
        %v3352 = vrot.slane %v3350, 4
        %v3353 = vrot.slane %v3209, 5
        %v3354 = vsel %vm3263, %v3352, %v3353
        %v3355 = vrot.slane %v3353, 4
        %v3356 = vrot.slane %v3210, 5
        %v3357 = vsel %vm3263, %v3355, %v3356
        %v3358 = vrot.slane %v3356, 4
        %v3359 = vrot.slane %v3211, 5
        %v3360 = vsel %vm3263, %v3358, %v3359
        %v3361 = vrot.slane %v3359, 4
        %v3362 = vrot.slane %v3212, 5
        %v3363 = vsel %vm3263, %v3361, %v3362
        %v3364 = vrot.slane %v3362, 4
        %v3365 = vrot.slane %v3213, 5
        %v3366 = vsel %vm3263, %v3364, %v3365
        %v3367 = vrot.slane %v3365, 4
        %v3368 = vrot.slane %v3214, 5
        %v3369 = vsel %vm3263, %v3367, %v3368
        %v3370 = vrot.slane %v3368, 4
        %v3371 = vrot.slane %v3215, 5
        %v3372 = vsel %vm3263, %v3370, %v3371
        %v3373 = vrot.slane %v3371, 4
        %v3374 = vrot.slane %v3216, 5
        %v3375 = vsel %vm3263, %v3373, %v3374
        %v3376 = vrot.slane %v3374, 4
        %v3377 = vrot.slane %v3217, 5
        %v3378 = vsel %vm3263, %v3376, %v3377
        %v3379 = vrot.slane %v3377, 4
        %v3380 = vrot.slane %v3218, 5
        %v3381 = vsel %vm3263, %v3379, %v3380
        %v3382 = vrot.slane %v3380, 4
        %v3383 = vrot.slane %v3219, 5
        %v3384 = vsel %vm3263, %v3382, %v3383
        %v3385 = vrot.slane %v3383, 4
        %3427 = vst [vmem:[#allocation2 + $0x1c] sm:$0xf] %v3267
        %3428 = vst [vmem:[#allocation2 + $0x40] sm:$0xf] %v3270
        %3429 = vst [vmem:[#allocation2 + $0x64] sm:$0xf] %v3273
        %3430 = vst [vmem:[#allocation2 + $0x88] sm:$0xf] %v3276
        %3431 = vst [vmem:[#allocation2 + $0xac] sm:$0xf] %v3279
        %3432 = vst [vmem:[#allocation2 + $0xd0] sm:$0xf] %v3282
        %3433 = vst [vmem:[#allocation2 + $0xf4] sm:$0xf] %v3285
        %3434 = vst [vmem:[#allocation2 + $0x118] sm:$0xf] %v3288
        %3435 = vst [vmem:[#allocation2 + $0x13c] sm:$0xf] %v3291
        %3436 = vst [vmem:[#allocation2 + $0x160] sm:$0xf] %v3294
        %3437 = vst [vmem:[#allocation2 + $0x184] sm:$0xf] %v3297
        %3438 = vst [vmem:[#allocation2 + $0x1a8] sm:$0xf] %v3300
        %3439 = vst [vmem:[#allocation2 + $0x1cc] sm:$0xf] %v3303
        %3440 = vst [vmem:[#allocation2 + $0x1f0] sm:$0xf] %v3306
        %3441 = vst [vmem:[#allocation2 + $0x214] sm:$0xf] %v3309
        %3442 = vst [vmem:[#allocation2 + $0x238] sm:$0xf] %v3312
        %3443 = vst [vmem:[#allocation2 + $0x25c] sm:$0xf] %v3315
        %3444 = vst [vmem:[#allocation2 + $0x280] sm:$0xf] %v3318
        %3445 = vst [vmem:[#allocation2 + $0x2a4] sm:$0xf] %v3321
        %3446 = vst [vmem:[#allocation2 + $0x2c8] sm:$0xf] %v3324
        %3447 = vst [vmem:[#allocation2 + $0x2ec] sm:$0xf] %v3327
        %3448 = vst [vmem:[#allocation2 + $0x310] sm:$0xf] %v3330
        %3449 = vst [vmem:[#allocation2 + $0x334] sm:$0xf] %v3333
        %3450 = vst [vmem:[#allocation2 + $0x358] sm:$0xf] %v3336
        %3451 = vst [vmem:[#allocation2 + $0x37c] sm:$0xf] %v3339
        %3452 = vst [vmem:[#allocation2 + $0x3a0] sm:$0xf] %v3342
        %3453 = vst [vmem:[#allocation2 + $0x3c4] sm:$0xf] %v3345
        %3454 = vst [vmem:[#allocation2 + $0x3e8] sm:$0xf] %v3348
        %3455 = vst [vmem:[#allocation2 + $0x40c] sm:$0xf] %v3351
        %3456 = vst [vmem:[#allocation2 + $0x430] sm:$0xf] %v3354
        %3457 = vst [vmem:[#allocation2 + $0x454] sm:$0xf] %v3357
        %3458 = vst [vmem:[#allocation2 + $0x478] sm:$0xf] %v3360
        %3459 = vst [vmem:[#allocation2 + $0x49c] sm:$0xf] %v3363
        %3460 = vst [vmem:[#allocation2 + $0x4c0] sm:$0xf] %v3366
        %3461 = vst [vmem:[#allocation2 + $0x4e4] sm:$0xf] %v3369
        %3462 = vst [vmem:[#allocation2 + $0x508] sm:$0xf] %v3372
        %3463 = vst [vmem:[#allocation2 + $0x52c] sm:$0xf] %v3375
        %3464 = vst [vmem:[#allocation2 + $0x550] sm:$0xf] %v3378
        %3465 = vst [vmem:[#allocation2 + $0x574] sm:$0xf] %v3381
        %3466 = vst [vmem:[#allocation2 + $0x598] sm:$0xf] %v3384
        %3467 = vst [vmem:[#allocation2 + $0x5bc] sm:$0x3] %v3385
        %v3468 = vld [vmem:[%s193 + $0x18] sm:$0xe]
        %v3469 = vld [vmem:[%s193 + $0x1c] sm:$0xf]
        %v3470 = vld [vmem:[%s193 + $0x20] sm:$0xf]
        %v3471 = vld [vmem:[%s193 + $0x24] sm:$0xf]
        %v3472 = vld [vmem:[%s193 + $0x28] sm:$0xf]
        %v3473 = vld [vmem:[%s193 + $0x2c] sm:$0xf]
        %v3474 = vld [vmem:[%s193 + $0x30] sm:$0xf]
        %v3475 = vld [vmem:[%s193 + $0x34] sm:$0xf]
        %v3476 = vld [vmem:[%s193 + $0x38] sm:$0xf]
        %v3477 = vld [vmem:[%s193 + $0x3c] sm:$0xf]
        %v3478 = vld [vmem:[%s193 + $0x40] sm:$0xf]
        %v3479 = vld [vmem:[%s193 + $0x44] sm:$0xf]
        %v3480 = vld [vmem:[%s193 + $0x48] sm:$0xf]
        %v3481 = vld [vmem:[%s193 + $0x4c] sm:$0xf]
        %v3482 = vld [vmem:[%s193 + $0x50] sm:$0xf]
        %v3483 = vld [vmem:[%s193 + $0x54] sm:$0xf]
        %v3484 = vld [vmem:[%s193 + $0x58] sm:$0xf]
        %v3485 = vld [vmem:[%s193 + $0x5c] sm:$0xf]
        %v3486 = vld [vmem:[%s193 + $0x60] sm:$0xf]
        %v3487 = vld [vmem:[%s193 + $0x64] sm:$0xf]
        %v3488 = vld [vmem:[%s193 + $0x68] sm:$0xf]
        %v3489 = vld [vmem:[%s193 + $0x6c] sm:$0xf]
        %v3490 = vld [vmem:[%s193 + $0x70] sm:$0xf]
        %v3491 = vld [vmem:[%s193 + $0x74] sm:$0xf]
        %v3492 = vld [vmem:[%s193 + $0x78] sm:$0xf]
        %v3493 = vld [vmem:[%s193 + $0x7c] sm:$0xf]
        %v3494 = vld [vmem:[%s193 + $0x80] sm:$0xf]
        %v3495 = vld [vmem:[%s193 + $0x84] sm:$0xf]
        %v3496 = vld [vmem:[%s193 + $0x88] sm:$0xf]
        %v3497 = vld [vmem:[%s193 + $0x8c] sm:$0xf]
        %v3498 = vld [vmem:[%s193 + $0x90] sm:$0xf]
        %v3499 = vld [vmem:[%s193 + $0x94] sm:$0xf]
        %v3500 = vld [vmem:[%s193 + $0x98] sm:$0xf]
        %v3501 = vld [vmem:[%s193 + $0x9c] sm:$0xf]
        %v3502 = vld [vmem:[%s193 + $0xa0] sm:$0xf]
        %v3503 = vld [vmem:[%s193 + $0xa4] sm:$0xf]
        %v3504 = vld [vmem:[%s193 + $0xa8] sm:$0xf]
        %v3505 = vld [vmem:[%s193 + $0xac] sm:$0xf]
        %v3506 = vld [vmem:[%s193 + $0xb0] sm:$0xf]
        %v3507 = vld [vmem:[%s193 + $0xb4] sm:$0xf]
        %v3508 = vld [vmem:[%s193 + $0xb8] sm:$0xf]
        %vm3509 = vsmask.f32 2304
        %vm3510 = vsmask.f32 6416
        %vm3511 = vmor %vm3509, %vm3510
        %v3513 = vshrl.u32 %v3468, 16
        %v3515 = vrot.slane %v3513, 5
        %v3516 = vshll.u32 %v3468, 16
        %v3518 = vrot.slane %v3516, 6
        %v3519 = vor.u32 %v3515, %v3518
        %v3520 = vrot.slane %v3519, 4
        %v3522 = vshrl.u32 %v3469, 16
        %v3524 = vrot.slane %v3522, 5
        %v3525 = vshll.u32 %v3469, 16
        %v3527 = vrot.slane %v3525, 6
        %v3528 = vor.u32 %v3524, %v3527
        %v3529 = vsel %vm3511, %v3520, %v3528
        %v3530 = vrot.slane %v3528, 4
        %v3532 = vshrl.u32 %v3470, 16
        %v3534 = vrot.slane %v3532, 5
        %v3535 = vshll.u32 %v3470, 16
        %v3537 = vrot.slane %v3535, 6
        %v3538 = vor.u32 %v3534, %v3537
        %v3539 = vsel %vm3511, %v3530, %v3538
        %v3540 = vrot.slane %v3538, 4
        %v3542 = vshrl.u32 %v3471, 16
        %v3544 = vrot.slane %v3542, 5
        %v3545 = vshll.u32 %v3471, 16
        %v3547 = vrot.slane %v3545, 6
        %v3548 = vor.u32 %v3544, %v3547
        %v3549 = vsel %vm3511, %v3540, %v3548
        %v3550 = vrot.slane %v3548, 4
        %v3552 = vshrl.u32 %v3472, 16
        %v3554 = vrot.slane %v3552, 5
        %v3555 = vshll.u32 %v3472, 16
        %v3557 = vrot.slane %v3555, 6
        %v3558 = vor.u32 %v3554, %v3557
        %v3559 = vsel %vm3511, %v3550, %v3558
        %v3560 = vrot.slane %v3558, 4
        %v3562 = vshrl.u32 %v3473, 16
        %v3564 = vrot.slane %v3562, 5
        %v3565 = vshll.u32 %v3473, 16
        %v3567 = vrot.slane %v3565, 6
        %v3568 = vor.u32 %v3564, %v3567
        %v3569 = vsel %vm3511, %v3560, %v3568
        %v3570 = vrot.slane %v3568, 4
        %v3572 = vshrl.u32 %v3474, 16
        %v3574 = vrot.slane %v3572, 5
        %v3575 = vshll.u32 %v3474, 16
        %v3577 = vrot.slane %v3575, 6
        %v3578 = vor.u32 %v3574, %v3577
        %v3579 = vsel %vm3511, %v3570, %v3578
        %v3580 = vrot.slane %v3578, 4
        %v3582 = vshrl.u32 %v3475, 16
        %v3584 = vrot.slane %v3582, 5
        %v3585 = vshll.u32 %v3475, 16
        %v3587 = vrot.slane %v3585, 6
        %v3588 = vor.u32 %v3584, %v3587
        %v3589 = vsel %vm3511, %v3580, %v3588
        %v3590 = vrot.slane %v3588, 4
        %v3592 = vshrl.u32 %v3476, 16
        %v3594 = vrot.slane %v3592, 5
        %v3595 = vshll.u32 %v3476, 16
        %v3597 = vrot.slane %v3595, 6
        %v3598 = vor.u32 %v3594, %v3597
        %v3599 = vsel %vm3511, %v3590, %v3598
        %v3600 = vrot.slane %v3598, 4
        %v3602 = vshrl.u32 %v3477, 16
        %v3604 = vrot.slane %v3602, 5
        %v3605 = vshll.u32 %v3477, 16
        %v3607 = vrot.slane %v3605, 6
        %v3608 = vor.u32 %v3604, %v3607
        %v3609 = vsel %vm3511, %v3600, %v3608
        %v3610 = vrot.slane %v3608, 4
        %v3612 = vshrl.u32 %v3478, 16
        %v3614 = vrot.slane %v3612, 5
        %v3615 = vshll.u32 %v3478, 16
        %v3617 = vrot.slane %v3615, 6
        %v3618 = vor.u32 %v3614, %v3617
        %v3619 = vsel %vm3511, %v3610, %v3618
        %v3620 = vrot.slane %v3618, 4
        %v3622 = vshrl.u32 %v3479, 16
        %v3624 = vrot.slane %v3622, 5
        %v3625 = vshll.u32 %v3479, 16
        %v3627 = vrot.slane %v3625, 6
        %v3628 = vor.u32 %v3624, %v3627
        %v3629 = vsel %vm3511, %v3620, %v3628
        %v3630 = vrot.slane %v3628, 4
        %v3632 = vshrl.u32 %v3480, 16
        %v3634 = vrot.slane %v3632, 5
        %v3635 = vshll.u32 %v3480, 16
        %v3637 = vrot.slane %v3635, 6
        %v3638 = vor.u32 %v3634, %v3637
        %v3639 = vsel %vm3511, %v3630, %v3638
        %v3640 = vrot.slane %v3638, 4
        %v3642 = vshrl.u32 %v3481, 16
        %v3644 = vrot.slane %v3642, 5
        %v3645 = vshll.u32 %v3481, 16
        %v3647 = vrot.slane %v3645, 6
        %v3648 = vor.u32 %v3644, %v3647
        %v3649 = vsel %vm3511, %v3640, %v3648
        %v3650 = vrot.slane %v3648, 4
        %v3652 = vshrl.u32 %v3482, 16
        %v3654 = vrot.slane %v3652, 5
        %v3655 = vshll.u32 %v3482, 16
        %v3657 = vrot.slane %v3655, 6
        %v3658 = vor.u32 %v3654, %v3657
        %v3659 = vsel %vm3511, %v3650, %v3658
        %v3660 = vrot.slane %v3658, 4
        %v3662 = vshrl.u32 %v3483, 16
        %v3664 = vrot.slane %v3662, 5
        %v3665 = vshll.u32 %v3483, 16
        %v3667 = vrot.slane %v3665, 6
        %v3668 = vor.u32 %v3664, %v3667
        %v3669 = vsel %vm3511, %v3660, %v3668
        %v3670 = vrot.slane %v3668, 4
        %v3672 = vshrl.u32 %v3484, 16
        %v3674 = vrot.slane %v3672, 5
        %v3675 = vshll.u32 %v3484, 16
        %v3677 = vrot.slane %v3675, 6
        %v3678 = vor.u32 %v3674, %v3677
        %v3679 = vsel %vm3511, %v3670, %v3678
        %v3680 = vrot.slane %v3678, 4
        %v3682 = vshrl.u32 %v3485, 16
        %v3684 = vrot.slane %v3682, 5
        %v3685 = vshll.u32 %v3485, 16
        %v3687 = vrot.slane %v3685, 6
        %v3688 = vor.u32 %v3684, %v3687
        %v3689 = vsel %vm3511, %v3680, %v3688
        %v3690 = vrot.slane %v3688, 4
        %v3692 = vshrl.u32 %v3486, 16
        %v3694 = vrot.slane %v3692, 5
        %v3695 = vshll.u32 %v3486, 16
        %v3697 = vrot.slane %v3695, 6
        %v3698 = vor.u32 %v3694, %v3697
        %v3699 = vsel %vm3511, %v3690, %v3698
        %v3700 = vrot.slane %v3698, 4
        %v3702 = vshrl.u32 %v3487, 16
        %v3704 = vrot.slane %v3702, 5
        %v3705 = vshll.u32 %v3487, 16
        %v3707 = vrot.slane %v3705, 6
        %v3708 = vor.u32 %v3704, %v3707
        %v3709 = vsel %vm3511, %v3700, %v3708
        %v3710 = vrot.slane %v3708, 4
        %v3712 = vshrl.u32 %v3488, 16
        %v3714 = vrot.slane %v3712, 5
        %v3715 = vshll.u32 %v3488, 16
        %v3717 = vrot.slane %v3715, 6
        %v3718 = vor.u32 %v3714, %v3717
        %v3719 = vsel %vm3511, %v3710, %v3718
        %v3720 = vrot.slane %v3718, 4
        %v3722 = vshrl.u32 %v3489, 16
        %v3724 = vrot.slane %v3722, 5
        %v3725 = vshll.u32 %v3489, 16
        %v3727 = vrot.slane %v3725, 6
        %v3728 = vor.u32 %v3724, %v3727
        %v3729 = vsel %vm3511, %v3720, %v3728
        %v3730 = vrot.slane %v3728, 4
        %v3732 = vshrl.u32 %v3490, 16
        %v3734 = vrot.slane %v3732, 5
        %v3735 = vshll.u32 %v3490, 16
        %v3737 = vrot.slane %v3735, 6
        %v3738 = vor.u32 %v3734, %v3737
        %v3739 = vsel %vm3511, %v3730, %v3738
        %v3740 = vrot.slane %v3738, 4
        %v3742 = vshrl.u32 %v3491, 16
        %v3744 = vrot.slane %v3742, 5
        %v3745 = vshll.u32 %v3491, 16
        %v3747 = vrot.slane %v3745, 6
        %v3748 = vor.u32 %v3744, %v3747
        %v3749 = vsel %vm3511, %v3740, %v3748
        %v3750 = vrot.slane %v3748, 4
        %v3752 = vshrl.u32 %v3492, 16
        %v3754 = vrot.slane %v3752, 5
        %v3755 = vshll.u32 %v3492, 16
        %v3757 = vrot.slane %v3755, 6
        %v3758 = vor.u32 %v3754, %v3757
        %v3759 = vsel %vm3511, %v3750, %v3758
        %v3760 = vrot.slane %v3758, 4
        %v3762 = vshrl.u32 %v3493, 16
        %v3764 = vrot.slane %v3762, 5
        %v3765 = vshll.u32 %v3493, 16
        %v3767 = vrot.slane %v3765, 6
        %v3768 = vor.u32 %v3764, %v3767
        %v3769 = vsel %vm3511, %v3760, %v3768
        %v3770 = vrot.slane %v3768, 4
        %v3772 = vshrl.u32 %v3494, 16
        %v3774 = vrot.slane %v3772, 5
        %v3775 = vshll.u32 %v3494, 16
        %v3777 = vrot.slane %v3775, 6
        %v3778 = vor.u32 %v3774, %v3777
        %v3779 = vsel %vm3511, %v3770, %v3778
        %v3780 = vrot.slane %v3778, 4
        %v3782 = vshrl.u32 %v3495, 16
        %v3784 = vrot.slane %v3782, 5
        %v3785 = vshll.u32 %v3495, 16
        %v3787 = vrot.slane %v3785, 6
        %v3788 = vor.u32 %v3784, %v3787
        %v3789 = vsel %vm3511, %v3780, %v3788
        %v3790 = vrot.slane %v3788, 4
        %v3792 = vshrl.u32 %v3496, 16
        %v3794 = vrot.slane %v3792, 5
        %v3795 = vshll.u32 %v3496, 16
        %v3797 = vrot.slane %v3795, 6
        %v3798 = vor.u32 %v3794, %v3797
        %v3799 = vsel %vm3511, %v3790, %v3798
        %v3800 = vrot.slane %v3798, 4
        %v3802 = vshrl.u32 %v3497, 16
        %v3804 = vrot.slane %v3802, 5
        %v3805 = vshll.u32 %v3497, 16
        %v3807 = vrot.slane %v3805, 6
        %v3808 = vor.u32 %v3804, %v3807
        %v3809 = vsel %vm3511, %v3800, %v3808
        %v3810 = vrot.slane %v3808, 4
        %v3812 = vshrl.u32 %v3498, 16
        %v3814 = vrot.slane %v3812, 5
        %v3815 = vshll.u32 %v3498, 16
        %v3817 = vrot.slane %v3815, 6
        %v3818 = vor.u32 %v3814, %v3817
        %v3819 = vsel %vm3511, %v3810, %v3818
        %v3820 = vrot.slane %v3818, 4
        %v3822 = vshrl.u32 %v3499, 16
        %v3824 = vrot.slane %v3822, 5
        %v3825 = vshll.u32 %v3499, 16
        %v3827 = vrot.slane %v3825, 6
        %v3828 = vor.u32 %v3824, %v3827
        %v3829 = vsel %vm3511, %v3820, %v3828
        %v3830 = vrot.slane %v3828, 4
        %v3832 = vshrl.u32 %v3500, 16
        %v3834 = vrot.slane %v3832, 5
        %v3835 = vshll.u32 %v3500, 16
        %v3837 = vrot.slane %v3835, 6
        %v3838 = vor.u32 %v3834, %v3837
        %v3839 = vsel %vm3511, %v3830, %v3838
        %v3840 = vrot.slane %v3838, 4
        %v3842 = vshrl.u32 %v3501, 16
        %v3844 = vrot.slane %v3842, 5
        %v3845 = vshll.u32 %v3501, 16
        %v3847 = vrot.slane %v3845, 6
        %v3848 = vor.u32 %v3844, %v3847
        %v3849 = vsel %vm3511, %v3840, %v3848
        %v3850 = vrot.slane %v3848, 4
        %v3852 = vshrl.u32 %v3502, 16
        %v3854 = vrot.slane %v3852, 5
        %v3855 = vshll.u32 %v3502, 16
        %v3857 = vrot.slane %v3855, 6
        %v3858 = vor.u32 %v3854, %v3857
        %v3859 = vsel %vm3511, %v3850, %v3858
        %v3860 = vrot.slane %v3858, 4
        %v3862 = vshrl.u32 %v3503, 16
        %v3864 = vrot.slane %v3862, 5
        %v3865 = vshll.u32 %v3503, 16
        %v3867 = vrot.slane %v3865, 6
        %v3868 = vor.u32 %v3864, %v3867
        %v3869 = vsel %vm3511, %v3860, %v3868
        %v3870 = vrot.slane %v3868, 4
        %v3872 = vshrl.u32 %v3504, 16
        %v3874 = vrot.slane %v3872, 5
        %v3875 = vshll.u32 %v3504, 16
        %v3877 = vrot.slane %v3875, 6
        %v3878 = vor.u32 %v3874, %v3877
        %v3879 = vsel %vm3511, %v3870, %v3878
        %v3880 = vrot.slane %v3878, 4
        %v3882 = vshrl.u32 %v3505, 16
        %v3884 = vrot.slane %v3882, 5
        %v3885 = vshll.u32 %v3505, 16
        %v3887 = vrot.slane %v3885, 6
        %v3888 = vor.u32 %v3884, %v3887
        %v3889 = vsel %vm3511, %v3880, %v3888
        %v3890 = vrot.slane %v3888, 4
        %v3892 = vshrl.u32 %v3506, 16
        %v3894 = vrot.slane %v3892, 5
        %v3895 = vshll.u32 %v3506, 16
        %v3897 = vrot.slane %v3895, 6
        %v3898 = vor.u32 %v3894, %v3897
        %v3899 = vsel %vm3511, %v3890, %v3898
        %v3900 = vrot.slane %v3898, 4
        %v3902 = vshrl.u32 %v3507, 16
        %v3904 = vrot.slane %v3902, 5
        %v3905 = vshll.u32 %v3507, 16
        %v3907 = vrot.slane %v3905, 6
        %v3908 = vor.u32 %v3904, %v3907
        %v3909 = vsel %vm3511, %v3900, %v3908
        %v3910 = vrot.slane %v3908, 4
        %v3912 = vshrl.u32 %v3508, 16
        %v3914 = vrot.slane %v3912, 5
        %v3915 = vshll.u32 %v3508, 16
        %v3917 = vrot.slane %v3915, 6
        %v3918 = vor.u32 %v3914, %v3917
        %v3919 = vsel %vm3511, %v3910, %v3918
        %v3920 = vrot.slane %v3918, 4
        %3962 = vst [vmem:[#allocation2 + $0x20] sm:$0xf] %v3529
        %3963 = vst [vmem:[#allocation2 + $0x44] sm:$0xf] %v3539
        %3964 = vst [vmem:[#allocation2 + $0x68] sm:$0xf] %v3549
        %3965 = vst [vmem:[#allocation2 + $0x8c] sm:$0xf] %v3559
        %3966 = vst [vmem:[#allocation2 + $0xb0] sm:$0xf] %v3569
        %3967 = vst [vmem:[#allocation2 + $0xd4] sm:$0xf] %v3579
        %3968 = vst [vmem:[#allocation2 + $0xf8] sm:$0xf] %v3589
        %3969 = vst [vmem:[#allocation2 + $0x11c] sm:$0xf] %v3599
        %3970 = vst [vmem:[#allocation2 + $0x140] sm:$0xf] %v3609
        %3971 = vst [vmem:[#allocation2 + $0x164] sm:$0xf] %v3619
        %3972 = vst [vmem:[#allocation2 + $0x188] sm:$0xf] %v3629
        %3973 = vst [vmem:[#allocation2 + $0x1ac] sm:$0xf] %v3639
        %3974 = vst [vmem:[#allocation2 + $0x1d0] sm:$0xf] %v3649
        %3975 = vst [vmem:[#allocation2 + $0x1f4] sm:$0xf] %v3659
        %3976 = vst [vmem:[#allocation2 + $0x218] sm:$0xf] %v3669
        %3977 = vst [vmem:[#allocation2 + $0x23c] sm:$0xf] %v3679
        %3978 = vst [vmem:[#allocation2 + $0x260] sm:$0xf] %v3689
        %3979 = vst [vmem:[#allocation2 + $0x284] sm:$0xf] %v3699
        %3980 = vst [vmem:[#allocation2 + $0x2a8] sm:$0xf] %v3709
        %3981 = vst [vmem:[#allocation2 + $0x2cc] sm:$0xf] %v3719
        %3982 = vst [vmem:[#allocation2 + $0x2f0] sm:$0xf] %v3729
        %3983 = vst [vmem:[#allocation2 + $0x314] sm:$0xf] %v3739
        %3984 = vst [vmem:[#allocation2 + $0x338] sm:$0xf] %v3749
        %3985 = vst [vmem:[#allocation2 + $0x35c] sm:$0xf] %v3759
        %3986 = vst [vmem:[#allocation2 + $0x380] sm:$0xf] %v3769
        %3987 = vst [vmem:[#allocation2 + $0x3a4] sm:$0xf] %v3779
        %3988 = vst [vmem:[#allocation2 + $0x3c8] sm:$0xf] %v3789
        %3989 = vst [vmem:[#allocation2 + $0x3ec] sm:$0xf] %v3799
        %3990 = vst [vmem:[#allocation2 + $0x410] sm:$0xf] %v3809
        %3991 = vst [vmem:[#allocation2 + $0x434] sm:$0xf] %v3819
        %3992 = vst [vmem:[#allocation2 + $0x458] sm:$0xf] %v3829
        %3993 = vst [vmem:[#allocation2 + $0x47c] sm:$0xf] %v3839
        %3994 = vst [vmem:[#allocation2 + $0x4a0] sm:$0xf] %v3849
        %3995 = vst [vmem:[#allocation2 + $0x4c4] sm:$0xf] %v3859
        %3996 = vst [vmem:[#allocation2 + $0x4e8] sm:$0xf] %v3869
        %3997 = vst [vmem:[#allocation2 + $0x50c] sm:$0xf] %v3879
        %3998 = vst [vmem:[#allocation2 + $0x530] sm:$0xf] %v3889
        %3999 = vst [vmem:[#allocation2 + $0x554] sm:$0xf] %v3899
        %4000 = vst [vmem:[#allocation2 + $0x578] sm:$0xf] %v3909
        %4001 = vst [vmem:[#allocation2 + $0x59c] sm:$0xf] %v3919
        %4002 = vst [vmem:[#allocation2 + $0x5c0] sm:$0x3] %v3920
        %v4003 = vld [vmem:[#allocation2] sm:$0xff]
        %v4004 = vld [vmem:[#allocation2 + $0x8] sm:$0xff]
        %v4005 = vld [vmem:[#allocation2 + $0x10] sm:$0xff]
        %v4006 = vld [vmem:[#allocation2 + $0x18] sm:$0xff]
        %v4007 = vld [vmem:[#allocation2 + $0x20] sm:$0xf]
        %v4008 = vld [vmem:[#allocation2 + $0x24] sm:$0xff]
        %v4009 = vld [vmem:[#allocation2 + $0x2c] sm:$0xff]
        %v4010 = vld [vmem:[#allocation2 + $0x34] sm:$0xff]
        %v4011 = vld [vmem:[#allocation2 + $0x3c] sm:$0xff]
        %v4012 = vld [vmem:[#allocation2 + $0x44] sm:$0xf]
        %v4013 = vld [vmem:[#allocation2 + $0x48] sm:$0xff]
        %v4014 = vld [vmem:[#allocation2 + $0x50] sm:$0xff]
        %v4015 = vld [vmem:[#allocation2 + $0x58] sm:$0xff]
        %v4016 = vld [vmem:[#allocation2 + $0x60] sm:$0xff]
        %v4017 = vld [vmem:[#allocation2 + $0x68] sm:$0xf]
        %v4018 = vld [vmem:[#allocation2 + $0x6c] sm:$0xff]
        %v4019 = vld [vmem:[#allocation2 + $0x74] sm:$0xff]
        %v4020 = vld [vmem:[#allocation2 + $0x7c] sm:$0xff]
        %v4021 = vld [vmem:[#allocation2 + $0x84] sm:$0xff]
        %v4022 = vld [vmem:[#allocation2 + $0x8c] sm:$0xf]
        %v4023 = vld [vmem:[#allocation2 + $0x90] sm:$0xff]
        %v4024 = vld [vmem:[#allocation2 + $0x98] sm:$0xff]
        %v4025 = vld [vmem:[#allocation2 + $0xa0] sm:$0xff]
        %v4026 = vld [vmem:[#allocation2 + $0xa8] sm:$0xff]
        %v4027 = vld [vmem:[#allocation2 + $0xb0] sm:$0xf]
        %v4028 = vld [vmem:[#allocation2 + $0xb4] sm:$0xff]
        %v4029 = vld [vmem:[#allocation2 + $0xbc] sm:$0xff]
        %v4030 = vld [vmem:[#allocation2 + $0xc4] sm:$0xff]
        %v4031 = vld [vmem:[#allocation2 + $0xcc] sm:$0xff]
        %v4032 = vld [vmem:[#allocation2 + $0xd4] sm:$0xf]
        %v4033 = vld [vmem:[#allocation2 + $0xd8] sm:$0xff]
        %v4034 = vld [vmem:[#allocation2 + $0xe0] sm:$0xff]
        %v4035 = vld [vmem:[#allocation2 + $0xe8] sm:$0xff]
        %v4036 = vld [vmem:[#allocation2 + $0xf0] sm:$0xff]
        %v4037 = vld [vmem:[#allocation2 + $0xf8] sm:$0xf]
        %v4038 = vld [vmem:[#allocation2 + $0xfc] sm:$0xff]
        %v4039 = vld [vmem:[#allocation2 + $0x104] sm:$0xff]
        %v4040 = vld [vmem:[#allocation2 + $0x10c] sm:$0xff]
        %v4041 = vld [vmem:[#allocation2 + $0x114] sm:$0xff]
        %v4042 = vld [vmem:[#allocation2 + $0x11c] sm:$0xf]
        %v4043 = vld [vmem:[#allocation2 + $0x120] sm:$0xff]
        %v4044 = vld [vmem:[#allocation2 + $0x128] sm:$0xff]
        %v4045 = vld [vmem:[#allocation2 + $0x130] sm:$0xff]
        %v4046 = vld [vmem:[#allocation2 + $0x138] sm:$0xff]
        %v4047 = vld [vmem:[#allocation2 + $0x140] sm:$0xf]
        %v4048 = vld [vmem:[#allocation2 + $0x144] sm:$0xff]
        %v4049 = vld [vmem:[#allocation2 + $0x14c] sm:$0xff]
        %v4050 = vld [vmem:[#allocation2 + $0x154] sm:$0xff]
        %v4051 = vld [vmem:[#allocation2 + $0x15c] sm:$0xff]
        %v4052 = vld [vmem:[#allocation2 + $0x164] sm:$0xf]
        %v4053 = vld [vmem:[#allocation2 + $0x168] sm:$0xff]
        %v4054 = vld [vmem:[#allocation2 + $0x170] sm:$0xff]
        %v4055 = vld [vmem:[#allocation2 + $0x178] sm:$0xff]
        %v4056 = vld [vmem:[#allocation2 + $0x180] sm:$0xff]
        %v4057 = vld [vmem:[#allocation2 + $0x188] sm:$0xf]
        %v4058 = vld [vmem:[#allocation2 + $0x18c] sm:$0xff]
        %v4059 = vld [vmem:[#allocation2 + $0x194] sm:$0xff]
        %v4060 = vld [vmem:[#allocation2 + $0x19c] sm:$0xff]
        %v4061 = vld [vmem:[#allocation2 + $0x1a4] sm:$0xff]
        %v4062 = vld [vmem:[#allocation2 + $0x1ac] sm:$0xf]
        %v4063 = vld [vmem:[#allocation2 + $0x1b0] sm:$0xff]
        %v4064 = vld [vmem:[#allocation2 + $0x1b8] sm:$0xff]
        %v4065 = vld [vmem:[#allocation2 + $0x1c0] sm:$0xff]
        %v4066 = vld [vmem:[#allocation2 + $0x1c8] sm:$0xff]
        %v4067 = vld [vmem:[#allocation2 + $0x1d0] sm:$0xf]
        %v4068 = vld [vmem:[#allocation2 + $0x1d4] sm:$0xff]
        %v4069 = vld [vmem:[#allocation2 + $0x1dc] sm:$0xff]
        %v4070 = vld [vmem:[#allocation2 + $0x1e4] sm:$0xff]
        %v4071 = vld [vmem:[#allocation2 + $0x1ec] sm:$0xff]
        %v4072 = vld [vmem:[#allocation2 + $0x1f4] sm:$0xf]
        %v4073 = vld [vmem:[#allocation2 + $0x1f8] sm:$0xff]
        %v4074 = vld [vmem:[#allocation2 + $0x200] sm:$0xff]
        %v4075 = vld [vmem:[#allocation2 + $0x208] sm:$0xff]
        %v4076 = vld [vmem:[#allocation2 + $0x210] sm:$0xff]
        %v4077 = vld [vmem:[#allocation2 + $0x218] sm:$0xf]
        %v4078 = vld [vmem:[#allocation2 + $0x21c] sm:$0xff]
        %v4079 = vld [vmem:[#allocation2 + $0x224] sm:$0xff]
        %v4080 = vld [vmem:[#allocation2 + $0x22c] sm:$0xff]
        %v4081 = vld [vmem:[#allocation2 + $0x234] sm:$0xff]
        %v4082 = vld [vmem:[#allocation2 + $0x23c] sm:$0xf]
        %v4083 = vld [vmem:[#allocation2 + $0x240] sm:$0xff]
        %v4084 = vld [vmem:[#allocation2 + $0x248] sm:$0xff]
        %v4085 = vld [vmem:[#allocation2 + $0x250] sm:$0xff]
        %v4086 = vld [vmem:[#allocation2 + $0x258] sm:$0xff]
        %v4087 = vld [vmem:[#allocation2 + $0x260] sm:$0xf]
        %v4088 = vld [vmem:[#allocation2 + $0x264] sm:$0xff]
        %v4089 = vld [vmem:[#allocation2 + $0x26c] sm:$0xff]
        %v4090 = vld [vmem:[#allocation2 + $0x274] sm:$0xff]
        %v4091 = vld [vmem:[#allocation2 + $0x27c] sm:$0xff]
        %v4092 = vld [vmem:[#allocation2 + $0x284] sm:$0xf]
        %v4093 = vld [vmem:[#allocation2 + $0x288] sm:$0xff]
        %v4094 = vld [vmem:[#allocation2 + $0x290] sm:$0xff]
        %v4095 = vld [vmem:[#allocation2 + $0x298] sm:$0xff]
        %v4096 = vld [vmem:[#allocation2 + $0x2a0] sm:$0xff]
        %v4097 = vld [vmem:[#allocation2 + $0x2a8] sm:$0xf]
        %v4098 = vld [vmem:[#allocation2 + $0x2ac] sm:$0xff]
        %v4099 = vld [vmem:[#allocation2 + $0x2b4] sm:$0xff]
        %v4100 = vld [vmem:[#allocation2 + $0x2bc] sm:$0xff]
        %v4101 = vld [vmem:[#allocation2 + $0x2c4] sm:$0xff]
        %v4102 = vld [vmem:[#allocation2 + $0x2cc] sm:$0xf]
        %v4103 = vld [vmem:[#allocation2 + $0x2d0] sm:$0xff]
        %v4104 = vld [vmem:[#allocation2 + $0x2d8] sm:$0xff]
        %v4105 = vld [vmem:[#allocation2 + $0x2e0] sm:$0xff]
        %v4106 = vld [vmem:[#allocation2 + $0x2e8] sm:$0xff]
        %v4107 = vld [vmem:[#allocation2 + $0x2f0] sm:$0xf]
        %v4108 = vld [vmem:[#allocation2 + $0x2f4] sm:$0xff]
        %v4109 = vld [vmem:[#allocation2 + $0x2fc] sm:$0xff]
        %v4110 = vld [vmem:[#allocation2 + $0x304] sm:$0xff]
        %v4111 = vld [vmem:[#allocation2 + $0x30c] sm:$0xff]
        %v4112 = vld [vmem:[#allocation2 + $0x314] sm:$0xf]
        %v4113 = vld [vmem:[#allocation2 + $0x318] sm:$0xff]
        %v4114 = vld [vmem:[#allocation2 + $0x320] sm:$0xff]
        %v4115 = vld [vmem:[#allocation2 + $0x328] sm:$0xff]
        %v4116 = vld [vmem:[#allocation2 + $0x330] sm:$0xff]
        %v4117 = vld [vmem:[#allocation2 + $0x338] sm:$0xf]
        %v4118 = vld [vmem:[#allocation2 + $0x33c] sm:$0xff]
        %v4119 = vld [vmem:[#allocation2 + $0x344] sm:$0xff]
        %v4120 = vld [vmem:[#allocation2 + $0x34c] sm:$0xff]
        %v4121 = vld [vmem:[#allocation2 + $0x354] sm:$0xff]
        %v4122 = vld [vmem:[#allocation2 + $0x35c] sm:$0xf]
        %v4123 = vld [vmem:[#allocation2 + $0x360] sm:$0xff]
        %v4124 = vld [vmem:[#allocation2 + $0x368] sm:$0xff]
        %v4125 = vld [vmem:[#allocation2 + $0x370] sm:$0xff]
        %v4126 = vld [vmem:[#allocation2 + $0x378] sm:$0xff]
        %v4127 = vld [vmem:[#allocation2 + $0x380] sm:$0xf]
        %v4128 = vld [vmem:[#allocation2 + $0x384] sm:$0xff]
        %v4129 = vld [vmem:[#allocation2 + $0x38c] sm:$0xff]
        %v4130 = vld [vmem:[#allocation2 + $0x394] sm:$0xff]
        %v4131 = vld [vmem:[#allocation2 + $0x39c] sm:$0xff]
        %v4132 = vld [vmem:[#allocation2 + $0x3a4] sm:$0xf]
        %v4133 = vld [vmem:[#allocation2 + $0x3a8] sm:$0xff]
        %v4134 = vld [vmem:[#allocation2 + $0x3b0] sm:$0xff]
        %v4135 = vld [vmem:[#allocation2 + $0x3b8] sm:$0xff]
        %v4136 = vld [vmem:[#allocation2 + $0x3c0] sm:$0xff]
        %v4137 = vld [vmem:[#allocation2 + $0x3c8] sm:$0xf]
        %v4138 = vld [vmem:[#allocation2 + $0x3cc] sm:$0xff]
        %v4139 = vld [vmem:[#allocation2 + $0x3d4] sm:$0xff]
        %v4140 = vld [vmem:[#allocation2 + $0x3dc] sm:$0xff]
        %v4141 = vld [vmem:[#allocation2 + $0x3e4] sm:$0xff]
        %v4142 = vld [vmem:[#allocation2 + $0x3ec] sm:$0xf]
        %v4143 = vld [vmem:[#allocation2 + $0x3f0] sm:$0xff]
        %v4144 = vld [vmem:[#allocation2 + $0x3f8] sm:$0xff]
        %v4145 = vld [vmem:[#allocation2 + $0x400] sm:$0xff]
        %v4146 = vld [vmem:[#allocation2 + $0x408] sm:$0xff]
        %v4147 = vld [vmem:[#allocation2 + $0x410] sm:$0xf]
        %v4148 = vld [vmem:[#allocation2 + $0x414] sm:$0xff]
        %v4149 = vld [vmem:[#allocation2 + $0x41c] sm:$0xff]
        %v4150 = vld [vmem:[#allocation2 + $0x424] sm:$0xff]
        %v4151 = vld [vmem:[#allocation2 + $0x42c] sm:$0xff]
        %v4152 = vld [vmem:[#allocation2 + $0x434] sm:$0xf]
        %v4153 = vld [vmem:[#allocation2 + $0x438] sm:$0xff]
        %v4154 = vld [vmem:[#allocation2 + $0x440] sm:$0xff]
        %v4155 = vld [vmem:[#allocation2 + $0x448] sm:$0xff]
        %v4156 = vld [vmem:[#allocation2 + $0x450] sm:$0xff]
        %v4157 = vld [vmem:[#allocation2 + $0x458] sm:$0xf]
        %v4158 = vld [vmem:[#allocation2 + $0x45c] sm:$0xff]
        %v4159 = vld [vmem:[#allocation2 + $0x464] sm:$0xff]
        %v4160 = vld [vmem:[#allocation2 + $0x46c] sm:$0xff]
        %v4161 = vld [vmem:[#allocation2 + $0x474] sm:$0xff]
        %v4162 = vld [vmem:[#allocation2 + $0x47c] sm:$0xf]
        %v4163 = vld [vmem:[#allocation2 + $0x480] sm:$0xff]
        %v4164 = vld [vmem:[#allocation2 + $0x488] sm:$0xff]
        %v4165 = vld [vmem:[#allocation2 + $0x490] sm:$0xff]
        %v4166 = vld [vmem:[#allocation2 + $0x498] sm:$0xff]
        %v4167 = vld [vmem:[#allocation2 + $0x4a0] sm:$0xf]
        %v4168 = vld [vmem:[#allocation2 + $0x4a4] sm:$0xff]
        %v4169 = vld [vmem:[#allocation2 + $0x4ac] sm:$0xff]
        %v4170 = vld [vmem:[#allocation2 + $0x4b4] sm:$0xff]
        %v4171 = vld [vmem:[#allocation2 + $0x4bc] sm:$0xff]
        %v4172 = vld [vmem:[#allocation2 + $0x4c4] sm:$0xf]
        %v4173 = vld [vmem:[#allocation2 + $0x4c8] sm:$0xff]
        %v4174 = vld [vmem:[#allocation2 + $0x4d0] sm:$0xff]
        %v4175 = vld [vmem:[#allocation2 + $0x4d8] sm:$0xff]
        %v4176 = vld [vmem:[#allocation2 + $0x4e0] sm:$0xff]
        %v4177 = vld [vmem:[#allocation2 + $0x4e8] sm:$0xf]
        %v4178 = vld [vmem:[#allocation2 + $0x4ec] sm:$0xff]
        %v4179 = vld [vmem:[#allocation2 + $0x4f4] sm:$0xff]
        %v4180 = vld [vmem:[#allocation2 + $0x4fc] sm:$0xff]
        %v4181 = vld [vmem:[#allocation2 + $0x504] sm:$0xff]
        %v4182 = vld [vmem:[#allocation2 + $0x50c] sm:$0xf]
        %v4183 = vld [vmem:[#allocation2 + $0x510] sm:$0xff]
        %v4184 = vld [vmem:[#allocation2 + $0x518] sm:$0xff]
        %v4185 = vld [vmem:[#allocation2 + $0x520] sm:$0xff]
        %v4186 = vld [vmem:[#allocation2 + $0x528] sm:$0xff]
        %v4187 = vld [vmem:[#allocation2 + $0x530] sm:$0xf]
        %v4188 = vld [vmem:[#allocation2 + $0x534] sm:$0xff]
        %v4189 = vld [vmem:[#allocation2 + $0x53c] sm:$0xff]
        %v4190 = vld [vmem:[#allocation2 + $0x544] sm:$0xff]
        %v4191 = vld [vmem:[#allocation2 + $0x54c] sm:$0xff]
        %v4192 = vld [vmem:[#allocation2 + $0x554] sm:$0xf]
        %v4193 = vld [vmem:[#allocation2 + $0x558] sm:$0xff]
        %v4194 = vld [vmem:[#allocation2 + $0x560] sm:$0xff]
        %v4195 = vld [vmem:[#allocation2 + $0x568] sm:$0xff]
        %v4196 = vld [vmem:[#allocation2 + $0x570] sm:$0xff]
        %v4197 = vld [vmem:[#allocation2 + $0x578] sm:$0xf]
        %v4198 = vld [vmem:[#allocation2 + $0x57c] sm:$0xff]
        %v4199 = vld [vmem:[#allocation2 + $0x584] sm:$0xff]
        %v4200 = vld [vmem:[#allocation2 + $0x58c] sm:$0xff]
        %v4201 = vld [vmem:[#allocation2 + $0x594] sm:$0xff]
        %v4202 = vld [vmem:[#allocation2 + $0x59c] sm:$0xf]
        %v4203 = vld [vmem:[#allocation2 + $0x5a0] sm:$0x33]
        %v4204 = vld [vmem:[#allocation2 + $0x5a8] sm:$0x33]
        %v4205 = vld [vmem:[#allocation2 + $0x5b0] sm:$0x33]
        %v4206 = vld [vmem:[#allocation2 + $0x5b8] sm:$0x33]
        %v4207 = vld [vmem:[#allocation2 + $0x5c0] sm:$0x3]
        %v4208 = vld [vmem:[#allocation3] sm:$0xff]
        %v4209 = vld [vmem:[#allocation3 + $0x8] sm:$0xff]
        %v4210 = vld [vmem:[#allocation3 + $0x10] sm:$0xff]
        %v4211 = vld [vmem:[#allocation3 + $0x18] sm:$0xff]
        %v4212 = vld [vmem:[#allocation3 + $0x20] sm:$0xff]
        %v4213 = vld [vmem:[#allocation3 + $0x28] sm:$0xff]
        %v4214 = vld [vmem:[#allocation3 + $0x30] sm:$0xff]
        %v4215 = vld [vmem:[#allocation3 + $0x38] sm:$0xff]
        %v4216 = vld [vmem:[#allocation3 + $0x40] sm:$0xff]
        %v4217 = vld [vmem:[#allocation3 + $0x48] sm:$0xff]
        %v4218 = vld [vmem:[#allocation3 + $0x50] sm:$0xff]
        %v4219 = vld [vmem:[#allocation3 + $0x58] sm:$0xff]
        %v4220 = vld [vmem:[#allocation3 + $0x60] sm:$0xff]
        %v4221 = vld [vmem:[#allocation3 + $0x68] sm:$0xff]
        %v4222 = vld [vmem:[#allocation3 + $0x70] sm:$0xff]
        %v4223 = vld [vmem:[#allocation3 + $0x78] sm:$0xff]
        %v4224 = vld [vmem:[#allocation3 + $0x80] sm:$0xff]
        %v4225 = vld [vmem:[#allocation3 + $0x88] sm:$0xff]
        %v4226 = vld [vmem:[#allocation3 + $0x90] sm:$0xff]
        %v4227 = vld [vmem:[#allocation3 + $0x98] sm:$0xff]
        %v4228 = vld [vmem:[#allocation3 + $0xa0] sm:$0xff]
        %v4229 = vld [vmem:[#allocation3 + $0xa8] sm:$0xff]
        %v4230 = vld [vmem:[#allocation3 + $0xb0] sm:$0xff]
        %v4231 = vld [vmem:[#allocation3 + $0xb8] sm:$0xff]
        %v4232 = vld [vmem:[#allocation3 + $0xc0] sm:$0xff]
        %v4233 = vld [vmem:[#allocation3 + $0xc8] sm:$0xff]
        %v4234 = vld [vmem:[#allocation3 + $0xd0] sm:$0xff]
        %v4235 = vld [vmem:[#allocation3 + $0xd8] sm:$0xff]
        %v4236 = vld [vmem:[#allocation3 + $0xe0] sm:$0xff]
        %v4237 = vld [vmem:[#allocation3 + $0xe8] sm:$0xff]
        %v4238 = vld [vmem:[#allocation3 + $0xf0] sm:$0xff]
        %v4239 = vld [vmem:[#allocation3 + $0xf8] sm:$0xff]
        %v4240 = vld [vmem:[#allocation3 + $0x100] sm:$0xff]
        %v4241 = vld [vmem:[#allocation3 + $0x108] sm:$0xff]
        %v4242 = vld [vmem:[#allocation3 + $0x110] sm:$0xff]
        %v4243 = vld [vmem:[#allocation3 + $0x118] sm:$0xff]
        %v4244 = vld [vmem:[#allocation3 + $0x120] sm:$0xff]
        %v4245 = vld [vmem:[#allocation3 + $0x128] sm:$0xff]
        %v4246 = vld [vmem:[#allocation3 + $0x130] sm:$0xff]
        %v4247 = vld [vmem:[#allocation3 + $0x138] sm:$0xff]
        %v4248 = vld [vmem:[#allocation3 + $0x140] sm:$0xff]
        %v4249 = vld [vmem:[#allocation3 + $0x148] sm:$0xff]
        %v4250 = vld [vmem:[#allocation3 + $0x150] sm:$0xff]
        %v4251 = vld [vmem:[#allocation3 + $0x158] sm:$0xff]
        %v4252 = vld [vmem:[#allocation3 + $0x160] sm:$0xff]
        %v4253 = vld [vmem:[#allocation3 + $0x168] sm:$0xff]
        %v4254 = vld [vmem:[#allocation3 + $0x170] sm:$0xff]
        %v4255 = vld [vmem:[#allocation3 + $0x178] sm:$0xff]
        %v4256 = vld [vmem:[#allocation3 + $0x180] sm:$0xff]
        %v4257 = vld [vmem:[#allocation3 + $0x188] sm:$0xff]
        %v4258 = vld [vmem:[#allocation3 + $0x190] sm:$0xff]
        %v4259 = vld [vmem:[#allocation3 + $0x198] sm:$0xff]
        %v4260 = vld [vmem:[#allocation3 + $0x1a0] sm:$0xff]
        %v4261 = vld [vmem:[#allocation3 + $0x1a8] sm:$0xff]
        %v4262 = vld [vmem:[#allocation3 + $0x1b0] sm:$0xff]
        %v4263 = vld [vmem:[#allocation3 + $0x1b8] sm:$0xff]
        %v4264 = vld [vmem:[#allocation3 + $0x1c0] sm:$0xff]
        %v4265 = vld [vmem:[#allocation3 + $0x1c8] sm:$0xff]
        %v4266 = vld [vmem:[#allocation3 + $0x1d0] sm:$0xff]
        %v4267 = vld [vmem:[#allocation3 + $0x1d8] sm:$0xff]
        %v4268 = vld [vmem:[#allocation3 + $0x1e0] sm:$0xff]
        %v4269 = vld [vmem:[#allocation3 + $0x1e8] sm:$0xff]
        %v4270 = vld [vmem:[#allocation3 + $0x1f0] sm:$0xff]
        %v4271 = vld [vmem:[#allocation3 + $0x1f8] sm:$0xff]
        %v4272 = vld [vmem:[#allocation3 + $0x200] sm:$0xff]
        %v4273 = vld [vmem:[#allocation3 + $0x208] sm:$0xff]
        %v4274 = vld [vmem:[#allocation3 + $0x210] sm:$0xff]
        %v4275 = vld [vmem:[#allocation3 + $0x218] sm:$0xff]
        %v4276 = vld [vmem:[#allocation3 + $0x220] sm:$0xff]
        %v4277 = vld [vmem:[#allocation3 + $0x228] sm:$0xff]
        %v4278 = vld [vmem:[#allocation3 + $0x230] sm:$0xff]
        %v4279 = vld [vmem:[#allocation3 + $0x238] sm:$0xff]
        %v4280 = vld [vmem:[#allocation3 + $0x240] sm:$0xff]
        %v4281 = vld [vmem:[#allocation3 + $0x248] sm:$0xff]
        %v4282 = vld [vmem:[#allocation3 + $0x250] sm:$0xff]
        %v4283 = vld [vmem:[#allocation3 + $0x258] sm:$0xff]
        %v4284 = vld [vmem:[#allocation3 + $0x260] sm:$0xff]
        %v4285 = vld [vmem:[#allocation3 + $0x268] sm:$0xff]
        %v4286 = vld [vmem:[#allocation3 + $0x270] sm:$0xff]
        %v4287 = vld [vmem:[#allocation3 + $0x278] sm:$0xff]
        %v4288 = vld [vmem:[#allocation3 + $0x280] sm:$0xff]
        %v4289 = vld [vmem:[#allocation3 + $0x288] sm:$0xff]
        %v4290 = vld [vmem:[#allocation3 + $0x290] sm:$0xff]
        %v4291 = vld [vmem:[#allocation3 + $0x298] sm:$0xff]
        %v4292 = vld [vmem:[#allocation3 + $0x2a0] sm:$0xff]
        %v4293 = vld [vmem:[#allocation3 + $0x2a8] sm:$0xff]
        %v4294 = vld [vmem:[#allocation3 + $0x2b0] sm:$0xff]
        %v4295 = vld [vmem:[#allocation3 + $0x2b8] sm:$0xff]
        %v4296 = vld [vmem:[#allocation3 + $0x2c0] sm:$0xff]
        %v4297 = vld [vmem:[#allocation3 + $0x2c8] sm:$0xff]
        %v4298 = vld [vmem:[#allocation3 + $0x2d0] sm:$0xff]
        %v4299 = vld [vmem:[#allocation3 + $0x2d8] sm:$0xff]
        %v4300 = vld [vmem:[#allocation3 + $0x2e0] sm:$0xff]
        %v4301 = vld [vmem:[#allocation3 + $0x2e8] sm:$0xff]
        %v4302 = vld [vmem:[#allocation3 + $0x2f0] sm:$0xff]
        %v4303 = vld [vmem:[#allocation3 + $0x2f8] sm:$0xff]
        %v4304 = vld [vmem:[#allocation3 + $0x300] sm:$0xff]
        %v4305 = vld [vmem:[#allocation3 + $0x308] sm:$0xff]
        %v4306 = vld [vmem:[#allocation3 + $0x310] sm:$0xff]
        %v4307 = vld [vmem:[#allocation3 + $0x318] sm:$0xff]
        %v4308 = vld [vmem:[#allocation3 + $0x320] sm:$0xff]
        %v4309 = vld [vmem:[#allocation3 + $0x328] sm:$0xff]
        %v4310 = vld [vmem:[#allocation3 + $0x330] sm:$0xff]
        %v4311 = vld [vmem:[#allocation3 + $0x338] sm:$0xff]
        %v4312 = vld [vmem:[#allocation3 + $0x340] sm:$0xff]
        %v4313 = vld [vmem:[#allocation3 + $0x348] sm:$0xff]
        %v4314 = vld [vmem:[#allocation3 + $0x350] sm:$0xff]
        %v4315 = vld [vmem:[#allocation3 + $0x358] sm:$0xff]
        %v4316 = vld [vmem:[#allocation3 + $0x360] sm:$0xff]
        %v4317 = vld [vmem:[#allocation3 + $0x368] sm:$0xff]
        %v4318 = vld [vmem:[#allocation3 + $0x370] sm:$0xff]
        %v4319 = vld [vmem:[#allocation3 + $0x378] sm:$0xff]
        %v4320 = vld [vmem:[#allocation3 + $0x380] sm:$0xff]
        %v4321 = vld [vmem:[#allocation3 + $0x388] sm:$0xff]
        %v4322 = vld [vmem:[#allocation3 + $0x390] sm:$0xff]
        %v4323 = vld [vmem:[#allocation3 + $0x398] sm:$0xff]
        %v4324 = vld [vmem:[#allocation3 + $0x3a0] sm:$0xff]
        %v4325 = vld [vmem:[#allocation3 + $0x3a8] sm:$0xff]
        %v4326 = vld [vmem:[#allocation3 + $0x3b0] sm:$0xff]
        %v4327 = vld [vmem:[#allocation3 + $0x3b8] sm:$0xff]
        %v4328 = vld [vmem:[#allocation3 + $0x3c0] sm:$0xff]
        %v4329 = vld [vmem:[#allocation3 + $0x3c8] sm:$0xff]
        %v4330 = vld [vmem:[#allocation3 + $0x3d0] sm:$0xff]
        %v4331 = vld [vmem:[#allocation3 + $0x3d8] sm:$0xff]
        %v4332 = vld [vmem:[#allocation3 + $0x3e0] sm:$0xff]
        %v4333 = vld [vmem:[#allocation3 + $0x3e8] sm:$0xff]
        %v4334 = vld [vmem:[#allocation3 + $0x3f0] sm:$0xff]
        %v4335 = vld [vmem:[#allocation3 + $0x3f8] sm:$0xff]
        %v4336 = vld [vmem:[#allocation3 + $0x400] sm:$0xff]
        %v4337 = vld [vmem:[#allocation3 + $0x408] sm:$0xff]
        %v4338 = vld [vmem:[#allocation3 + $0x410] sm:$0xff]
        %v4339 = vld [vmem:[#allocation3 + $0x418] sm:$0xff]
        %v4340 = vld [vmem:[#allocation3 + $0x420] sm:$0xff]
        %v4341 = vld [vmem:[#allocation3 + $0x428] sm:$0xff]
        %v4342 = vld [vmem:[#allocation3 + $0x430] sm:$0xff]
        %v4343 = vld [vmem:[#allocation3 + $0x438] sm:$0xff]
        %v4344 = vld [vmem:[#allocation3 + $0x440] sm:$0xff]
        %v4345 = vld [vmem:[#allocation3 + $0x448] sm:$0xff]
        %v4346 = vld [vmem:[#allocation3 + $0x450] sm:$0xff]
        %v4347 = vld [vmem:[#allocation3 + $0x458] sm:$0xff]
        %v4348 = vld [vmem:[#allocation3 + $0x460] sm:$0xff]
        %v4349 = vld [vmem:[#allocation3 + $0x468] sm:$0xff]
        %v4350 = vld [vmem:[#allocation3 + $0x470] sm:$0xff]
        %v4351 = vld [vmem:[#allocation3 + $0x478] sm:$0xff]
        %v4557 = vunpack.c.l.b16 %v4003
        %v4558 = vunpack.c.h.b16 %v4003
        %v4559 = vunpack.c.l.b16 %v4004
        %v4560 = vunpack.c.h.b16 %v4004
        %v4561 = vunpack.c.l.b16 %v4005
        %v4562 = vunpack.c.h.b16 %v4005
        %v4563 = vunpack.c.l.b16 %v4006
        %v4564 = vunpack.c.h.b16 %v4006
        %v4565 = vunpack.c.l.b16 %v4007
        %v4566 = vunpack.c.l.b16 %v4008
        %v4567 = vunpack.c.h.b16 %v4008
        %v4568 = vunpack.c.l.b16 %v4009
        %v4569 = vunpack.c.h.b16 %v4009
        %v4570 = vunpack.c.l.b16 %v4010
        %v4571 = vunpack.c.h.b16 %v4010
        %v4572 = vunpack.c.l.b16 %v4011
        %v4573 = vunpack.c.h.b16 %v4011
        %v4574 = vunpack.c.l.b16 %v4012
        %v4575 = vunpack.c.l.b16 %v4013
        %v4576 = vunpack.c.h.b16 %v4013
        %v4577 = vunpack.c.l.b16 %v4014
        %v4578 = vunpack.c.h.b16 %v4014
        %v4579 = vunpack.c.l.b16 %v4015
        %v4580 = vunpack.c.h.b16 %v4015
        %v4581 = vunpack.c.l.b16 %v4016
        %v4582 = vunpack.c.h.b16 %v4016
        %v4583 = vunpack.c.l.b16 %v4017
        %v4584 = vunpack.c.l.b16 %v4018
        %v4585 = vunpack.c.h.b16 %v4018
        %v4586 = vunpack.c.l.b16 %v4019
        %v4587 = vunpack.c.h.b16 %v4019
        %v4588 = vunpack.c.l.b16 %v4020
        %v4589 = vunpack.c.h.b16 %v4020
        %v4590 = vunpack.c.l.b16 %v4021
        %v4591 = vunpack.c.h.b16 %v4021
        %v4592 = vunpack.c.l.b16 %v4022
        %v4593 = vunpack.c.l.b16 %v4023
        %v4594 = vunpack.c.h.b16 %v4023
        %v4595 = vunpack.c.l.b16 %v4024
        %v4596 = vunpack.c.h.b16 %v4024
        %v4597 = vunpack.c.l.b16 %v4025
        %v4598 = vunpack.c.h.b16 %v4025
        %v4599 = vunpack.c.l.b16 %v4026
        %v4600 = vunpack.c.h.b16 %v4026
        %v4601 = vunpack.c.l.b16 %v4027
        %v4602 = vunpack.c.l.b16 %v4028
        %v4603 = vunpack.c.h.b16 %v4028
        %v4604 = vunpack.c.l.b16 %v4029
        %v4605 = vunpack.c.h.b16 %v4029
        %v4606 = vunpack.c.l.b16 %v4030
        %v4607 = vunpack.c.h.b16 %v4030
        %v4608 = vunpack.c.l.b16 %v4031
        %v4609 = vunpack.c.h.b16 %v4031
        %v4610 = vunpack.c.l.b16 %v4032
        %v4611 = vunpack.c.l.b16 %v4033
        %v4612 = vunpack.c.h.b16 %v4033
        %v4613 = vunpack.c.l.b16 %v4034
        %v4614 = vunpack.c.h.b16 %v4034
        %v4615 = vunpack.c.l.b16 %v4035
        %v4616 = vunpack.c.h.b16 %v4035
        %v4617 = vunpack.c.l.b16 %v4036
        %v4618 = vunpack.c.h.b16 %v4036
        %v4619 = vunpack.c.l.b16 %v4037
        %v4620 = vunpack.c.l.b16 %v4038
        %v4621 = vunpack.c.h.b16 %v4038
        %v4622 = vunpack.c.l.b16 %v4039
        %v4623 = vunpack.c.h.b16 %v4039
        %v4624 = vunpack.c.l.b16 %v4040
        %v4625 = vunpack.c.h.b16 %v4040
        %v4626 = vunpack.c.l.b16 %v4041
        %v4627 = vunpack.c.h.b16 %v4041
        %v4628 = vunpack.c.l.b16 %v4042
        %v4629 = vunpack.c.l.b16 %v4043
        %v4630 = vunpack.c.h.b16 %v4043
        %v4631 = vunpack.c.l.b16 %v4044
        %v4632 = vunpack.c.h.b16 %v4044
        %v4633 = vunpack.c.l.b16 %v4045
        %v4634 = vunpack.c.h.b16 %v4045
        %v4635 = vunpack.c.l.b16 %v4046
        %v4636 = vunpack.c.h.b16 %v4046
        %v4637 = vunpack.c.l.b16 %v4047
        %v4638 = vunpack.c.l.b16 %v4048
        %v4639 = vunpack.c.h.b16 %v4048
        %v4640 = vunpack.c.l.b16 %v4049
        %v4641 = vunpack.c.h.b16 %v4049
        %v4642 = vunpack.c.l.b16 %v4050
        %v4643 = vunpack.c.h.b16 %v4050
        %v4644 = vunpack.c.l.b16 %v4051
        %v4645 = vunpack.c.h.b16 %v4051
        %v4646 = vunpack.c.l.b16 %v4052
        %v4647 = vunpack.c.l.b16 %v4053
        %v4648 = vunpack.c.h.b16 %v4053
        %v4649 = vunpack.c.l.b16 %v4054
        %v4650 = vunpack.c.h.b16 %v4054
        %v4651 = vunpack.c.l.b16 %v4055
        %v4652 = vunpack.c.h.b16 %v4055
        %v4653 = vunpack.c.l.b16 %v4056
        %v4654 = vunpack.c.h.b16 %v4056
        %v4655 = vunpack.c.l.b16 %v4057
        %v4656 = vunpack.c.l.b16 %v4058
        %v4657 = vunpack.c.h.b16 %v4058
        %v4658 = vunpack.c.l.b16 %v4059
        %v4659 = vunpack.c.h.b16 %v4059
        %v4660 = vunpack.c.l.b16 %v4060
        %v4661 = vunpack.c.h.b16 %v4060
        %v4662 = vunpack.c.l.b16 %v4061
        %v4663 = vunpack.c.h.b16 %v4061
        %v4664 = vunpack.c.l.b16 %v4062
        %v4665 = vunpack.c.l.b16 %v4063
        %v4666 = vunpack.c.h.b16 %v4063
        %v4667 = vunpack.c.l.b16 %v4064
        %v4668 = vunpack.c.h.b16 %v4064
        %v4669 = vunpack.c.l.b16 %v4065
        %v4670 = vunpack.c.h.b16 %v4065
        %v4671 = vunpack.c.l.b16 %v4066
        %v4672 = vunpack.c.h.b16 %v4066
        %v4673 = vunpack.c.l.b16 %v4067
        %v4674 = vunpack.c.l.b16 %v4068
        %v4675 = vunpack.c.h.b16 %v4068
        %v4676 = vunpack.c.l.b16 %v4069
        %v4677 = vunpack.c.h.b16 %v4069
        %v4678 = vunpack.c.l.b16 %v4070
        %v4679 = vunpack.c.h.b16 %v4070
        %v4680 = vunpack.c.l.b16 %v4071
        %v4681 = vunpack.c.h.b16 %v4071
        %v4682 = vunpack.c.l.b16 %v4072
        %v4683 = vunpack.c.l.b16 %v4073
        %v4684 = vunpack.c.h.b16 %v4073
        %v4685 = vunpack.c.l.b16 %v4074
        %v4686 = vunpack.c.h.b16 %v4074
        %v4687 = vunpack.c.l.b16 %v4075
        %v4688 = vunpack.c.h.b16 %v4075
        %v4689 = vunpack.c.l.b16 %v4076
        %v4690 = vunpack.c.h.b16 %v4076
        %v4691 = vunpack.c.l.b16 %v4077
        %v4692 = vunpack.c.l.b16 %v4078
        %v4693 = vunpack.c.h.b16 %v4078
        %v4694 = vunpack.c.l.b16 %v4079
        %v4695 = vunpack.c.h.b16 %v4079
        %v4696 = vunpack.c.l.b16 %v4080
        %v4697 = vunpack.c.h.b16 %v4080
        %v4698 = vunpack.c.l.b16 %v4081
        %v4699 = vunpack.c.h.b16 %v4081
        %v4700 = vunpack.c.l.b16 %v4082
        %v4701 = vunpack.c.l.b16 %v4083
        %v4702 = vunpack.c.h.b16 %v4083
        %v4703 = vunpack.c.l.b16 %v4084
        %v4704 = vunpack.c.h.b16 %v4084
        %v4705 = vunpack.c.l.b16 %v4085
        %v4706 = vunpack.c.h.b16 %v4085
        %v4707 = vunpack.c.l.b16 %v4086
        %v4708 = vunpack.c.h.b16 %v4086
        %v4709 = vunpack.c.l.b16 %v4087
        %v4710 = vunpack.c.l.b16 %v4088
        %v4711 = vunpack.c.h.b16 %v4088
        %v4712 = vunpack.c.l.b16 %v4089
        %v4713 = vunpack.c.h.b16 %v4089
        %v4714 = vunpack.c.l.b16 %v4090
        %v4715 = vunpack.c.h.b16 %v4090
        %v4716 = vunpack.c.l.b16 %v4091
        %v4717 = vunpack.c.h.b16 %v4091
        %v4718 = vunpack.c.l.b16 %v4092
        %v4719 = vunpack.c.l.b16 %v4093
        %v4720 = vunpack.c.h.b16 %v4093
        %v4721 = vunpack.c.l.b16 %v4094
        %v4722 = vunpack.c.h.b16 %v4094
        %v4723 = vunpack.c.l.b16 %v4095
        %v4724 = vunpack.c.h.b16 %v4095
        %v4725 = vunpack.c.l.b16 %v4096
        %v4726 = vunpack.c.h.b16 %v4096
        %v4727 = vunpack.c.l.b16 %v4097
        %v4728 = vunpack.c.l.b16 %v4098
        %v4729 = vunpack.c.h.b16 %v4098
        %v4730 = vunpack.c.l.b16 %v4099
        %v4731 = vunpack.c.h.b16 %v4099
        %v4732 = vunpack.c.l.b16 %v4100
        %v4733 = vunpack.c.h.b16 %v4100
        %v4734 = vunpack.c.l.b16 %v4101
        %v4735 = vunpack.c.h.b16 %v4101
        %v4736 = vunpack.c.l.b16 %v4102
        %v4737 = vunpack.c.l.b16 %v4103
        %v4738 = vunpack.c.h.b16 %v4103
        %v4739 = vunpack.c.l.b16 %v4104
        %v4740 = vunpack.c.h.b16 %v4104
        %v4741 = vunpack.c.l.b16 %v4105
        %v4742 = vunpack.c.h.b16 %v4105
        %v4743 = vunpack.c.l.b16 %v4106
        %v4744 = vunpack.c.h.b16 %v4106
        %v4745 = vunpack.c.l.b16 %v4107
        %v4746 = vunpack.c.l.b16 %v4108
        %v4747 = vunpack.c.h.b16 %v4108
        %v4748 = vunpack.c.l.b16 %v4109
        %v4749 = vunpack.c.h.b16 %v4109
        %v4750 = vunpack.c.l.b16 %v4110
        %v4751 = vunpack.c.h.b16 %v4110
        %v4752 = vunpack.c.l.b16 %v4111
        %v4753 = vunpack.c.h.b16 %v4111
        %v4754 = vunpack.c.l.b16 %v4112
        %v4755 = vunpack.c.l.b16 %v4113
        %v4756 = vunpack.c.h.b16 %v4113
        %v4757 = vunpack.c.l.b16 %v4114
        %v4758 = vunpack.c.h.b16 %v4114
        %v4759 = vunpack.c.l.b16 %v4115
        %v4760 = vunpack.c.h.b16 %v4115
        %v4761 = vunpack.c.l.b16 %v4116
        %v4762 = vunpack.c.h.b16 %v4116
        %v4763 = vunpack.c.l.b16 %v4117
        %v4764 = vunpack.c.l.b16 %v4118
        %v4765 = vunpack.c.h.b16 %v4118
        %v4766 = vunpack.c.l.b16 %v4119
        %v4767 = vunpack.c.h.b16 %v4119
        %v4768 = vunpack.c.l.b16 %v4120
        %v4769 = vunpack.c.h.b16 %v4120
        %v4770 = vunpack.c.l.b16 %v4121
        %v4771 = vunpack.c.h.b16 %v4121
        %v4772 = vunpack.c.l.b16 %v4122
        %v4773 = vunpack.c.l.b16 %v4123
        %v4774 = vunpack.c.h.b16 %v4123
        %v4775 = vunpack.c.l.b16 %v4124
        %v4776 = vunpack.c.h.b16 %v4124
        %v4777 = vunpack.c.l.b16 %v4125
        %v4778 = vunpack.c.h.b16 %v4125
        %v4779 = vunpack.c.l.b16 %v4126
        %v4780 = vunpack.c.h.b16 %v4126
        %v4781 = vunpack.c.l.b16 %v4127
        %v4782 = vunpack.c.l.b16 %v4128
        %v4783 = vunpack.c.h.b16 %v4128
        %v4784 = vunpack.c.l.b16 %v4129
        %v4785 = vunpack.c.h.b16 %v4129
        %v4786 = vunpack.c.l.b16 %v4130
        %v4787 = vunpack.c.h.b16 %v4130
        %v4788 = vunpack.c.l.b16 %v4131
        %v4789 = vunpack.c.h.b16 %v4131
        %v4790 = vunpack.c.l.b16 %v4132
        %v4791 = vunpack.c.l.b16 %v4133
        %v4792 = vunpack.c.h.b16 %v4133
        %v4793 = vunpack.c.l.b16 %v4134
        %v4794 = vunpack.c.h.b16 %v4134
        %v4795 = vunpack.c.l.b16 %v4135
        %v4796 = vunpack.c.h.b16 %v4135
        %v4797 = vunpack.c.l.b16 %v4136
        %v4798 = vunpack.c.h.b16 %v4136
        %v4799 = vunpack.c.l.b16 %v4137
        %v4800 = vunpack.c.l.b16 %v4138
        %v4801 = vunpack.c.h.b16 %v4138
        %v4802 = vunpack.c.l.b16 %v4139
        %v4803 = vunpack.c.h.b16 %v4139
        %v4804 = vunpack.c.l.b16 %v4140
        %v4805 = vunpack.c.h.b16 %v4140
        %v4806 = vunpack.c.l.b16 %v4141
        %v4807 = vunpack.c.h.b16 %v4141
        %v4808 = vunpack.c.l.b16 %v4142
        %v4809 = vunpack.c.l.b16 %v4143
        %v4810 = vunpack.c.h.b16 %v4143
        %v4811 = vunpack.c.l.b16 %v4144
        %v4812 = vunpack.c.h.b16 %v4144
        %v4813 = vunpack.c.l.b16 %v4145
        %v4814 = vunpack.c.h.b16 %v4145
        %v4815 = vunpack.c.l.b16 %v4146
        %v4816 = vunpack.c.h.b16 %v4146
        %v4817 = vunpack.c.l.b16 %v4147
        %v4818 = vunpack.c.l.b16 %v4148
        %v4819 = vunpack.c.h.b16 %v4148
        %v4820 = vunpack.c.l.b16 %v4149
        %v4821 = vunpack.c.h.b16 %v4149
        %v4822 = vunpack.c.l.b16 %v4150
        %v4823 = vunpack.c.h.b16 %v4150
        %v4824 = vunpack.c.l.b16 %v4151
        %v4825 = vunpack.c.h.b16 %v4151
        %v4826 = vunpack.c.l.b16 %v4152
        %v4827 = vunpack.c.l.b16 %v4153
        %v4828 = vunpack.c.h.b16 %v4153
        %v4829 = vunpack.c.l.b16 %v4154
        %v4830 = vunpack.c.h.b16 %v4154
        %v4831 = vunpack.c.l.b16 %v4155
        %v4832 = vunpack.c.h.b16 %v4155
        %v4833 = vunpack.c.l.b16 %v4156
        %v4834 = vunpack.c.h.b16 %v4156
        %v4835 = vunpack.c.l.b16 %v4157
        %v4836 = vunpack.c.l.b16 %v4158
        %v4837 = vunpack.c.h.b16 %v4158
        %v4838 = vunpack.c.l.b16 %v4159
        %v4839 = vunpack.c.h.b16 %v4159
        %v4840 = vunpack.c.l.b16 %v4160
        %v4841 = vunpack.c.h.b16 %v4160
        %v4842 = vunpack.c.l.b16 %v4161
        %v4843 = vunpack.c.h.b16 %v4161
        %v4844 = vunpack.c.l.b16 %v4162
        %v4845 = vunpack.c.l.b16 %v4163
        %v4846 = vunpack.c.h.b16 %v4163
        %v4847 = vunpack.c.l.b16 %v4164
        %v4848 = vunpack.c.h.b16 %v4164
        %v4849 = vunpack.c.l.b16 %v4165
        %v4850 = vunpack.c.h.b16 %v4165
        %v4851 = vunpack.c.l.b16 %v4166
        %v4852 = vunpack.c.h.b16 %v4166
        %v4853 = vunpack.c.l.b16 %v4167
        %v4854 = vunpack.c.l.b16 %v4168
        %v4855 = vunpack.c.h.b16 %v4168
        %v4856 = vunpack.c.l.b16 %v4169
        %v4857 = vunpack.c.h.b16 %v4169
        %v4858 = vunpack.c.l.b16 %v4170
        %v4859 = vunpack.c.h.b16 %v4170
        %v4860 = vunpack.c.l.b16 %v4171
        %v4861 = vunpack.c.h.b16 %v4171
        %v4862 = vunpack.c.l.b16 %v4172
        %v4863 = vunpack.c.l.b16 %v4173
        %v4864 = vunpack.c.h.b16 %v4173
        %v4865 = vunpack.c.l.b16 %v4174
        %v4866 = vunpack.c.h.b16 %v4174
        %v4867 = vunpack.c.l.b16 %v4175
        %v4868 = vunpack.c.h.b16 %v4175
        %v4869 = vunpack.c.l.b16 %v4176
        %v4870 = vunpack.c.h.b16 %v4176
        %v4871 = vunpack.c.l.b16 %v4177
        %v4872 = vunpack.c.l.b16 %v4178
        %v4873 = vunpack.c.h.b16 %v4178
        %v4874 = vunpack.c.l.b16 %v4179
        %v4875 = vunpack.c.h.b16 %v4179
        %v4876 = vunpack.c.l.b16 %v4180
        %v4877 = vunpack.c.h.b16 %v4180
        %v4878 = vunpack.c.l.b16 %v4181
        %v4879 = vunpack.c.h.b16 %v4181
        %v4880 = vunpack.c.l.b16 %v4182
        %v4881 = vunpack.c.l.b16 %v4183
        %v4882 = vunpack.c.h.b16 %v4183
        %v4883 = vunpack.c.l.b16 %v4184
        %v4884 = vunpack.c.h.b16 %v4184
        %v4885 = vunpack.c.l.b16 %v4185
        %v4886 = vunpack.c.h.b16 %v4185
        %v4887 = vunpack.c.l.b16 %v4186
        %v4888 = vunpack.c.h.b16 %v4186
        %v4889 = vunpack.c.l.b16 %v4187
        %v4890 = vunpack.c.l.b16 %v4188
        %v4891 = vunpack.c.h.b16 %v4188
        %v4892 = vunpack.c.l.b16 %v4189
        %v4893 = vunpack.c.h.b16 %v4189
        %v4894 = vunpack.c.l.b16 %v4190
        %v4895 = vunpack.c.h.b16 %v4190
        %v4896 = vunpack.c.l.b16 %v4191
        %v4897 = vunpack.c.h.b16 %v4191
        %v4898 = vunpack.c.l.b16 %v4192
        %v4899 = vunpack.c.l.b16 %v4193
        %v4900 = vunpack.c.h.b16 %v4193
        %v4901 = vunpack.c.l.b16 %v4194
        %v4902 = vunpack.c.h.b16 %v4194
        %v4903 = vunpack.c.l.b16 %v4195
        %v4904 = vunpack.c.h.b16 %v4195
        %v4905 = vunpack.c.l.b16 %v4196
        %v4906 = vunpack.c.h.b16 %v4196
        %v4907 = vunpack.c.l.b16 %v4197
        %v4908 = vunpack.c.l.b16 %v4198
        %v4909 = vunpack.c.h.b16 %v4198
        %v4910 = vunpack.c.l.b16 %v4199
        %v4911 = vunpack.c.h.b16 %v4199
        %v4912 = vunpack.c.l.b16 %v4200
        %v4913 = vunpack.c.h.b16 %v4200
        %v4914 = vunpack.c.l.b16 %v4201
        %v4915 = vunpack.c.h.b16 %v4201
        %v4916 = vunpack.c.l.b16 %v4202
        %v4917 = vunpack.c.l.b16 %v4203
        %v4918 = vunpack.c.h.b16 %v4203
        %v4919 = vunpack.c.l.b16 %v4204
        %v4920 = vunpack.c.h.b16 %v4204
        %v4921 = vunpack.c.l.b16 %v4205
        %v4922 = vunpack.c.h.b16 %v4205
        %v4923 = vunpack.c.l.b16 %v4206
        %v4924 = vunpack.c.h.b16 %v4206
        %v4925 = vunpack.c.l.b16 %v4207
        %v4926 = vpack.c.b16 %v4566, %v4557
        %v4927 = vpack.c.b16 %v4567, %v4558
        %v4928 = vpack.c.b16 %v4568, %v4559
        %v4929 = vpack.c.b16 %v4569, %v4560
        %v4930 = vpack.c.b16 %v4570, %v4561
        %v4931 = vpack.c.b16 %v4571, %v4562
        %v4932 = vpack.c.b16 %v4572, %v4563
        %v4933 = vpack.c.b16 %v4573, %v4564
        %v4934 = vpack.c.b16 %v4574, %v4565
        %v4935 = vpack.c.b16 %v4584, %v4575
        %v4936 = vpack.c.b16 %v4585, %v4576
        %v4937 = vpack.c.b16 %v4586, %v4577
        %v4938 = vpack.c.b16 %v4587, %v4578
        %v4939 = vpack.c.b16 %v4588, %v4579
        %v4940 = vpack.c.b16 %v4589, %v4580
        %v4941 = vpack.c.b16 %v4590, %v4581
        %v4942 = vpack.c.b16 %v4591, %v4582
        %v4943 = vpack.c.b16 %v4592, %v4583
        %v4944 = vpack.c.b16 %v4602, %v4593
        %v4945 = vpack.c.b16 %v4603, %v4594
        %v4946 = vpack.c.b16 %v4604, %v4595
        %v4947 = vpack.c.b16 %v4605, %v4596
        %v4948 = vpack.c.b16 %v4606, %v4597
        %v4949 = vpack.c.b16 %v4607, %v4598
        %v4950 = vpack.c.b16 %v4608, %v4599
        %v4951 = vpack.c.b16 %v4609, %v4600
        %v4952 = vpack.c.b16 %v4610, %v4601
        %v4953 = vpack.c.b16 %v4620, %v4611
        %v4954 = vpack.c.b16 %v4621, %v4612
        %v4955 = vpack.c.b16 %v4622, %v4613
        %v4956 = vpack.c.b16 %v4623, %v4614
        %v4957 = vpack.c.b16 %v4624, %v4615
        %v4958 = vpack.c.b16 %v4625, %v4616
        %v4959 = vpack.c.b16 %v4626, %v4617
        %v4960 = vpack.c.b16 %v4627, %v4618
        %v4961 = vpack.c.b16 %v4628, %v4619
        %v4962 = vpack.c.b16 %v4638, %v4629
        %v4963 = vpack.c.b16 %v4639, %v4630
        %v4964 = vpack.c.b16 %v4640, %v4631
        %v4965 = vpack.c.b16 %v4641, %v4632
        %v4966 = vpack.c.b16 %v4642, %v4633
        %v4967 = vpack.c.b16 %v4643, %v4634
        %v4968 = vpack.c.b16 %v4644, %v4635
        %v4969 = vpack.c.b16 %v4645, %v4636
        %v4970 = vpack.c.b16 %v4646, %v4637
        %v4971 = vpack.c.b16 %v4656, %v4647
        %v4972 = vpack.c.b16 %v4657, %v4648
        %v4973 = vpack.c.b16 %v4658, %v4649
        %v4974 = vpack.c.b16 %v4659, %v4650
        %v4975 = vpack.c.b16 %v4660, %v4651
        %v4976 = vpack.c.b16 %v4661, %v4652
        %v4977 = vpack.c.b16 %v4662, %v4653
        %v4978 = vpack.c.b16 %v4663, %v4654
        %v4979 = vpack.c.b16 %v4664, %v4655
        %v4980 = vpack.c.b16 %v4674, %v4665
        %v4981 = vpack.c.b16 %v4675, %v4666
        %v4982 = vpack.c.b16 %v4676, %v4667
        %v4983 = vpack.c.b16 %v4677, %v4668
        %v4984 = vpack.c.b16 %v4678, %v4669
        %v4985 = vpack.c.b16 %v4679, %v4670
        %v4986 = vpack.c.b16 %v4680, %v4671
        %v4987 = vpack.c.b16 %v4681, %v4672
        %v4988 = vpack.c.b16 %v4682, %v4673
        %v4989 = vpack.c.b16 %v4692, %v4683
        %v4990 = vpack.c.b16 %v4693, %v4684
        %v4991 = vpack.c.b16 %v4694, %v4685
        %v4992 = vpack.c.b16 %v4695, %v4686
        %v4993 = vpack.c.b16 %v4696, %v4687
        %v4994 = vpack.c.b16 %v4697, %v4688
        %v4995 = vpack.c.b16 %v4698, %v4689
        %v4996 = vpack.c.b16 %v4699, %v4690
        %v4997 = vpack.c.b16 %v4700, %v4691
        %v4998 = vpack.c.b16 %v4710, %v4701
        %v4999 = vpack.c.b16 %v4711, %v4702
        %v5000 = vpack.c.b16 %v4712, %v4703
        %v5001 = vpack.c.b16 %v4713, %v4704
        %v5002 = vpack.c.b16 %v4714, %v4705
        %v5003 = vpack.c.b16 %v4715, %v4706
        %v5004 = vpack.c.b16 %v4716, %v4707
        %v5005 = vpack.c.b16 %v4717, %v4708
        %v5006 = vpack.c.b16 %v4718, %v4709
        %v5007 = vpack.c.b16 %v4728, %v4719
        %v5008 = vpack.c.b16 %v4729, %v4720
        %v5009 = vpack.c.b16 %v4730, %v4721
        %v5010 = vpack.c.b16 %v4731, %v4722
        %v5011 = vpack.c.b16 %v4732, %v4723
        %v5012 = vpack.c.b16 %v4733, %v4724
        %v5013 = vpack.c.b16 %v4734, %v4725
        %v5014 = vpack.c.b16 %v4735, %v4726
        %v5015 = vpack.c.b16 %v4736, %v4727
        %v5016 = vpack.c.b16 %v4746, %v4737
        %v5017 = vpack.c.b16 %v4747, %v4738
        %v5018 = vpack.c.b16 %v4748, %v4739
        %v5019 = vpack.c.b16 %v4749, %v4740
        %v5020 = vpack.c.b16 %v4750, %v4741
        %v5021 = vpack.c.b16 %v4751, %v4742
        %v5022 = vpack.c.b16 %v4752, %v4743
        %v5023 = vpack.c.b16 %v4753, %v4744
        %v5024 = vpack.c.b16 %v4754, %v4745
        %v5025 = vpack.c.b16 %v4764, %v4755
        %v5026 = vpack.c.b16 %v4765, %v4756
        %v5027 = vpack.c.b16 %v4766, %v4757
        %v5028 = vpack.c.b16 %v4767, %v4758
        %v5029 = vpack.c.b16 %v4768, %v4759
        %v5030 = vpack.c.b16 %v4769, %v4760
        %v5031 = vpack.c.b16 %v4770, %v4761
        %v5032 = vpack.c.b16 %v4771, %v4762
        %v5033 = vpack.c.b16 %v4772, %v4763
        %v5034 = vpack.c.b16 %v4782, %v4773
        %v5035 = vpack.c.b16 %v4783, %v4774
        %v5036 = vpack.c.b16 %v4784, %v4775
        %v5037 = vpack.c.b16 %v4785, %v4776
        %v5038 = vpack.c.b16 %v4786, %v4777
        %v5039 = vpack.c.b16 %v4787, %v4778
        %v5040 = vpack.c.b16 %v4788, %v4779
        %v5041 = vpack.c.b16 %v4789, %v4780
        %v5042 = vpack.c.b16 %v4790, %v4781
        %v5043 = vpack.c.b16 %v4800, %v4791
        %v5044 = vpack.c.b16 %v4801, %v4792
        %v5045 = vpack.c.b16 %v4802, %v4793
        %v5046 = vpack.c.b16 %v4803, %v4794
        %v5047 = vpack.c.b16 %v4804, %v4795
        %v5048 = vpack.c.b16 %v4805, %v4796
        %v5049 = vpack.c.b16 %v4806, %v4797
        %v5050 = vpack.c.b16 %v4807, %v4798
        %v5051 = vpack.c.b16 %v4808, %v4799
        %v5052 = vpack.c.b16 %v4818, %v4809
        %v5053 = vpack.c.b16 %v4819, %v4810
        %v5054 = vpack.c.b16 %v4820, %v4811
        %v5055 = vpack.c.b16 %v4821, %v4812
        %v5056 = vpack.c.b16 %v4822, %v4813
        %v5057 = vpack.c.b16 %v4823, %v4814
        %v5058 = vpack.c.b16 %v4824, %v4815
        %v5059 = vpack.c.b16 %v4825, %v4816
        %v5060 = vpack.c.b16 %v4826, %v4817
        %v5061 = vpack.c.b16 %v4836, %v4827
        %v5062 = vpack.c.b16 %v4837, %v4828
        %v5063 = vpack.c.b16 %v4838, %v4829
        %v5064 = vpack.c.b16 %v4839, %v4830
        %v5065 = vpack.c.b16 %v4840, %v4831
        %v5066 = vpack.c.b16 %v4841, %v4832
        %v5067 = vpack.c.b16 %v4842, %v4833
        %v5068 = vpack.c.b16 %v4843, %v4834
        %v5069 = vpack.c.b16 %v4844, %v4835
        %v5070 = vpack.c.b16 %v4854, %v4845
        %v5071 = vpack.c.b16 %v4855, %v4846
        %v5072 = vpack.c.b16 %v4856, %v4847
        %v5073 = vpack.c.b16 %v4857, %v4848
        %v5074 = vpack.c.b16 %v4858, %v4849
        %v5075 = vpack.c.b16 %v4859, %v4850
        %v5076 = vpack.c.b16 %v4860, %v4851
        %v5077 = vpack.c.b16 %v4861, %v4852
        %v5078 = vpack.c.b16 %v4862, %v4853
        %v5079 = vpack.c.b16 %v4872, %v4863
        %v5080 = vpack.c.b16 %v4873, %v4864
        %v5081 = vpack.c.b16 %v4874, %v4865
        %v5082 = vpack.c.b16 %v4875, %v4866
        %v5083 = vpack.c.b16 %v4876, %v4867
        %v5084 = vpack.c.b16 %v4877, %v4868
        %v5085 = vpack.c.b16 %v4878, %v4869
        %v5086 = vpack.c.b16 %v4879, %v4870
        %v5087 = vpack.c.b16 %v4880, %v4871
        %v5088 = vpack.c.b16 %v4890, %v4881
        %v5089 = vpack.c.b16 %v4891, %v4882
        %v5090 = vpack.c.b16 %v4892, %v4883
        %v5091 = vpack.c.b16 %v4893, %v4884
        %v5092 = vpack.c.b16 %v4894, %v4885
        %v5093 = vpack.c.b16 %v4895, %v4886
        %v5094 = vpack.c.b16 %v4896, %v4887
        %v5095 = vpack.c.b16 %v4897, %v4888
        %v5096 = vpack.c.b16 %v4898, %v4889
        %v5097 = vpack.c.b16 %v4908, %v4899
        %v5098 = vpack.c.b16 %v4909, %v4900
        %v5099 = vpack.c.b16 %v4910, %v4901
        %v5100 = vpack.c.b16 %v4911, %v4902
        %v5101 = vpack.c.b16 %v4912, %v4903
        %v5102 = vpack.c.b16 %v4913, %v4904
        %v5103 = vpack.c.b16 %v4914, %v4905
        %v5104 = vpack.c.b16 %v4915, %v4906
        %v5105 = vpack.c.b16 %v4916, %v4907
        %v5106 = vpack.c.b16 %v4917, %v4917
        %v5107 = vpack.c.b16 %v4918, %v4918
        %v5108 = vpack.c.b16 %v4919, %v4919
        %v5109 = vpack.c.b16 %v4920, %v4920
        %v5110 = vpack.c.b16 %v4921, %v4921
        %v5111 = vpack.c.b16 %v4922, %v4922
        %v5112 = vpack.c.b16 %v4923, %v4923
        %v5113 = vpack.c.b16 %v4924, %v4924
        %v5114 = vpack.c.b16 %v4925, %v4925
        %v5448 = vunpack.c.l.b16 %v4208
        %v5449 = vunpack.c.h.b16 %v4208
        %v5450 = vunpack.c.l.b16 %v4209
        %v5451 = vunpack.c.h.b16 %v4209
        %v5452 = vunpack.c.l.b16 %v4210
        %v5453 = vunpack.c.h.b16 %v4210
        %v5454 = vunpack.c.l.b16 %v4211
        %v5455 = vunpack.c.h.b16 %v4211
        %v5456 = vunpack.c.l.b16 %v4212
        %v5457 = vunpack.c.h.b16 %v4212
        %v5458 = vunpack.c.l.b16 %v4213
        %v5459 = vunpack.c.h.b16 %v4213
        %v5460 = vunpack.c.l.b16 %v4214
        %v5461 = vunpack.c.h.b16 %v4214
        %v5462 = vunpack.c.l.b16 %v4215
        %v5463 = vunpack.c.h.b16 %v4215
        %v5464 = vunpack.c.l.b16 %v4216
        %v5465 = vunpack.c.h.b16 %v4216
        %v5466 = vunpack.c.l.b16 %v4217
        %v5467 = vunpack.c.h.b16 %v4217
        %v5468 = vunpack.c.l.b16 %v4218
        %v5469 = vunpack.c.h.b16 %v4218
        %v5470 = vunpack.c.l.b16 %v4219
        %v5471 = vunpack.c.h.b16 %v4219
        %v5472 = vunpack.c.l.b16 %v4220
        %v5473 = vunpack.c.h.b16 %v4220
        %v5474 = vunpack.c.l.b16 %v4221
        %v5475 = vunpack.c.h.b16 %v4221
        %v5476 = vunpack.c.l.b16 %v4222
        %v5477 = vunpack.c.h.b16 %v4222
        %v5478 = vunpack.c.l.b16 %v4223
        %v5479 = vunpack.c.h.b16 %v4223
        %v5480 = vunpack.c.l.b16 %v4224
        %v5481 = vunpack.c.h.b16 %v4224
        %v5482 = vunpack.c.l.b16 %v4225
        %v5483 = vunpack.c.h.b16 %v4225
        %v5484 = vunpack.c.l.b16 %v4226
        %v5485 = vunpack.c.h.b16 %v4226
        %v5486 = vunpack.c.l.b16 %v4227
        %v5487 = vunpack.c.h.b16 %v4227
        %v5488 = vunpack.c.l.b16 %v4228
        %v5489 = vunpack.c.h.b16 %v4228
        %v5490 = vunpack.c.l.b16 %v4229
        %v5491 = vunpack.c.h.b16 %v4229
        %v5492 = vunpack.c.l.b16 %v4230
        %v5493 = vunpack.c.h.b16 %v4230
        %v5494 = vunpack.c.l.b16 %v4231
        %v5495 = vunpack.c.h.b16 %v4231
        %v5496 = vunpack.c.l.b16 %v4232
        %v5497 = vunpack.c.h.b16 %v4232
        %v5498 = vunpack.c.l.b16 %v4233
        %v5499 = vunpack.c.h.b16 %v4233
        %v5500 = vunpack.c.l.b16 %v4234
        %v5501 = vunpack.c.h.b16 %v4234
        %v5502 = vunpack.c.l.b16 %v4235
        %v5503 = vunpack.c.h.b16 %v4235
        %v5504 = vunpack.c.l.b16 %v4236
        %v5505 = vunpack.c.h.b16 %v4236
        %v5506 = vunpack.c.l.b16 %v4237
        %v5507 = vunpack.c.h.b16 %v4237
        %v5508 = vunpack.c.l.b16 %v4238
        %v5509 = vunpack.c.h.b16 %v4238
        %v5510 = vunpack.c.l.b16 %v4239
        %v5511 = vunpack.c.h.b16 %v4239
        %v5512 = vunpack.c.l.b16 %v4240
        %v5513 = vunpack.c.h.b16 %v4240
        %v5514 = vunpack.c.l.b16 %v4241
        %v5515 = vunpack.c.h.b16 %v4241
        %v5516 = vunpack.c.l.b16 %v4242
        %v5517 = vunpack.c.h.b16 %v4242
        %v5518 = vunpack.c.l.b16 %v4243
        %v5519 = vunpack.c.h.b16 %v4243
        %v5520 = vunpack.c.l.b16 %v4244
        %v5521 = vunpack.c.h.b16 %v4244
        %v5522 = vunpack.c.l.b16 %v4245
        %v5523 = vunpack.c.h.b16 %v4245
        %v5524 = vunpack.c.l.b16 %v4246
        %v5525 = vunpack.c.h.b16 %v4246
        %v5526 = vunpack.c.l.b16 %v4247
        %v5527 = vunpack.c.h.b16 %v4247
        %v5528 = vunpack.c.l.b16 %v4248
        %v5529 = vunpack.c.h.b16 %v4248
        %v5530 = vunpack.c.l.b16 %v4249
        %v5531 = vunpack.c.h.b16 %v4249
        %v5532 = vunpack.c.l.b16 %v4250
        %v5533 = vunpack.c.h.b16 %v4250
        %v5534 = vunpack.c.l.b16 %v4251
        %v5535 = vunpack.c.h.b16 %v4251
        %v5536 = vunpack.c.l.b16 %v4252
        %v5537 = vunpack.c.h.b16 %v4252
        %v5538 = vunpack.c.l.b16 %v4253
        %v5539 = vunpack.c.h.b16 %v4253
        %v5540 = vunpack.c.l.b16 %v4254
        %v5541 = vunpack.c.h.b16 %v4254
        %v5542 = vunpack.c.l.b16 %v4255
        %v5543 = vunpack.c.h.b16 %v4255
        %v5544 = vunpack.c.l.b16 %v4256
        %v5545 = vunpack.c.h.b16 %v4256
        %v5546 = vunpack.c.l.b16 %v4257
        %v5547 = vunpack.c.h.b16 %v4257
        %v5548 = vunpack.c.l.b16 %v4258
        %v5549 = vunpack.c.h.b16 %v4258
        %v5550 = vunpack.c.l.b16 %v4259
        %v5551 = vunpack.c.h.b16 %v4259
        %v5552 = vunpack.c.l.b16 %v4260
        %v5553 = vunpack.c.h.b16 %v4260
        %v5554 = vunpack.c.l.b16 %v4261
        %v5555 = vunpack.c.h.b16 %v4261
        %v5556 = vunpack.c.l.b16 %v4262
        %v5557 = vunpack.c.h.b16 %v4262
        %v5558 = vunpack.c.l.b16 %v4263
        %v5559 = vunpack.c.h.b16 %v4263
        %v5560 = vunpack.c.l.b16 %v4264
        %v5561 = vunpack.c.h.b16 %v4264
        %v5562 = vunpack.c.l.b16 %v4265
        %v5563 = vunpack.c.h.b16 %v4265
        %v5564 = vunpack.c.l.b16 %v4266
        %v5565 = vunpack.c.h.b16 %v4266
        %v5566 = vunpack.c.l.b16 %v4267
        %v5567 = vunpack.c.h.b16 %v4267
        %v5568 = vunpack.c.l.b16 %v4268
        %v5569 = vunpack.c.h.b16 %v4268
        %v5570 = vunpack.c.l.b16 %v4269
        %v5571 = vunpack.c.h.b16 %v4269
        %v5572 = vunpack.c.l.b16 %v4270
        %v5573 = vunpack.c.h.b16 %v4270
        %v5574 = vunpack.c.l.b16 %v4271
        %v5575 = vunpack.c.h.b16 %v4271
        %v5576 = vunpack.c.l.b16 %v4272
        %v5577 = vunpack.c.h.b16 %v4272
        %v5578 = vunpack.c.l.b16 %v4273
        %v5579 = vunpack.c.h.b16 %v4273
        %v5580 = vunpack.c.l.b16 %v4274
        %v5581 = vunpack.c.h.b16 %v4274
        %v5582 = vunpack.c.l.b16 %v4275
        %v5583 = vunpack.c.h.b16 %v4275
        %v5584 = vunpack.c.l.b16 %v4276
        %v5585 = vunpack.c.h.b16 %v4276
        %v5586 = vunpack.c.l.b16 %v4277
        %v5587 = vunpack.c.h.b16 %v4277
        %v5588 = vunpack.c.l.b16 %v4278
        %v5589 = vunpack.c.h.b16 %v4278
        %v5590 = vunpack.c.l.b16 %v4279
        %v5591 = vunpack.c.h.b16 %v4279
        %v5592 = vunpack.c.l.b16 %v4280
        %v5593 = vunpack.c.h.b16 %v4280
        %v5594 = vunpack.c.l.b16 %v4281
        %v5595 = vunpack.c.h.b16 %v4281
        %v5596 = vunpack.c.l.b16 %v4282
        %v5597 = vunpack.c.h.b16 %v4282
        %v5598 = vunpack.c.l.b16 %v4283
        %v5599 = vunpack.c.h.b16 %v4283
        %v5600 = vunpack.c.l.b16 %v4284
        %v5601 = vunpack.c.h.b16 %v4284
        %v5602 = vunpack.c.l.b16 %v4285
        %v5603 = vunpack.c.h.b16 %v4285
        %v5604 = vunpack.c.l.b16 %v4286
        %v5605 = vunpack.c.h.b16 %v4286
        %v5606 = vunpack.c.l.b16 %v4287
        %v5607 = vunpack.c.h.b16 %v4287
        %v5608 = vunpack.c.l.b16 %v4288
        %v5609 = vunpack.c.h.b16 %v4288
        %v5610 = vunpack.c.l.b16 %v4289
        %v5611 = vunpack.c.h.b16 %v4289
        %v5612 = vunpack.c.l.b16 %v4290
        %v5613 = vunpack.c.h.b16 %v4290
        %v5614 = vunpack.c.l.b16 %v4291
        %v5615 = vunpack.c.h.b16 %v4291
        %v5616 = vunpack.c.l.b16 %v4292
        %v5617 = vunpack.c.h.b16 %v4292
        %v5618 = vunpack.c.l.b16 %v4293
        %v5619 = vunpack.c.h.b16 %v4293
        %v5620 = vunpack.c.l.b16 %v4294
        %v5621 = vunpack.c.h.b16 %v4294
        %v5622 = vunpack.c.l.b16 %v4295
        %v5623 = vunpack.c.h.b16 %v4295
        %v5624 = vunpack.c.l.b16 %v4296
        %v5625 = vunpack.c.h.b16 %v4296
        %v5626 = vunpack.c.l.b16 %v4297
        %v5627 = vunpack.c.h.b16 %v4297
        %v5628 = vunpack.c.l.b16 %v4298
        %v5629 = vunpack.c.h.b16 %v4298
        %v5630 = vunpack.c.l.b16 %v4299
        %v5631 = vunpack.c.h.b16 %v4299
        %v5632 = vunpack.c.l.b16 %v4300
        %v5633 = vunpack.c.h.b16 %v4300
        %v5634 = vunpack.c.l.b16 %v4301
        %v5635 = vunpack.c.h.b16 %v4301
        %v5636 = vunpack.c.l.b16 %v4302
        %v5637 = vunpack.c.h.b16 %v4302
        %v5638 = vunpack.c.l.b16 %v4303
        %v5639 = vunpack.c.h.b16 %v4303
        %v5640 = vunpack.c.l.b16 %v4304
        %v5641 = vunpack.c.h.b16 %v4304
        %v5642 = vunpack.c.l.b16 %v4305
        %v5643 = vunpack.c.h.b16 %v4305
        %v5644 = vunpack.c.l.b16 %v4306
        %v5645 = vunpack.c.h.b16 %v4306
        %v5646 = vunpack.c.l.b16 %v4307
        %v5647 = vunpack.c.h.b16 %v4307
        %v5648 = vunpack.c.l.b16 %v4308
        %v5649 = vunpack.c.h.b16 %v4308
        %v5650 = vunpack.c.l.b16 %v4309
        %v5651 = vunpack.c.h.b16 %v4309
        %v5652 = vunpack.c.l.b16 %v4310
        %v5653 = vunpack.c.h.b16 %v4310
        %v5654 = vunpack.c.l.b16 %v4311
        %v5655 = vunpack.c.h.b16 %v4311
        %v5656 = vunpack.c.l.b16 %v4312
        %v5657 = vunpack.c.h.b16 %v4312
        %v5658 = vunpack.c.l.b16 %v4313
        %v5659 = vunpack.c.h.b16 %v4313
        %v5660 = vunpack.c.l.b16 %v4314
        %v5661 = vunpack.c.h.b16 %v4314
        %v5662 = vunpack.c.l.b16 %v4315
        %v5663 = vunpack.c.h.b16 %v4315
        %v5664 = vunpack.c.l.b16 %v4316
        %v5665 = vunpack.c.h.b16 %v4316
        %v5666 = vunpack.c.l.b16 %v4317
        %v5667 = vunpack.c.h.b16 %v4317
        %v5668 = vunpack.c.l.b16 %v4318
        %v5669 = vunpack.c.h.b16 %v4318
        %v5670 = vunpack.c.l.b16 %v4319
        %v5671 = vunpack.c.h.b16 %v4319
        %v5672 = vunpack.c.l.b16 %v4320
        %v5673 = vunpack.c.h.b16 %v4320
        %v5674 = vunpack.c.l.b16 %v4321
        %v5675 = vunpack.c.h.b16 %v4321
        %v5676 = vunpack.c.l.b16 %v4322
        %v5677 = vunpack.c.h.b16 %v4322
        %v5678 = vunpack.c.l.b16 %v4323
        %v5679 = vunpack.c.h.b16 %v4323
        %v5680 = vunpack.c.l.b16 %v4324
        %v5681 = vunpack.c.h.b16 %v4324
        %v5682 = vunpack.c.l.b16 %v4325
        %v5683 = vunpack.c.h.b16 %v4325
        %v5684 = vunpack.c.l.b16 %v4326
        %v5685 = vunpack.c.h.b16 %v4326
        %v5686 = vunpack.c.l.b16 %v4327
        %v5687 = vunpack.c.h.b16 %v4327
        %v5688 = vunpack.c.l.b16 %v4328
        %v5689 = vunpack.c.h.b16 %v4328
        %v5690 = vunpack.c.l.b16 %v4329
        %v5691 = vunpack.c.h.b16 %v4329
        %v5692 = vunpack.c.l.b16 %v4330
        %v5693 = vunpack.c.h.b16 %v4330
        %v5694 = vunpack.c.l.b16 %v4331
        %v5695 = vunpack.c.h.b16 %v4331
        %v5696 = vunpack.c.l.b16 %v4332
        %v5697 = vunpack.c.h.b16 %v4332
        %v5698 = vunpack.c.l.b16 %v4333
        %v5699 = vunpack.c.h.b16 %v4333
        %v5700 = vunpack.c.l.b16 %v4334
        %v5701 = vunpack.c.h.b16 %v4334
        %v5702 = vunpack.c.l.b16 %v4335
        %v5703 = vunpack.c.h.b16 %v4335
        %v5704 = vunpack.c.l.b16 %v4336
        %v5705 = vunpack.c.h.b16 %v4336
        %v5706 = vunpack.c.l.b16 %v4337
        %v5707 = vunpack.c.h.b16 %v4337
        %v5708 = vunpack.c.l.b16 %v4338
        %v5709 = vunpack.c.h.b16 %v4338
        %v5710 = vunpack.c.l.b16 %v4339
        %v5711 = vunpack.c.h.b16 %v4339
        %v5712 = vunpack.c.l.b16 %v4340
        %v5713 = vunpack.c.h.b16 %v4340
        %v5714 = vunpack.c.l.b16 %v4341
        %v5715 = vunpack.c.h.b16 %v4341
        %v5716 = vunpack.c.l.b16 %v4342
        %v5717 = vunpack.c.h.b16 %v4342
        %v5718 = vunpack.c.l.b16 %v4343
        %v5719 = vunpack.c.h.b16 %v4343
        %v5720 = vunpack.c.l.b16 %v4344
        %v5721 = vunpack.c.h.b16 %v4344
        %v5722 = vunpack.c.l.b16 %v4345
        %v5723 = vunpack.c.h.b16 %v4345
        %v5724 = vunpack.c.l.b16 %v4346
        %v5725 = vunpack.c.h.b16 %v4346
        %v5726 = vunpack.c.l.b16 %v4347
        %v5727 = vunpack.c.h.b16 %v4347
        %v5728 = vunpack.c.l.b16 %v4348
        %v5729 = vunpack.c.h.b16 %v4348
        %v5730 = vunpack.c.l.b16 %v4349
        %v5731 = vunpack.c.h.b16 %v4349
        %v5732 = vunpack.c.l.b16 %v4350
        %v5733 = vunpack.c.h.b16 %v4350
        %v5734 = vunpack.c.l.b16 %v4351
        %v5735 = vunpack.c.h.b16 %v4351
        %v5736 = vpack.c.b16 %v5450, %v5448
        %v5737 = vpack.c.b16 %v5451, %v5449
        %v5738 = vpack.c.b16 %v5454, %v5452
        %v5739 = vpack.c.b16 %v5455, %v5453
        %v5740 = vpack.c.b16 %v5458, %v5456
        %v5741 = vpack.c.b16 %v5459, %v5457
        %v5742 = vpack.c.b16 %v5462, %v5460
        %v5743 = vpack.c.b16 %v5463, %v5461
        %v5744 = vpack.c.b16 %v5466, %v5464
        %v5745 = vpack.c.b16 %v5467, %v5465
        %v5746 = vpack.c.b16 %v5470, %v5468
        %v5747 = vpack.c.b16 %v5471, %v5469
        %v5748 = vpack.c.b16 %v5474, %v5472
        %v5749 = vpack.c.b16 %v5475, %v5473
        %v5750 = vpack.c.b16 %v5478, %v5476
        %v5751 = vpack.c.b16 %v5479, %v5477
        %v5752 = vpack.c.b16 %v5482, %v5480
        %v5753 = vpack.c.b16 %v5483, %v5481
        %v5754 = vpack.c.b16 %v5486, %v5484
        %v5755 = vpack.c.b16 %v5487, %v5485
        %v5756 = vpack.c.b16 %v5490, %v5488
        %v5757 = vpack.c.b16 %v5491, %v5489
        %v5758 = vpack.c.b16 %v5494, %v5492
        %v5759 = vpack.c.b16 %v5495, %v5493
        %v5760 = vpack.c.b16 %v5498, %v5496
        %v5761 = vpack.c.b16 %v5499, %v5497
        %v5762 = vpack.c.b16 %v5502, %v5500
        %v5763 = vpack.c.b16 %v5503, %v5501
        %v5764 = vpack.c.b16 %v5506, %v5504
        %v5765 = vpack.c.b16 %v5507, %v5505
        %v5766 = vpack.c.b16 %v5510, %v5508
        %v5767 = vpack.c.b16 %v5511, %v5509
        %v5768 = vpack.c.b16 %v5514, %v5512
        %v5769 = vpack.c.b16 %v5515, %v5513
        %v5770 = vpack.c.b16 %v5518, %v5516
        %v5771 = vpack.c.b16 %v5519, %v5517
        %v5772 = vpack.c.b16 %v5522, %v5520
        %v5773 = vpack.c.b16 %v5523, %v5521
        %v5774 = vpack.c.b16 %v5526, %v5524
        %v5775 = vpack.c.b16 %v5527, %v5525
        %v5776 = vpack.c.b16 %v5530, %v5528
        %v5777 = vpack.c.b16 %v5531, %v5529
        %v5778 = vpack.c.b16 %v5534, %v5532
        %v5779 = vpack.c.b16 %v5535, %v5533
        %v5780 = vpack.c.b16 %v5538, %v5536
        %v5781 = vpack.c.b16 %v5539, %v5537
        %v5782 = vpack.c.b16 %v5542, %v5540
        %v5783 = vpack.c.b16 %v5543, %v5541
        %v5784 = vpack.c.b16 %v5546, %v5544
        %v5785 = vpack.c.b16 %v5547, %v5545
        %v5786 = vpack.c.b16 %v5550, %v5548
        %v5787 = vpack.c.b16 %v5551, %v5549
        %v5788 = vpack.c.b16 %v5554, %v5552
        %v5789 = vpack.c.b16 %v5555, %v5553
        %v5790 = vpack.c.b16 %v5558, %v5556
        %v5791 = vpack.c.b16 %v5559, %v5557
        %v5792 = vpack.c.b16 %v5562, %v5560
        %v5793 = vpack.c.b16 %v5563, %v5561
        %v5794 = vpack.c.b16 %v5566, %v5564
        %v5795 = vpack.c.b16 %v5567, %v5565
        %v5796 = vpack.c.b16 %v5570, %v5568
        %v5797 = vpack.c.b16 %v5571, %v5569
        %v5798 = vpack.c.b16 %v5574, %v5572
        %v5799 = vpack.c.b16 %v5575, %v5573
        %v5800 = vpack.c.b16 %v5578, %v5576
        %v5801 = vpack.c.b16 %v5579, %v5577
        %v5802 = vpack.c.b16 %v5582, %v5580
        %v5803 = vpack.c.b16 %v5583, %v5581
        %v5804 = vpack.c.b16 %v5586, %v5584
        %v5805 = vpack.c.b16 %v5587, %v5585
        %v5806 = vpack.c.b16 %v5590, %v5588
        %v5807 = vpack.c.b16 %v5591, %v5589
        %v5808 = vpack.c.b16 %v5594, %v5592
        %v5809 = vpack.c.b16 %v5595, %v5593
        %v5810 = vpack.c.b16 %v5598, %v5596
        %v5811 = vpack.c.b16 %v5599, %v5597
        %v5812 = vpack.c.b16 %v5602, %v5600
        %v5813 = vpack.c.b16 %v5603, %v5601
        %v5814 = vpack.c.b16 %v5606, %v5604
        %v5815 = vpack.c.b16 %v5607, %v5605
        %v5816 = vpack.c.b16 %v5610, %v5608
        %v5817 = vpack.c.b16 %v5611, %v5609
        %v5818 = vpack.c.b16 %v5614, %v5612
        %v5819 = vpack.c.b16 %v5615, %v5613
        %v5820 = vpack.c.b16 %v5618, %v5616
        %v5821 = vpack.c.b16 %v5619, %v5617
        %v5822 = vpack.c.b16 %v5622, %v5620
        %v5823 = vpack.c.b16 %v5623, %v5621
        %v5824 = vpack.c.b16 %v5626, %v5624
        %v5825 = vpack.c.b16 %v5627, %v5625
        %v5826 = vpack.c.b16 %v5630, %v5628
        %v5827 = vpack.c.b16 %v5631, %v5629
        %v5828 = vpack.c.b16 %v5634, %v5632
        %v5829 = vpack.c.b16 %v5635, %v5633
        %v5830 = vpack.c.b16 %v5638, %v5636
        %v5831 = vpack.c.b16 %v5639, %v5637
        %v5832 = vpack.c.b16 %v5642, %v5640
        %v5833 = vpack.c.b16 %v5643, %v5641
        %v5834 = vpack.c.b16 %v5646, %v5644
        %v5835 = vpack.c.b16 %v5647, %v5645
        %v5836 = vpack.c.b16 %v5650, %v5648
        %v5837 = vpack.c.b16 %v5651, %v5649
        %v5838 = vpack.c.b16 %v5654, %v5652
        %v5839 = vpack.c.b16 %v5655, %v5653
        %v5840 = vpack.c.b16 %v5658, %v5656
        %v5841 = vpack.c.b16 %v5659, %v5657
        %v5842 = vpack.c.b16 %v5662, %v5660
        %v5843 = vpack.c.b16 %v5663, %v5661
        %v5844 = vpack.c.b16 %v5666, %v5664
        %v5845 = vpack.c.b16 %v5667, %v5665
        %v5846 = vpack.c.b16 %v5670, %v5668
        %v5847 = vpack.c.b16 %v5671, %v5669
        %v5848 = vpack.c.b16 %v5674, %v5672
        %v5849 = vpack.c.b16 %v5675, %v5673
        %v5850 = vpack.c.b16 %v5678, %v5676
        %v5851 = vpack.c.b16 %v5679, %v5677
        %v5852 = vpack.c.b16 %v5682, %v5680
        %v5853 = vpack.c.b16 %v5683, %v5681
        %v5854 = vpack.c.b16 %v5686, %v5684
        %v5855 = vpack.c.b16 %v5687, %v5685
        %v5856 = vpack.c.b16 %v5690, %v5688
        %v5857 = vpack.c.b16 %v5691, %v5689
        %v5858 = vpack.c.b16 %v5694, %v5692
        %v5859 = vpack.c.b16 %v5695, %v5693
        %v5860 = vpack.c.b16 %v5698, %v5696
        %v5861 = vpack.c.b16 %v5699, %v5697
        %v5862 = vpack.c.b16 %v5702, %v5700
        %v5863 = vpack.c.b16 %v5703, %v5701
        %v5864 = vpack.c.b16 %v5706, %v5704
        %v5865 = vpack.c.b16 %v5707, %v5705
        %v5866 = vpack.c.b16 %v5710, %v5708
        %v5867 = vpack.c.b16 %v5711, %v5709
        %v5868 = vpack.c.b16 %v5714, %v5712
        %v5869 = vpack.c.b16 %v5715, %v5713
        %v5870 = vpack.c.b16 %v5718, %v5716
        %v5871 = vpack.c.b16 %v5719, %v5717
        %v5872 = vpack.c.b16 %v5722, %v5720
        %v5873 = vpack.c.b16 %v5723, %v5721
        %v5874 = vpack.c.b16 %v5726, %v5724
        %v5875 = vpack.c.b16 %v5727, %v5725
        %v5876 = vpack.c.b16 %v5730, %v5728
        %v5877 = vpack.c.b16 %v5731, %v5729
        %v5878 = vpack.c.b16 %v5734, %v5732
        %v5879 = vpack.c.b16 %v5735, %v5733
        %6024 = vmatpush.bf16.msra.mxu0 %v5750
        %6025 = vmatpush.bf16.msra.mxu0 %v5748
        %6026 = vmatpush.bf16.msra.mxu0 %v5746
        %6027 = vmatpush.bf16.msra.mxu0 %v5744
        %6028 = vmatpush.bf16.msra.mxu0 %v5742
        %6029 = vmatpush.bf16.msra.mxu0 %v5740
        %6030 = vmatpush.bf16.msra.mxu0 %v5738
        %6031 = vmatpush.bf16.msra.mxu0 %v5736
        %6032 = vmatmul.bf16.gmra.mxu0 %v4926
        %v6033 = vpop.f32.mrf.mxu0
        %v6034 = vadd.f32 0.0, %v6033
        %v6035 = vpop.f32.mrf.mxu0
        %v6036 = vadd.f32 0.0, %v6035
        %6037 = vmatmul.bf16.gmra.mxu0 %v4935
        %v6038 = vpop.f32.mrf.mxu0
        %v6039 = vadd.f32 0.0, %v6038
        %v6040 = vpop.f32.mrf.mxu0
        %v6041 = vadd.f32 0.0, %v6040
        %6042 = vmatmul.bf16.gmra.mxu0 %v4944
        %v6043 = vpop.f32.mrf.mxu0
        %v6044 = vadd.f32 0.0, %v6043
        %v6045 = vpop.f32.mrf.mxu0
        %v6046 = vadd.f32 0.0, %v6045
        %6047 = vmatmul.bf16.gmra.mxu0 %v4953
        %v6048 = vpop.f32.mrf.mxu0
        %v6049 = vadd.f32 0.0, %v6048
        %v6050 = vpop.f32.mrf.mxu0
        %v6051 = vadd.f32 0.0, %v6050
        %6052 = vmatmul.bf16.gmra.mxu0 %v4962
        %v6053 = vpop.f32.mrf.mxu0
        %v6054 = vadd.f32 0.0, %v6053
        %v6055 = vpop.f32.mrf.mxu0
        %v6056 = vadd.f32 0.0, %v6055
        %6057 = vmatmul.bf16.gmra.mxu0 %v4971
        %v6058 = vpop.f32.mrf.mxu0
        %v6059 = vadd.f32 0.0, %v6058
        %v6060 = vpop.f32.mrf.mxu0
        %v6061 = vadd.f32 0.0, %v6060
        %6062 = vmatmul.bf16.gmra.mxu0 %v4980
        %v6063 = vpop.f32.mrf.mxu0
        %v6064 = vadd.f32 0.0, %v6063
        %v6065 = vpop.f32.mrf.mxu0
        %v6066 = vadd.f32 0.0, %v6065
        %6067 = vmatmul.bf16.gmra.mxu0 %v4989
        %v6068 = vpop.f32.mrf.mxu0
        %v6069 = vadd.f32 0.0, %v6068
        %v6070 = vpop.f32.mrf.mxu0
        %v6071 = vadd.f32 0.0, %v6070
        %6072 = vmatmul.bf16.gmra.mxu0 %v4998
        %v6073 = vpop.f32.mrf.mxu0
        %v6074 = vadd.f32 0.0, %v6073
        %v6075 = vpop.f32.mrf.mxu0
        %v6076 = vadd.f32 0.0, %v6075
        %6077 = vmatmul.bf16.gmra.mxu0 %v5007
        %v6078 = vpop.f32.mrf.mxu0
        %v6079 = vadd.f32 0.0, %v6078
        %v6080 = vpop.f32.mrf.mxu0
        %v6081 = vadd.f32 0.0, %v6080
        %6082 = vmatmul.bf16.gmra.mxu0 %v5016
        %v6083 = vpop.f32.mrf.mxu0
        %v6084 = vadd.f32 0.0, %v6083
        %v6085 = vpop.f32.mrf.mxu0
        %v6086 = vadd.f32 0.0, %v6085
        %6087 = vmatmul.bf16.gmra.mxu0 %v5025
        %v6088 = vpop.f32.mrf.mxu0
        %v6089 = vadd.f32 0.0, %v6088
        %v6090 = vpop.f32.mrf.mxu0
        %v6091 = vadd.f32 0.0, %v6090
        %6092 = vmatmul.bf16.gmra.mxu0 %v5034
        %v6093 = vpop.f32.mrf.mxu0
        %v6094 = vadd.f32 0.0, %v6093
        %v6095 = vpop.f32.mrf.mxu0
        %v6096 = vadd.f32 0.0, %v6095
        %6097 = vmatmul.bf16.gmra.mxu0 %v5043
        %v6098 = vpop.f32.mrf.mxu0
        %v6099 = vadd.f32 0.0, %v6098
        %v6100 = vpop.f32.mrf.mxu0
        %v6101 = vadd.f32 0.0, %v6100
        %6102 = vmatmul.bf16.gmra.mxu0 %v5052
        %v6103 = vpop.f32.mrf.mxu0
        %v6104 = vadd.f32 0.0, %v6103
        %v6105 = vpop.f32.mrf.mxu0
        %v6106 = vadd.f32 0.0, %v6105
        %6107 = vmatmul.bf16.gmra.mxu0 %v5061
        %v6108 = vpop.f32.mrf.mxu0
        %v6109 = vadd.f32 0.0, %v6108
        %v6110 = vpop.f32.mrf.mxu0
        %v6111 = vadd.f32 0.0, %v6110
        %6112 = vmatmul.bf16.gmra.mxu0 %v5070
        %v6113 = vpop.f32.mrf.mxu0
        %v6114 = vadd.f32 0.0, %v6113
        %v6115 = vpop.f32.mrf.mxu0
        %v6116 = vadd.f32 0.0, %v6115
        %6117 = vmatmul.bf16.gmra.mxu0 %v5079
        %v6118 = vpop.f32.mrf.mxu0
        %v6119 = vadd.f32 0.0, %v6118
        %v6120 = vpop.f32.mrf.mxu0
        %v6121 = vadd.f32 0.0, %v6120
        %6122 = vmatmul.bf16.gmra.mxu0 %v5088
        %v6123 = vpop.f32.mrf.mxu0
        %v6124 = vadd.f32 0.0, %v6123
        %v6125 = vpop.f32.mrf.mxu0
        %v6126 = vadd.f32 0.0, %v6125
        %6127 = vmatmul.bf16.gmra.mxu0 %v5097
        %v6128 = vpop.f32.mrf.mxu0
        %v6129 = vadd.f32 0.0, %v6128
        %v6130 = vpop.f32.mrf.mxu0
        %v6131 = vadd.f32 0.0, %v6130
        %6132 = vmatmul.bf16.gmra.mxu0 %v5106
        %v6133 = vpop.f32.mrf.mxu0
        %v6134 = vadd.f32 0.0, %v6133
        %v6135 = vpop.f32.mrf.mxu0
        %6136 = vdwg.mxu0
        %6137 = vmatpush.bf16.msra.mxu0 %v5766
        %6138 = vmatpush.bf16.msra.mxu0 %v5764
        %6139 = vmatpush.bf16.msra.mxu0 %v5762
        %6140 = vmatpush.bf16.msra.mxu0 %v5760
        %6141 = vmatpush.bf16.msra.mxu0 %v5758
        %6142 = vmatpush.bf16.msra.mxu0 %v5756
        %6143 = vmatpush.bf16.msra.mxu0 %v5754
        %6144 = vmatpush.bf16.msra.mxu0 %v5752
        %6145 = vmatmul.bf16.gmra.mxu0 %v4927
        %v6146 = vpop.f32.mrf.mxu0
        %v6147 = vadd.f32 %v6034, %v6146
        %v6148 = vpop.f32.mrf.mxu0
        %v6149 = vadd.f32 %v6036, %v6148
        %6150 = vmatmul.bf16.gmra.mxu0 %v4936
        %v6151 = vpop.f32.mrf.mxu0
        %v6152 = vadd.f32 %v6039, %v6151
        %v6153 = vpop.f32.mrf.mxu0
        %v6154 = vadd.f32 %v6041, %v6153
        %6155 = vmatmul.bf16.gmra.mxu0 %v4945
        %v6156 = vpop.f32.mrf.mxu0
        %v6157 = vadd.f32 %v6044, %v6156
        %v6158 = vpop.f32.mrf.mxu0
        %v6159 = vadd.f32 %v6046, %v6158
        %6160 = vmatmul.bf16.gmra.mxu0 %v4954
        %v6161 = vpop.f32.mrf.mxu0
        %v6162 = vadd.f32 %v6049, %v6161
        %v6163 = vpop.f32.mrf.mxu0
        %v6164 = vadd.f32 %v6051, %v6163
        %6165 = vmatmul.bf16.gmra.mxu0 %v4963
        %v6166 = vpop.f32.mrf.mxu0
        %v6167 = vadd.f32 %v6054, %v6166
        %v6168 = vpop.f32.mrf.mxu0
        %v6169 = vadd.f32 %v6056, %v6168
        %6170 = vmatmul.bf16.gmra.mxu0 %v4972
        %v6171 = vpop.f32.mrf.mxu0
        %v6172 = vadd.f32 %v6059, %v6171
        %v6173 = vpop.f32.mrf.mxu0
        %v6174 = vadd.f32 %v6061, %v6173
        %6175 = vmatmul.bf16.gmra.mxu0 %v4981
        %v6176 = vpop.f32.mrf.mxu0
        %v6177 = vadd.f32 %v6064, %v6176
        %v6178 = vpop.f32.mrf.mxu0
        %v6179 = vadd.f32 %v6066, %v6178
        %6180 = vmatmul.bf16.gmra.mxu0 %v4990
        %v6181 = vpop.f32.mrf.mxu0
        %v6182 = vadd.f32 %v6069, %v6181
        %v6183 = vpop.f32.mrf.mxu0
        %v6184 = vadd.f32 %v6071, %v6183
        %6185 = vmatmul.bf16.gmra.mxu0 %v4999
        %v6186 = vpop.f32.mrf.mxu0
        %v6187 = vadd.f32 %v6074, %v6186
        %v6188 = vpop.f32.mrf.mxu0
        %v6189 = vadd.f32 %v6076, %v6188
        %6190 = vmatmul.bf16.gmra.mxu0 %v5008
        %v6191 = vpop.f32.mrf.mxu0
        %v6192 = vadd.f32 %v6079, %v6191
        %v6193 = vpop.f32.mrf.mxu0
        %v6194 = vadd.f32 %v6081, %v6193
        %6195 = vmatmul.bf16.gmra.mxu0 %v5017
        %v6196 = vpop.f32.mrf.mxu0
        %v6197 = vadd.f32 %v6084, %v6196
        %v6198 = vpop.f32.mrf.mxu0
        %v6199 = vadd.f32 %v6086, %v6198
        %6200 = vmatmul.bf16.gmra.mxu0 %v5026
        %v6201 = vpop.f32.mrf.mxu0
        %v6202 = vadd.f32 %v6089, %v6201
        %v6203 = vpop.f32.mrf.mxu0
        %v6204 = vadd.f32 %v6091, %v6203
        %6205 = vmatmul.bf16.gmra.mxu0 %v5035
        %v6206 = vpop.f32.mrf.mxu0
        %v6207 = vadd.f32 %v6094, %v6206
        %v6208 = vpop.f32.mrf.mxu0
        %v6209 = vadd.f32 %v6096, %v6208
        %6210 = vmatmul.bf16.gmra.mxu0 %v5044
        %v6211 = vpop.f32.mrf.mxu0
        %v6212 = vadd.f32 %v6099, %v6211
        %v6213 = vpop.f32.mrf.mxu0
        %v6214 = vadd.f32 %v6101, %v6213
        %6215 = vmatmul.bf16.gmra.mxu0 %v5053
        %v6216 = vpop.f32.mrf.mxu0
        %v6217 = vadd.f32 %v6104, %v6216
        %v6218 = vpop.f32.mrf.mxu0
        %v6219 = vadd.f32 %v6106, %v6218
        %6220 = vmatmul.bf16.gmra.mxu0 %v5062
        %v6221 = vpop.f32.mrf.mxu0
        %v6222 = vadd.f32 %v6109, %v6221
        %v6223 = vpop.f32.mrf.mxu0
        %v6224 = vadd.f32 %v6111, %v6223
        %6225 = vmatmul.bf16.gmra.mxu0 %v5071
        %v6226 = vpop.f32.mrf.mxu0
        %v6227 = vadd.f32 %v6114, %v6226
        %v6228 = vpop.f32.mrf.mxu0
        %v6229 = vadd.f32 %v6116, %v6228
        %6230 = vmatmul.bf16.gmra.mxu0 %v5080
        %v6231 = vpop.f32.mrf.mxu0
        %v6232 = vadd.f32 %v6119, %v6231
        %v6233 = vpop.f32.mrf.mxu0
        %v6234 = vadd.f32 %v6121, %v6233
        %6235 = vmatmul.bf16.gmra.mxu0 %v5089
        %v6236 = vpop.f32.mrf.mxu0
        %v6237 = vadd.f32 %v6124, %v6236
        %v6238 = vpop.f32.mrf.mxu0
        %v6239 = vadd.f32 %v6126, %v6238
        %6240 = vmatmul.bf16.gmra.mxu0 %v5098
        %v6241 = vpop.f32.mrf.mxu0
        %v6242 = vadd.f32 %v6129, %v6241
        %v6243 = vpop.f32.mrf.mxu0
        %v6244 = vadd.f32 %v6131, %v6243
        %6245 = vmatmul.bf16.gmra.mxu0 %v5107
        %v6246 = vpop.f32.mrf.mxu0
        %v6247 = vadd.f32 %v6134, %v6246
        %v6248 = vpop.f32.mrf.mxu0
        %6249 = vdwg.mxu0
        %6250 = vmatpush.bf16.msra.mxu0 %v5782
        %6251 = vmatpush.bf16.msra.mxu0 %v5780
        %6252 = vmatpush.bf16.msra.mxu0 %v5778
        %6253 = vmatpush.bf16.msra.mxu0 %v5776
        %6254 = vmatpush.bf16.msra.mxu0 %v5774
        %6255 = vmatpush.bf16.msra.mxu0 %v5772
        %6256 = vmatpush.bf16.msra.mxu0 %v5770
        %6257 = vmatpush.bf16.msra.mxu0 %v5768
        %6258 = vmatmul.bf16.gmra.mxu0 %v4928
        %v6259 = vpop.f32.mrf.mxu0
        %v6260 = vadd.f32 %v6147, %v6259
        %v6261 = vpop.f32.mrf.mxu0
        %v6262 = vadd.f32 %v6149, %v6261
        %6263 = vmatmul.bf16.gmra.mxu0 %v4937
        %v6264 = vpop.f32.mrf.mxu0
        %v6265 = vadd.f32 %v6152, %v6264
        %v6266 = vpop.f32.mrf.mxu0
        %v6267 = vadd.f32 %v6154, %v6266
        %6268 = vmatmul.bf16.gmra.mxu0 %v4946
        %v6269 = vpop.f32.mrf.mxu0
        %v6270 = vadd.f32 %v6157, %v6269
        %v6271 = vpop.f32.mrf.mxu0
        %v6272 = vadd.f32 %v6159, %v6271
        %6273 = vmatmul.bf16.gmra.mxu0 %v4955
        %v6274 = vpop.f32.mrf.mxu0
        %v6275 = vadd.f32 %v6162, %v6274
        %v6276 = vpop.f32.mrf.mxu0
        %v6277 = vadd.f32 %v6164, %v6276
        %6278 = vmatmul.bf16.gmra.mxu0 %v4964
        %v6279 = vpop.f32.mrf.mxu0
        %v6280 = vadd.f32 %v6167, %v6279
        %v6281 = vpop.f32.mrf.mxu0
        %v6282 = vadd.f32 %v6169, %v6281
        %6283 = vmatmul.bf16.gmra.mxu0 %v4973
        %v6284 = vpop.f32.mrf.mxu0
        %v6285 = vadd.f32 %v6172, %v6284
        %v6286 = vpop.f32.mrf.mxu0
        %v6287 = vadd.f32 %v6174, %v6286
        %6288 = vmatmul.bf16.gmra.mxu0 %v4982
        %v6289 = vpop.f32.mrf.mxu0
        %v6290 = vadd.f32 %v6177, %v6289
        %v6291 = vpop.f32.mrf.mxu0
        %v6292 = vadd.f32 %v6179, %v6291
        %6293 = vmatmul.bf16.gmra.mxu0 %v4991
        %v6294 = vpop.f32.mrf.mxu0
        %v6295 = vadd.f32 %v6182, %v6294
        %v6296 = vpop.f32.mrf.mxu0
        %v6297 = vadd.f32 %v6184, %v6296
        %6298 = vmatmul.bf16.gmra.mxu0 %v5000
        %v6299 = vpop.f32.mrf.mxu0
        %v6300 = vadd.f32 %v6187, %v6299
        %v6301 = vpop.f32.mrf.mxu0
        %v6302 = vadd.f32 %v6189, %v6301
        %6303 = vmatmul.bf16.gmra.mxu0 %v5009
        %v6304 = vpop.f32.mrf.mxu0
        %v6305 = vadd.f32 %v6192, %v6304
        %v6306 = vpop.f32.mrf.mxu0
        %v6307 = vadd.f32 %v6194, %v6306
        %6308 = vmatmul.bf16.gmra.mxu0 %v5018
        %v6309 = vpop.f32.mrf.mxu0
        %v6310 = vadd.f32 %v6197, %v6309
        %v6311 = vpop.f32.mrf.mxu0
        %v6312 = vadd.f32 %v6199, %v6311
        %6313 = vmatmul.bf16.gmra.mxu0 %v5027
        %v6314 = vpop.f32.mrf.mxu0
        %v6315 = vadd.f32 %v6202, %v6314
        %v6316 = vpop.f32.mrf.mxu0
        %v6317 = vadd.f32 %v6204, %v6316
        %6318 = vmatmul.bf16.gmra.mxu0 %v5036
        %v6319 = vpop.f32.mrf.mxu0
        %v6320 = vadd.f32 %v6207, %v6319
        %v6321 = vpop.f32.mrf.mxu0
        %v6322 = vadd.f32 %v6209, %v6321
        %6323 = vmatmul.bf16.gmra.mxu0 %v5045
        %v6324 = vpop.f32.mrf.mxu0
        %v6325 = vadd.f32 %v6212, %v6324
        %v6326 = vpop.f32.mrf.mxu0
        %v6327 = vadd.f32 %v6214, %v6326
        %6328 = vmatmul.bf16.gmra.mxu0 %v5054
        %v6329 = vpop.f32.mrf.mxu0
        %v6330 = vadd.f32 %v6217, %v6329
        %v6331 = vpop.f32.mrf.mxu0
        %v6332 = vadd.f32 %v6219, %v6331
        %6333 = vmatmul.bf16.gmra.mxu0 %v5063
        %v6334 = vpop.f32.mrf.mxu0
        %v6335 = vadd.f32 %v6222, %v6334
        %v6336 = vpop.f32.mrf.mxu0
        %v6337 = vadd.f32 %v6224, %v6336
        %6338 = vmatmul.bf16.gmra.mxu0 %v5072
        %v6339 = vpop.f32.mrf.mxu0
        %v6340 = vadd.f32 %v6227, %v6339
        %v6341 = vpop.f32.mrf.mxu0
        %v6342 = vadd.f32 %v6229, %v6341
        %6343 = vmatmul.bf16.gmra.mxu0 %v5081
        %v6344 = vpop.f32.mrf.mxu0
        %v6345 = vadd.f32 %v6232, %v6344
        %v6346 = vpop.f32.mrf.mxu0
        %v6347 = vadd.f32 %v6234, %v6346
        %6348 = vmatmul.bf16.gmra.mxu0 %v5090
        %v6349 = vpop.f32.mrf.mxu0
        %v6350 = vadd.f32 %v6237, %v6349
        %v6351 = vpop.f32.mrf.mxu0
        %v6352 = vadd.f32 %v6239, %v6351
        %6353 = vmatmul.bf16.gmra.mxu0 %v5099
        %v6354 = vpop.f32.mrf.mxu0
        %v6355 = vadd.f32 %v6242, %v6354
        %v6356 = vpop.f32.mrf.mxu0
        %v6357 = vadd.f32 %v6244, %v6356
        %6358 = vmatmul.bf16.gmra.mxu0 %v5108
        %v6359 = vpop.f32.mrf.mxu0
        %v6360 = vadd.f32 %v6247, %v6359
        %v6361 = vpop.f32.mrf.mxu0
        %6362 = vdwg.mxu0
        %6363 = vmatpush.bf16.msra.mxu0 %v5798
        %6364 = vmatpush.bf16.msra.mxu0 %v5796
        %6365 = vmatpush.bf16.msra.mxu0 %v5794
        %6366 = vmatpush.bf16.msra.mxu0 %v5792
        %6367 = vmatpush.bf16.msra.mxu0 %v5790
        %6368 = vmatpush.bf16.msra.mxu0 %v5788
        %6369 = vmatpush.bf16.msra.mxu0 %v5786
        %6370 = vmatpush.bf16.msra.mxu0 %v5784
        %6371 = vmatmul.bf16.gmra.mxu0 %v4929
        %v6372 = vpop.f32.mrf.mxu0
        %v6373 = vadd.f32 %v6260, %v6372
        %v6374 = vpop.f32.mrf.mxu0
        %v6375 = vadd.f32 %v6262, %v6374
        %6376 = vmatmul.bf16.gmra.mxu0 %v4938
        %v6377 = vpop.f32.mrf.mxu0
        %v6378 = vadd.f32 %v6265, %v6377
        %v6379 = vpop.f32.mrf.mxu0
        %v6380 = vadd.f32 %v6267, %v6379
        %6381 = vmatmul.bf16.gmra.mxu0 %v4947
        %v6382 = vpop.f32.mrf.mxu0
        %v6383 = vadd.f32 %v6270, %v6382
        %v6384 = vpop.f32.mrf.mxu0
        %v6385 = vadd.f32 %v6272, %v6384
        %6386 = vmatmul.bf16.gmra.mxu0 %v4956
        %v6387 = vpop.f32.mrf.mxu0
        %v6388 = vadd.f32 %v6275, %v6387
        %v6389 = vpop.f32.mrf.mxu0
        %v6390 = vadd.f32 %v6277, %v6389
        %6391 = vmatmul.bf16.gmra.mxu0 %v4965
        %v6392 = vpop.f32.mrf.mxu0
        %v6393 = vadd.f32 %v6280, %v6392
        %v6394 = vpop.f32.mrf.mxu0
        %v6395 = vadd.f32 %v6282, %v6394
        %6396 = vmatmul.bf16.gmra.mxu0 %v4974
        %v6397 = vpop.f32.mrf.mxu0
        %v6398 = vadd.f32 %v6285, %v6397
        %v6399 = vpop.f32.mrf.mxu0
        %v6400 = vadd.f32 %v6287, %v6399
        %6401 = vmatmul.bf16.gmra.mxu0 %v4983
        %v6402 = vpop.f32.mrf.mxu0
        %v6403 = vadd.f32 %v6290, %v6402
        %v6404 = vpop.f32.mrf.mxu0
        %v6405 = vadd.f32 %v6292, %v6404
        %6406 = vmatmul.bf16.gmra.mxu0 %v4992
        %v6407 = vpop.f32.mrf.mxu0
        %v6408 = vadd.f32 %v6295, %v6407
        %v6409 = vpop.f32.mrf.mxu0
        %v6410 = vadd.f32 %v6297, %v6409
        %6411 = vmatmul.bf16.gmra.mxu0 %v5001
        %v6412 = vpop.f32.mrf.mxu0
        %v6413 = vadd.f32 %v6300, %v6412
        %v6414 = vpop.f32.mrf.mxu0
        %v6415 = vadd.f32 %v6302, %v6414
        %6416 = vmatmul.bf16.gmra.mxu0 %v5010
        %v6417 = vpop.f32.mrf.mxu0
        %v6418 = vadd.f32 %v6305, %v6417
        %v6419 = vpop.f32.mrf.mxu0
        %v6420 = vadd.f32 %v6307, %v6419
        %6421 = vmatmul.bf16.gmra.mxu0 %v5019
        %v6422 = vpop.f32.mrf.mxu0
        %v6423 = vadd.f32 %v6310, %v6422
        %v6424 = vpop.f32.mrf.mxu0
        %v6425 = vadd.f32 %v6312, %v6424
        %6426 = vmatmul.bf16.gmra.mxu0 %v5028
        %v6427 = vpop.f32.mrf.mxu0
        %v6428 = vadd.f32 %v6315, %v6427
        %v6429 = vpop.f32.mrf.mxu0
        %v6430 = vadd.f32 %v6317, %v6429
        %6431 = vmatmul.bf16.gmra.mxu0 %v5037
        %v6432 = vpop.f32.mrf.mxu0
        %v6433 = vadd.f32 %v6320, %v6432
        %v6434 = vpop.f32.mrf.mxu0
        %v6435 = vadd.f32 %v6322, %v6434
        %6436 = vmatmul.bf16.gmra.mxu0 %v5046
        %v6437 = vpop.f32.mrf.mxu0
        %v6438 = vadd.f32 %v6325, %v6437
        %v6439 = vpop.f32.mrf.mxu0
        %v6440 = vadd.f32 %v6327, %v6439
        %6441 = vmatmul.bf16.gmra.mxu0 %v5055
        %v6442 = vpop.f32.mrf.mxu0
        %v6443 = vadd.f32 %v6330, %v6442
        %v6444 = vpop.f32.mrf.mxu0
        %v6445 = vadd.f32 %v6332, %v6444
        %6446 = vmatmul.bf16.gmra.mxu0 %v5064
        %v6447 = vpop.f32.mrf.mxu0
        %v6448 = vadd.f32 %v6335, %v6447
        %v6449 = vpop.f32.mrf.mxu0
        %v6450 = vadd.f32 %v6337, %v6449
        %6451 = vmatmul.bf16.gmra.mxu0 %v5073
        %v6452 = vpop.f32.mrf.mxu0
        %v6453 = vadd.f32 %v6340, %v6452
        %v6454 = vpop.f32.mrf.mxu0
        %v6455 = vadd.f32 %v6342, %v6454
        %6456 = vmatmul.bf16.gmra.mxu0 %v5082
        %v6457 = vpop.f32.mrf.mxu0
        %v6458 = vadd.f32 %v6345, %v6457
        %v6459 = vpop.f32.mrf.mxu0
        %v6460 = vadd.f32 %v6347, %v6459
        %6461 = vmatmul.bf16.gmra.mxu0 %v5091
        %v6462 = vpop.f32.mrf.mxu0
        %v6463 = vadd.f32 %v6350, %v6462
        %v6464 = vpop.f32.mrf.mxu0
        %v6465 = vadd.f32 %v6352, %v6464
        %6466 = vmatmul.bf16.gmra.mxu0 %v5100
        %v6467 = vpop.f32.mrf.mxu0
        %v6468 = vadd.f32 %v6355, %v6467
        %v6469 = vpop.f32.mrf.mxu0
        %v6470 = vadd.f32 %v6357, %v6469
        %6471 = vmatmul.bf16.gmra.mxu0 %v5109
        %v6472 = vpop.f32.mrf.mxu0
        %v6473 = vadd.f32 %v6360, %v6472
        %v6474 = vpop.f32.mrf.mxu0
        %6475 = vdwg.mxu0
        %6476 = vmatpush.bf16.msra.mxu0 %v5814
        %6477 = vmatpush.bf16.msra.mxu0 %v5812
        %6478 = vmatpush.bf16.msra.mxu0 %v5810
        %6479 = vmatpush.bf16.msra.mxu0 %v5808
        %6480 = vmatpush.bf16.msra.mxu0 %v5806
        %6481 = vmatpush.bf16.msra.mxu0 %v5804
        %6482 = vmatpush.bf16.msra.mxu0 %v5802
        %6483 = vmatpush.bf16.msra.mxu0 %v5800
        %6484 = vmatmul.bf16.gmra.mxu0 %v4930
        %v6485 = vpop.f32.mrf.mxu0
        %v6486 = vadd.f32 %v6373, %v6485
        %v6487 = vpop.f32.mrf.mxu0
        %v6488 = vadd.f32 %v6375, %v6487
        %6489 = vmatmul.bf16.gmra.mxu0 %v4939
        %v6490 = vpop.f32.mrf.mxu0
        %v6491 = vadd.f32 %v6378, %v6490
        %v6492 = vpop.f32.mrf.mxu0
        %v6493 = vadd.f32 %v6380, %v6492
        %6494 = vmatmul.bf16.gmra.mxu0 %v4948
        %v6495 = vpop.f32.mrf.mxu0
        %v6496 = vadd.f32 %v6383, %v6495
        %v6497 = vpop.f32.mrf.mxu0
        %v6498 = vadd.f32 %v6385, %v6497
        %6499 = vmatmul.bf16.gmra.mxu0 %v4957
        %v6500 = vpop.f32.mrf.mxu0
        %v6501 = vadd.f32 %v6388, %v6500
        %v6502 = vpop.f32.mrf.mxu0
        %v6503 = vadd.f32 %v6390, %v6502
        %6504 = vmatmul.bf16.gmra.mxu0 %v4966
        %v6505 = vpop.f32.mrf.mxu0
        %v6506 = vadd.f32 %v6393, %v6505
        %v6507 = vpop.f32.mrf.mxu0
        %v6508 = vadd.f32 %v6395, %v6507
        %6509 = vmatmul.bf16.gmra.mxu0 %v4975
        %v6510 = vpop.f32.mrf.mxu0
        %v6511 = vadd.f32 %v6398, %v6510
        %v6512 = vpop.f32.mrf.mxu0
        %v6513 = vadd.f32 %v6400, %v6512
        %6514 = vmatmul.bf16.gmra.mxu0 %v4984
        %v6515 = vpop.f32.mrf.mxu0
        %v6516 = vadd.f32 %v6403, %v6515
        %v6517 = vpop.f32.mrf.mxu0
        %v6518 = vadd.f32 %v6405, %v6517
        %6519 = vmatmul.bf16.gmra.mxu0 %v4993
        %v6520 = vpop.f32.mrf.mxu0
        %v6521 = vadd.f32 %v6408, %v6520
        %v6522 = vpop.f32.mrf.mxu0
        %v6523 = vadd.f32 %v6410, %v6522
        %6524 = vmatmul.bf16.gmra.mxu0 %v5002
        %v6525 = vpop.f32.mrf.mxu0
        %v6526 = vadd.f32 %v6413, %v6525
        %v6527 = vpop.f32.mrf.mxu0
        %v6528 = vadd.f32 %v6415, %v6527
        %6529 = vmatmul.bf16.gmra.mxu0 %v5011
        %v6530 = vpop.f32.mrf.mxu0
        %v6531 = vadd.f32 %v6418, %v6530
        %v6532 = vpop.f32.mrf.mxu0
        %v6533 = vadd.f32 %v6420, %v6532
        %6534 = vmatmul.bf16.gmra.mxu0 %v5020
        %v6535 = vpop.f32.mrf.mxu0
        %v6536 = vadd.f32 %v6423, %v6535
        %v6537 = vpop.f32.mrf.mxu0
        %v6538 = vadd.f32 %v6425, %v6537
        %6539 = vmatmul.bf16.gmra.mxu0 %v5029
        %v6540 = vpop.f32.mrf.mxu0
        %v6541 = vadd.f32 %v6428, %v6540
        %v6542 = vpop.f32.mrf.mxu0
        %v6543 = vadd.f32 %v6430, %v6542
        %6544 = vmatmul.bf16.gmra.mxu0 %v5038
        %v6545 = vpop.f32.mrf.mxu0
        %v6546 = vadd.f32 %v6433, %v6545
        %v6547 = vpop.f32.mrf.mxu0
        %v6548 = vadd.f32 %v6435, %v6547
        %6549 = vmatmul.bf16.gmra.mxu0 %v5047
        %v6550 = vpop.f32.mrf.mxu0
        %v6551 = vadd.f32 %v6438, %v6550
        %v6552 = vpop.f32.mrf.mxu0
        %v6553 = vadd.f32 %v6440, %v6552
        %6554 = vmatmul.bf16.gmra.mxu0 %v5056
        %v6555 = vpop.f32.mrf.mxu0
        %v6556 = vadd.f32 %v6443, %v6555
        %v6557 = vpop.f32.mrf.mxu0
        %v6558 = vadd.f32 %v6445, %v6557
        %6559 = vmatmul.bf16.gmra.mxu0 %v5065
        %v6560 = vpop.f32.mrf.mxu0
        %v6561 = vadd.f32 %v6448, %v6560
        %v6562 = vpop.f32.mrf.mxu0
        %v6563 = vadd.f32 %v6450, %v6562
        %6564 = vmatmul.bf16.gmra.mxu0 %v5074
        %v6565 = vpop.f32.mrf.mxu0
        %v6566 = vadd.f32 %v6453, %v6565
        %v6567 = vpop.f32.mrf.mxu0
        %v6568 = vadd.f32 %v6455, %v6567
        %6569 = vmatmul.bf16.gmra.mxu0 %v5083
        %v6570 = vpop.f32.mrf.mxu0
        %v6571 = vadd.f32 %v6458, %v6570
        %v6572 = vpop.f32.mrf.mxu0
        %v6573 = vadd.f32 %v6460, %v6572
        %6574 = vmatmul.bf16.gmra.mxu0 %v5092
        %v6575 = vpop.f32.mrf.mxu0
        %v6576 = vadd.f32 %v6463, %v6575
        %v6577 = vpop.f32.mrf.mxu0
        %v6578 = vadd.f32 %v6465, %v6577
        %6579 = vmatmul.bf16.gmra.mxu0 %v5101
        %v6580 = vpop.f32.mrf.mxu0
        %v6581 = vadd.f32 %v6468, %v6580
        %v6582 = vpop.f32.mrf.mxu0
        %v6583 = vadd.f32 %v6470, %v6582
        %6584 = vmatmul.bf16.gmra.mxu0 %v5110
        %v6585 = vpop.f32.mrf.mxu0
        %v6586 = vadd.f32 %v6473, %v6585
        %v6587 = vpop.f32.mrf.mxu0
        %6588 = vdwg.mxu0
        %6589 = vmatpush.bf16.msra.mxu0 %v5830
        %6590 = vmatpush.bf16.msra.mxu0 %v5828
        %6591 = vmatpush.bf16.msra.mxu0 %v5826
        %6592 = vmatpush.bf16.msra.mxu0 %v5824
        %6593 = vmatpush.bf16.msra.mxu0 %v5822
        %6594 = vmatpush.bf16.msra.mxu0 %v5820
        %6595 = vmatpush.bf16.msra.mxu0 %v5818
        %6596 = vmatpush.bf16.msra.mxu0 %v5816
        %6597 = vmatmul.bf16.gmra.mxu0 %v4931
        %v6598 = vpop.f32.mrf.mxu0
        %v6599 = vadd.f32 %v6486, %v6598
        %v6600 = vpop.f32.mrf.mxu0
        %v6601 = vadd.f32 %v6488, %v6600
        %6602 = vmatmul.bf16.gmra.mxu0 %v4940
        %v6603 = vpop.f32.mrf.mxu0
        %v6604 = vadd.f32 %v6491, %v6603
        %v6605 = vpop.f32.mrf.mxu0
        %v6606 = vadd.f32 %v6493, %v6605
        %6607 = vmatmul.bf16.gmra.mxu0 %v4949
        %v6608 = vpop.f32.mrf.mxu0
        %v6609 = vadd.f32 %v6496, %v6608
        %v6610 = vpop.f32.mrf.mxu0
        %v6611 = vadd.f32 %v6498, %v6610
        %6612 = vmatmul.bf16.gmra.mxu0 %v4958
        %v6613 = vpop.f32.mrf.mxu0
        %v6614 = vadd.f32 %v6501, %v6613
        %v6615 = vpop.f32.mrf.mxu0
        %v6616 = vadd.f32 %v6503, %v6615
        %6617 = vmatmul.bf16.gmra.mxu0 %v4967
        %v6618 = vpop.f32.mrf.mxu0
        %v6619 = vadd.f32 %v6506, %v6618
        %v6620 = vpop.f32.mrf.mxu0
        %v6621 = vadd.f32 %v6508, %v6620
        %6622 = vmatmul.bf16.gmra.mxu0 %v4976
        %v6623 = vpop.f32.mrf.mxu0
        %v6624 = vadd.f32 %v6511, %v6623
        %v6625 = vpop.f32.mrf.mxu0
        %v6626 = vadd.f32 %v6513, %v6625
        %6627 = vmatmul.bf16.gmra.mxu0 %v4985
        %v6628 = vpop.f32.mrf.mxu0
        %v6629 = vadd.f32 %v6516, %v6628
        %v6630 = vpop.f32.mrf.mxu0
        %v6631 = vadd.f32 %v6518, %v6630
        %6632 = vmatmul.bf16.gmra.mxu0 %v4994
        %v6633 = vpop.f32.mrf.mxu0
        %v6634 = vadd.f32 %v6521, %v6633
        %v6635 = vpop.f32.mrf.mxu0
        %v6636 = vadd.f32 %v6523, %v6635
        %6637 = vmatmul.bf16.gmra.mxu0 %v5003
        %v6638 = vpop.f32.mrf.mxu0
        %v6639 = vadd.f32 %v6526, %v6638
        %v6640 = vpop.f32.mrf.mxu0
        %v6641 = vadd.f32 %v6528, %v6640
        %6642 = vmatmul.bf16.gmra.mxu0 %v5012
        %v6643 = vpop.f32.mrf.mxu0
        %v6644 = vadd.f32 %v6531, %v6643
        %v6645 = vpop.f32.mrf.mxu0
        %v6646 = vadd.f32 %v6533, %v6645
        %6647 = vmatmul.bf16.gmra.mxu0 %v5021
        %v6648 = vpop.f32.mrf.mxu0
        %v6649 = vadd.f32 %v6536, %v6648
        %v6650 = vpop.f32.mrf.mxu0
        %v6651 = vadd.f32 %v6538, %v6650
        %6652 = vmatmul.bf16.gmra.mxu0 %v5030
        %v6653 = vpop.f32.mrf.mxu0
        %v6654 = vadd.f32 %v6541, %v6653
        %v6655 = vpop.f32.mrf.mxu0
        %v6656 = vadd.f32 %v6543, %v6655
        %6657 = vmatmul.bf16.gmra.mxu0 %v5039
        %v6658 = vpop.f32.mrf.mxu0
        %v6659 = vadd.f32 %v6546, %v6658
        %v6660 = vpop.f32.mrf.mxu0
        %v6661 = vadd.f32 %v6548, %v6660
        %6662 = vmatmul.bf16.gmra.mxu0 %v5048
        %v6663 = vpop.f32.mrf.mxu0
        %v6664 = vadd.f32 %v6551, %v6663
        %v6665 = vpop.f32.mrf.mxu0
        %v6666 = vadd.f32 %v6553, %v6665
        %6667 = vmatmul.bf16.gmra.mxu0 %v5057
        %v6668 = vpop.f32.mrf.mxu0
        %v6669 = vadd.f32 %v6556, %v6668
        %v6670 = vpop.f32.mrf.mxu0
        %v6671 = vadd.f32 %v6558, %v6670
        %6672 = vmatmul.bf16.gmra.mxu0 %v5066
        %v6673 = vpop.f32.mrf.mxu0
        %v6674 = vadd.f32 %v6561, %v6673
        %v6675 = vpop.f32.mrf.mxu0
        %v6676 = vadd.f32 %v6563, %v6675
        %6677 = vmatmul.bf16.gmra.mxu0 %v5075
        %v6678 = vpop.f32.mrf.mxu0
        %v6679 = vadd.f32 %v6566, %v6678
        %v6680 = vpop.f32.mrf.mxu0
        %v6681 = vadd.f32 %v6568, %v6680
        %6682 = vmatmul.bf16.gmra.mxu0 %v5084
        %v6683 = vpop.f32.mrf.mxu0
        %v6684 = vadd.f32 %v6571, %v6683
        %v6685 = vpop.f32.mrf.mxu0
        %v6686 = vadd.f32 %v6573, %v6685
        %6687 = vmatmul.bf16.gmra.mxu0 %v5093
        %v6688 = vpop.f32.mrf.mxu0
        %v6689 = vadd.f32 %v6576, %v6688
        %v6690 = vpop.f32.mrf.mxu0
        %v6691 = vadd.f32 %v6578, %v6690
        %6692 = vmatmul.bf16.gmra.mxu0 %v5102
        %v6693 = vpop.f32.mrf.mxu0
        %v6694 = vadd.f32 %v6581, %v6693
        %v6695 = vpop.f32.mrf.mxu0
        %v6696 = vadd.f32 %v6583, %v6695
        %6697 = vmatmul.bf16.gmra.mxu0 %v5111
        %v6698 = vpop.f32.mrf.mxu0
        %v6699 = vadd.f32 %v6586, %v6698
        %v6700 = vpop.f32.mrf.mxu0
        %6701 = vdwg.mxu0
        %6702 = vmatpush.bf16.msra.mxu0 %v5846
        %6703 = vmatpush.bf16.msra.mxu0 %v5844
        %6704 = vmatpush.bf16.msra.mxu0 %v5842
        %6705 = vmatpush.bf16.msra.mxu0 %v5840
        %6706 = vmatpush.bf16.msra.mxu0 %v5838
        %6707 = vmatpush.bf16.msra.mxu0 %v5836
        %6708 = vmatpush.bf16.msra.mxu0 %v5834
        %6709 = vmatpush.bf16.msra.mxu0 %v5832
        %6710 = vmatmul.bf16.gmra.mxu0 %v4932
        %v6711 = vpop.f32.mrf.mxu0
        %v6712 = vadd.f32 %v6599, %v6711
        %v6713 = vpop.f32.mrf.mxu0
        %v6714 = vadd.f32 %v6601, %v6713
        %6715 = vmatmul.bf16.gmra.mxu0 %v4941
        %v6716 = vpop.f32.mrf.mxu0
        %v6717 = vadd.f32 %v6604, %v6716
        %v6718 = vpop.f32.mrf.mxu0
        %v6719 = vadd.f32 %v6606, %v6718
        %6720 = vmatmul.bf16.gmra.mxu0 %v4950
        %v6721 = vpop.f32.mrf.mxu0
        %v6722 = vadd.f32 %v6609, %v6721
        %v6723 = vpop.f32.mrf.mxu0
        %v6724 = vadd.f32 %v6611, %v6723
        %6725 = vmatmul.bf16.gmra.mxu0 %v4959
        %v6726 = vpop.f32.mrf.mxu0
        %v6727 = vadd.f32 %v6614, %v6726
        %v6728 = vpop.f32.mrf.mxu0
        %v6729 = vadd.f32 %v6616, %v6728
        %6730 = vmatmul.bf16.gmra.mxu0 %v4968
        %v6731 = vpop.f32.mrf.mxu0
        %v6732 = vadd.f32 %v6619, %v6731
        %v6733 = vpop.f32.mrf.mxu0
        %v6734 = vadd.f32 %v6621, %v6733
        %6735 = vmatmul.bf16.gmra.mxu0 %v4977
        %v6736 = vpop.f32.mrf.mxu0
        %v6737 = vadd.f32 %v6624, %v6736
        %v6738 = vpop.f32.mrf.mxu0
        %v6739 = vadd.f32 %v6626, %v6738
        %6740 = vmatmul.bf16.gmra.mxu0 %v4986
        %v6741 = vpop.f32.mrf.mxu0
        %v6742 = vadd.f32 %v6629, %v6741
        %v6743 = vpop.f32.mrf.mxu0
        %v6744 = vadd.f32 %v6631, %v6743
        %6745 = vmatmul.bf16.gmra.mxu0 %v4995
        %v6746 = vpop.f32.mrf.mxu0
        %v6747 = vadd.f32 %v6634, %v6746
        %v6748 = vpop.f32.mrf.mxu0
        %v6749 = vadd.f32 %v6636, %v6748
        %6750 = vmatmul.bf16.gmra.mxu0 %v5004
        %v6751 = vpop.f32.mrf.mxu0
        %v6752 = vadd.f32 %v6639, %v6751
        %v6753 = vpop.f32.mrf.mxu0
        %v6754 = vadd.f32 %v6641, %v6753
        %6755 = vmatmul.bf16.gmra.mxu0 %v5013
        %v6756 = vpop.f32.mrf.mxu0
        %v6757 = vadd.f32 %v6644, %v6756
        %v6758 = vpop.f32.mrf.mxu0
        %v6759 = vadd.f32 %v6646, %v6758
        %6760 = vmatmul.bf16.gmra.mxu0 %v5022
        %v6761 = vpop.f32.mrf.mxu0
        %v6762 = vadd.f32 %v6649, %v6761
        %v6763 = vpop.f32.mrf.mxu0
        %v6764 = vadd.f32 %v6651, %v6763
        %6765 = vmatmul.bf16.gmra.mxu0 %v5031
        %v6766 = vpop.f32.mrf.mxu0
        %v6767 = vadd.f32 %v6654, %v6766
        %v6768 = vpop.f32.mrf.mxu0
        %v6769 = vadd.f32 %v6656, %v6768
        %6770 = vmatmul.bf16.gmra.mxu0 %v5040
        %v6771 = vpop.f32.mrf.mxu0
        %v6772 = vadd.f32 %v6659, %v6771
        %v6773 = vpop.f32.mrf.mxu0
        %v6774 = vadd.f32 %v6661, %v6773
        %6775 = vmatmul.bf16.gmra.mxu0 %v5049
        %v6776 = vpop.f32.mrf.mxu0
        %v6777 = vadd.f32 %v6664, %v6776
        %v6778 = vpop.f32.mrf.mxu0
        %v6779 = vadd.f32 %v6666, %v6778
        %6780 = vmatmul.bf16.gmra.mxu0 %v5058
        %v6781 = vpop.f32.mrf.mxu0
        %v6782 = vadd.f32 %v6669, %v6781
        %v6783 = vpop.f32.mrf.mxu0
        %v6784 = vadd.f32 %v6671, %v6783
        %6785 = vmatmul.bf16.gmra.mxu0 %v5067
        %v6786 = vpop.f32.mrf.mxu0
        %v6787 = vadd.f32 %v6674, %v6786
        %v6788 = vpop.f32.mrf.mxu0
        %v6789 = vadd.f32 %v6676, %v6788
        %6790 = vmatmul.bf16.gmra.mxu0 %v5076
        %v6791 = vpop.f32.mrf.mxu0
        %v6792 = vadd.f32 %v6679, %v6791
        %v6793 = vpop.f32.mrf.mxu0
        %v6794 = vadd.f32 %v6681, %v6793
        %6795 = vmatmul.bf16.gmra.mxu0 %v5085
        %v6796 = vpop.f32.mrf.mxu0
        %v6797 = vadd.f32 %v6684, %v6796
        %v6798 = vpop.f32.mrf.mxu0
        %v6799 = vadd.f32 %v6686, %v6798
        %6800 = vmatmul.bf16.gmra.mxu0 %v5094
        %v6801 = vpop.f32.mrf.mxu0
        %v6802 = vadd.f32 %v6689, %v6801
        %v6803 = vpop.f32.mrf.mxu0
        %v6804 = vadd.f32 %v6691, %v6803
        %6805 = vmatmul.bf16.gmra.mxu0 %v5103
        %v6806 = vpop.f32.mrf.mxu0
        %v6807 = vadd.f32 %v6694, %v6806
        %v6808 = vpop.f32.mrf.mxu0
        %v6809 = vadd.f32 %v6696, %v6808
        %6810 = vmatmul.bf16.gmra.mxu0 %v5112
        %v6811 = vpop.f32.mrf.mxu0
        %v6812 = vadd.f32 %v6699, %v6811
        %v6813 = vpop.f32.mrf.mxu0
        %6814 = vdwg.mxu0
        %6815 = vmatpush.bf16.msra.mxu0 %v5862
        %6816 = vmatpush.bf16.msra.mxu0 %v5860
        %6817 = vmatpush.bf16.msra.mxu0 %v5858
        %6818 = vmatpush.bf16.msra.mxu0 %v5856
        %6819 = vmatpush.bf16.msra.mxu0 %v5854
        %6820 = vmatpush.bf16.msra.mxu0 %v5852
        %6821 = vmatpush.bf16.msra.mxu0 %v5850
        %6822 = vmatpush.bf16.msra.mxu0 %v5848
        %6823 = vmatmul.bf16.gmra.mxu0 %v4933
        %v6824 = vpop.f32.mrf.mxu0
        %v6825 = vadd.f32 %v6712, %v6824
        %v6826 = vpop.f32.mrf.mxu0
        %v6827 = vadd.f32 %v6714, %v6826
        %6828 = vmatmul.bf16.gmra.mxu0 %v4942
        %v6829 = vpop.f32.mrf.mxu0
        %v6830 = vadd.f32 %v6717, %v6829
        %v6831 = vpop.f32.mrf.mxu0
        %v6832 = vadd.f32 %v6719, %v6831
        %6833 = vmatmul.bf16.gmra.mxu0 %v4951
        %v6834 = vpop.f32.mrf.mxu0
        %v6835 = vadd.f32 %v6722, %v6834
        %v6836 = vpop.f32.mrf.mxu0
        %v6837 = vadd.f32 %v6724, %v6836
        %6838 = vmatmul.bf16.gmra.mxu0 %v4960
        %v6839 = vpop.f32.mrf.mxu0
        %v6840 = vadd.f32 %v6727, %v6839
        %v6841 = vpop.f32.mrf.mxu0
        %v6842 = vadd.f32 %v6729, %v6841
        %6843 = vmatmul.bf16.gmra.mxu0 %v4969
        %v6844 = vpop.f32.mrf.mxu0
        %v6845 = vadd.f32 %v6732, %v6844
        %v6846 = vpop.f32.mrf.mxu0
        %v6847 = vadd.f32 %v6734, %v6846
        %6848 = vmatmul.bf16.gmra.mxu0 %v4978
        %v6849 = vpop.f32.mrf.mxu0
        %v6850 = vadd.f32 %v6737, %v6849
        %v6851 = vpop.f32.mrf.mxu0
        %v6852 = vadd.f32 %v6739, %v6851
        %6853 = vmatmul.bf16.gmra.mxu0 %v4987
        %v6854 = vpop.f32.mrf.mxu0
        %v6855 = vadd.f32 %v6742, %v6854
        %v6856 = vpop.f32.mrf.mxu0
        %v6857 = vadd.f32 %v6744, %v6856
        %6858 = vmatmul.bf16.gmra.mxu0 %v4996
        %v6859 = vpop.f32.mrf.mxu0
        %v6860 = vadd.f32 %v6747, %v6859
        %v6861 = vpop.f32.mrf.mxu0
        %v6862 = vadd.f32 %v6749, %v6861
        %6863 = vmatmul.bf16.gmra.mxu0 %v5005
        %v6864 = vpop.f32.mrf.mxu0
        %v6865 = vadd.f32 %v6752, %v6864
        %v6866 = vpop.f32.mrf.mxu0
        %v6867 = vadd.f32 %v6754, %v6866
        %6868 = vmatmul.bf16.gmra.mxu0 %v5014
        %v6869 = vpop.f32.mrf.mxu0
        %v6870 = vadd.f32 %v6757, %v6869
        %v6871 = vpop.f32.mrf.mxu0
        %v6872 = vadd.f32 %v6759, %v6871
        %6873 = vmatmul.bf16.gmra.mxu0 %v5023
        %v6874 = vpop.f32.mrf.mxu0
        %v6875 = vadd.f32 %v6762, %v6874
        %v6876 = vpop.f32.mrf.mxu0
        %v6877 = vadd.f32 %v6764, %v6876
        %6878 = vmatmul.bf16.gmra.mxu0 %v5032
        %v6879 = vpop.f32.mrf.mxu0
        %v6880 = vadd.f32 %v6767, %v6879
        %v6881 = vpop.f32.mrf.mxu0
        %v6882 = vadd.f32 %v6769, %v6881
        %6883 = vmatmul.bf16.gmra.mxu0 %v5041
        %v6884 = vpop.f32.mrf.mxu0
        %v6885 = vadd.f32 %v6772, %v6884
        %v6886 = vpop.f32.mrf.mxu0
        %v6887 = vadd.f32 %v6774, %v6886
        %6888 = vmatmul.bf16.gmra.mxu0 %v5050
        %v6889 = vpop.f32.mrf.mxu0
        %v6890 = vadd.f32 %v6777, %v6889
        %v6891 = vpop.f32.mrf.mxu0
        %v6892 = vadd.f32 %v6779, %v6891
        %6893 = vmatmul.bf16.gmra.mxu0 %v5059
        %v6894 = vpop.f32.mrf.mxu0
        %v6895 = vadd.f32 %v6782, %v6894
        %v6896 = vpop.f32.mrf.mxu0
        %v6897 = vadd.f32 %v6784, %v6896
        %6898 = vmatmul.bf16.gmra.mxu0 %v5068
        %v6899 = vpop.f32.mrf.mxu0
        %v6900 = vadd.f32 %v6787, %v6899
        %v6901 = vpop.f32.mrf.mxu0
        %v6902 = vadd.f32 %v6789, %v6901
        %6903 = vmatmul.bf16.gmra.mxu0 %v5077
        %v6904 = vpop.f32.mrf.mxu0
        %v6905 = vadd.f32 %v6792, %v6904
        %v6906 = vpop.f32.mrf.mxu0
        %v6907 = vadd.f32 %v6794, %v6906
        %6908 = vmatmul.bf16.gmra.mxu0 %v5086
        %v6909 = vpop.f32.mrf.mxu0
        %v6910 = vadd.f32 %v6797, %v6909
        %v6911 = vpop.f32.mrf.mxu0
        %v6912 = vadd.f32 %v6799, %v6911
        %6913 = vmatmul.bf16.gmra.mxu0 %v5095
        %v6914 = vpop.f32.mrf.mxu0
        %v6915 = vadd.f32 %v6802, %v6914
        %v6916 = vpop.f32.mrf.mxu0
        %v6917 = vadd.f32 %v6804, %v6916
        %6918 = vmatmul.bf16.gmra.mxu0 %v5104
        %v6919 = vpop.f32.mrf.mxu0
        %v6920 = vadd.f32 %v6807, %v6919
        %v6921 = vpop.f32.mrf.mxu0
        %v6922 = vadd.f32 %v6809, %v6921
        %6923 = vmatmul.bf16.gmra.mxu0 %v5113
        %v6924 = vpop.f32.mrf.mxu0
        %v6925 = vadd.f32 %v6812, %v6924
        %v6926 = vpop.f32.mrf.mxu0
        %6927 = vdwg.mxu0
        %6928 = vmatpush.bf16.msra.mxu0 %v5878
        %6929 = vmatpush.bf16.msra.mxu0 %v5876
        %6930 = vmatpush.bf16.msra.mxu0 %v5874
        %6931 = vmatpush.bf16.msra.mxu0 %v5872
        %6932 = vmatpush.bf16.msra.mxu0 %v5870
        %6933 = vmatpush.bf16.msra.mxu0 %v5868
        %6934 = vmatpush.bf16.msra.mxu0 %v5866
        %6935 = vmatpush.bf16.msra.mxu0 %v5864
        %6936 = vmatmul.bf16.gmra.mxu0 %v4934
        %v6937 = vpop.f32.mrf.mxu0
        %v6938 = vadd.f32 %v6825, %v6937
        %v6939 = vpop.f32.mrf.mxu0
        %v6940 = vadd.f32 %v6827, %v6939
        %6941 = vmatmul.bf16.gmra.mxu0 %v4943
        %v6942 = vpop.f32.mrf.mxu0
        %v6943 = vadd.f32 %v6830, %v6942
        %v6944 = vpop.f32.mrf.mxu0
        %v6945 = vadd.f32 %v6832, %v6944
        %6946 = vmatmul.bf16.gmra.mxu0 %v4952
        %v6947 = vpop.f32.mrf.mxu0
        %v6948 = vadd.f32 %v6835, %v6947
        %v6949 = vpop.f32.mrf.mxu0
        %v6950 = vadd.f32 %v6837, %v6949
        %6951 = vmatmul.bf16.gmra.mxu0 %v4961
        %v6952 = vpop.f32.mrf.mxu0
        %v6953 = vadd.f32 %v6840, %v6952
        %v6954 = vpop.f32.mrf.mxu0
        %v6955 = vadd.f32 %v6842, %v6954
        %6956 = vmatmul.bf16.gmra.mxu0 %v4970
        %v6957 = vpop.f32.mrf.mxu0
        %v6958 = vadd.f32 %v6845, %v6957
        %v6959 = vpop.f32.mrf.mxu0
        %v6960 = vadd.f32 %v6847, %v6959
        %6961 = vmatmul.bf16.gmra.mxu0 %v4979
        %v6962 = vpop.f32.mrf.mxu0
        %v6963 = vadd.f32 %v6850, %v6962
        %v6964 = vpop.f32.mrf.mxu0
        %v6965 = vadd.f32 %v6852, %v6964
        %6966 = vmatmul.bf16.gmra.mxu0 %v4988
        %v6967 = vpop.f32.mrf.mxu0
        %v6968 = vadd.f32 %v6855, %v6967
        %v6969 = vpop.f32.mrf.mxu0
        %v6970 = vadd.f32 %v6857, %v6969
        %6971 = vmatmul.bf16.gmra.mxu0 %v4997
        %v6972 = vpop.f32.mrf.mxu0
        %v6973 = vadd.f32 %v6860, %v6972
        %v6974 = vpop.f32.mrf.mxu0
        %v6975 = vadd.f32 %v6862, %v6974
        %6976 = vmatmul.bf16.gmra.mxu0 %v5006
        %v6977 = vpop.f32.mrf.mxu0
        %v6978 = vadd.f32 %v6865, %v6977
        %v6979 = vpop.f32.mrf.mxu0
        %v6980 = vadd.f32 %v6867, %v6979
        %6981 = vmatmul.bf16.gmra.mxu0 %v5015
        %v6982 = vpop.f32.mrf.mxu0
        %v6983 = vadd.f32 %v6870, %v6982
        %v6984 = vpop.f32.mrf.mxu0
        %v6985 = vadd.f32 %v6872, %v6984
        %6986 = vmatmul.bf16.gmra.mxu0 %v5024
        %v6987 = vpop.f32.mrf.mxu0
        %v6988 = vadd.f32 %v6875, %v6987
        %v6989 = vpop.f32.mrf.mxu0
        %v6990 = vadd.f32 %v6877, %v6989
        %6991 = vmatmul.bf16.gmra.mxu0 %v5033
        %v6992 = vpop.f32.mrf.mxu0
        %v6993 = vadd.f32 %v6880, %v6992
        %v6994 = vpop.f32.mrf.mxu0
        %v6995 = vadd.f32 %v6882, %v6994
        %6996 = vmatmul.bf16.gmra.mxu0 %v5042
        %v6997 = vpop.f32.mrf.mxu0
        %v6998 = vadd.f32 %v6885, %v6997
        %v6999 = vpop.f32.mrf.mxu0
        %v7000 = vadd.f32 %v6887, %v6999
        %7001 = vmatmul.bf16.gmra.mxu0 %v5051
        %v7002 = vpop.f32.mrf.mxu0
        %v7003 = vadd.f32 %v6890, %v7002
        %v7004 = vpop.f32.mrf.mxu0
        %v7005 = vadd.f32 %v6892, %v7004
        %7006 = vmatmul.bf16.gmra.mxu0 %v5060
        %v7007 = vpop.f32.mrf.mxu0
        %v7008 = vadd.f32 %v6895, %v7007
        %v7009 = vpop.f32.mrf.mxu0
        %v7010 = vadd.f32 %v6897, %v7009
        %7011 = vmatmul.bf16.gmra.mxu0 %v5069
        %v7012 = vpop.f32.mrf.mxu0
        %v7013 = vadd.f32 %v6900, %v7012
        %v7014 = vpop.f32.mrf.mxu0
        %v7015 = vadd.f32 %v6902, %v7014
        %7016 = vmatmul.bf16.gmra.mxu0 %v5078
        %v7017 = vpop.f32.mrf.mxu0
        %v7018 = vadd.f32 %v6905, %v7017
        %v7019 = vpop.f32.mrf.mxu0
        %v7020 = vadd.f32 %v6907, %v7019
        %7021 = vmatmul.bf16.gmra.mxu0 %v5087
        %v7022 = vpop.f32.mrf.mxu0
        %v7023 = vadd.f32 %v6910, %v7022
        %v7024 = vpop.f32.mrf.mxu0
        %v7025 = vadd.f32 %v6912, %v7024
        %7026 = vmatmul.bf16.gmra.mxu0 %v5096
        %v7027 = vpop.f32.mrf.mxu0
        %v7028 = vadd.f32 %v6915, %v7027
        %v7029 = vpop.f32.mrf.mxu0
        %v7030 = vadd.f32 %v6917, %v7029
        %7031 = vmatmul.bf16.gmra.mxu0 %v5105
        %v7032 = vpop.f32.mrf.mxu0
        %v7033 = vadd.f32 %v6920, %v7032
        %v7034 = vpop.f32.mrf.mxu0
        %v7035 = vadd.f32 %v6922, %v7034
        %7036 = vmatmul.bf16.gmra.mxu0 %v5114
        %v7037 = vpop.f32.mrf.mxu0
        %v7038 = vadd.f32 %v6925, %v7037
        %v7039 = vpop.f32.mrf.mxu0
        %7040 = vdwg.mxu0
        %7041 = vmatpush.bf16.msra.mxu0 %v5751
        %7042 = vmatpush.bf16.msra.mxu0 %v5749
        %7043 = vmatpush.bf16.msra.mxu0 %v5747
        %7044 = vmatpush.bf16.msra.mxu0 %v5745
        %7045 = vmatpush.bf16.msra.mxu0 %v5743
        %7046 = vmatpush.bf16.msra.mxu0 %v5741
        %7047 = vmatpush.bf16.msra.mxu0 %v5739
        %7048 = vmatpush.bf16.msra.mxu0 %v5737
        %7049 = vmatmul.bf16.gmra.mxu0 %v4926
        %v7050 = vpop.f32.mrf.mxu0
        %v7051 = vadd.f32 0.0, %v7050
        %v7052 = vpop.f32.mrf.mxu0
        %v7053 = vadd.f32 0.0, %v7052
        %7054 = vmatmul.bf16.gmra.mxu0 %v4935
        %v7055 = vpop.f32.mrf.mxu0
        %v7056 = vadd.f32 0.0, %v7055
        %v7057 = vpop.f32.mrf.mxu0
        %v7058 = vadd.f32 0.0, %v7057
        %7059 = vmatmul.bf16.gmra.mxu0 %v4944
        %v7060 = vpop.f32.mrf.mxu0
        %v7061 = vadd.f32 0.0, %v7060
        %v7062 = vpop.f32.mrf.mxu0
        %v7063 = vadd.f32 0.0, %v7062
        %7064 = vmatmul.bf16.gmra.mxu0 %v4953
        %v7065 = vpop.f32.mrf.mxu0
        %v7066 = vadd.f32 0.0, %v7065
        %v7067 = vpop.f32.mrf.mxu0
        %v7068 = vadd.f32 0.0, %v7067
        %7069 = vmatmul.bf16.gmra.mxu0 %v4962
        %v7070 = vpop.f32.mrf.mxu0
        %v7071 = vadd.f32 0.0, %v7070
        %v7072 = vpop.f32.mrf.mxu0
        %v7073 = vadd.f32 0.0, %v7072
        %7074 = vmatmul.bf16.gmra.mxu0 %v4971
        %v7075 = vpop.f32.mrf.mxu0
        %v7076 = vadd.f32 0.0, %v7075
        %v7077 = vpop.f32.mrf.mxu0
        %v7078 = vadd.f32 0.0, %v7077
        %7079 = vmatmul.bf16.gmra.mxu0 %v4980
        %v7080 = vpop.f32.mrf.mxu0
        %v7081 = vadd.f32 0.0, %v7080
        %v7082 = vpop.f32.mrf.mxu0
        %v7083 = vadd.f32 0.0, %v7082
        %7084 = vmatmul.bf16.gmra.mxu0 %v4989
        %v7085 = vpop.f32.mrf.mxu0
        %v7086 = vadd.f32 0.0, %v7085
        %v7087 = vpop.f32.mrf.mxu0
        %v7088 = vadd.f32 0.0, %v7087
        %7089 = vmatmul.bf16.gmra.mxu0 %v4998
        %v7090 = vpop.f32.mrf.mxu0
        %v7091 = vadd.f32 0.0, %v7090
        %v7092 = vpop.f32.mrf.mxu0
        %v7093 = vadd.f32 0.0, %v7092
        %7094 = vmatmul.bf16.gmra.mxu0 %v5007
        %v7095 = vpop.f32.mrf.mxu0
        %v7096 = vadd.f32 0.0, %v7095
        %v7097 = vpop.f32.mrf.mxu0
        %v7098 = vadd.f32 0.0, %v7097
        %7099 = vmatmul.bf16.gmra.mxu0 %v5016
        %v7100 = vpop.f32.mrf.mxu0
        %v7101 = vadd.f32 0.0, %v7100
        %v7102 = vpop.f32.mrf.mxu0
        %v7103 = vadd.f32 0.0, %v7102
        %7104 = vmatmul.bf16.gmra.mxu0 %v5025
        %v7105 = vpop.f32.mrf.mxu0
        %v7106 = vadd.f32 0.0, %v7105
        %v7107 = vpop.f32.mrf.mxu0
        %v7108 = vadd.f32 0.0, %v7107
        %7109 = vmatmul.bf16.gmra.mxu0 %v5034
        %v7110 = vpop.f32.mrf.mxu0
        %v7111 = vadd.f32 0.0, %v7110
        %v7112 = vpop.f32.mrf.mxu0
        %v7113 = vadd.f32 0.0, %v7112
        %7114 = vmatmul.bf16.gmra.mxu0 %v5043
        %v7115 = vpop.f32.mrf.mxu0
        %v7116 = vadd.f32 0.0, %v7115
        %v7117 = vpop.f32.mrf.mxu0
        %v7118 = vadd.f32 0.0, %v7117
        %7119 = vmatmul.bf16.gmra.mxu0 %v5052
        %v7120 = vpop.f32.mrf.mxu0
        %v7121 = vadd.f32 0.0, %v7120
        %v7122 = vpop.f32.mrf.mxu0
        %v7123 = vadd.f32 0.0, %v7122
        %7124 = vmatmul.bf16.gmra.mxu0 %v5061
        %v7125 = vpop.f32.mrf.mxu0
        %v7126 = vadd.f32 0.0, %v7125
        %v7127 = vpop.f32.mrf.mxu0
        %v7128 = vadd.f32 0.0, %v7127
        %7129 = vmatmul.bf16.gmra.mxu0 %v5070
        %v7130 = vpop.f32.mrf.mxu0
        %v7131 = vadd.f32 0.0, %v7130
        %v7132 = vpop.f32.mrf.mxu0
        %v7133 = vadd.f32 0.0, %v7132
        %7134 = vmatmul.bf16.gmra.mxu0 %v5079
        %v7135 = vpop.f32.mrf.mxu0
        %v7136 = vadd.f32 0.0, %v7135
        %v7137 = vpop.f32.mrf.mxu0
        %v7138 = vadd.f32 0.0, %v7137
        %7139 = vmatmul.bf16.gmra.mxu0 %v5088
        %v7140 = vpop.f32.mrf.mxu0
        %v7141 = vadd.f32 0.0, %v7140
        %v7142 = vpop.f32.mrf.mxu0
        %v7143 = vadd.f32 0.0, %v7142
        %7144 = vmatmul.bf16.gmra.mxu0 %v5097
        %v7145 = vpop.f32.mrf.mxu0
        %v7146 = vadd.f32 0.0, %v7145
        %v7147 = vpop.f32.mrf.mxu0
        %v7148 = vadd.f32 0.0, %v7147
        %7149 = vmatmul.bf16.gmra.mxu0 %v5106
        %v7150 = vpop.f32.mrf.mxu0
        %v7151 = vadd.f32 0.0, %v7150
        %v7152 = vpop.f32.mrf.mxu0
        %7153 = vdwg.mxu0
        %7154 = vmatpush.bf16.msra.mxu0 %v5767
        %7155 = vmatpush.bf16.msra.mxu0 %v5765
        %7156 = vmatpush.bf16.msra.mxu0 %v5763
        %7157 = vmatpush.bf16.msra.mxu0 %v5761
        %7158 = vmatpush.bf16.msra.mxu0 %v5759
        %7159 = vmatpush.bf16.msra.mxu0 %v5757
        %7160 = vmatpush.bf16.msra.mxu0 %v5755
        %7161 = vmatpush.bf16.msra.mxu0 %v5753
        %7162 = vmatmul.bf16.gmra.mxu0 %v4927
        %v7163 = vpop.f32.mrf.mxu0
        %v7164 = vadd.f32 %v7051, %v7163
        %v7165 = vpop.f32.mrf.mxu0
        %v7166 = vadd.f32 %v7053, %v7165
        %7167 = vmatmul.bf16.gmra.mxu0 %v4936
        %v7168 = vpop.f32.mrf.mxu0
        %v7169 = vadd.f32 %v7056, %v7168
        %v7170 = vpop.f32.mrf.mxu0
        %v7171 = vadd.f32 %v7058, %v7170
        %7172 = vmatmul.bf16.gmra.mxu0 %v4945
        %v7173 = vpop.f32.mrf.mxu0
        %v7174 = vadd.f32 %v7061, %v7173
        %v7175 = vpop.f32.mrf.mxu0
        %v7176 = vadd.f32 %v7063, %v7175
        %7177 = vmatmul.bf16.gmra.mxu0 %v4954
        %v7178 = vpop.f32.mrf.mxu0
        %v7179 = vadd.f32 %v7066, %v7178
        %v7180 = vpop.f32.mrf.mxu0
        %v7181 = vadd.f32 %v7068, %v7180
        %7182 = vmatmul.bf16.gmra.mxu0 %v4963
        %v7183 = vpop.f32.mrf.mxu0
        %v7184 = vadd.f32 %v7071, %v7183
        %v7185 = vpop.f32.mrf.mxu0
        %v7186 = vadd.f32 %v7073, %v7185
        %7187 = vmatmul.bf16.gmra.mxu0 %v4972
        %v7188 = vpop.f32.mrf.mxu0
        %v7189 = vadd.f32 %v7076, %v7188
        %v7190 = vpop.f32.mrf.mxu0
        %v7191 = vadd.f32 %v7078, %v7190
        %7192 = vmatmul.bf16.gmra.mxu0 %v4981
        %v7193 = vpop.f32.mrf.mxu0
        %v7194 = vadd.f32 %v7081, %v7193
        %v7195 = vpop.f32.mrf.mxu0
        %v7196 = vadd.f32 %v7083, %v7195
        %7197 = vmatmul.bf16.gmra.mxu0 %v4990
        %v7198 = vpop.f32.mrf.mxu0
        %v7199 = vadd.f32 %v7086, %v7198
        %v7200 = vpop.f32.mrf.mxu0
        %v7201 = vadd.f32 %v7088, %v7200
        %7202 = vmatmul.bf16.gmra.mxu0 %v4999
        %v7203 = vpop.f32.mrf.mxu0
        %v7204 = vadd.f32 %v7091, %v7203
        %v7205 = vpop.f32.mrf.mxu0
        %v7206 = vadd.f32 %v7093, %v7205
        %7207 = vmatmul.bf16.gmra.mxu0 %v5008
        %v7208 = vpop.f32.mrf.mxu0
        %v7209 = vadd.f32 %v7096, %v7208
        %v7210 = vpop.f32.mrf.mxu0
        %v7211 = vadd.f32 %v7098, %v7210
        %7212 = vmatmul.bf16.gmra.mxu0 %v5017
        %v7213 = vpop.f32.mrf.mxu0
        %v7214 = vadd.f32 %v7101, %v7213
        %v7215 = vpop.f32.mrf.mxu0
        %v7216 = vadd.f32 %v7103, %v7215
        %7217 = vmatmul.bf16.gmra.mxu0 %v5026
        %v7218 = vpop.f32.mrf.mxu0
        %v7219 = vadd.f32 %v7106, %v7218
        %v7220 = vpop.f32.mrf.mxu0
        %v7221 = vadd.f32 %v7108, %v7220
        %7222 = vmatmul.bf16.gmra.mxu0 %v5035
        %v7223 = vpop.f32.mrf.mxu0
        %v7224 = vadd.f32 %v7111, %v7223
        %v7225 = vpop.f32.mrf.mxu0
        %v7226 = vadd.f32 %v7113, %v7225
        %7227 = vmatmul.bf16.gmra.mxu0 %v5044
        %v7228 = vpop.f32.mrf.mxu0
        %v7229 = vadd.f32 %v7116, %v7228
        %v7230 = vpop.f32.mrf.mxu0
        %v7231 = vadd.f32 %v7118, %v7230
        %7232 = vmatmul.bf16.gmra.mxu0 %v5053
        %v7233 = vpop.f32.mrf.mxu0
        %v7234 = vadd.f32 %v7121, %v7233
        %v7235 = vpop.f32.mrf.mxu0
        %v7236 = vadd.f32 %v7123, %v7235
        %7237 = vmatmul.bf16.gmra.mxu0 %v5062
        %v7238 = vpop.f32.mrf.mxu0
        %v7239 = vadd.f32 %v7126, %v7238
        %v7240 = vpop.f32.mrf.mxu0
        %v7241 = vadd.f32 %v7128, %v7240
        %7242 = vmatmul.bf16.gmra.mxu0 %v5071
        %v7243 = vpop.f32.mrf.mxu0
        %v7244 = vadd.f32 %v7131, %v7243
        %v7245 = vpop.f32.mrf.mxu0
        %v7246 = vadd.f32 %v7133, %v7245
        %7247 = vmatmul.bf16.gmra.mxu0 %v5080
        %v7248 = vpop.f32.mrf.mxu0
        %v7249 = vadd.f32 %v7136, %v7248
        %v7250 = vpop.f32.mrf.mxu0
        %v7251 = vadd.f32 %v7138, %v7250
        %7252 = vmatmul.bf16.gmra.mxu0 %v5089
        %v7253 = vpop.f32.mrf.mxu0
        %v7254 = vadd.f32 %v7141, %v7253
        %v7255 = vpop.f32.mrf.mxu0
        %v7256 = vadd.f32 %v7143, %v7255
        %7257 = vmatmul.bf16.gmra.mxu0 %v5098
        %v7258 = vpop.f32.mrf.mxu0
        %v7259 = vadd.f32 %v7146, %v7258
        %v7260 = vpop.f32.mrf.mxu0
        %v7261 = vadd.f32 %v7148, %v7260
        %7262 = vmatmul.bf16.gmra.mxu0 %v5107
        %v7263 = vpop.f32.mrf.mxu0
        %v7264 = vadd.f32 %v7151, %v7263
        %v7265 = vpop.f32.mrf.mxu0
        %7266 = vdwg.mxu0
        %7267 = vmatpush.bf16.msra.mxu0 %v5783
        %7268 = vmatpush.bf16.msra.mxu0 %v5781
        %7269 = vmatpush.bf16.msra.mxu0 %v5779
        %7270 = vmatpush.bf16.msra.mxu0 %v5777
        %7271 = vmatpush.bf16.msra.mxu0 %v5775
        %7272 = vmatpush.bf16.msra.mxu0 %v5773
        %7273 = vmatpush.bf16.msra.mxu0 %v5771
        %7274 = vmatpush.bf16.msra.mxu0 %v5769
        %7275 = vmatmul.bf16.gmra.mxu0 %v4928
        %v7276 = vpop.f32.mrf.mxu0
        %v7277 = vadd.f32 %v7164, %v7276
        %v7278 = vpop.f32.mrf.mxu0
        %v7279 = vadd.f32 %v7166, %v7278
        %7280 = vmatmul.bf16.gmra.mxu0 %v4937
        %v7281 = vpop.f32.mrf.mxu0
        %v7282 = vadd.f32 %v7169, %v7281
        %v7283 = vpop.f32.mrf.mxu0
        %v7284 = vadd.f32 %v7171, %v7283
        %7285 = vmatmul.bf16.gmra.mxu0 %v4946
        %v7286 = vpop.f32.mrf.mxu0
        %v7287 = vadd.f32 %v7174, %v7286
        %v7288 = vpop.f32.mrf.mxu0
        %v7289 = vadd.f32 %v7176, %v7288
        %7290 = vmatmul.bf16.gmra.mxu0 %v4955
        %v7291 = vpop.f32.mrf.mxu0
        %v7292 = vadd.f32 %v7179, %v7291
        %v7293 = vpop.f32.mrf.mxu0
        %v7294 = vadd.f32 %v7181, %v7293
        %7295 = vmatmul.bf16.gmra.mxu0 %v4964
        %v7296 = vpop.f32.mrf.mxu0
        %v7297 = vadd.f32 %v7184, %v7296
        %v7298 = vpop.f32.mrf.mxu0
        %v7299 = vadd.f32 %v7186, %v7298
        %7300 = vmatmul.bf16.gmra.mxu0 %v4973
        %v7301 = vpop.f32.mrf.mxu0
        %v7302 = vadd.f32 %v7189, %v7301
        %v7303 = vpop.f32.mrf.mxu0
        %v7304 = vadd.f32 %v7191, %v7303
        %7305 = vmatmul.bf16.gmra.mxu0 %v4982
        %v7306 = vpop.f32.mrf.mxu0
        %v7307 = vadd.f32 %v7194, %v7306
        %v7308 = vpop.f32.mrf.mxu0
        %v7309 = vadd.f32 %v7196, %v7308
        %7310 = vmatmul.bf16.gmra.mxu0 %v4991
        %v7311 = vpop.f32.mrf.mxu0
        %v7312 = vadd.f32 %v7199, %v7311
        %v7313 = vpop.f32.mrf.mxu0
        %v7314 = vadd.f32 %v7201, %v7313
        %7315 = vmatmul.bf16.gmra.mxu0 %v5000
        %v7316 = vpop.f32.mrf.mxu0
        %v7317 = vadd.f32 %v7204, %v7316
        %v7318 = vpop.f32.mrf.mxu0
        %v7319 = vadd.f32 %v7206, %v7318
        %7320 = vmatmul.bf16.gmra.mxu0 %v5009
        %v7321 = vpop.f32.mrf.mxu0
        %v7322 = vadd.f32 %v7209, %v7321
        %v7323 = vpop.f32.mrf.mxu0
        %v7324 = vadd.f32 %v7211, %v7323
        %7325 = vmatmul.bf16.gmra.mxu0 %v5018
        %v7326 = vpop.f32.mrf.mxu0
        %v7327 = vadd.f32 %v7214, %v7326
        %v7328 = vpop.f32.mrf.mxu0
        %v7329 = vadd.f32 %v7216, %v7328
        %7330 = vmatmul.bf16.gmra.mxu0 %v5027
        %v7331 = vpop.f32.mrf.mxu0
        %v7332 = vadd.f32 %v7219, %v7331
        %v7333 = vpop.f32.mrf.mxu0
        %v7334 = vadd.f32 %v7221, %v7333
        %7335 = vmatmul.bf16.gmra.mxu0 %v5036
        %v7336 = vpop.f32.mrf.mxu0
        %v7337 = vadd.f32 %v7224, %v7336
        %v7338 = vpop.f32.mrf.mxu0
        %v7339 = vadd.f32 %v7226, %v7338
        %7340 = vmatmul.bf16.gmra.mxu0 %v5045
        %v7341 = vpop.f32.mrf.mxu0
        %v7342 = vadd.f32 %v7229, %v7341
        %v7343 = vpop.f32.mrf.mxu0
        %v7344 = vadd.f32 %v7231, %v7343
        %7345 = vmatmul.bf16.gmra.mxu0 %v5054
        %v7346 = vpop.f32.mrf.mxu0
        %v7347 = vadd.f32 %v7234, %v7346
        %v7348 = vpop.f32.mrf.mxu0
        %v7349 = vadd.f32 %v7236, %v7348
        %7350 = vmatmul.bf16.gmra.mxu0 %v5063
        %v7351 = vpop.f32.mrf.mxu0
        %v7352 = vadd.f32 %v7239, %v7351
        %v7353 = vpop.f32.mrf.mxu0
        %v7354 = vadd.f32 %v7241, %v7353
        %7355 = vmatmul.bf16.gmra.mxu0 %v5072
        %v7356 = vpop.f32.mrf.mxu0
        %v7357 = vadd.f32 %v7244, %v7356
        %v7358 = vpop.f32.mrf.mxu0
        %v7359 = vadd.f32 %v7246, %v7358
        %7360 = vmatmul.bf16.gmra.mxu0 %v5081
        %v7361 = vpop.f32.mrf.mxu0
        %v7362 = vadd.f32 %v7249, %v7361
        %v7363 = vpop.f32.mrf.mxu0
        %v7364 = vadd.f32 %v7251, %v7363
        %7365 = vmatmul.bf16.gmra.mxu0 %v5090
        %v7366 = vpop.f32.mrf.mxu0
        %v7367 = vadd.f32 %v7254, %v7366
        %v7368 = vpop.f32.mrf.mxu0
        %v7369 = vadd.f32 %v7256, %v7368
        %7370 = vmatmul.bf16.gmra.mxu0 %v5099
        %v7371 = vpop.f32.mrf.mxu0
        %v7372 = vadd.f32 %v7259, %v7371
        %v7373 = vpop.f32.mrf.mxu0
        %v7374 = vadd.f32 %v7261, %v7373
        %7375 = vmatmul.bf16.gmra.mxu0 %v5108
        %v7376 = vpop.f32.mrf.mxu0
        %v7377 = vadd.f32 %v7264, %v7376
        %v7378 = vpop.f32.mrf.mxu0
        %7379 = vdwg.mxu0
        %7380 = vmatpush.bf16.msra.mxu0 %v5799
        %7381 = vmatpush.bf16.msra.mxu0 %v5797
        %7382 = vmatpush.bf16.msra.mxu0 %v5795
        %7383 = vmatpush.bf16.msra.mxu0 %v5793
        %7384 = vmatpush.bf16.msra.mxu0 %v5791
        %7385 = vmatpush.bf16.msra.mxu0 %v5789
        %7386 = vmatpush.bf16.msra.mxu0 %v5787
        %7387 = vmatpush.bf16.msra.mxu0 %v5785
        %7388 = vmatmul.bf16.gmra.mxu0 %v4929
        %v7389 = vpop.f32.mrf.mxu0
        %v7390 = vadd.f32 %v7277, %v7389
        %v7391 = vpop.f32.mrf.mxu0
        %v7392 = vadd.f32 %v7279, %v7391
        %7393 = vmatmul.bf16.gmra.mxu0 %v4938
        %v7394 = vpop.f32.mrf.mxu0
        %v7395 = vadd.f32 %v7282, %v7394
        %v7396 = vpop.f32.mrf.mxu0
        %v7397 = vadd.f32 %v7284, %v7396
        %7398 = vmatmul.bf16.gmra.mxu0 %v4947
        %v7399 = vpop.f32.mrf.mxu0
        %v7400 = vadd.f32 %v7287, %v7399
        %v7401 = vpop.f32.mrf.mxu0
        %v7402 = vadd.f32 %v7289, %v7401
        %7403 = vmatmul.bf16.gmra.mxu0 %v4956
        %v7404 = vpop.f32.mrf.mxu0
        %v7405 = vadd.f32 %v7292, %v7404
        %v7406 = vpop.f32.mrf.mxu0
        %v7407 = vadd.f32 %v7294, %v7406
        %7408 = vmatmul.bf16.gmra.mxu0 %v4965
        %v7409 = vpop.f32.mrf.mxu0
        %v7410 = vadd.f32 %v7297, %v7409
        %v7411 = vpop.f32.mrf.mxu0
        %v7412 = vadd.f32 %v7299, %v7411
        %7413 = vmatmul.bf16.gmra.mxu0 %v4974
        %v7414 = vpop.f32.mrf.mxu0
        %v7415 = vadd.f32 %v7302, %v7414
        %v7416 = vpop.f32.mrf.mxu0
        %v7417 = vadd.f32 %v7304, %v7416
        %7418 = vmatmul.bf16.gmra.mxu0 %v4983
        %v7419 = vpop.f32.mrf.mxu0
        %v7420 = vadd.f32 %v7307, %v7419
        %v7421 = vpop.f32.mrf.mxu0
        %v7422 = vadd.f32 %v7309, %v7421
        %7423 = vmatmul.bf16.gmra.mxu0 %v4992
        %v7424 = vpop.f32.mrf.mxu0
        %v7425 = vadd.f32 %v7312, %v7424
        %v7426 = vpop.f32.mrf.mxu0
        %v7427 = vadd.f32 %v7314, %v7426
        %7428 = vmatmul.bf16.gmra.mxu0 %v5001
        %v7429 = vpop.f32.mrf.mxu0
        %v7430 = vadd.f32 %v7317, %v7429
        %v7431 = vpop.f32.mrf.mxu0
        %v7432 = vadd.f32 %v7319, %v7431
        %7433 = vmatmul.bf16.gmra.mxu0 %v5010
        %v7434 = vpop.f32.mrf.mxu0
        %v7435 = vadd.f32 %v7322, %v7434
        %v7436 = vpop.f32.mrf.mxu0
        %v7437 = vadd.f32 %v7324, %v7436
        %7438 = vmatmul.bf16.gmra.mxu0 %v5019
        %v7439 = vpop.f32.mrf.mxu0
        %v7440 = vadd.f32 %v7327, %v7439
        %v7441 = vpop.f32.mrf.mxu0
        %v7442 = vadd.f32 %v7329, %v7441
        %7443 = vmatmul.bf16.gmra.mxu0 %v5028
        %v7444 = vpop.f32.mrf.mxu0
        %v7445 = vadd.f32 %v7332, %v7444
        %v7446 = vpop.f32.mrf.mxu0
        %v7447 = vadd.f32 %v7334, %v7446
        %7448 = vmatmul.bf16.gmra.mxu0 %v5037
        %v7449 = vpop.f32.mrf.mxu0
        %v7450 = vadd.f32 %v7337, %v7449
        %v7451 = vpop.f32.mrf.mxu0
        %v7452 = vadd.f32 %v7339, %v7451
        %7453 = vmatmul.bf16.gmra.mxu0 %v5046
        %v7454 = vpop.f32.mrf.mxu0
        %v7455 = vadd.f32 %v7342, %v7454
        %v7456 = vpop.f32.mrf.mxu0
        %v7457 = vadd.f32 %v7344, %v7456
        %7458 = vmatmul.bf16.gmra.mxu0 %v5055
        %v7459 = vpop.f32.mrf.mxu0
        %v7460 = vadd.f32 %v7347, %v7459
        %v7461 = vpop.f32.mrf.mxu0
        %v7462 = vadd.f32 %v7349, %v7461
        %7463 = vmatmul.bf16.gmra.mxu0 %v5064
        %v7464 = vpop.f32.mrf.mxu0
        %v7465 = vadd.f32 %v7352, %v7464
        %v7466 = vpop.f32.mrf.mxu0
        %v7467 = vadd.f32 %v7354, %v7466
        %7468 = vmatmul.bf16.gmra.mxu0 %v5073
        %v7469 = vpop.f32.mrf.mxu0
        %v7470 = vadd.f32 %v7357, %v7469
        %v7471 = vpop.f32.mrf.mxu0
        %v7472 = vadd.f32 %v7359, %v7471
        %7473 = vmatmul.bf16.gmra.mxu0 %v5082
        %v7474 = vpop.f32.mrf.mxu0
        %v7475 = vadd.f32 %v7362, %v7474
        %v7476 = vpop.f32.mrf.mxu0
        %v7477 = vadd.f32 %v7364, %v7476
        %7478 = vmatmul.bf16.gmra.mxu0 %v5091
        %v7479 = vpop.f32.mrf.mxu0
        %v7480 = vadd.f32 %v7367, %v7479
        %v7481 = vpop.f32.mrf.mxu0
        %v7482 = vadd.f32 %v7369, %v7481
        %7483 = vmatmul.bf16.gmra.mxu0 %v5100
        %v7484 = vpop.f32.mrf.mxu0
        %v7485 = vadd.f32 %v7372, %v7484
        %v7486 = vpop.f32.mrf.mxu0
        %v7487 = vadd.f32 %v7374, %v7486
        %7488 = vmatmul.bf16.gmra.mxu0 %v5109
        %v7489 = vpop.f32.mrf.mxu0
        %v7490 = vadd.f32 %v7377, %v7489
        %v7491 = vpop.f32.mrf.mxu0
        %7492 = vdwg.mxu0
        %7493 = vmatpush.bf16.msra.mxu0 %v5815
        %7494 = vmatpush.bf16.msra.mxu0 %v5813
        %7495 = vmatpush.bf16.msra.mxu0 %v5811
        %7496 = vmatpush.bf16.msra.mxu0 %v5809
        %7497 = vmatpush.bf16.msra.mxu0 %v5807
        %7498 = vmatpush.bf16.msra.mxu0 %v5805
        %7499 = vmatpush.bf16.msra.mxu0 %v5803
        %7500 = vmatpush.bf16.msra.mxu0 %v5801
        %7501 = vmatmul.bf16.gmra.mxu0 %v4930
        %v7502 = vpop.f32.mrf.mxu0
        %v7503 = vadd.f32 %v7390, %v7502
        %v7504 = vpop.f32.mrf.mxu0
        %v7505 = vadd.f32 %v7392, %v7504
        %7506 = vmatmul.bf16.gmra.mxu0 %v4939
        %v7507 = vpop.f32.mrf.mxu0
        %v7508 = vadd.f32 %v7395, %v7507
        %v7509 = vpop.f32.mrf.mxu0
        %v7510 = vadd.f32 %v7397, %v7509
        %7511 = vmatmul.bf16.gmra.mxu0 %v4948
        %v7512 = vpop.f32.mrf.mxu0
        %v7513 = vadd.f32 %v7400, %v7512
        %v7514 = vpop.f32.mrf.mxu0
        %v7515 = vadd.f32 %v7402, %v7514
        %7516 = vmatmul.bf16.gmra.mxu0 %v4957
        %v7517 = vpop.f32.mrf.mxu0
        %v7518 = vadd.f32 %v7405, %v7517
        %v7519 = vpop.f32.mrf.mxu0
        %v7520 = vadd.f32 %v7407, %v7519
        %7521 = vmatmul.bf16.gmra.mxu0 %v4966
        %v7522 = vpop.f32.mrf.mxu0
        %v7523 = vadd.f32 %v7410, %v7522
        %v7524 = vpop.f32.mrf.mxu0
        %v7525 = vadd.f32 %v7412, %v7524
        %7526 = vmatmul.bf16.gmra.mxu0 %v4975
        %v7527 = vpop.f32.mrf.mxu0
        %v7528 = vadd.f32 %v7415, %v7527
        %v7529 = vpop.f32.mrf.mxu0
        %v7530 = vadd.f32 %v7417, %v7529
        %7531 = vmatmul.bf16.gmra.mxu0 %v4984
        %v7532 = vpop.f32.mrf.mxu0
        %v7533 = vadd.f32 %v7420, %v7532
        %v7534 = vpop.f32.mrf.mxu0
        %v7535 = vadd.f32 %v7422, %v7534
        %7536 = vmatmul.bf16.gmra.mxu0 %v4993
        %v7537 = vpop.f32.mrf.mxu0
        %v7538 = vadd.f32 %v7425, %v7537
        %v7539 = vpop.f32.mrf.mxu0
        %v7540 = vadd.f32 %v7427, %v7539
        %7541 = vmatmul.bf16.gmra.mxu0 %v5002
        %v7542 = vpop.f32.mrf.mxu0
        %v7543 = vadd.f32 %v7430, %v7542
        %v7544 = vpop.f32.mrf.mxu0
        %v7545 = vadd.f32 %v7432, %v7544
        %7546 = vmatmul.bf16.gmra.mxu0 %v5011
        %v7547 = vpop.f32.mrf.mxu0
        %v7548 = vadd.f32 %v7435, %v7547
        %v7549 = vpop.f32.mrf.mxu0
        %v7550 = vadd.f32 %v7437, %v7549
        %7551 = vmatmul.bf16.gmra.mxu0 %v5020
        %v7552 = vpop.f32.mrf.mxu0
        %v7553 = vadd.f32 %v7440, %v7552
        %v7554 = vpop.f32.mrf.mxu0
        %v7555 = vadd.f32 %v7442, %v7554
        %7556 = vmatmul.bf16.gmra.mxu0 %v5029
        %v7557 = vpop.f32.mrf.mxu0
        %v7558 = vadd.f32 %v7445, %v7557
        %v7559 = vpop.f32.mrf.mxu0
        %v7560 = vadd.f32 %v7447, %v7559
        %7561 = vmatmul.bf16.gmra.mxu0 %v5038
        %v7562 = vpop.f32.mrf.mxu0
        %v7563 = vadd.f32 %v7450, %v7562
        %v7564 = vpop.f32.mrf.mxu0
        %v7565 = vadd.f32 %v7452, %v7564
        %7566 = vmatmul.bf16.gmra.mxu0 %v5047
        %v7567 = vpop.f32.mrf.mxu0
        %v7568 = vadd.f32 %v7455, %v7567
        %v7569 = vpop.f32.mrf.mxu0
        %v7570 = vadd.f32 %v7457, %v7569
        %7571 = vmatmul.bf16.gmra.mxu0 %v5056
        %v7572 = vpop.f32.mrf.mxu0
        %v7573 = vadd.f32 %v7460, %v7572
        %v7574 = vpop.f32.mrf.mxu0
        %v7575 = vadd.f32 %v7462, %v7574
        %7576 = vmatmul.bf16.gmra.mxu0 %v5065
        %v7577 = vpop.f32.mrf.mxu0
        %v7578 = vadd.f32 %v7465, %v7577
        %v7579 = vpop.f32.mrf.mxu0
        %v7580 = vadd.f32 %v7467, %v7579
        %7581 = vmatmul.bf16.gmra.mxu0 %v5074
        %v7582 = vpop.f32.mrf.mxu0
        %v7583 = vadd.f32 %v7470, %v7582
        %v7584 = vpop.f32.mrf.mxu0
        %v7585 = vadd.f32 %v7472, %v7584
        %7586 = vmatmul.bf16.gmra.mxu0 %v5083
        %v7587 = vpop.f32.mrf.mxu0
        %v7588 = vadd.f32 %v7475, %v7587
        %v7589 = vpop.f32.mrf.mxu0
        %v7590 = vadd.f32 %v7477, %v7589
        %7591 = vmatmul.bf16.gmra.mxu0 %v5092
        %v7592 = vpop.f32.mrf.mxu0
        %v7593 = vadd.f32 %v7480, %v7592
        %v7594 = vpop.f32.mrf.mxu0
        %v7595 = vadd.f32 %v7482, %v7594
        %7596 = vmatmul.bf16.gmra.mxu0 %v5101
        %v7597 = vpop.f32.mrf.mxu0
        %v7598 = vadd.f32 %v7485, %v7597
        %v7599 = vpop.f32.mrf.mxu0
        %v7600 = vadd.f32 %v7487, %v7599
        %7601 = vmatmul.bf16.gmra.mxu0 %v5110
        %v7602 = vpop.f32.mrf.mxu0
        %v7603 = vadd.f32 %v7490, %v7602
        %v7604 = vpop.f32.mrf.mxu0
        %7605 = vdwg.mxu0
        %7606 = vmatpush.bf16.msra.mxu0 %v5831
        %7607 = vmatpush.bf16.msra.mxu0 %v5829
        %7608 = vmatpush.bf16.msra.mxu0 %v5827
        %7609 = vmatpush.bf16.msra.mxu0 %v5825
        %7610 = vmatpush.bf16.msra.mxu0 %v5823
        %7611 = vmatpush.bf16.msra.mxu0 %v5821
        %7612 = vmatpush.bf16.msra.mxu0 %v5819
        %7613 = vmatpush.bf16.msra.mxu0 %v5817
        %7614 = vmatmul.bf16.gmra.mxu0 %v4931
        %v7615 = vpop.f32.mrf.mxu0
        %v7616 = vadd.f32 %v7503, %v7615
        %v7617 = vpop.f32.mrf.mxu0
        %v7618 = vadd.f32 %v7505, %v7617
        %7619 = vmatmul.bf16.gmra.mxu0 %v4940
        %v7620 = vpop.f32.mrf.mxu0
        %v7621 = vadd.f32 %v7508, %v7620
        %v7622 = vpop.f32.mrf.mxu0
        %v7623 = vadd.f32 %v7510, %v7622
        %7624 = vmatmul.bf16.gmra.mxu0 %v4949
        %v7625 = vpop.f32.mrf.mxu0
        %v7626 = vadd.f32 %v7513, %v7625
        %v7627 = vpop.f32.mrf.mxu0
        %v7628 = vadd.f32 %v7515, %v7627
        %7629 = vmatmul.bf16.gmra.mxu0 %v4958
        %v7630 = vpop.f32.mrf.mxu0
        %v7631 = vadd.f32 %v7518, %v7630
        %v7632 = vpop.f32.mrf.mxu0
        %v7633 = vadd.f32 %v7520, %v7632
        %7634 = vmatmul.bf16.gmra.mxu0 %v4967
        %v7635 = vpop.f32.mrf.mxu0
        %v7636 = vadd.f32 %v7523, %v7635
        %v7637 = vpop.f32.mrf.mxu0
        %v7638 = vadd.f32 %v7525, %v7637
        %7639 = vmatmul.bf16.gmra.mxu0 %v4976
        %v7640 = vpop.f32.mrf.mxu0
        %v7641 = vadd.f32 %v7528, %v7640
        %v7642 = vpop.f32.mrf.mxu0
        %v7643 = vadd.f32 %v7530, %v7642
        %7644 = vmatmul.bf16.gmra.mxu0 %v4985
        %v7645 = vpop.f32.mrf.mxu0
        %v7646 = vadd.f32 %v7533, %v7645
        %v7647 = vpop.f32.mrf.mxu0
        %v7648 = vadd.f32 %v7535, %v7647
        %7649 = vmatmul.bf16.gmra.mxu0 %v4994
        %v7650 = vpop.f32.mrf.mxu0
        %v7651 = vadd.f32 %v7538, %v7650
        %v7652 = vpop.f32.mrf.mxu0
        %v7653 = vadd.f32 %v7540, %v7652
        %7654 = vmatmul.bf16.gmra.mxu0 %v5003
        %v7655 = vpop.f32.mrf.mxu0
        %v7656 = vadd.f32 %v7543, %v7655
        %v7657 = vpop.f32.mrf.mxu0
        %v7658 = vadd.f32 %v7545, %v7657
        %7659 = vmatmul.bf16.gmra.mxu0 %v5012
        %v7660 = vpop.f32.mrf.mxu0
        %v7661 = vadd.f32 %v7548, %v7660
        %v7662 = vpop.f32.mrf.mxu0
        %v7663 = vadd.f32 %v7550, %v7662
        %7664 = vmatmul.bf16.gmra.mxu0 %v5021
        %v7665 = vpop.f32.mrf.mxu0
        %v7666 = vadd.f32 %v7553, %v7665
        %v7667 = vpop.f32.mrf.mxu0
        %v7668 = vadd.f32 %v7555, %v7667
        %7669 = vmatmul.bf16.gmra.mxu0 %v5030
        %v7670 = vpop.f32.mrf.mxu0
        %v7671 = vadd.f32 %v7558, %v7670
        %v7672 = vpop.f32.mrf.mxu0
        %v7673 = vadd.f32 %v7560, %v7672
        %7674 = vmatmul.bf16.gmra.mxu0 %v5039
        %v7675 = vpop.f32.mrf.mxu0
        %v7676 = vadd.f32 %v7563, %v7675
        %v7677 = vpop.f32.mrf.mxu0
        %v7678 = vadd.f32 %v7565, %v7677
        %7679 = vmatmul.bf16.gmra.mxu0 %v5048
        %v7680 = vpop.f32.mrf.mxu0
        %v7681 = vadd.f32 %v7568, %v7680
        %v7682 = vpop.f32.mrf.mxu0
        %v7683 = vadd.f32 %v7570, %v7682
        %7684 = vmatmul.bf16.gmra.mxu0 %v5057
        %v7685 = vpop.f32.mrf.mxu0
        %v7686 = vadd.f32 %v7573, %v7685
        %v7687 = vpop.f32.mrf.mxu0
        %v7688 = vadd.f32 %v7575, %v7687
        %7689 = vmatmul.bf16.gmra.mxu0 %v5066
        %v7690 = vpop.f32.mrf.mxu0
        %v7691 = vadd.f32 %v7578, %v7690
        %v7692 = vpop.f32.mrf.mxu0
        %v7693 = vadd.f32 %v7580, %v7692
        %7694 = vmatmul.bf16.gmra.mxu0 %v5075
        %v7695 = vpop.f32.mrf.mxu0
        %v7696 = vadd.f32 %v7583, %v7695
        %v7697 = vpop.f32.mrf.mxu0
        %v7698 = vadd.f32 %v7585, %v7697
        %7699 = vmatmul.bf16.gmra.mxu0 %v5084
        %v7700 = vpop.f32.mrf.mxu0
        %v7701 = vadd.f32 %v7588, %v7700
        %v7702 = vpop.f32.mrf.mxu0
        %v7703 = vadd.f32 %v7590, %v7702
        %7704 = vmatmul.bf16.gmra.mxu0 %v5093
        %v7705 = vpop.f32.mrf.mxu0
        %v7706 = vadd.f32 %v7593, %v7705
        %v7707 = vpop.f32.mrf.mxu0
        %v7708 = vadd.f32 %v7595, %v7707
        %7709 = vmatmul.bf16.gmra.mxu0 %v5102
        %v7710 = vpop.f32.mrf.mxu0
        %v7711 = vadd.f32 %v7598, %v7710
        %v7712 = vpop.f32.mrf.mxu0
        %v7713 = vadd.f32 %v7600, %v7712
        %7714 = vmatmul.bf16.gmra.mxu0 %v5111
        %v7715 = vpop.f32.mrf.mxu0
        %v7716 = vadd.f32 %v7603, %v7715
        %v7717 = vpop.f32.mrf.mxu0
        %7718 = vdwg.mxu0
        %7719 = vmatpush.bf16.msra.mxu0 %v5847
        %7720 = vmatpush.bf16.msra.mxu0 %v5845
        %7721 = vmatpush.bf16.msra.mxu0 %v5843
        %7722 = vmatpush.bf16.msra.mxu0 %v5841
        %7723 = vmatpush.bf16.msra.mxu0 %v5839
        %7724 = vmatpush.bf16.msra.mxu0 %v5837
        %7725 = vmatpush.bf16.msra.mxu0 %v5835
        %7726 = vmatpush.bf16.msra.mxu0 %v5833
        %7727 = vmatmul.bf16.gmra.mxu0 %v4932
        %v7728 = vpop.f32.mrf.mxu0
        %v7729 = vadd.f32 %v7616, %v7728
        %v7730 = vpop.f32.mrf.mxu0
        %v7731 = vadd.f32 %v7618, %v7730
        %7732 = vmatmul.bf16.gmra.mxu0 %v4941
        %v7733 = vpop.f32.mrf.mxu0
        %v7734 = vadd.f32 %v7621, %v7733
        %v7735 = vpop.f32.mrf.mxu0
        %v7736 = vadd.f32 %v7623, %v7735
        %7737 = vmatmul.bf16.gmra.mxu0 %v4950
        %v7738 = vpop.f32.mrf.mxu0
        %v7739 = vadd.f32 %v7626, %v7738
        %v7740 = vpop.f32.mrf.mxu0
        %v7741 = vadd.f32 %v7628, %v7740
        %7742 = vmatmul.bf16.gmra.mxu0 %v4959
        %v7743 = vpop.f32.mrf.mxu0
        %v7744 = vadd.f32 %v7631, %v7743
        %v7745 = vpop.f32.mrf.mxu0
        %v7746 = vadd.f32 %v7633, %v7745
        %7747 = vmatmul.bf16.gmra.mxu0 %v4968
        %v7748 = vpop.f32.mrf.mxu0
        %v7749 = vadd.f32 %v7636, %v7748
        %v7750 = vpop.f32.mrf.mxu0
        %v7751 = vadd.f32 %v7638, %v7750
        %7752 = vmatmul.bf16.gmra.mxu0 %v4977
        %v7753 = vpop.f32.mrf.mxu0
        %v7754 = vadd.f32 %v7641, %v7753
        %v7755 = vpop.f32.mrf.mxu0
        %v7756 = vadd.f32 %v7643, %v7755
        %7757 = vmatmul.bf16.gmra.mxu0 %v4986
        %v7758 = vpop.f32.mrf.mxu0
        %v7759 = vadd.f32 %v7646, %v7758
        %v7760 = vpop.f32.mrf.mxu0
        %v7761 = vadd.f32 %v7648, %v7760
        %7762 = vmatmul.bf16.gmra.mxu0 %v4995
        %v7763 = vpop.f32.mrf.mxu0
        %v7764 = vadd.f32 %v7651, %v7763
        %v7765 = vpop.f32.mrf.mxu0
        %v7766 = vadd.f32 %v7653, %v7765
        %7767 = vmatmul.bf16.gmra.mxu0 %v5004
        %v7768 = vpop.f32.mrf.mxu0
        %v7769 = vadd.f32 %v7656, %v7768
        %v7770 = vpop.f32.mrf.mxu0
        %v7771 = vadd.f32 %v7658, %v7770
        %7772 = vmatmul.bf16.gmra.mxu0 %v5013
        %v7773 = vpop.f32.mrf.mxu0
        %v7774 = vadd.f32 %v7661, %v7773
        %v7775 = vpop.f32.mrf.mxu0
        %v7776 = vadd.f32 %v7663, %v7775
        %7777 = vmatmul.bf16.gmra.mxu0 %v5022
        %v7778 = vpop.f32.mrf.mxu0
        %v7779 = vadd.f32 %v7666, %v7778
        %v7780 = vpop.f32.mrf.mxu0
        %v7781 = vadd.f32 %v7668, %v7780
        %7782 = vmatmul.bf16.gmra.mxu0 %v5031
        %v7783 = vpop.f32.mrf.mxu0
        %v7784 = vadd.f32 %v7671, %v7783
        %v7785 = vpop.f32.mrf.mxu0
        %v7786 = vadd.f32 %v7673, %v7785
        %7787 = vmatmul.bf16.gmra.mxu0 %v5040
        %v7788 = vpop.f32.mrf.mxu0
        %v7789 = vadd.f32 %v7676, %v7788
        %v7790 = vpop.f32.mrf.mxu0
        %v7791 = vadd.f32 %v7678, %v7790
        %7792 = vmatmul.bf16.gmra.mxu0 %v5049
        %v7793 = vpop.f32.mrf.mxu0
        %v7794 = vadd.f32 %v7681, %v7793
        %v7795 = vpop.f32.mrf.mxu0
        %v7796 = vadd.f32 %v7683, %v7795
        %7797 = vmatmul.bf16.gmra.mxu0 %v5058
        %v7798 = vpop.f32.mrf.mxu0
        %v7799 = vadd.f32 %v7686, %v7798
        %v7800 = vpop.f32.mrf.mxu0
        %v7801 = vadd.f32 %v7688, %v7800
        %7802 = vmatmul.bf16.gmra.mxu0 %v5067
        %v7803 = vpop.f32.mrf.mxu0
        %v7804 = vadd.f32 %v7691, %v7803
        %v7805 = vpop.f32.mrf.mxu0
        %v7806 = vadd.f32 %v7693, %v7805
        %7807 = vmatmul.bf16.gmra.mxu0 %v5076
        %v7808 = vpop.f32.mrf.mxu0
        %v7809 = vadd.f32 %v7696, %v7808
        %v7810 = vpop.f32.mrf.mxu0
        %v7811 = vadd.f32 %v7698, %v7810
        %7812 = vmatmul.bf16.gmra.mxu0 %v5085
        %v7813 = vpop.f32.mrf.mxu0
        %v7814 = vadd.f32 %v7701, %v7813
        %v7815 = vpop.f32.mrf.mxu0
        %v7816 = vadd.f32 %v7703, %v7815
        %7817 = vmatmul.bf16.gmra.mxu0 %v5094
        %v7818 = vpop.f32.mrf.mxu0
        %v7819 = vadd.f32 %v7706, %v7818
        %v7820 = vpop.f32.mrf.mxu0
        %v7821 = vadd.f32 %v7708, %v7820
        %7822 = vmatmul.bf16.gmra.mxu0 %v5103
        %v7823 = vpop.f32.mrf.mxu0
        %v7824 = vadd.f32 %v7711, %v7823
        %v7825 = vpop.f32.mrf.mxu0
        %v7826 = vadd.f32 %v7713, %v7825
        %7827 = vmatmul.bf16.gmra.mxu0 %v5112
        %v7828 = vpop.f32.mrf.mxu0
        %v7829 = vadd.f32 %v7716, %v7828
        %v7830 = vpop.f32.mrf.mxu0
        %7831 = vdwg.mxu0
        %7832 = vmatpush.bf16.msra.mxu0 %v5863
        %7833 = vmatpush.bf16.msra.mxu0 %v5861
        %7834 = vmatpush.bf16.msra.mxu0 %v5859
        %7835 = vmatpush.bf16.msra.mxu0 %v5857
        %7836 = vmatpush.bf16.msra.mxu0 %v5855
        %7837 = vmatpush.bf16.msra.mxu0 %v5853
        %7838 = vmatpush.bf16.msra.mxu0 %v5851
        %7839 = vmatpush.bf16.msra.mxu0 %v5849
        %7840 = vmatmul.bf16.gmra.mxu0 %v4933
        %v7841 = vpop.f32.mrf.mxu0
        %v7842 = vadd.f32 %v7729, %v7841
        %v7843 = vpop.f32.mrf.mxu0
        %v7844 = vadd.f32 %v7731, %v7843
        %7845 = vmatmul.bf16.gmra.mxu0 %v4942
        %v7846 = vpop.f32.mrf.mxu0
        %v7847 = vadd.f32 %v7734, %v7846
        %v7848 = vpop.f32.mrf.mxu0
        %v7849 = vadd.f32 %v7736, %v7848
        %7850 = vmatmul.bf16.gmra.mxu0 %v4951
        %v7851 = vpop.f32.mrf.mxu0
        %v7852 = vadd.f32 %v7739, %v7851
        %v7853 = vpop.f32.mrf.mxu0
        %v7854 = vadd.f32 %v7741, %v7853
        %7855 = vmatmul.bf16.gmra.mxu0 %v4960
        %v7856 = vpop.f32.mrf.mxu0
        %v7857 = vadd.f32 %v7744, %v7856
        %v7858 = vpop.f32.mrf.mxu0
        %v7859 = vadd.f32 %v7746, %v7858
        %7860 = vmatmul.bf16.gmra.mxu0 %v4969
        %v7861 = vpop.f32.mrf.mxu0
        %v7862 = vadd.f32 %v7749, %v7861
        %v7863 = vpop.f32.mrf.mxu0
        %v7864 = vadd.f32 %v7751, %v7863
        %7865 = vmatmul.bf16.gmra.mxu0 %v4978
        %v7866 = vpop.f32.mrf.mxu0
        %v7867 = vadd.f32 %v7754, %v7866
        %v7868 = vpop.f32.mrf.mxu0
        %v7869 = vadd.f32 %v7756, %v7868
        %7870 = vmatmul.bf16.gmra.mxu0 %v4987
        %v7871 = vpop.f32.mrf.mxu0
        %v7872 = vadd.f32 %v7759, %v7871
        %v7873 = vpop.f32.mrf.mxu0
        %v7874 = vadd.f32 %v7761, %v7873
        %7875 = vmatmul.bf16.gmra.mxu0 %v4996
        %v7876 = vpop.f32.mrf.mxu0
        %v7877 = vadd.f32 %v7764, %v7876
        %v7878 = vpop.f32.mrf.mxu0
        %v7879 = vadd.f32 %v7766, %v7878
        %7880 = vmatmul.bf16.gmra.mxu0 %v5005
        %v7881 = vpop.f32.mrf.mxu0
        %v7882 = vadd.f32 %v7769, %v7881
        %v7883 = vpop.f32.mrf.mxu0
        %v7884 = vadd.f32 %v7771, %v7883
        %7885 = vmatmul.bf16.gmra.mxu0 %v5014
        %v7886 = vpop.f32.mrf.mxu0
        %v7887 = vadd.f32 %v7774, %v7886
        %v7888 = vpop.f32.mrf.mxu0
        %v7889 = vadd.f32 %v7776, %v7888
        %7890 = vmatmul.bf16.gmra.mxu0 %v5023
        %v7891 = vpop.f32.mrf.mxu0
        %v7892 = vadd.f32 %v7779, %v7891
        %v7893 = vpop.f32.mrf.mxu0
        %v7894 = vadd.f32 %v7781, %v7893
        %7895 = vmatmul.bf16.gmra.mxu0 %v5032
        %v7896 = vpop.f32.mrf.mxu0
        %v7897 = vadd.f32 %v7784, %v7896
        %v7898 = vpop.f32.mrf.mxu0
        %v7899 = vadd.f32 %v7786, %v7898
        %7900 = vmatmul.bf16.gmra.mxu0 %v5041
        %v7901 = vpop.f32.mrf.mxu0
        %v7902 = vadd.f32 %v7789, %v7901
        %v7903 = vpop.f32.mrf.mxu0
        %v7904 = vadd.f32 %v7791, %v7903
        %7905 = vmatmul.bf16.gmra.mxu0 %v5050
        %v7906 = vpop.f32.mrf.mxu0
        %v7907 = vadd.f32 %v7794, %v7906
        %v7908 = vpop.f32.mrf.mxu0
        %v7909 = vadd.f32 %v7796, %v7908
        %7910 = vmatmul.bf16.gmra.mxu0 %v5059
        %v7911 = vpop.f32.mrf.mxu0
        %v7912 = vadd.f32 %v7799, %v7911
        %v7913 = vpop.f32.mrf.mxu0
        %v7914 = vadd.f32 %v7801, %v7913
        %7915 = vmatmul.bf16.gmra.mxu0 %v5068
        %v7916 = vpop.f32.mrf.mxu0
        %v7917 = vadd.f32 %v7804, %v7916
        %v7918 = vpop.f32.mrf.mxu0
        %v7919 = vadd.f32 %v7806, %v7918
        %7920 = vmatmul.bf16.gmra.mxu0 %v5077
        %v7921 = vpop.f32.mrf.mxu0
        %v7922 = vadd.f32 %v7809, %v7921
        %v7923 = vpop.f32.mrf.mxu0
        %v7924 = vadd.f32 %v7811, %v7923
        %7925 = vmatmul.bf16.gmra.mxu0 %v5086
        %v7926 = vpop.f32.mrf.mxu0
        %v7927 = vadd.f32 %v7814, %v7926
        %v7928 = vpop.f32.mrf.mxu0
        %v7929 = vadd.f32 %v7816, %v7928
        %7930 = vmatmul.bf16.gmra.mxu0 %v5095
        %v7931 = vpop.f32.mrf.mxu0
        %v7932 = vadd.f32 %v7819, %v7931
        %v7933 = vpop.f32.mrf.mxu0
        %v7934 = vadd.f32 %v7821, %v7933
        %7935 = vmatmul.bf16.gmra.mxu0 %v5104
        %v7936 = vpop.f32.mrf.mxu0
        %v7937 = vadd.f32 %v7824, %v7936
        %v7938 = vpop.f32.mrf.mxu0
        %v7939 = vadd.f32 %v7826, %v7938
        %7940 = vmatmul.bf16.gmra.mxu0 %v5113
        %v7941 = vpop.f32.mrf.mxu0
        %v7942 = vadd.f32 %v7829, %v7941
        %v7943 = vpop.f32.mrf.mxu0
        %7944 = vdwg.mxu0
        %7945 = vmatpush.bf16.msra.mxu0 %v5879
        %7946 = vmatpush.bf16.msra.mxu0 %v5877
        %7947 = vmatpush.bf16.msra.mxu0 %v5875
        %7948 = vmatpush.bf16.msra.mxu0 %v5873
        %7949 = vmatpush.bf16.msra.mxu0 %v5871
        %7950 = vmatpush.bf16.msra.mxu0 %v5869
        %7951 = vmatpush.bf16.msra.mxu0 %v5867
        %7952 = vmatpush.bf16.msra.mxu0 %v5865
        %7953 = vmatmul.bf16.gmra.mxu0 %v4934
        %v7954 = vpop.f32.mrf.mxu0
        %v7955 = vadd.f32 %v7842, %v7954
        %v7956 = vpop.f32.mrf.mxu0
        %v7957 = vadd.f32 %v7844, %v7956
        %7958 = vmatmul.bf16.gmra.mxu0 %v4943
        %v7959 = vpop.f32.mrf.mxu0
        %v7960 = vadd.f32 %v7847, %v7959
        %v7961 = vpop.f32.mrf.mxu0
        %v7962 = vadd.f32 %v7849, %v7961
        %7963 = vmatmul.bf16.gmra.mxu0 %v4952
        %v7964 = vpop.f32.mrf.mxu0
        %v7965 = vadd.f32 %v7852, %v7964
        %v7966 = vpop.f32.mrf.mxu0
        %v7967 = vadd.f32 %v7854, %v7966
        %7968 = vmatmul.bf16.gmra.mxu0 %v4961
        %v7969 = vpop.f32.mrf.mxu0
        %v7970 = vadd.f32 %v7857, %v7969
        %v7971 = vpop.f32.mrf.mxu0
        %v7972 = vadd.f32 %v7859, %v7971
        %7973 = vmatmul.bf16.gmra.mxu0 %v4970
        %v7974 = vpop.f32.mrf.mxu0
        %v7975 = vadd.f32 %v7862, %v7974
        %v7976 = vpop.f32.mrf.mxu0
        %v7977 = vadd.f32 %v7864, %v7976
        %7978 = vmatmul.bf16.gmra.mxu0 %v4979
        %v7979 = vpop.f32.mrf.mxu0
        %v7980 = vadd.f32 %v7867, %v7979
        %v7981 = vpop.f32.mrf.mxu0
        %v7982 = vadd.f32 %v7869, %v7981
        %7983 = vmatmul.bf16.gmra.mxu0 %v4988
        %v7984 = vpop.f32.mrf.mxu0
        %v7985 = vadd.f32 %v7872, %v7984
        %v7986 = vpop.f32.mrf.mxu0
        %v7987 = vadd.f32 %v7874, %v7986
        %7988 = vmatmul.bf16.gmra.mxu0 %v4997
        %v7989 = vpop.f32.mrf.mxu0
        %v7990 = vadd.f32 %v7877, %v7989
        %v7991 = vpop.f32.mrf.mxu0
        %v7992 = vadd.f32 %v7879, %v7991
        %7993 = vmatmul.bf16.gmra.mxu0 %v5006
        %v7994 = vpop.f32.mrf.mxu0
        %v7995 = vadd.f32 %v7882, %v7994
        %v7996 = vpop.f32.mrf.mxu0
        %v7997 = vadd.f32 %v7884, %v7996
        %7998 = vmatmul.bf16.gmra.mxu0 %v5015
        %v7999 = vpop.f32.mrf.mxu0
        %v8000 = vadd.f32 %v7887, %v7999
        %v8001 = vpop.f32.mrf.mxu0
        %v8002 = vadd.f32 %v7889, %v8001
        %8003 = vmatmul.bf16.gmra.mxu0 %v5024
        %v8004 = vpop.f32.mrf.mxu0
        %v8005 = vadd.f32 %v7892, %v8004
        %v8006 = vpop.f32.mrf.mxu0
        %v8007 = vadd.f32 %v7894, %v8006
        %8008 = vmatmul.bf16.gmra.mxu0 %v5033
        %v8009 = vpop.f32.mrf.mxu0
        %v8010 = vadd.f32 %v7897, %v8009
        %v8011 = vpop.f32.mrf.mxu0
        %v8012 = vadd.f32 %v7899, %v8011
        %8013 = vmatmul.bf16.gmra.mxu0 %v5042
        %v8014 = vpop.f32.mrf.mxu0
        %v8015 = vadd.f32 %v7902, %v8014
        %v8016 = vpop.f32.mrf.mxu0
        %v8017 = vadd.f32 %v7904, %v8016
        %8018 = vmatmul.bf16.gmra.mxu0 %v5051
        %v8019 = vpop.f32.mrf.mxu0
        %v8020 = vadd.f32 %v7907, %v8019
        %v8021 = vpop.f32.mrf.mxu0
        %v8022 = vadd.f32 %v7909, %v8021
        %8023 = vmatmul.bf16.gmra.mxu0 %v5060
        %v8024 = vpop.f32.mrf.mxu0
        %v8025 = vadd.f32 %v7912, %v8024
        %v8026 = vpop.f32.mrf.mxu0
        %v8027 = vadd.f32 %v7914, %v8026
        %8028 = vmatmul.bf16.gmra.mxu0 %v5069
        %v8029 = vpop.f32.mrf.mxu0
        %v8030 = vadd.f32 %v7917, %v8029
        %v8031 = vpop.f32.mrf.mxu0
        %v8032 = vadd.f32 %v7919, %v8031
        %8033 = vmatmul.bf16.gmra.mxu0 %v5078
        %v8034 = vpop.f32.mrf.mxu0
        %v8035 = vadd.f32 %v7922, %v8034
        %v8036 = vpop.f32.mrf.mxu0
        %v8037 = vadd.f32 %v7924, %v8036
        %8038 = vmatmul.bf16.gmra.mxu0 %v5087
        %v8039 = vpop.f32.mrf.mxu0
        %v8040 = vadd.f32 %v7927, %v8039
        %v8041 = vpop.f32.mrf.mxu0
        %v8042 = vadd.f32 %v7929, %v8041
        %8043 = vmatmul.bf16.gmra.mxu0 %v5096
        %v8044 = vpop.f32.mrf.mxu0
        %v8045 = vadd.f32 %v7932, %v8044
        %v8046 = vpop.f32.mrf.mxu0
        %v8047 = vadd.f32 %v7934, %v8046
        %8048 = vmatmul.bf16.gmra.mxu0 %v5105
        %v8049 = vpop.f32.mrf.mxu0
        %v8050 = vadd.f32 %v7937, %v8049
        %v8051 = vpop.f32.mrf.mxu0
        %v8052 = vadd.f32 %v7939, %v8051
        %8053 = vmatmul.bf16.gmra.mxu0 %v5114
        %v8054 = vpop.f32.mrf.mxu0
        %v8055 = vadd.f32 %v7942, %v8054
        %v8056 = vpop.f32.mrf.mxu0
        %8057 = vdwg.mxu0
        %8058 = vst [vmem:[%s198] sm:$0xff] %v6938
        %8059 = vst [vmem:[%s198 + $0x8] sm:$0xff] %v7955
        %8060 = vst [vmem:[%s198 + $0x10] sm:$0xff] %v6940
        %8061 = vst [vmem:[%s198 + $0x18] sm:$0xff] %v7957
        %8062 = vst [vmem:[%s198 + $0x20] sm:$0xff] %v6943
        %8063 = vst [vmem:[%s198 + $0x28] sm:$0xff] %v7960
        %8064 = vst [vmem:[%s198 + $0x30] sm:$0xff] %v6945
        %8065 = vst [vmem:[%s198 + $0x38] sm:$0xff] %v7962
        %8066 = vst [vmem:[%s198 + $0x40] sm:$0xff] %v6948
        %8067 = vst [vmem:[%s198 + $0x48] sm:$0xff] %v7965
        %8068 = vst [vmem:[%s198 + $0x50] sm:$0xff] %v6950
        %8069 = vst [vmem:[%s198 + $0x58] sm:$0xff] %v7967
        %8070 = vst [vmem:[%s198 + $0x60] sm:$0xff] %v6953
        %8071 = vst [vmem:[%s198 + $0x68] sm:$0xff] %v7970
        %8072 = vst [vmem:[%s198 + $0x70] sm:$0xff] %v6955
        %8073 = vst [vmem:[%s198 + $0x78] sm:$0xff] %v7972
        %8074 = vst [vmem:[%s198 + $0x80] sm:$0xff] %v6958
        %8075 = vst [vmem:[%s198 + $0x88] sm:$0xff] %v7975
        %8076 = vst [vmem:[%s198 + $0x90] sm:$0xff] %v6960
        %8077 = vst [vmem:[%s198 + $0x98] sm:$0xff] %v7977
        %8078 = vst [vmem:[%s198 + $0xa0] sm:$0xff] %v6963
        %8079 = vst [vmem:[%s198 + $0xa8] sm:$0xff] %v7980
        %8080 = vst [vmem:[%s198 + $0xb0] sm:$0xff] %v6965
        %8081 = vst [vmem:[%s198 + $0xb8] sm:$0xff] %v7982
        %8082 = vst [vmem:[%s198 + $0xc0] sm:$0xff] %v6968
        %8083 = vst [vmem:[%s198 + $0xc8] sm:$0xff] %v7985
        %8084 = vst [vmem:[%s198 + $0xd0] sm:$0xff] %v6970
        %8085 = vst [vmem:[%s198 + $0xd8] sm:$0xff] %v7987
        %8086 = vst [vmem:[%s198 + $0xe0] sm:$0xff] %v6973
        %8087 = vst [vmem:[%s198 + $0xe8] sm:$0xff] %v7990
        %8088 = vst [vmem:[%s198 + $0xf0] sm:$0xff] %v6975
        %8089 = vst [vmem:[%s198 + $0xf8] sm:$0xff] %v7992
        %8090 = vst [vmem:[%s198 + $0x100] sm:$0xff] %v6978
        %8091 = vst [vmem:[%s198 + $0x108] sm:$0xff] %v7995
        %8092 = vst [vmem:[%s198 + $0x110] sm:$0xff] %v6980
        %8093 = vst [vmem:[%s198 + $0x118] sm:$0xff] %v7997
        %8094 = vst [vmem:[%s198 + $0x120] sm:$0xff] %v6983
        %8095 = vst [vmem:[%s198 + $0x128] sm:$0xff] %v8000
        %8096 = vst [vmem:[%s198 + $0x130] sm:$0xff] %v6985
        %8097 = vst [vmem:[%s198 + $0x138] sm:$0xff] %v8002
        %8098 = vst [vmem:[%s198 + $0x140] sm:$0xff] %v6988
        %8099 = vst [vmem:[%s198 + $0x148] sm:$0xff] %v8005
        %8100 = vst [vmem:[%s198 + $0x150] sm:$0xff] %v6990
        %8101 = vst [vmem:[%s198 + $0x158] sm:$0xff] %v8007
        %8102 = vst [vmem:[%s198 + $0x160] sm:$0xff] %v6993
        %8103 = vst [vmem:[%s198 + $0x168] sm:$0xff] %v8010
        %8104 = vst [vmem:[%s198 + $0x170] sm:$0xff] %v6995
        %8105 = vst [vmem:[%s198 + $0x178] sm:$0xff] %v8012
        %8106 = vst [vmem:[%s198 + $0x180] sm:$0xff] %v6998
        %8107 = vst [vmem:[%s198 + $0x188] sm:$0xff] %v8015
        %8108 = vst [vmem:[%s198 + $0x190] sm:$0xff] %v7000
        %8109 = vst [vmem:[%s198 + $0x198] sm:$0xff] %v8017
        %8110 = vst [vmem:[%s198 + $0x1a0] sm:$0xff] %v7003
        %8111 = vst [vmem:[%s198 + $0x1a8] sm:$0xff] %v8020
        %8112 = vst [vmem:[%s198 + $0x1b0] sm:$0xff] %v7005
        %8113 = vst [vmem:[%s198 + $0x1b8] sm:$0xff] %v8022
        %8114 = vst [vmem:[%s198 + $0x1c0] sm:$0xff] %v7008
        %8115 = vst [vmem:[%s198 + $0x1c8] sm:$0xff] %v8025
        %8116 = vst [vmem:[%s198 + $0x1d0] sm:$0xff] %v7010
        %8117 = vst [vmem:[%s198 + $0x1d8] sm:$0xff] %v8027
        %8118 = vst [vmem:[%s198 + $0x1e0] sm:$0xff] %v7013
        %8119 = vst [vmem:[%s198 + $0x1e8] sm:$0xff] %v8030
        %8120 = vst [vmem:[%s198 + $0x1f0] sm:$0xff] %v7015
        %8121 = vst [vmem:[%s198 + $0x1f8] sm:$0xff] %v8032
        %8122 = vst [vmem:[%s198 + $0x200] sm:$0xff] %v7018
        %8123 = vst [vmem:[%s198 + $0x208] sm:$0xff] %v8035
        %8124 = vst [vmem:[%s198 + $0x210] sm:$0xff] %v7020
        %8125 = vst [vmem:[%s198 + $0x218] sm:$0xff] %v8037
        %8126 = vst [vmem:[%s198 + $0x220] sm:$0xff] %v7023
        %8127 = vst [vmem:[%s198 + $0x228] sm:$0xff] %v8040
        %8128 = vst [vmem:[%s198 + $0x230] sm:$0xff] %v7025
        %8129 = vst [vmem:[%s198 + $0x238] sm:$0xff] %v8042
        %8130 = vst [vmem:[%s198 + $0x240] sm:$0xff] %v7028
        %8131 = vst [vmem:[%s198 + $0x248] sm:$0xff] %v8045
        %8132 = vst [vmem:[%s198 + $0x250] sm:$0xff] %v7030
        %8133 = vst [vmem:[%s198 + $0x258] sm:$0xff] %v8047
        %8134 = vst [vmem:[%s198 + $0x260] sm:$0xff] %v7033
        %8135 = vst [vmem:[%s198 + $0x268] sm:$0xff] %v8050
        %8136 = vst [vmem:[%s198 + $0x270] sm:$0xff] %v7035
        %8137 = vst [vmem:[%s198 + $0x278] sm:$0xff] %v8052
        %8138 = vst [vmem:[%s198 + $0x280] sm:$0xf] %v7038
        %8139 = vst [vmem:[%s198 + $0x288] sm:$0xf] %v8055
        %v8140 = vlaneseq
        %v8141 = vshrl.u32 %v8140, 7
        %v8142 = vadd.s32 %v8141, 8
        %v8143 = vadd.s32 %v8141, 16
        %v8144 = vadd.s32 %v8141, 24
        %v8145 = vadd.s32 %v8141, 32
        %v8146 = vadd.s32 %v8141, 40
        %v8147 = vadd.s32 %v8141, 48
        %v8148 = vadd.s32 %v8141, 56
        %v8149 = vadd.s32 %v8141, 64
        %v8150 = vadd.s32 %v8141, 72
        %v8151 = vadd.s32 %v8141, 80
        %v8152 = vadd.s32 %v8141, 88
        %v8153 = vadd.s32 %v8141, 96
        %v8154 = vadd.s32 %v8141, 104
        %v8155 = vadd.s32 %v8141, 112
        %v8156 = vadd.s32 %v8141, 120
        %v8157 = vadd.s32 %v8141, 128
        %v8158 = vadd.s32 %v8141, 136
        %v8159 = vadd.s32 %v8141, 144
        %v8160 = vadd.s32 %v8141, 152
        %v8161 = vadd.s32 %v8141, 160
        %v8162 = vadd.s32 %v8141, 168
        %v8163 = vadd.s32 %v8141, 176
        %v8164 = vadd.s32 %v8141, 184
        %v8165 = vadd.s32 %v8141, 192
        %v8166 = vadd.s32 %v8141, 200
        %v8167 = vadd.s32 %v8141, 208
        %v8168 = vadd.s32 %v8141, 216
        %v8169 = vadd.s32 %v8141, 224
        %v8170 = vadd.s32 %v8141, 232
        %v8171 = vadd.s32 %v8141, 240
        %v8172 = vadd.s32 %v8141, 248
        %v8173 = vadd.s32 %v8141, 256
        %v8174 = vadd.s32 %v8141, 264
        %v8175 = vadd.s32 %v8141, 272
        %v8176 = vadd.s32 %v8141, 280
        %v8177 = vadd.s32 %v8141, 288
        %v8178 = vadd.s32 %v8141, 296
        %v8179 = vadd.s32 %v8141, 304
        %v8180 = vadd.s32 %v8141, 312
        %v8181 = vadd.s32 %v8141, 320
        %v8182 = vcvt.s32.f32 %v8141
        %v8183 = vcvt.s32.f32 %v8142
        %v8184 = vcvt.s32.f32 %v8143
        %v8185 = vcvt.s32.f32 %v8144
        %v8186 = vcvt.s32.f32 %v8145
        %v8187 = vcvt.s32.f32 %v8146
        %v8188 = vcvt.s32.f32 %v8147
        %v8189 = vcvt.s32.f32 %v8148
        %v8190 = vcvt.s32.f32 %v8149
        %v8191 = vcvt.s32.f32 %v8150
        %v8192 = vcvt.s32.f32 %v8151
        %v8193 = vcvt.s32.f32 %v8152
        %v8194 = vcvt.s32.f32 %v8153
        %v8195 = vcvt.s32.f32 %v8154
        %v8196 = vcvt.s32.f32 %v8155
        %v8197 = vcvt.s32.f32 %v8156
        %v8198 = vcvt.s32.f32 %v8157
        %v8199 = vcvt.s32.f32 %v8158
        %v8200 = vcvt.s32.f32 %v8159
        %v8201 = vcvt.s32.f32 %v8160
        %v8202 = vcvt.s32.f32 %v8161
        %v8203 = vcvt.s32.f32 %v8162
        %v8204 = vcvt.s32.f32 %v8163
        %v8205 = vcvt.s32.f32 %v8164
        %v8206 = vcvt.s32.f32 %v8165
        %v8207 = vcvt.s32.f32 %v8166
        %v8208 = vcvt.s32.f32 %v8167
        %v8209 = vcvt.s32.f32 %v8168
        %v8210 = vcvt.s32.f32 %v8169
        %v8211 = vcvt.s32.f32 %v8170
        %v8212 = vcvt.s32.f32 %v8171
        %v8213 = vcvt.s32.f32 %v8172
        %v8214 = vcvt.s32.f32 %v8173
        %v8215 = vcvt.s32.f32 %v8174
        %v8216 = vcvt.s32.f32 %v8175
        %v8217 = vcvt.s32.f32 %v8176
        %v8218 = vcvt.s32.f32 %v8177
        %v8219 = vcvt.s32.f32 %v8178
        %v8220 = vcvt.s32.f32 %v8179
        %v8221 = vcvt.s32.f32 %v8180
        %v8222 = vcvt.s32.f32 %v8181
        %v8223 = vadd.f32 %v8182, 0.5
        %v8224 = vadd.f32 %v8183, 0.5
        %v8225 = vadd.f32 %v8184, 0.5
        %v8226 = vadd.f32 %v8185, 0.5
        %v8227 = vadd.f32 %v8186, 0.5
        %v8228 = vadd.f32 %v8187, 0.5
        %v8229 = vadd.f32 %v8188, 0.5
        %v8230 = vadd.f32 %v8189, 0.5
        %v8231 = vadd.f32 %v8190, 0.5
        %v8232 = vadd.f32 %v8191, 0.5
        %v8233 = vadd.f32 %v8192, 0.5
        %v8234 = vadd.f32 %v8193, 0.5
        %v8235 = vadd.f32 %v8194, 0.5
        %v8236 = vadd.f32 %v8195, 0.5
        %v8237 = vadd.f32 %v8196, 0.5
        %v8238 = vadd.f32 %v8197, 0.5
        %v8239 = vadd.f32 %v8198, 0.5
        %v8240 = vadd.f32 %v8199, 0.5
        %v8241 = vadd.f32 %v8200, 0.5
        %v8242 = vadd.f32 %v8201, 0.5
        %v8243 = vadd.f32 %v8202, 0.5
        %v8244 = vadd.f32 %v8203, 0.5
        %v8245 = vadd.f32 %v8204, 0.5
        %v8246 = vadd.f32 %v8205, 0.5
        %v8247 = vadd.f32 %v8206, 0.5
        %v8248 = vadd.f32 %v8207, 0.5
        %v8249 = vadd.f32 %v8208, 0.5
        %v8250 = vadd.f32 %v8209, 0.5
        %v8251 = vadd.f32 %v8210, 0.5
        %v8252 = vadd.f32 %v8211, 0.5
        %v8253 = vadd.f32 %v8212, 0.5
        %v8254 = vadd.f32 %v8213, 0.5
        %v8255 = vadd.f32 %v8214, 0.5
        %v8256 = vadd.f32 %v8215, 0.5
        %v8257 = vadd.f32 %v8216, 0.5
        %v8258 = vadd.f32 %v8217, 0.5
        %v8259 = vadd.f32 %v8218, 0.5
        %v8260 = vadd.f32 %v8219, 0.5
        %v8261 = vadd.f32 %v8220, 0.5
        %v8262 = vadd.f32 %v8221, 0.5
        %v8263 = vadd.f32 %v8222, 0.5
        %v8264 = vmul.f32 %v8223, 0.055555556
        %v8265 = vmul.f32 %v8224, 0.055555556
        %v8266 = vmul.f32 %v8225, 0.055555556
        %v8267 = vmul.f32 %v8226, 0.055555556
        %v8268 = vmul.f32 %v8227, 0.055555556
        %v8269 = vmul.f32 %v8228, 0.055555556
        %v8270 = vmul.f32 %v8229, 0.055555556
        %v8271 = vmul.f32 %v8230, 0.055555556
        %v8272 = vmul.f32 %v8231, 0.055555556
        %v8273 = vmul.f32 %v8232, 0.055555556
        %v8274 = vmul.f32 %v8233, 0.055555556
        %v8275 = vmul.f32 %v8234, 0.055555556
        %v8276 = vmul.f32 %v8235, 0.055555556
        %v8277 = vmul.f32 %v8236, 0.055555556
        %v8278 = vmul.f32 %v8237, 0.055555556
        %v8279 = vmul.f32 %v8238, 0.055555556
        %v8280 = vmul.f32 %v8239, 0.055555556
        %v8281 = vmul.f32 %v8240, 0.055555556
        %v8282 = vmul.f32 %v8241, 0.055555556
        %v8283 = vmul.f32 %v8242, 0.055555556
        %v8284 = vmul.f32 %v8243, 0.055555556
        %v8285 = vmul.f32 %v8244, 0.055555556
        %v8286 = vmul.f32 %v8245, 0.055555556
        %v8287 = vmul.f32 %v8246, 0.055555556
        %v8288 = vmul.f32 %v8247, 0.055555556
        %v8289 = vmul.f32 %v8248, 0.055555556
        %v8290 = vmul.f32 %v8249, 0.055555556
        %v8291 = vmul.f32 %v8250, 0.055555556
        %v8292 = vmul.f32 %v8251, 0.055555556
        %v8293 = vmul.f32 %v8252, 0.055555556
        %v8294 = vmul.f32 %v8253, 0.055555556
        %v8295 = vmul.f32 %v8254, 0.055555556
        %v8296 = vmul.f32 %v8255, 0.055555556
        %v8297 = vmul.f32 %v8256, 0.055555556
        %v8298 = vmul.f32 %v8257, 0.055555556
        %v8299 = vmul.f32 %v8258, 0.055555556
        %v8300 = vmul.f32 %v8259, 0.055555556
        %v8301 = vmul.f32 %v8260, 0.055555556
        %v8302 = vmul.f32 %v8261, 0.055555556
        %v8303 = vmul.f32 %v8262, 0.055555556
        %v8304 = vmul.f32 %v8263, 0.055555556
        %v8305 = vfloor.f32 %v8264
        %v8306 = vfloor.f32 %v8265
        %v8307 = vfloor.f32 %v8266
        %v8308 = vfloor.f32 %v8267
        %v8309 = vfloor.f32 %v8268
        %v8310 = vfloor.f32 %v8269
        %v8311 = vfloor.f32 %v8270
        %v8312 = vfloor.f32 %v8271
        %v8313 = vfloor.f32 %v8272
        %v8314 = vfloor.f32 %v8273
        %v8315 = vfloor.f32 %v8274
        %v8316 = vfloor.f32 %v8275
        %v8317 = vfloor.f32 %v8276
        %v8318 = vfloor.f32 %v8277
        %v8319 = vfloor.f32 %v8278
        %v8320 = vfloor.f32 %v8279
        %v8321 = vfloor.f32 %v8280
        %v8322 = vfloor.f32 %v8281
        %v8323 = vfloor.f32 %v8282
        %v8324 = vfloor.f32 %v8283
        %v8325 = vfloor.f32 %v8284
        %v8326 = vfloor.f32 %v8285
        %v8327 = vfloor.f32 %v8286
        %v8328 = vfloor.f32 %v8287
        %v8329 = vfloor.f32 %v8288
        %v8330 = vfloor.f32 %v8289
        %v8331 = vfloor.f32 %v8290
        %v8332 = vfloor.f32 %v8291
        %v8333 = vfloor.f32 %v8292
        %v8334 = vfloor.f32 %v8293
        %v8335 = vfloor.f32 %v8294
        %v8336 = vfloor.f32 %v8295
        %v8337 = vfloor.f32 %v8296
        %v8338 = vfloor.f32 %v8297
        %v8339 = vfloor.f32 %v8298
        %v8340 = vfloor.f32 %v8299
        %v8341 = vfloor.f32 %v8300
        %v8342 = vfloor.f32 %v8301
        %v8343 = vfloor.f32 %v8302
        %v8344 = vfloor.f32 %v8303
        %v8345 = vfloor.f32 %v8304
        %v8346 = vmul.f32 %v8305, 18.0
        %v8347 = vmul.f32 %v8306, 18.0
        %v8348 = vmul.f32 %v8307, 18.0
        %v8349 = vmul.f32 %v8308, 18.0
        %v8350 = vmul.f32 %v8309, 18.0
        %v8351 = vmul.f32 %v8310, 18.0
        %v8352 = vmul.f32 %v8311, 18.0
        %v8353 = vmul.f32 %v8312, 18.0
        %v8354 = vmul.f32 %v8313, 18.0
        %v8355 = vmul.f32 %v8314, 18.0
        %v8356 = vmul.f32 %v8315, 18.0
        %v8357 = vmul.f32 %v8316, 18.0
        %v8358 = vmul.f32 %v8317, 18.0
        %v8359 = vmul.f32 %v8318, 18.0
        %v8360 = vmul.f32 %v8319, 18.0
        %v8361 = vmul.f32 %v8320, 18.0
        %v8362 = vmul.f32 %v8321, 18.0
        %v8363 = vmul.f32 %v8322, 18.0
        %v8364 = vmul.f32 %v8323, 18.0
        %v8365 = vmul.f32 %v8324, 18.0
        %v8366 = vmul.f32 %v8325, 18.0
        %v8367 = vmul.f32 %v8326, 18.0
        %v8368 = vmul.f32 %v8327, 18.0
        %v8369 = vmul.f32 %v8328, 18.0
        %v8370 = vmul.f32 %v8329, 18.0
        %v8371 = vmul.f32 %v8330, 18.0
        %v8372 = vmul.f32 %v8331, 18.0
        %v8373 = vmul.f32 %v8332, 18.0
        %v8374 = vmul.f32 %v8333, 18.0
        %v8375 = vmul.f32 %v8334, 18.0
        %v8376 = vmul.f32 %v8335, 18.0
        %v8377 = vmul.f32 %v8336, 18.0
        %v8378 = vmul.f32 %v8337, 18.0
        %v8379 = vmul.f32 %v8338, 18.0
        %v8380 = vmul.f32 %v8339, 18.0
        %v8381 = vmul.f32 %v8340, 18.0
        %v8382 = vmul.f32 %v8341, 18.0
        %v8383 = vmul.f32 %v8342, 18.0
        %v8384 = vmul.f32 %v8343, 18.0
        %v8385 = vmul.f32 %v8344, 18.0
        %v8386 = vmul.f32 %v8345, 18.0
        %v8387 = vsub.f32 %v8182, %v8346
        %v8388 = vsub.f32 %v8183, %v8347
        %v8389 = vsub.f32 %v8184, %v8348
        %v8390 = vsub.f32 %v8185, %v8349
        %v8391 = vsub.f32 %v8186, %v8350
        %v8392 = vsub.f32 %v8187, %v8351
        %v8393 = vsub.f32 %v8188, %v8352
        %v8394 = vsub.f32 %v8189, %v8353
        %v8395 = vsub.f32 %v8190, %v8354
        %v8396 = vsub.f32 %v8191, %v8355
        %v8397 = vsub.f32 %v8192, %v8356
        %v8398 = vsub.f32 %v8193, %v8357
        %v8399 = vsub.f32 %v8194, %v8358
        %v8400 = vsub.f32 %v8195, %v8359
        %v8401 = vsub.f32 %v8196, %v8360
        %v8402 = vsub.f32 %v8197, %v8361
        %v8403 = vsub.f32 %v8198, %v8362
        %v8404 = vsub.f32 %v8199, %v8363
        %v8405 = vsub.f32 %v8200, %v8364
        %v8406 = vsub.f32 %v8201, %v8365
        %v8407 = vsub.f32 %v8202, %v8366
        %v8408 = vsub.f32 %v8203, %v8367
        %v8409 = vsub.f32 %v8204, %v8368
        %v8410 = vsub.f32 %v8205, %v8369
        %v8411 = vsub.f32 %v8206, %v8370
        %v8412 = vsub.f32 %v8207, %v8371
        %v8413 = vsub.f32 %v8208, %v8372
        %v8414 = vsub.f32 %v8209, %v8373
        %v8415 = vsub.f32 %v8210, %v8374
        %v8416 = vsub.f32 %v8211, %v8375
        %v8417 = vsub.f32 %v8212, %v8376
        %v8418 = vsub.f32 %v8213, %v8377
        %v8419 = vsub.f32 %v8214, %v8378
        %v8420 = vsub.f32 %v8215, %v8379
        %v8421 = vsub.f32 %v8216, %v8380
        %v8422 = vsub.f32 %v8217, %v8381
        %v8423 = vsub.f32 %v8218, %v8382
        %v8424 = vsub.f32 %v8219, %v8383
        %v8425 = vsub.f32 %v8220, %v8384
        %v8426 = vsub.f32 %v8221, %v8385
        %v8427 = vsub.f32 %v8222, %v8386
        %vm8428 = vcmp.ge.f32.partialorder %v8305, 1.0
        %vm8429 = vcmp.ge.f32.partialorder %v8306, 1.0
        %vm8430 = vcmp.ge.f32.partialorder %v8307, 1.0
        %vm8431 = vcmp.ge.f32.partialorder %v8308, 1.0
        %vm8432 = vcmp.ge.f32.partialorder %v8309, 1.0
        %vm8433 = vcmp.ge.f32.partialorder %v8310, 1.0
        %vm8434 = vcmp.ge.f32.partialorder %v8311, 1.0
        %vm8435 = vcmp.ge.f32.partialorder %v8312, 1.0
        %vm8436 = vcmp.ge.f32.partialorder %v8313, 1.0
        %vm8437 = vcmp.ge.f32.partialorder %v8314, 1.0
        %vm8438 = vcmp.ge.f32.partialorder %v8315, 1.0
        %vm8439 = vcmp.ge.f32.partialorder %v8316, 1.0
        %vm8440 = vcmp.ge.f32.partialorder %v8317, 1.0
        %vm8441 = vcmp.ge.f32.partialorder %v8318, 1.0
        %vm8442 = vcmp.ge.f32.partialorder %v8319, 1.0
        %vm8443 = vcmp.ge.f32.partialorder %v8320, 1.0
        %vm8444 = vcmp.ge.f32.partialorder %v8321, 1.0
        %vm8445 = vcmp.ge.f32.partialorder %v8322, 1.0
        %vm8446 = vcmp.ge.f32.partialorder %v8323, 1.0
        %vm8447 = vcmp.ge.f32.partialorder %v8324, 1.0
        %vm8448 = vcmp.ge.f32.partialorder %v8325, 1.0
        %vm8449 = vcmp.ge.f32.partialorder %v8326, 1.0
        %vm8450 = vcmp.ge.f32.partialorder %v8327, 1.0
        %vm8451 = vcmp.ge.f32.partialorder %v8328, 1.0
        %vm8452 = vcmp.ge.f32.partialorder %v8329, 1.0
        %vm8453 = vcmp.ge.f32.partialorder %v8330, 1.0
        %vm8454 = vcmp.ge.f32.partialorder %v8331, 1.0
        %vm8455 = vcmp.ge.f32.partialorder %v8332, 1.0
        %vm8456 = vcmp.ge.f32.partialorder %v8333, 1.0
        %vm8457 = vcmp.ge.f32.partialorder %v8334, 1.0
        %vm8458 = vcmp.ge.f32.partialorder %v8335, 1.0
        %vm8459 = vcmp.ge.f32.partialorder %v8336, 1.0
        %vm8460 = vcmp.ge.f32.partialorder %v8337, 1.0
        %vm8461 = vcmp.ge.f32.partialorder %v8338, 1.0
        %vm8462 = vcmp.ge.f32.partialorder %v8339, 1.0
        %vm8463 = vcmp.ge.f32.partialorder %v8340, 1.0
        %vm8464 = vcmp.ge.f32.partialorder %v8341, 1.0
        %vm8465 = vcmp.ge.f32.partialorder %v8342, 1.0
        %vm8466 = vcmp.ge.f32.partialorder %v8343, 1.0
        %vm8467 = vcmp.ge.f32.partialorder %v8344, 1.0
        %vm8468 = vcmp.ge.f32.partialorder %v8345, 1.0
        %vm8469 = vcmp.le.f32.partialorder %v8305, 16.0
        %vm8470 = vcmp.le.f32.partialorder %v8306, 16.0
        %vm8471 = vcmp.le.f32.partialorder %v8307, 16.0
        %vm8472 = vcmp.le.f32.partialorder %v8308, 16.0
        %vm8473 = vcmp.le.f32.partialorder %v8309, 16.0
        %vm8474 = vcmp.le.f32.partialorder %v8310, 16.0
        %vm8475 = vcmp.le.f32.partialorder %v8311, 16.0
        %vm8476 = vcmp.le.f32.partialorder %v8312, 16.0
        %vm8477 = vcmp.le.f32.partialorder %v8313, 16.0
        %vm8478 = vcmp.le.f32.partialorder %v8314, 16.0
        %vm8479 = vcmp.le.f32.partialorder %v8315, 16.0
        %vm8480 = vcmp.le.f32.partialorder %v8316, 16.0
        %vm8481 = vcmp.le.f32.partialorder %v8317, 16.0
        %vm8482 = vcmp.le.f32.partialorder %v8318, 16.0
        %vm8483 = vcmp.le.f32.partialorder %v8319, 16.0
        %vm8484 = vcmp.le.f32.partialorder %v8320, 16.0
        %vm8485 = vcmp.le.f32.partialorder %v8321, 16.0
        %vm8486 = vcmp.le.f32.partialorder %v8322, 16.0
        %vm8487 = vcmp.le.f32.partialorder %v8323, 16.0
        %vm8488 = vcmp.le.f32.partialorder %v8324, 16.0
        %vm8489 = vcmp.le.f32.partialorder %v8325, 16.0
        %vm8490 = vcmp.le.f32.partialorder %v8326, 16.0
        %vm8491 = vcmp.le.f32.partialorder %v8327, 16.0
        %vm8492 = vcmp.le.f32.partialorder %v8328, 16.0
        %vm8493 = vcmp.le.f32.partialorder %v8329, 16.0
        %vm8494 = vcmp.le.f32.partialorder %v8330, 16.0
        %vm8495 = vcmp.le.f32.partialorder %v8331, 16.0
        %vm8496 = vcmp.le.f32.partialorder %v8332, 16.0
        %vm8497 = vcmp.le.f32.partialorder %v8333, 16.0
        %vm8498 = vcmp.le.f32.partialorder %v8334, 16.0
        %vm8499 = vcmp.le.f32.partialorder %v8335, 16.0
        %vm8500 = vcmp.le.f32.partialorder %v8336, 16.0
        %vm8501 = vcmp.le.f32.partialorder %v8337, 16.0
        %vm8502 = vcmp.le.f32.partialorder %v8338, 16.0
        %vm8503 = vcmp.le.f32.partialorder %v8339, 16.0
        %vm8504 = vcmp.le.f32.partialorder %v8340, 16.0
        %vm8505 = vcmp.le.f32.partialorder %v8341, 16.0
        %vm8506 = vcmp.le.f32.partialorder %v8342, 16.0
        %vm8507 = vcmp.le.f32.partialorder %v8343, 16.0
        %vm8508 = vcmp.le.f32.partialorder %v8344, 16.0
        %vm8509 = vcmp.le.f32.partialorder %v8345, 16.0
        %vm8510 = vmand %vm8428, %vm8469
        %vm8511 = vmand %vm8429, %vm8470
        %vm8512 = vmand %vm8430, %vm8471
        %vm8513 = vmand %vm8431, %vm8472
        %vm8514 = vmand %vm8432, %vm8473
        %vm8515 = vmand %vm8433, %vm8474
        %vm8516 = vmand %vm8434, %vm8475
        %vm8517 = vmand %vm8435, %vm8476
        %vm8518 = vmand %vm8436, %vm8477
        %vm8519 = vmand %vm8437, %vm8478
        %vm8520 = vmand %vm8438, %vm8479
        %vm8521 = vmand %vm8439, %vm8480
        %vm8522 = vmand %vm8440, %vm8481
        %vm8523 = vmand %vm8441, %vm8482
        %vm8524 = vmand %vm8442, %vm8483
        %vm8525 = vmand %vm8443, %vm8484
        %vm8526 = vmand %vm8444, %vm8485
        %vm8527 = vmand %vm8445, %vm8486
        %vm8528 = vmand %vm8446, %vm8487
        %vm8529 = vmand %vm8447, %vm8488
        %vm8530 = vmand %vm8448, %vm8489
        %vm8531 = vmand %vm8449, %vm8490
        %vm8532 = vmand %vm8450, %vm8491
        %vm8533 = vmand %vm8451, %vm8492
        %vm8534 = vmand %vm8452, %vm8493
        %vm8535 = vmand %vm8453, %vm8494
        %vm8536 = vmand %vm8454, %vm8495
        %vm8537 = vmand %vm8455, %vm8496
        %vm8538 = vmand %vm8456, %vm8497
        %vm8539 = vmand %vm8457, %vm8498
        %vm8540 = vmand %vm8458, %vm8499
        %vm8541 = vmand %vm8459, %vm8500
        %vm8542 = vmand %vm8460, %vm8501
        %vm8543 = vmand %vm8461, %vm8502
        %vm8544 = vmand %vm8462, %vm8503
        %vm8545 = vmand %vm8463, %vm8504
        %vm8546 = vmand %vm8464, %vm8505
        %vm8547 = vmand %vm8465, %vm8506
        %vm8548 = vmand %vm8466, %vm8507
        %vm8549 = vmand %vm8467, %vm8508
        %vm8550 = vmand %vm8468, %vm8509
        %vm8551 = vcmp.ge.f32.partialorder %v8387, 1.0
        %vm8552 = vcmp.ge.f32.partialorder %v8388, 1.0
        %vm8553 = vcmp.ge.f32.partialorder %v8389, 1.0
        %vm8554 = vcmp.ge.f32.partialorder %v8390, 1.0
        %vm8555 = vcmp.ge.f32.partialorder %v8391, 1.0
        %vm8556 = vcmp.ge.f32.partialorder %v8392, 1.0
        %vm8557 = vcmp.ge.f32.partialorder %v8393, 1.0
        %vm8558 = vcmp.ge.f32.partialorder %v8394, 1.0
        %vm8559 = vcmp.ge.f32.partialorder %v8395, 1.0
        %vm8560 = vcmp.ge.f32.partialorder %v8396, 1.0
        %vm8561 = vcmp.ge.f32.partialorder %v8397, 1.0
        %vm8562 = vcmp.ge.f32.partialorder %v8398, 1.0
        %vm8563 = vcmp.ge.f32.partialorder %v8399, 1.0
        %vm8564 = vcmp.ge.f32.partialorder %v8400, 1.0
        %vm8565 = vcmp.ge.f32.partialorder %v8401, 1.0
        %vm8566 = vcmp.ge.f32.partialorder %v8402, 1.0
        %vm8567 = vcmp.ge.f32.partialorder %v8403, 1.0
        %vm8568 = vcmp.ge.f32.partialorder %v8404, 1.0
        %vm8569 = vcmp.ge.f32.partialorder %v8405, 1.0
        %vm8570 = vcmp.ge.f32.partialorder %v8406, 1.0
        %vm8571 = vcmp.ge.f32.partialorder %v8407, 1.0
        %vm8572 = vcmp.ge.f32.partialorder %v8408, 1.0
        %vm8573 = vcmp.ge.f32.partialorder %v8409, 1.0
        %vm8574 = vcmp.ge.f32.partialorder %v8410, 1.0
        %vm8575 = vcmp.ge.f32.partialorder %v8411, 1.0
        %vm8576 = vcmp.ge.f32.partialorder %v8412, 1.0
        %vm8577 = vcmp.ge.f32.partialorder %v8413, 1.0
        %vm8578 = vcmp.ge.f32.partialorder %v8414, 1.0
        %vm8579 = vcmp.ge.f32.partialorder %v8415, 1.0
        %vm8580 = vcmp.ge.f32.partialorder %v8416, 1.0
        %vm8581 = vcmp.ge.f32.partialorder %v8417, 1.0
        %vm8582 = vcmp.ge.f32.partialorder %v8418, 1.0
        %vm8583 = vcmp.ge.f32.partialorder %v8419, 1.0
        %vm8584 = vcmp.ge.f32.partialorder %v8420, 1.0
        %vm8585 = vcmp.ge.f32.partialorder %v8421, 1.0
        %vm8586 = vcmp.ge.f32.partialorder %v8422, 1.0
        %vm8587 = vcmp.ge.f32.partialorder %v8423, 1.0
        %vm8588 = vcmp.ge.f32.partialorder %v8424, 1.0
        %vm8589 = vcmp.ge.f32.partialorder %v8425, 1.0
        %vm8590 = vcmp.ge.f32.partialorder %v8426, 1.0
        %vm8591 = vcmp.ge.f32.partialorder %v8427, 1.0
        %vm8592 = vmand %vm8510, %vm8551
        %vm8593 = vmand %vm8511, %vm8552
        %vm8594 = vmand %vm8512, %vm8553
        %vm8595 = vmand %vm8513, %vm8554
        %vm8596 = vmand %vm8514, %vm8555
        %vm8597 = vmand %vm8515, %vm8556
        %vm8598 = vmand %vm8516, %vm8557
        %vm8599 = vmand %vm8517, %vm8558
        %vm8600 = vmand %vm8518, %vm8559
        %vm8601 = vmand %vm8519, %vm8560
        %vm8602 = vmand %vm8520, %vm8561
        %vm8603 = vmand %vm8521, %vm8562
        %vm8604 = vmand %vm8522, %vm8563
        %vm8605 = vmand %vm8523, %vm8564
        %vm8606 = vmand %vm8524, %vm8565
        %vm8607 = vmand %vm8525, %vm8566
        %vm8608 = vmand %vm8526, %vm8567
        %vm8609 = vmand %vm8527, %vm8568
        %vm8610 = vmand %vm8528, %vm8569
        %vm8611 = vmand %vm8529, %vm8570
        %vm8612 = vmand %vm8530, %vm8571
        %vm8613 = vmand %vm8531, %vm8572
        %vm8614 = vmand %vm8532, %vm8573
        %vm8615 = vmand %vm8533, %vm8574
        %vm8616 = vmand %vm8534, %vm8575
        %vm8617 = vmand %vm8535, %vm8576
        %vm8618 = vmand %vm8536, %vm8577
        %vm8619 = vmand %vm8537, %vm8578
        %vm8620 = vmand %vm8538, %vm8579
        %vm8621 = vmand %vm8539, %vm8580
        %vm8622 = vmand %vm8540, %vm8581
        %vm8623 = vmand %vm8541, %vm8582
        %vm8624 = vmand %vm8542, %vm8583
        %vm8625 = vmand %vm8543, %vm8584
        %vm8626 = vmand %vm8544, %vm8585
        %vm8627 = vmand %vm8545, %vm8586
        %vm8628 = vmand %vm8546, %vm8587
        %vm8629 = vmand %vm8547, %vm8588
        %vm8630 = vmand %vm8548, %vm8589
        %vm8631 = vmand %vm8549, %vm8590
        %vm8632 = vmand %vm8550, %vm8591
        %vm8633 = vcmp.le.f32.partialorder %v8387, 16.0
        %vm8634 = vcmp.le.f32.partialorder %v8388, 16.0
        %vm8635 = vcmp.le.f32.partialorder %v8389, 16.0
        %vm8636 = vcmp.le.f32.partialorder %v8390, 16.0
        %vm8637 = vcmp.le.f32.partialorder %v8391, 16.0
        %vm8638 = vcmp.le.f32.partialorder %v8392, 16.0
        %vm8639 = vcmp.le.f32.partialorder %v8393, 16.0
        %vm8640 = vcmp.le.f32.partialorder %v8394, 16.0
        %vm8641 = vcmp.le.f32.partialorder %v8395, 16.0
        %vm8642 = vcmp.le.f32.partialorder %v8396, 16.0
        %vm8643 = vcmp.le.f32.partialorder %v8397, 16.0
        %vm8644 = vcmp.le.f32.partialorder %v8398, 16.0
        %vm8645 = vcmp.le.f32.partialorder %v8399, 16.0
        %vm8646 = vcmp.le.f32.partialorder %v8400, 16.0
        %vm8647 = vcmp.le.f32.partialorder %v8401, 16.0
        %vm8648 = vcmp.le.f32.partialorder %v8402, 16.0
        %vm8649 = vcmp.le.f32.partialorder %v8403, 16.0
        %vm8650 = vcmp.le.f32.partialorder %v8404, 16.0
        %vm8651 = vcmp.le.f32.partialorder %v8405, 16.0
        %vm8652 = vcmp.le.f32.partialorder %v8406, 16.0
        %vm8653 = vcmp.le.f32.partialorder %v8407, 16.0
        %vm8654 = vcmp.le.f32.partialorder %v8408, 16.0
        %vm8655 = vcmp.le.f32.partialorder %v8409, 16.0
        %vm8656 = vcmp.le.f32.partialorder %v8410, 16.0
        %vm8657 = vcmp.le.f32.partialorder %v8411, 16.0
        %vm8658 = vcmp.le.f32.partialorder %v8412, 16.0
        %vm8659 = vcmp.le.f32.partialorder %v8413, 16.0
        %vm8660 = vcmp.le.f32.partialorder %v8414, 16.0
        %vm8661 = vcmp.le.f32.partialorder %v8415, 16.0
        %vm8662 = vcmp.le.f32.partialorder %v8416, 16.0
        %vm8663 = vcmp.le.f32.partialorder %v8417, 16.0
        %vm8664 = vcmp.le.f32.partialorder %v8418, 16.0
        %vm8665 = vcmp.le.f32.partialorder %v8419, 16.0
        %vm8666 = vcmp.le.f32.partialorder %v8420, 16.0
        %vm8667 = vcmp.le.f32.partialorder %v8421, 16.0
        %vm8668 = vcmp.le.f32.partialorder %v8422, 16.0
        %vm8669 = vcmp.le.f32.partialorder %v8423, 16.0
        %vm8670 = vcmp.le.f32.partialorder %v8424, 16.0
        %vm8671 = vcmp.le.f32.partialorder %v8425, 16.0
        %vm8672 = vcmp.le.f32.partialorder %v8426, 16.0
        %vm8673 = vcmp.le.f32.partialorder %v8427, 16.0
        %vm8674 = vmand %vm8592, %vm8633
        %vm8675 = vmand %vm8593, %vm8634
        %vm8676 = vmand %vm8594, %vm8635
        %vm8677 = vmand %vm8595, %vm8636
        %vm8678 = vmand %vm8596, %vm8637
        %vm8679 = vmand %vm8597, %vm8638
        %vm8680 = vmand %vm8598, %vm8639
        %vm8681 = vmand %vm8599, %vm8640
        %vm8682 = vmand %vm8600, %vm8641
        %vm8683 = vmand %vm8601, %vm8642
        %vm8684 = vmand %vm8602, %vm8643
        %vm8685 = vmand %vm8603, %vm8644
        %vm8686 = vmand %vm8604, %vm8645
        %vm8687 = vmand %vm8605, %vm8646
        %vm8688 = vmand %vm8606, %vm8647
        %vm8689 = vmand %vm8607, %vm8648
        %vm8690 = vmand %vm8608, %vm8649
        %vm8691 = vmand %vm8609, %vm8650
        %vm8692 = vmand %vm8610, %vm8651
        %vm8693 = vmand %vm8611, %vm8652
        %vm8694 = vmand %vm8612, %vm8653
        %vm8695 = vmand %vm8613, %vm8654
        %vm8696 = vmand %vm8614, %vm8655
        %vm8697 = vmand %vm8615, %vm8656
        %vm8698 = vmand %vm8616, %vm8657
        %vm8699 = vmand %vm8617, %vm8658
        %vm8700 = vmand %vm8618, %vm8659
        %vm8701 = vmand %vm8619, %vm8660
        %vm8702 = vmand %vm8620, %vm8661
        %vm8703 = vmand %vm8621, %vm8662
        %vm8704 = vmand %vm8622, %vm8663
        %vm8705 = vmand %vm8623, %vm8664
        %vm8706 = vmand %vm8624, %vm8665
        %vm8707 = vmand %vm8625, %vm8666
        %vm8708 = vmand %vm8626, %vm8667
        %vm8709 = vmand %vm8627, %vm8668
        %vm8710 = vmand %vm8628, %vm8669
        %vm8711 = vmand %vm8629, %vm8670
        %vm8712 = vmand %vm8630, %vm8671
        %vm8713 = vmand %vm8631, %vm8672
        %vm8714 = vmand %vm8632, %vm8673
        %v8715 = vsel %vm8674, 1, 0
        %v8716 = vsel %vm8675, 1, 0
        %v8717 = vsel %vm8676, 1, 0
        %v8718 = vsel %vm8677, 1, 0
        %v8719 = vsel %vm8678, 1, 0
        %v8720 = vsel %vm8679, 1, 0
        %v8721 = vsel %vm8680, 1, 0
        %v8722 = vsel %vm8681, 1, 0
        %v8723 = vsel %vm8682, 1, 0
        %v8724 = vsel %vm8683, 1, 0
        %v8725 = vsel %vm8684, 1, 0
        %v8726 = vsel %vm8685, 1, 0
        %v8727 = vsel %vm8686, 1, 0
        %v8728 = vsel %vm8687, 1, 0
        %v8729 = vsel %vm8688, 1, 0
        %v8730 = vsel %vm8689, 1, 0
        %v8731 = vsel %vm8690, 1, 0
        %v8732 = vsel %vm8691, 1, 0
        %v8733 = vsel %vm8692, 1, 0
        %v8734 = vsel %vm8693, 1, 0
        %v8735 = vsel %vm8694, 1, 0
        %v8736 = vsel %vm8695, 1, 0
        %v8737 = vsel %vm8696, 1, 0
        %v8738 = vsel %vm8697, 1, 0
        %v8739 = vsel %vm8698, 1, 0
        %v8740 = vsel %vm8699, 1, 0
        %v8741 = vsel %vm8700, 1, 0
        %v8742 = vsel %vm8701, 1, 0
        %v8743 = vsel %vm8702, 1, 0
        %v8744 = vsel %vm8703, 1, 0
        %v8745 = vsel %vm8704, 1, 0
        %v8746 = vsel %vm8705, 1, 0
        %v8747 = vsel %vm8706, 1, 0
        %v8748 = vsel %vm8707, 1, 0
        %v8749 = vsel %vm8708, 1, 0
        %v8750 = vsel %vm8709, 1, 0
        %v8751 = vsel %vm8710, 1, 0
        %v8752 = vsel %vm8711, 1, 0
        %v8753 = vsel %vm8712, 1, 0
        %v8754 = vsel %vm8713, 1, 0
        %v8755 = vsel %vm8714, 1, 0
        %v8756 = vcvt.s32.f32 %v8715
        %v8757 = vcvt.s32.f32 %v8716
        %v8758 = vcvt.s32.f32 %v8717
        %v8759 = vcvt.s32.f32 %v8718
        %v8760 = vcvt.s32.f32 %v8719
        %v8761 = vcvt.s32.f32 %v8720
        %v8762 = vcvt.s32.f32 %v8721
        %v8763 = vcvt.s32.f32 %v8722
        %v8764 = vcvt.s32.f32 %v8723
        %v8765 = vcvt.s32.f32 %v8724
        %v8766 = vcvt.s32.f32 %v8725
        %v8767 = vcvt.s32.f32 %v8726
        %v8768 = vcvt.s32.f32 %v8727
        %v8769 = vcvt.s32.f32 %v8728
        %v8770 = vcvt.s32.f32 %v8729
        %v8771 = vcvt.s32.f32 %v8730
        %v8772 = vcvt.s32.f32 %v8731
        %v8773 = vcvt.s32.f32 %v8732
        %v8774 = vcvt.s32.f32 %v8733
        %v8775 = vcvt.s32.f32 %v8734
        %v8776 = vcvt.s32.f32 %v8735
        %v8777 = vcvt.s32.f32 %v8736
        %v8778 = vcvt.s32.f32 %v8737
        %v8779 = vcvt.s32.f32 %v8738
        %v8780 = vcvt.s32.f32 %v8739
        %v8781 = vcvt.s32.f32 %v8740
        %v8782 = vcvt.s32.f32 %v8741
        %v8783 = vcvt.s32.f32 %v8742
        %v8784 = vcvt.s32.f32 %v8743
        %v8785 = vcvt.s32.f32 %v8744
        %v8786 = vcvt.s32.f32 %v8745
        %v8787 = vcvt.s32.f32 %v8746
        %v8788 = vcvt.s32.f32 %v8747
        %v8789 = vcvt.s32.f32 %v8748
        %v8790 = vcvt.s32.f32 %v8749
        %v8791 = vcvt.s32.f32 %v8750
        %v8792 = vcvt.s32.f32 %v8751
        %v8793 = vcvt.s32.f32 %v8752
        %v8794 = vcvt.s32.f32 %v8753
        %v8795 = vcvt.s32.f32 %v8754
        %v8796 = vcvt.s32.f32 %v8755
        %v8797 = vmul.f32 %v6938, %v8756
        %v8798 = vmul.f32 %v7955, %v8756
        %v8799 = vmul.f32 %v6940, %v8757
        %v8800 = vmul.f32 %v7957, %v8757
        %v8801 = vmul.f32 %v6943, %v8758
        %v8802 = vmul.f32 %v7960, %v8758
        %v8803 = vmul.f32 %v6945, %v8759
        %v8804 = vmul.f32 %v7962, %v8759
        %v8805 = vmul.f32 %v6948, %v8760
        %v8806 = vmul.f32 %v7965, %v8760
        %v8807 = vmul.f32 %v6950, %v8761
        %v8808 = vmul.f32 %v7967, %v8761
        %v8809 = vmul.f32 %v6953, %v8762
        %v8810 = vmul.f32 %v7970, %v8762
        %v8811 = vmul.f32 %v6955, %v8763
        %v8812 = vmul.f32 %v7972, %v8763
        %v8813 = vmul.f32 %v6958, %v8764
        %v8814 = vmul.f32 %v7975, %v8764
        %v8815 = vmul.f32 %v6960, %v8765
        %v8816 = vmul.f32 %v7977, %v8765
        %v8817 = vmul.f32 %v6963, %v8766
        %v8818 = vmul.f32 %v7980, %v8766
        %v8819 = vmul.f32 %v6965, %v8767
        %v8820 = vmul.f32 %v7982, %v8767
        %v8821 = vmul.f32 %v6968, %v8768
        %v8822 = vmul.f32 %v7985, %v8768
        %v8823 = vmul.f32 %v6970, %v8769
        %v8824 = vmul.f32 %v7987, %v8769
        %v8825 = vmul.f32 %v6973, %v8770
        %v8826 = vmul.f32 %v7990, %v8770
        %v8827 = vmul.f32 %v6975, %v8771
        %v8828 = vmul.f32 %v7992, %v8771
        %v8829 = vmul.f32 %v6978, %v8772
        %v8830 = vmul.f32 %v7995, %v8772
        %v8831 = vmul.f32 %v6980, %v8773
        %v8832 = vmul.f32 %v7997, %v8773
        %v8833 = vmul.f32 %v6983, %v8774
        %v8834 = vmul.f32 %v8000, %v8774
        %v8835 = vmul.f32 %v6985, %v8775
        %v8836 = vmul.f32 %v8002, %v8775
        %v8837 = vmul.f32 %v6988, %v8776
        %v8838 = vmul.f32 %v8005, %v8776
        %v8839 = vmul.f32 %v6990, %v8777
        %v8840 = vmul.f32 %v8007, %v8777
        %v8841 = vmul.f32 %v6993, %v8778
        %v8842 = vmul.f32 %v8010, %v8778
        %v8843 = vmul.f32 %v6995, %v8779
        %v8844 = vmul.f32 %v8012, %v8779
        %v8845 = vmul.f32 %v6998, %v8780
        %v8846 = vmul.f32 %v8015, %v8780
        %v8847 = vmul.f32 %v7000, %v8781
        %v8848 = vmul.f32 %v8017, %v8781
        %v8849 = vmul.f32 %v7003, %v8782
        %v8850 = vmul.f32 %v8020, %v8782
        %v8851 = vmul.f32 %v7005, %v8783
        %v8852 = vmul.f32 %v8022, %v8783
        %v8853 = vmul.f32 %v7008, %v8784
        %v8854 = vmul.f32 %v8025, %v8784
        %v8855 = vmul.f32 %v7010, %v8785
        %v8856 = vmul.f32 %v8027, %v8785
        %v8857 = vmul.f32 %v7013, %v8786
        %v8858 = vmul.f32 %v8030, %v8786
        %v8859 = vmul.f32 %v7015, %v8787
        %v8860 = vmul.f32 %v8032, %v8787
        %v8861 = vmul.f32 %v7018, %v8788
        %v8862 = vmul.f32 %v8035, %v8788
        %v8863 = vmul.f32 %v7020, %v8789
        %v8864 = vmul.f32 %v8037, %v8789
        %v8865 = vmul.f32 %v7023, %v8790
        %v8866 = vmul.f32 %v8040, %v8790
        %v8867 = vmul.f32 %v7025, %v8791
        %v8868 = vmul.f32 %v8042, %v8791
        %v8869 = vmul.f32 %v7028, %v8792
        %v8870 = vmul.f32 %v8045, %v8792
        %v8871 = vmul.f32 %v7030, %v8793
        %v8872 = vmul.f32 %v8047, %v8793
        %v8873 = vmul.f32 %v7033, %v8794
        %v8874 = vmul.f32 %v8050, %v8794
        %v8875 = vmul.f32 %v7035, %v8795
        %v8876 = vmul.f32 %v8052, %v8795
        %v8877 = vmul.f32 %v7038, %v8796
        %v8878 = vmul.f32 %v8055, %v8796
        %v8879 = vadd.f32 %v8797, %v8799
        %v8880 = vadd.f32 %v8879, %v8801
        %v8881 = vadd.f32 %v8880, %v8803
        %v8882 = vadd.f32 %v8881, %v8805
        %v8883 = vadd.f32 %v8882, %v8807
        %v8884 = vadd.f32 %v8883, %v8809
        %v8885 = vadd.f32 %v8884, %v8811
        %v8886 = vadd.f32 %v8885, %v8813
        %v8887 = vadd.f32 %v8886, %v8815
        %v8888 = vadd.f32 %v8887, %v8817
        %v8889 = vadd.f32 %v8888, %v8819
        %v8890 = vadd.f32 %v8889, %v8821
        %v8891 = vadd.f32 %v8890, %v8823
        %v8892 = vadd.f32 %v8891, %v8825
        %v8893 = vadd.f32 %v8892, %v8827
        %v8894 = vadd.f32 %v8893, %v8829
        %v8895 = vadd.f32 %v8894, %v8831
        %v8896 = vadd.f32 %v8895, %v8833
        %v8897 = vadd.f32 %v8896, %v8835
        %v8898 = vadd.f32 %v8897, %v8837
        %v8899 = vadd.f32 %v8898, %v8839
        %v8900 = vadd.f32 %v8899, %v8841
        %v8901 = vadd.f32 %v8900, %v8843
        %v8902 = vadd.f32 %v8901, %v8845
        %v8903 = vadd.f32 %v8902, %v8847
        %v8904 = vadd.f32 %v8903, %v8849
        %v8905 = vadd.f32 %v8904, %v8851
        %v8906 = vadd.f32 %v8905, %v8853
        %v8907 = vadd.f32 %v8906, %v8855
        %v8908 = vadd.f32 %v8907, %v8857
        %v8909 = vadd.f32 %v8908, %v8859
        %v8910 = vadd.f32 %v8909, %v8861
        %v8911 = vadd.f32 %v8910, %v8863
        %v8912 = vadd.f32 %v8911, %v8865
        %v8913 = vadd.f32 %v8912, %v8867
        %v8914 = vadd.f32 %v8913, %v8869
        %v8915 = vadd.f32 %v8914, %v8871
        %v8916 = vadd.f32 %v8915, %v8873
        %v8917 = vadd.f32 %v8916, %v8875
        %vm8918 = vcmask 1043456
        %v8919 = vsel %vm8918, %v8877, 0.0
        %v8920 = vadd.f32 %v8917, %v8919
        %v8921 = vrot.slane %v8920, 4
        %v8922 = vadd.f32 %v8920, %v8921
        %v8923 = vrot.slane %v8922, 2
        %v8924 = vadd.f32 %v8922, %v8923
        %v8925 = vrot.slane %v8924, 1
        %v8926 = vadd.f32 %v8924, %v8925
        %v8927 = vadd.f32 %v8798, %v8800
        %v8928 = vadd.f32 %v8927, %v8802
        %v8929 = vadd.f32 %v8928, %v8804
        %v8930 = vadd.f32 %v8929, %v8806
        %v8931 = vadd.f32 %v8930, %v8808
        %v8932 = vadd.f32 %v8931, %v8810
        %v8933 = vadd.f32 %v8932, %v8812
        %v8934 = vadd.f32 %v8933, %v8814
        %v8935 = vadd.f32 %v8934, %v8816
        %v8936 = vadd.f32 %v8935, %v8818
        %v8937 = vadd.f32 %v8936, %v8820
        %v8938 = vadd.f32 %v8937, %v8822
        %v8939 = vadd.f32 %v8938, %v8824
        %v8940 = vadd.f32 %v8939, %v8826
        %v8941 = vadd.f32 %v8940, %v8828
        %v8942 = vadd.f32 %v8941, %v8830
        %v8943 = vadd.f32 %v8942, %v8832
        %v8944 = vadd.f32 %v8943, %v8834
        %v8945 = vadd.f32 %v8944, %v8836
        %v8946 = vadd.f32 %v8945, %v8838
        %v8947 = vadd.f32 %v8946, %v8840
        %v8948 = vadd.f32 %v8947, %v8842
        %v8949 = vadd.f32 %v8948, %v8844
        %v8950 = vadd.f32 %v8949, %v8846
        %v8951 = vadd.f32 %v8950, %v8848
        %v8952 = vadd.f32 %v8951, %v8850
        %v8953 = vadd.f32 %v8952, %v8852
        %v8954 = vadd.f32 %v8953, %v8854
        %v8955 = vadd.f32 %v8954, %v8856
        %v8956 = vadd.f32 %v8955, %v8858
        %v8957 = vadd.f32 %v8956, %v8860
        %v8958 = vadd.f32 %v8957, %v8862
        %v8959 = vadd.f32 %v8958, %v8864
        %v8960 = vadd.f32 %v8959, %v8866
        %v8961 = vadd.f32 %v8960, %v8868
        %v8962 = vadd.f32 %v8961, %v8870
        %v8963 = vadd.f32 %v8962, %v8872
        %v8964 = vadd.f32 %v8963, %v8874
        %v8965 = vadd.f32 %v8964, %v8876
        %v8966 = vsel %vm8918, %v8878, 0.0
        %v8967 = vadd.f32 %v8965, %v8966
        %v8968 = vrot.slane %v8967, 4
        %v8969 = vadd.f32 %v8967, %v8968
        %v8970 = vrot.slane %v8969, 2
        %v8971 = vadd.f32 %v8969, %v8970
        %v8972 = vrot.slane %v8971, 1
        %v8973 = vadd.f32 %v8971, %v8972
        %v8974 = vmul.f32 %v8797, %v6938
        %v8975 = vmul.f32 %v8798, %v7955
        %v8976 = vmul.f32 %v8799, %v6940
        %v8977 = vmul.f32 %v8800, %v7957
        %v8978 = vmul.f32 %v8801, %v6943
        %v8979 = vmul.f32 %v8802, %v7960
        %v8980 = vmul.f32 %v8803, %v6945
        %v8981 = vmul.f32 %v8804, %v7962
        %v8982 = vmul.f32 %v8805, %v6948
        %v8983 = vmul.f32 %v8806, %v7965
        %v8984 = vmul.f32 %v8807, %v6950
        %v8985 = vmul.f32 %v8808, %v7967
        %v8986 = vmul.f32 %v8809, %v6953
        %v8987 = vmul.f32 %v8810, %v7970
        %v8988 = vmul.f32 %v8811, %v6955
        %v8989 = vmul.f32 %v8812, %v7972
        %v8990 = vmul.f32 %v8813, %v6958
        %v8991 = vmul.f32 %v8814, %v7975
        %v8992 = vmul.f32 %v8815, %v6960
        %v8993 = vmul.f32 %v8816, %v7977
        %v8994 = vmul.f32 %v8817, %v6963
        %v8995 = vmul.f32 %v8818, %v7980
        %v8996 = vmul.f32 %v8819, %v6965
        %v8997 = vmul.f32 %v8820, %v7982
        %v8998 = vmul.f32 %v8821, %v6968
        %v8999 = vmul.f32 %v8822, %v7985
        %v9000 = vmul.f32 %v8823, %v6970
        %v9001 = vmul.f32 %v8824, %v7987
        %v9002 = vmul.f32 %v8825, %v6973
        %v9003 = vmul.f32 %v8826, %v7990
        %v9004 = vmul.f32 %v8827, %v6975
        %v9005 = vmul.f32 %v8828, %v7992
        %v9006 = vmul.f32 %v8829, %v6978
        %v9007 = vmul.f32 %v8830, %v7995
        %v9008 = vmul.f32 %v8831, %v6980
        %v9009 = vmul.f32 %v8832, %v7997
        %v9010 = vmul.f32 %v8833, %v6983
        %v9011 = vmul.f32 %v8834, %v8000
        %v9012 = vmul.f32 %v8835, %v6985
        %v9013 = vmul.f32 %v8836, %v8002
        %v9014 = vmul.f32 %v8837, %v6988
        %v9015 = vmul.f32 %v8838, %v8005
        %v9016 = vmul.f32 %v8839, %v6990
        %v9017 = vmul.f32 %v8840, %v8007
        %v9018 = vmul.f32 %v8841, %v6993
        %v9019 = vmul.f32 %v8842, %v8010
        %v9020 = vmul.f32 %v8843, %v6995
        %v9021 = vmul.f32 %v8844, %v8012
        %v9022 = vmul.f32 %v8845, %v6998
        %v9023 = vmul.f32 %v8846, %v8015
        %v9024 = vmul.f32 %v8847, %v7000
        %v9025 = vmul.f32 %v8848, %v8017
        %v9026 = vmul.f32 %v8849, %v7003
        %v9027 = vmul.f32 %v8850, %v8020
        %v9028 = vmul.f32 %v8851, %v7005
        %v9029 = vmul.f32 %v8852, %v8022
        %v9030 = vmul.f32 %v8853, %v7008
        %v9031 = vmul.f32 %v8854, %v8025
        %v9032 = vmul.f32 %v8855, %v7010
        %v9033 = vmul.f32 %v8856, %v8027
        %v9034 = vmul.f32 %v8857, %v7013
        %v9035 = vmul.f32 %v8858, %v8030
        %v9036 = vmul.f32 %v8859, %v7015
        %v9037 = vmul.f32 %v8860, %v8032
        %v9038 = vmul.f32 %v8861, %v7018
        %v9039 = vmul.f32 %v8862, %v8035
        %v9040 = vmul.f32 %v8863, %v7020
        %v9041 = vmul.f32 %v8864, %v8037
        %v9042 = vmul.f32 %v8865, %v7023
        %v9043 = vmul.f32 %v8866, %v8040
        %v9044 = vmul.f32 %v8867, %v7025
        %v9045 = vmul.f32 %v8868, %v8042
        %v9046 = vmul.f32 %v8869, %v7028
        %v9047 = vmul.f32 %v8870, %v8045
        %v9048 = vmul.f32 %v8871, %v7030
        %v9049 = vmul.f32 %v8872, %v8047
        %v9050 = vmul.f32 %v8873, %v7033
        %v9051 = vmul.f32 %v8874, %v8050
        %v9052 = vmul.f32 %v8875, %v7035
        %v9053 = vmul.f32 %v8876, %v8052
        %v9054 = vmul.f32 %v8877, %v7038
        %v9055 = vmul.f32 %v8878, %v8055
        %v9056 = vadd.f32 %v8974, %v8976
        %v9057 = vadd.f32 %v9056, %v8978
        %v9058 = vadd.f32 %v9057, %v8980
        %v9059 = vadd.f32 %v9058, %v8982
        %v9060 = vadd.f32 %v9059, %v8984
        %v9061 = vadd.f32 %v9060, %v8986
        %v9062 = vadd.f32 %v9061, %v8988
        %v9063 = vadd.f32 %v9062, %v8990
        %v9064 = vadd.f32 %v9063, %v8992
        %v9065 = vadd.f32 %v9064, %v8994
        %v9066 = vadd.f32 %v9065, %v8996
        %v9067 = vadd.f32 %v9066, %v8998
        %v9068 = vadd.f32 %v9067, %v9000
        %v9069 = vadd.f32 %v9068, %v9002
        %v9070 = vadd.f32 %v9069, %v9004
        %v9071 = vadd.f32 %v9070, %v9006
        %v9072 = vadd.f32 %v9071, %v9008
        %v9073 = vadd.f32 %v9072, %v9010
        %v9074 = vadd.f32 %v9073, %v9012
        %v9075 = vadd.f32 %v9074, %v9014
        %v9076 = vadd.f32 %v9075, %v9016
        %v9077 = vadd.f32 %v9076, %v9018
        %v9078 = vadd.f32 %v9077, %v9020
        %v9079 = vadd.f32 %v9078, %v9022
        %v9080 = vadd.f32 %v9079, %v9024
        %v9081 = vadd.f32 %v9080, %v9026
        %v9082 = vadd.f32 %v9081, %v9028
        %v9083 = vadd.f32 %v9082, %v9030
        %v9084 = vadd.f32 %v9083, %v9032
        %v9085 = vadd.f32 %v9084, %v9034
        %v9086 = vadd.f32 %v9085, %v9036
        %v9087 = vadd.f32 %v9086, %v9038
        %v9088 = vadd.f32 %v9087, %v9040
        %v9089 = vadd.f32 %v9088, %v9042
        %v9090 = vadd.f32 %v9089, %v9044
        %v9091 = vadd.f32 %v9090, %v9046
        %v9092 = vadd.f32 %v9091, %v9048
        %v9093 = vadd.f32 %v9092, %v9050
        %v9094 = vadd.f32 %v9093, %v9052
        %v9095 = vsel %vm8918, %v9054, 0.0
        %v9096 = vadd.f32 %v9094, %v9095
        %v9097 = vrot.slane %v9096, 4
        %v9098 = vadd.f32 %v9096, %v9097
        %v9099 = vrot.slane %v9098, 2
        %v9100 = vadd.f32 %v9098, %v9099
        %v9101 = vrot.slane %v9100, 1
        %v9102 = vadd.f32 %v9100, %v9101
        %v9103 = vadd.f32 %v8975, %v8977
        %v9104 = vadd.f32 %v9103, %v8979
        %v9105 = vadd.f32 %v9104, %v8981
        %v9106 = vadd.f32 %v9105, %v8983
        %v9107 = vadd.f32 %v9106, %v8985
        %v9108 = vadd.f32 %v9107, %v8987
        %v9109 = vadd.f32 %v9108, %v8989
        %v9110 = vadd.f32 %v9109, %v8991
        %v9111 = vadd.f32 %v9110, %v8993
        %v9112 = vadd.f32 %v9111, %v8995
        %v9113 = vadd.f32 %v9112, %v8997
        %v9114 = vadd.f32 %v9113, %v8999
        %v9115 = vadd.f32 %v9114, %v9001
        %v9116 = vadd.f32 %v9115, %v9003
        %v9117 = vadd.f32 %v9116, %v9005
        %v9118 = vadd.f32 %v9117, %v9007
        %v9119 = vadd.f32 %v9118, %v9009
        %v9120 = vadd.f32 %v9119, %v9011
        %v9121 = vadd.f32 %v9120, %v9013
        %v9122 = vadd.f32 %v9121, %v9015
        %v9123 = vadd.f32 %v9122, %v9017
        %v9124 = vadd.f32 %v9123, %v9019
        %v9125 = vadd.f32 %v9124, %v9021
        %v9126 = vadd.f32 %v9125, %v9023
        %v9127 = vadd.f32 %v9126, %v9025
        %v9128 = vadd.f32 %v9127, %v9027
        %v9129 = vadd.f32 %v9128, %v9029
        %v9130 = vadd.f32 %v9129, %v9031
        %v9131 = vadd.f32 %v9130, %v9033
        %v9132 = vadd.f32 %v9131, %v9035
        %v9133 = vadd.f32 %v9132, %v9037
        %v9134 = vadd.f32 %v9133, %v9039
        %v9135 = vadd.f32 %v9134, %v9041
        %v9136 = vadd.f32 %v9135, %v9043
        %v9137 = vadd.f32 %v9136, %v9045
        %v9138 = vadd.f32 %v9137, %v9047
        %v9139 = vadd.f32 %v9138, %v9049
        %v9140 = vadd.f32 %v9139, %v9051
        %v9141 = vadd.f32 %v9140, %v9053
        %v9142 = vsel %vm8918, %v9055, 0.0
        %v9143 = vadd.f32 %v9141, %v9142
        %v9144 = vrot.slane %v9143, 4
        %v9145 = vadd.f32 %v9143, %v9144
        %v9146 = vrot.slane %v9145, 2
        %v9147 = vadd.f32 %v9145, %v9146
        %v9148 = vrot.slane %v9147, 1
        %v9149 = vadd.f32 %v9147, %v9148
        %vm9150 = vcmask 1040384
        %v9151 = vsel %vm9150, %v8926, %v9102
        %v9152 = vsel %vm9150, %v8973, %v9149
        %vm9153 = vcmask 1041408
        %v9154 = vsel %vm9153, %v9151, 0.0
        %v9155 = vsel %vm9153, %v9152, 0.0
        %9156 = vst [vmem:[%s188] sm:$0xff] %v9154
        %9157 = vst [vmem:[%s188 + $0x8] sm:$0xff] %v9155
        %p9158 = scmp.lt.s32.totalorder %s19, 1
        %s9159 = scalar_select %p9158, %s19, 1
        %s9160 = smul.addr %s9159, 82
        %s9161 = smul.addr %s9160, 8
        %s9162 = scalar_lea.vmem %s2, %s9161
        %s9163 = sand.u32 %s100, 1
        %s9164 = scalar_lea.sflag [#allocation5], %s9163
        %s9165 = sand.u32 %s100, 1
        %s9166 = smul.addr %s9165, 16
        %s9167 = scalar_lea.vmem [#allocation6], %s9166
        // Predicated region
        $region33: #{tpu_custom_call.1} parent=27 // pred_check
          %p9168 = pneg %p84
        $region34: #{tpu_custom_call.1} parent=27 // pred_check_branch
          %9170 = sbr.rel (%p9168) target = $region36
        $region35: #{tpu_custom_call.1} parent=27 // pred_region
          _
        $region36: #{tpu_custom_call.1} parent=27 // pred_fallthru
          _
        // Predicated region
        $region37: #{tpu_custom_call.1} parent=27 // pred_check
          %p9171 = pneg %p110
        $region38: #{tpu_custom_call.1} parent=27 // pred_check_branch
          %9173 = sbr.rel (%p9171) target = $region40
        $region39: #{tpu_custom_call.1} parent=27 // pred_region
          %9175 = vsyncadd %s9164, 0
          %s9176 = smul.addr %s19, 2
          %s9177 = smul.addr %s9176, 8
          %s9178 = scalar_lea.hbm %s3, %s9177
          %s9180 = sshll.u32 %s9167, 4
          %s9181 = int_to_ptr.vmem [resolvable:$true] %s9180
          %s9182 = sshll.u32 %s9178, 4
          %s9183 = int_to_ptr.hbm [resolvable:$true] %s9182
          %9185 = dma.vmem_to_hbm [thread:$0]  %s9181, 256, %s9183, %s9164
        $region40: #{tpu_custom_call.1} parent=27 // pred_fallthru
          _
      $region28: #{tpu_custom_call.1} parent=5 // pred_fallthru
        _
      %p9186 = scmp.le.s32.totalorder 2, %s14
      // Predicated region
      $region41: #{tpu_custom_call.1} parent=5 // pred_check
        %p9187 = pneg %p9186
      $region42: #{tpu_custom_call.1} parent=5 // pred_check_branch
        %9189 = sbr.rel (%p9187) target = $region44
      $region43: #{tpu_custom_call.1} parent=5 // pred_region
        %s9190 = ssub.s32 %s14, 2
        // Predicated region
        $region45: #{tpu_custom_call.1} parent=43 // pred_check
          %p9191 = pneg %p90
        $region46: #{tpu_custom_call.1} parent=43 // pred_check_branch
          %9193 = sbr.rel (%p9191) target = $region48
        $region47: #{tpu_custom_call.1} parent=43 // pred_region
          %p9194 = scmp.lt.s32.totalorder %s20, 1
          %s9195 = scalar_select %p9194, %s20, 1
          %s9196 = smul.addr %s9195, 82
          %s9197 = smul.addr %s9196, 8
          %s9198 = scalar_lea.vmem %s2, %s9197
        $region48: #{tpu_custom_call.1} parent=43 // pred_fallthru
          _
        // Predicated region
        $region49: #{tpu_custom_call.1} parent=43 // pred_check
          %p9199 = pneg %p116
        $region50: #{tpu_custom_call.1} parent=43 // pred_check_branch
          %9201 = sbr.rel (%p9199) target = $region52
        $region51: #{tpu_custom_call.1} parent=43 // pred_region
          %s9202 = sand.u32 %s101, 1
          %s9203 = scalar_lea.sflag [#allocation5], %s9202
          %s9204 = sand.u32 %s101, 1
          %s9205 = smul.addr %s9204, 16
          %s9206 = scalar_lea.vmem [#allocation6], %s9205
          %9208 = dma.done %s9203, 256
        $region52: #{tpu_custom_call.1} parent=43 // pred_fallthru
          _
      $region44: #{tpu_custom_call.1} parent=5 // pred_fallthru
        _
    $region6: #{tpu_custom_call.1} parent=1 // loop_footer
      %s18 = sadd.s32 1, %s14
    $region7: #{tpu_custom_call.1} parent=1 // loop_footer_branch
      %13 = sbr.rel target = $region3
    $region8: #{tpu_custom_call.1} parent=1 // loop_exit
      _
    %9209 = vsyncpa [#allocation4], 1
    %s9210 = scalar_lea.sflag [#allocation4], 1
    %9211 = vsyncpa %s9210, 1
    %9212 = vsyncpa [#allocation5], 1
    %s9213 = scalar_lea.sflag [#allocation5], 1
    %9214 = vsyncpa %s9213, 1

</llo_original>
